<compile_context>
chip_gen: v7x
topology: tpu7x:2x2x1
jax: 0.10.0
libtpu: 0.0.40
codegen_flags: <defaults>
</compile_context>

<pallas_src>
import functools

import jax
import jax.numpy as jnp
from jax.experimental import pallas as pl
from jax.experimental.pallas import tpu as pltpu

_VMEM_LIMIT = 32 * 1024 * 1024   # safe on v5e/v6e (128 MiB) and v7x (64 MiB physical)
_SMEM_SPEC = pl.BlockSpec(memory_space=pltpu.MemorySpace.SMEM)


def _round_up(x, m):
    return ((x + m - 1) // m) * m


def _elu(y):
    # ELU(alpha=1): y if y > 0 else exp(y) - 1   (exp clamped on the dead branch)
    return jnp.where(y > 0, y, jnp.exp(jnp.minimum(y, 0.0)) - 1.0)


# ----------------------------------------------------------------------------
# Row-tiled linear (+ fused activation)
# ----------------------------------------------------------------------------

def _linear_kernel(x_ref, w_ref, b_ref, o_ref, *, activation):
    y = jnp.dot(x_ref[...], w_ref[...], preferred_element_type=jnp.float32) + b_ref[...]
    if activation == "elu":
        y = _elu(y)
    elif activation == "tanh":
        y = jnp.tanh(y)
    o_ref[...] = y.astype(o_ref.dtype)


def linear_pallas(x, w, b=None, activation=None, tm=512):
    """y = act(x @ w + b); x: (M, K), w: (K, N).  Tiled over rows of M."""
    M, K = x.shape
    N = w.shape[1]
    if b is None:
        b = jnp.zeros((N,), jnp.float32)
    tm = min(tm, _round_up(M, 8))
    Mp = _round_up(M, tm)
    xp = jnp.pad(x, ((0, Mp - M), (0, 0))) if Mp != M else x
    out = pl.pallas_call(
        functools.partial(_linear_kernel, activation=activation),
        out_shape=jax.ShapeDtypeStruct((Mp, N), jnp.float32),
        grid=(Mp // tm,),
        in_specs=[pl.BlockSpec((tm, K), lambda i: (i, 0)),
                  pl.BlockSpec((K, N), lambda i: (0, 0)),
                  pl.BlockSpec((1, N), lambda i: (0, 0))],
        out_specs=pl.BlockSpec((tm, N), lambda i: (i, 0)),
        compiler_params=pltpu.CompilerParams(
            dimension_semantics=("parallel",),
            vmem_limit_bytes=_VMEM_LIMIT),
    )(xp, w, b.reshape(1, N))
    return out[:M] if Mp != M else out


def mlp_apply(layers, x2d, final_activation=None):
    n = len(layers)
    h = x2d
    for i, (w, b) in enumerate(layers):
        act = "elu" if i < n - 1 else final_activation
        h = linear_pallas(h, w, b, activation=act)
    return h


# ----------------------------------------------------------------------------
# Fused multi-channel DenseGCNConv (X@W hoisted out, one kernel for all channels)
# ----------------------------------------------------------------------------

def _gcn_kernel(xw_ref, a_ref, b_ref, o_ref, *, C, Fout):
    xw = xw_ref[0]                                                  # (N, C*Fout)
    N = a_ref.shape[2]
    row = jax.lax.broadcasted_iota(jnp.int32, (N, N), 0)
    col = jax.lax.broadcasted_iota(jnp.int32, (N, N), 1)
    eye = (row == col).astype(jnp.float32)
    outs = []
    for c in range(C):                                              # C is 2-3: unrolled
        a = a_ref[0, c] * (1.0 - eye) + eye                         # adj[:, i, i] = 1
        deg = jnp.sum(a, axis=-1, keepdims=True)                    # (N, 1)
        dinv = jax.lax.rsqrt(jnp.maximum(deg, 1.0))                 # deg.clamp(1)^-0.5
        xw_c = xw[:, c * Fout:(c + 1) * Fout]
        # D^{-1/2} A D^{-1/2} @ XW  ==  dinv * (A @ (dinv * XW))
        outs.append(dinv * jnp.dot(a, dinv * xw_c, preferred_element_type=jnp.float32))
    o_ref[0] = (jnp.concatenate(outs, axis=-1) + b_ref[...]).astype(o_ref.dtype)


def gcn_propagate_pallas(xw, adj, b_all):
    """xw: (B, N, C*Fout) = X @ [W_0 | ... | W_{C-1}]; adj: (B, C, N, N); b_all: (C*Fout,)."""
    B, C, N, _ = adj.shape
    CF = xw.shape[-1]
    Fout = CF // C
    return pl.pallas_call(
        functools.partial(_gcn_kernel, C=C, Fout=Fout),
        out_shape=jax.ShapeDtypeStruct((B, N, CF), jnp.float32),
        grid=(B,),
        in_specs=[pl.BlockSpec((1, N, CF), lambda b: (b, 0, 0)),
                  pl.BlockSpec((1, C, N, N), lambda b: (b, 0, 0, 0)),
                  pl.BlockSpec((1, CF), lambda b: (0, 0))],
        out_specs=pl.BlockSpec((1, N, CF), lambda b: (b, 0, 0)),
        compiler_params=pltpu.CompilerParams(
            dimension_semantics=("parallel",),
            vmem_limit_bytes=_VMEM_LIMIT),
    )(xw, adj, b_all.reshape(1, CF))


# ----------------------------------------------------------------------------
# Batched matmul for pow_tensor
# ----------------------------------------------------------------------------

def _bmm_kernel(a_ref, b_ref, o_ref):
    o_ref[0] = jnp.dot(a_ref[0], b_ref[0],
                       preferred_element_type=jnp.float32).astype(o_ref.dtype)


def bmm_pallas(a, b):
    B, N, _ = a.shape
    return pl.pallas_call(
        _bmm_kernel,
        out_shape=jax.ShapeDtypeStruct((B, N, N), jnp.float32),
        grid=(B,),
        in_specs=[pl.BlockSpec((1, N, N), lambda i: (i, 0, 0)),
                  pl.BlockSpec((1, N, N), lambda i: (i, 0, 0))],
        out_specs=pl.BlockSpec((1, N, N), lambda i: (i, 0, 0)),
        compiler_params=pltpu.CompilerParams(
            dimension_semantics=("parallel",),
            vmem_limit_bytes=_VMEM_LIMIT),
    )(a, b)


# ----------------------------------------------------------------------------
# Tiny-width per-pair MLPs on lane-dense (TI, N) slabs (edge MLP + final MLP)
# ----------------------------------------------------------------------------

def _slab_tail(slabs, wrefs, dims, out_ref):
    """Layers 2..L of a tiny-width MLP as scalar-weighted sums of lane-dense (TI, N) slabs."""
    L = len(dims)
    if L > 1:
        slabs = [_elu(s) for s in slabs]
    for l in range(1, L):
        w, b = wrefs[2 * l], wrefs[2 * l + 1]                       # SMEM: scalar reads
        new = []
        for h in range(dims[l]):
            s = b[h] + w[0, h] * slabs[0]
            for k in range(1, dims[l - 1]):
                s = s + w[k, h] * slabs[k]
            new.append(s)
        slabs = [_elu(s) for s in new] if l < L - 1 else new
    for co in range(dims[-1]):                                      # channels-first output
        out_ref[0, co] = slabs[co].astype(out_ref.dtype)


def _edge_mlp_kernel(xr_ref, xct_ref, adj_ref, *refs, C, dims):
    # refs = (w_adj, b1, w2, b2, ..., out_ref)
    out_ref, wrefs = refs[-1], refs[:-1]
    w_adj, b1 = wrefs[0], wrefs[1]
    slabs = []
    for h in range(dims[0]):
        # layer 1 at pair (i, j): x_i @ W_rows + x_j @ W_cols + adj[:, i, j] @ W_adj + b1
        s = xr_ref[0, :, h:h + 1] + xct_ref[0, h:h + 1, :] + b1[h]   # (TI,1)+(1,N)+scalar
        for c in range(C):
            s = s + w_adj[c, h] * adj_ref[0, c]
        slabs.append(s)
    _slab_tail(slabs, wrefs, dims, out_ref)


def _chan_mlp_kernel(adj_ref, *refs, C, dims):
    out_ref, wrefs = refs[-1], refs[:-1]
    w1, b1 = wrefs[0], wrefs[1]
    slabs = []
    for h in range(dims[0]):
        s = b1[h] + w1[0, h] * adj_ref[0, 0]
        for c in range(1, C):
            s = s + w1[c, h] * adj_ref[0, c]
        slabs.append(s)
    _slab_tail(slabs, wrefs, dims, out_ref)


def edge_mlp_pallas(x_out, adj, layers):
    """Edge MLP of BaselineNetworkLayer without materializing node_feature_to_matrix.
    Returns the MLP output already channels-first: (B, C_out, N, N)."""
    B, C, N, _ = adj.shape
    F = x_out.shape[-1]
    w1, b1 = layers[0]
    d1 = w1.shape[1]
    w_rows, w_cols, w_adj = w1[:F], w1[F:2 * F], w1[2 * F:]
    # per-node part of layer 1 — computed once per node instead of once per node pair
    xrc = linear_pallas(x_out.reshape(B * N, F), jnp.concatenate([w_rows, w_cols], axis=1))
    xr = xrc[:, :d1].reshape(B, N, d1)                              # broadcast over j
    xct = jnp.swapaxes(xrc[:, d1:].reshape(B, N, d1), 1, 2)         # (B, d1, N), broadcast over i
    tail = layers[1:]
    dims = tuple([d1] + [w.shape[1] for (w, _) in tail])
    c_out = dims[-1]
    ti = N if N <= 128 else 128
    in_specs = [pl.BlockSpec((1, ti, d1), lambda b, it: (b, it, 0)),
                pl.BlockSpec((1, d1, N), lambda b, it: (b, 0, 0)),
                pl.BlockSpec((1, C, ti, N), lambda b, it: (b, 0, it, 0)),
                _SMEM_SPEC, _SMEM_SPEC]
    args = [xr, xct, adj, w_adj, b1]
    for (w, bb) in tail:
        in_specs += [_SMEM_SPEC, _SMEM_SPEC]
        args += [w, bb]
    return pl.pallas_call(
        functools.partial(_edge_mlp_kernel, C=C, dims=dims),
        out_shape=jax.ShapeDtypeStruct((B, c_out, N, N), jnp.float32),
        grid=(B, pl.cdiv(N, ti)),
        in_specs=in_specs,
        out_specs=pl.BlockSpec((1, c_out, ti, N), lambda b, it: (b, 0, it, 0)),
        compiler_params=pltpu.CompilerParams(
            dimension_semantics=("parallel", "parallel"),
            vmem_limit_bytes=_VMEM_LIMIT),
    )(*args)


def channel_mlp_pallas(adj, layers):
    """Pointwise-over-channels MLP on a channels-first (B, C, N, N) tensor.
    == MLP(adj.permute(0,2,3,1).reshape(-1,C)).reshape(B,N,N,Cout).permute(0,3,1,2)."""
    B, C, N, _ = adj.shape
    w1, b1 = layers[0]
    tail = layers[1:]
    dims = tuple([w1.shape[1]] + [w.shape[1] for (w, _) in tail])
    c_out = dims[-1]
    ti = N if N <= 128 else 128
    in_specs = [pl.BlockSpec((1, C, ti, N), lambda b, it: (b, 0, it, 0)),
                _SMEM_SPEC, _SMEM_SPEC]
    args = [adj, w1, b1]
    for (w, bb) in tail:
        in_specs += [_SMEM_SPEC, _SMEM_SPEC]
        args += [w, bb]
    return pl.pallas_call(
        functools.partial(_chan_mlp_kernel, C=C, dims=dims),
        out_shape=jax.ShapeDtypeStruct((B, c_out, N, N), jnp.float32),
        grid=(B, pl.cdiv(N, ti)),
        in_specs=in_specs,
        out_specs=pl.BlockSpec((1, c_out, ti, N), lambda b, it: (b, 0, it, 0)),
        compiler_params=pltpu.CompilerParams(
            dimension_semantics=("parallel", "parallel"),
            vmem_limit_bytes=_VMEM_LIMIT),
    )(*args)


# ----------------------------------------------------------------------------
# Plain-JAX glue (mirrors GDSS utils.graph_utils)
# ----------------------------------------------------------------------------

def mask_x(x, flags):
    if flags is None:
        flags = jnp.ones((x.shape[0], x.shape[1]), x.dtype)
    return x * flags[:, :, None]


def mask_adjs(adjs, flags):
    if flags is None:
        flags = jnp.ones((adjs.shape[0], adjs.shape[-1]), adjs.dtype)
    f = flags[:, None, :] if adjs.ndim == 4 else flags
    adjs = adjs * f[..., None]
    adjs = adjs * f[..., None, :]
    return adjs


def pow_tensor(x, cnum):
    xc = [x]
    x_ = x
    for _ in range(cnum - 1):
        x_ = bmm_pallas(x_, x)
        xc.append(x_)
    return jnp.stack(xc, axis=1)   # (B, cnum, N, N)


# ----------------------------------------------------------------------------
# Deterministic parameter initialization (shapes match the PyTorch __init__)
# ----------------------------------------------------------------------------

def init_linear(key, din, dout):
    kw, kb = jax.random.split(key)
    w = jax.random.normal(kw, (din, dout), jnp.float32) * (1.0 / jnp.sqrt(float(din)))
    b = jax.random.normal(kb, (dout,), jnp.float32) * 0.01
    return (w, b)


def init_mlp(key, num_layers, din, dhid, dout):
    if num_layers == 1:
        return [init_linear(key, din, dout)]
    keys = jax.random.split(key, num_layers)
    layers = [init_linear(keys[0], din, dhid)]
    for i in range(num_layers - 2):
        layers.append(init_linear(keys[i + 1], dhid, dhid))
    layers.append(init_linear(keys[-1], dhid, dout))
    return layers


def init_baseline_layer(key, num_linears, conv_in, conv_out, input_dim, output_dim):
    hidden_dim = max(input_dim, output_dim)
    keys = jax.random.split(key, input_dim + 2)
    convs = [init_linear(keys[c], conv_in, conv_out) for c in range(input_dim)]
    multi_channel = init_mlp(keys[input_dim], 2, input_dim * conv_out, hidden_dim, conv_out)
    mlp = init_mlp(keys[input_dim + 1], num_linears, input_dim + 2 * conv_out,
                   hidden_dim, output_dim)
    return dict(convs=convs, multi_channel=multi_channel, mlp=mlp)


def init_baseline_network(key, nfeat, nhid, num_layers, num_linears,
                          c_init, c_hid, c_final):
    keys = jax.random.split(key, num_layers + 1)
    layers = []
    for l in range(num_layers):
        if l == 0:
            layers.append(init_baseline_layer(keys[l], num_linears, nfeat, nhid, c_init, c_hid))
        elif l == num_layers - 1:
            layers.append(init_baseline_layer(keys[l], num_linears, nhid, nhid, c_hid, c_final))
        else:
            layers.append(init_baseline_layer(keys[l], num_linears, nhid, nhid, c_hid, c_hid))
    fdim = c_hid * (num_layers - 1) + c_final + c_init
    final = init_mlp(keys[-1], 3, fdim, 2 * fdim, 1)
    return dict(layers=layers, final=final)


# ----------------------------------------------------------------------------
# Forward pass (mirrors BaselineNetworkLayer.forward / BaselineNetwork.forward)
# ----------------------------------------------------------------------------

def baseline_layer_forward(params, x, adj, flags):
    B, C, N, _ = adj.shape
    Fin = x.shape[-1]
    convs = params["convs"]
    Fout = convs[0][0].shape[1]
    # fused multi-channel DenseGCNConv (X@W hoisted, channel-stacked weights)
    w_all = jnp.concatenate([w for (w, _) in convs], axis=1)       # (Fin, C*Fout)
    b_all = jnp.concatenate([b for (_, b) in convs], axis=0)       # (C*Fout,)
    xw = linear_pallas(x.reshape(B * N, Fin), w_all)
    xcat = gcn_propagate_pallas(xw.reshape(B, N, C * Fout), adj, b_all)   # == torch.cat(x_list,-1)
    # multi_channel MLP with tanh fused into its last linear
    h = mlp_apply(params["multi_channel"], xcat.reshape(B * N, C * Fout),
                  final_activation="tanh")
    x_out = mask_x(h.reshape(B, N, Fout), flags)   # tanh(mask*h) == mask*tanh(h) for 0/1 flags
    # edge MLP — no node_feature_to_matrix materialization, channels-first output
    _adj = edge_mlp_pallas(x_out, adj, params["mlp"])              # (B, C_out, N, N)
    _adj = _adj + jnp.swapaxes(_adj, -1, -2)
    adj_out = mask_adjs(_adj, flags)
    return x_out, adj_out


def baseline_network_forward(params, x, adj, flags, c_init):
    adjc = pow_tensor(adj, c_init)                                 # (B, c_init, N, N)
    adj_list = [adjc]
    for lp in params["layers"]:
        x, adjc = baseline_layer_forward(lp, x, adjc, flags)
        adj_list.append(adjc)
    adjs = jnp.concatenate(adj_list, axis=1)                       # channels-first (B, fdim, N, N)
    score = channel_mlp_pallas(adjs, params["final"])[:, 0]        # (B, N, N)
    N = score.shape[-1]
    score = score * (1.0 - jnp.eye(N, dtype=score.dtype))[None]
    score = mask_adjs(score, flags)
    return score


# ----------------------------------------------------------------------------
# Driver
# ----------------------------------------------------------------------------

if __name__ == "__main__":
    # Small hyperparameters consistent with the module's constructor.
    B, N = 2, 8
    nfeat, nhid = 4, 8
    num_layers, num_linears = 2, 2
    c_init, c_hid, c_final = 2, 3, 2

    key = jax.random.PRNGKey(0)
    kparams, kx, ka = jax.random.split(key, 3)

    params = init_baseline_network(kparams, nfeat, nhid, num_layers, num_linears,
                                   c_init, c_hid, c_final)

    x = jax.random.normal(kx, (B, N, nfeat), jnp.float32)
    u = jax.random.uniform(ka, (B, N, N), jnp.float32)
    adj = (jnp.maximum(u, jnp.swapaxes(u, -1, -2)) > 0.5).astype(jnp.float32)
    adj = adj * (1.0 - jnp.eye(N, dtype=jnp.float32))               # symmetric, no self-loops
    flags = jnp.ones((B, N), jnp.float32).at[1, N - 2:].set(0.0)    # mask out 2 nodes in batch 1
    x = mask_x(x, flags)
    adj = mask_adjs(adj, flags)

    fwd = jax.jit(baseline_network_forward, static_argnames=("c_init",))
    score = fwd(params, x, adj, flags, c_init=c_init)
    jax.block_until_ready(score)
    assert score.shape == (B, N, N)
    assert bool(jnp.all(jnp.isfinite(score)))
    print("KERNEL_OK")
</pallas_src>

<mosaic_0001>
module attributes {stable_mosaic.version = 11 : i64} {
  func.func @_bmm_kernel(%arg0: i32, %arg1: memref<1x8x8xf32, #tpu.memory_space<vmem>>, %arg2: memref<1x8x8xf32, #tpu.memory_space<vmem>>, %arg3: memref<1x8x8xf32, #tpu.memory_space<vmem>>) attributes {dimension_semantics = [#tpu.dimension_semantics<parallel>], iteration_bounds = array<i64: 2>, scalar_prefetch = 0 : i64, scratch_operands = 0 : i64, tpu.core_type = #tpu.core_type<tc>, window_params = [{transform_indices = @transform_0, window_bounds = array<i64: 1, 8, 8>}, {transform_indices = @transform_1, window_bounds = array<i64: 1, 8, 8>}, {transform_indices = @transform_2, window_bounds = array<i64: 1, 8, 8>}]} {
    %c0 = arith.constant 0 : index
    %c0_0 = arith.constant 0 : index
    %c0_1 = arith.constant 0 : index
    %0 = vector.load %arg1[%c0, %c0_0, %c0_1] : memref<1x8x8xf32, #tpu.memory_space<vmem>>, vector<1x8x8xf32>
    %1 = vector.shape_cast %0 : vector<1x8x8xf32> to vector<8x8xf32>
    %c0_2 = arith.constant 0 : index
    %c0_3 = arith.constant 0 : index
    %c0_4 = arith.constant 0 : index
    %2 = vector.load %arg2[%c0_2, %c0_3, %c0_4] : memref<1x8x8xf32, #tpu.memory_space<vmem>>, vector<1x8x8xf32>
    %3 = vector.shape_cast %2 : vector<1x8x8xf32> to vector<8x8xf32>
    %cst = arith.constant dense<0.000000e+00> : vector<8x8xf32>
    %4 = tpu.matmul %1, %3, %cst {dimension_numbers = #tpu.dot_dimension_numbers<[1], [0], [0], [1], [0, 0, 1, 1], [], []>} : vector<8x8xf32>, vector<8x8xf32>, vector<8x8xf32> -> vector<8x8xf32>
    %c0_5 = arith.constant 0 : index
    %c0_6 = arith.constant 0 : index
    %c0_7 = arith.constant 0 : index
    %5 = vector.load %arg3[%c0_5, %c0_6, %c0_7] : memref<1x8x8xf32, #tpu.memory_space<vmem>>, vector<1x8x8xf32>
    %6 = vector.shape_cast %5 : vector<1x8x8xf32> to vector<8x8xf32>
    %7 = vector.shape_cast %4 : vector<8x8xf32> to vector<1x8x8xf32>
    tpu.vector_store %arg3[%c0_5, %c0_6, %c0_7], %7 {strides = array<i32>} : memref<1x8x8xf32, #tpu.memory_space<vmem>>, vector<1x8x8xf32>,
    return
  }
  func.func @transform_0(%arg0: i32) -> (i32, i32, i32) {
    %c0_i32 = arith.constant 0 : i32
    %c0_i32_0 = arith.constant 0 : i32
    %c0_i32_1 = arith.constant 0 : i32
    return %arg0, %c0_i32, %c0_i32_0 : i32, i32, i32
  }
  func.func @transform_1(%arg0: i32) -> (i32, i32, i32) {
    %c0_i32 = arith.constant 0 : i32
    %c0_i32_0 = arith.constant 0 : i32
    %c0_i32_1 = arith.constant 0 : i32
    return %arg0, %c0_i32, %c0_i32_0 : i32, i32, i32
  }
  func.func @transform_2(%arg0: i32) -> (i32, i32, i32) {
    %c0_i32 = arith.constant 0 : i32
    %c0_i32_0 = arith.constant 0 : i32
    %c0_i32_1 = arith.constant 0 : i32
    return %arg0, %c0_i32, %c0_i32_0 : i32, i32, i32
  }
}

module attributes {stable_mosaic.version = 11 : i64} {
  func.func @_linear_kernel(%arg0: i32, %arg1: memref<16x4xf32, #tpu.memory_space<vmem>>, %arg2: memref<4x16xf32, #tpu.memory_space<vmem>>, %arg3: memref<1x16xf32, #tpu.memory_space<vmem>>, %arg4: memref<16x16xf32, #tpu.memory_space<vmem>>) attributes {dimension_semantics = [#tpu.dimension_semantics<parallel>], iteration_bounds = array<i64: 1>, scalar_prefetch = 0 : i64, scratch_operands = 0 : i64, tpu.core_type = #tpu.core_type<tc>, window_params = [{transform_indices = @transform_0, window_bounds = array<i64: 16, 4>}, {pipeline_mode = #tpu.pipeline_mode<synchronous>, transform_indices = @transform_1, window_bounds = array<i64: 4, 16>}, {pipeline_mode = #tpu.pipeline_mode<synchronous>, transform_indices = @transform_2, window_bounds = array<i64: 1, 16>}, {transform_indices = @transform_3, window_bounds = array<i64: 16, 16>}]} {
    %c0 = arith.constant 0 : index
    %c0_0 = arith.constant 0 : index
    %0 = vector.load %arg1[%c0, %c0_0] : memref<16x4xf32, #tpu.memory_space<vmem>>, vector<16x4xf32>
    %c0_1 = arith.constant 0 : index
    %c0_2 = arith.constant 0 : index
    %1 = vector.load %arg2[%c0_1, %c0_2] : memref<4x16xf32, #tpu.memory_space<vmem>>, vector<4x16xf32>
    %cst = arith.constant dense<0.000000e+00> : vector<16x16xf32>
    %2 = tpu.matmul %0, %1, %cst {dimension_numbers = #tpu.dot_dimension_numbers<[1], [0], [0], [1], [0, 0, 1, 1], [], []>} : vector<16x4xf32>, vector<4x16xf32>, vector<16x16xf32> -> vector<16x16xf32>
    %c0_3 = arith.constant 0 : index
    %c0_4 = arith.constant 0 : index
    %3 = vector.load %arg3[%c0_3, %c0_4] : memref<1x16xf32, #tpu.memory_space<vmem>>, vector<1x16xf32>
    %4 = vector.broadcast %3 : vector<1x16xf32> to vector<16x16xf32>
    %5 = arith.addf %2, %4 : vector<16x16xf32>
    %c0_5 = arith.constant 0 : index
    %c0_6 = arith.constant 0 : index
    %6 = vector.load %arg4[%c0_5, %c0_6] : memref<16x16xf32, #tpu.memory_space<vmem>>, vector<16x16xf32>
    tpu.vector_store %arg4[%c0_5, %c0_6], %5 {strides = array<i32>} : memref<16x16xf32, #tpu.memory_space<vmem>>, vector<16x16xf32>,
    return
  }
  func.func @transform_0(%arg0: i32) -> (i32, i32) {
    %c0_i32 = arith.constant 0 : i32
    %c0_i32_0 = arith.constant 0 : i32
    return %arg0, %c0_i32 : i32, i32
  }
  func.func @transform_1(%arg0: i32) -> (i32, i32) {
    %c0_i32 = arith.constant 0 : i32
    %c0_i32_0 = arith.constant 0 : i32
    %c0_i32_1 = arith.constant 0 : i32
    return %c0_i32, %c0_i32_0 : i32, i32
  }
  func.func @transform_2(%arg0: i32) -> (i32, i32) {
    %c0_i32 = arith.constant 0 : i32
    %c0_i32_0 = arith.constant 0 : i32
    %c0_i32_1 = arith.constant 0 : i32
    return %c0_i32, %c0_i32_0 : i32, i32
  }
  func.func @transform_3(%arg0: i32) -> (i32, i32) {
    %c0_i32 = arith.constant 0 : i32
    %c0_i32_0 = arith.constant 0 : i32
    return %arg0, %c0_i32 : i32, i32
  }
}

module attributes {stable_mosaic.version = 11 : i64} {
  func.func @_gcn_kernel(%arg0: i32, %arg1: memref<1x8x16xf32, #tpu.memory_space<vmem>>, %arg2: memref<1x2x8x8xf32, #tpu.memory_space<vmem>>, %arg3: memref<1x16xf32, #tpu.memory_space<vmem>>, %arg4: memref<1x8x16xf32, #tpu.memory_space<vmem>>) attributes {dimension_semantics = [#tpu.dimension_semantics<parallel>], iteration_bounds = array<i64: 2>, scalar_prefetch = 0 : i64, scratch_operands = 0 : i64, tpu.core_type = #tpu.core_type<tc>, window_params = [{transform_indices = @transform_0, window_bounds = array<i64: 1, 8, 16>}, {transform_indices = @transform_1, window_bounds = array<i64: 1, 2, 8, 8>}, {pipeline_mode = #tpu.pipeline_mode<synchronous>, transform_indices = @transform_2, window_bounds = array<i64: 1, 16>}, {transform_indices = @transform_3, window_bounds = array<i64: 1, 8, 16>}]} {
    %c0 = arith.constant 0 : index
    %c0_0 = arith.constant 0 : index
    %c0_1 = arith.constant 0 : index
    %0 = vector.load %arg1[%c0, %c0_0, %c0_1] : memref<1x8x16xf32, #tpu.memory_space<vmem>>, vector<1x8x16xf32>
    %1 = vector.shape_cast %0 : vector<1x8x16xf32> to vector<8x16xf32>
    %2 = tpu.iota {dimensions = array<i32: 0>} : vector<8x8xi32>
    %3 = tpu.iota {dimensions = array<i32: 1>} : vector<8x8xi32>
    %4 = arith.cmpi eq, %2, %3 : vector<8x8xi32>
    %5 = arith.extui %4 : vector<8x8xi1> to vector<8x8xi32>
    %6 = arith.sitofp %5 : vector<8x8xi32> to vector<8x8xf32>
    %c0_2 = arith.constant 0 : index
    %c0_3 = arith.constant 0 : index
    %c0_4 = arith.constant 0 : index
    %c0_5 = arith.constant 0 : index
    %7 = vector.load %arg2[%c0_2, %c0_3, %c0_4, %c0_5] : memref<1x2x8x8xf32, #tpu.memory_space<vmem>>, vector<1x1x8x8xf32>
    %8 = vector.shape_cast %7 : vector<1x1x8x8xf32> to vector<8x8xf32>
    %cst = arith.constant 1.000000e+00 : f32
    %9 = vector.broadcast %cst : f32 to vector<8x8xf32>
    %10 = arith.subf %9, %6 : vector<8x8xf32>
    %11 = arith.mulf %8, %10 : vector<8x8xf32>
    %12 = arith.addf %11, %6 : vector<8x8xf32>
    %cst_6 = arith.constant dense<0.000000e+00> : vector<8xf32>
    %13 = vector.multi_reduction <add>, %12, %cst_6 [1] : vector<8x8xf32> to vector<8xf32>
    %14 = vector.shape_cast %13 : vector<8xf32> to vector<8x1xf32>
    %cst_7 = arith.constant 1.000000e+00 : f32
    %15 = vector.broadcast %cst_7 : f32 to vector<8x1xf32>
    %16 = arith.maximumf %14, %15 : vector<8x1xf32>
    %17 = math.rsqrt %16 : vector<8x1xf32>
    %18 = vector.extract_strided_slice %1 {offsets = [0, 0], sizes = [8, 8], strides = [1, 1]} : vector<8x16xf32> to vector<8x8xf32>
    %19 = vector.broadcast %17 : vector<8x1xf32> to vector<8x8xf32>
    %20 = arith.mulf %19, %18 : vector<8x8xf32>
    %cst_8 = arith.constant dense<0.000000e+00> : vector<8x8xf32>
    %21 = tpu.matmul %12, %20, %cst_8 {dimension_numbers = #tpu.dot_dimension_numbers<[1], [0], [0], [1], [0, 0, 1, 1], [], []>} : vector<8x8xf32>, vector<8x8xf32>, vector<8x8xf32> -> vector<8x8xf32>
    %22 = vector.broadcast %17 : vector<8x1xf32> to vector<8x8xf32>
    %23 = arith.mulf %22, %21 : vector<8x8xf32>
    %c0_9 = arith.constant 0 : index
    %c1 = arith.constant 1 : index
    %c0_10 = arith.constant 0 : index
    %c0_11 = arith.constant 0 : index
    %24 = vector.load %arg2[%c0_9, %c1, %c0_10, %c0_11] : memref<1x2x8x8xf32, #tpu.memory_space<vmem>>, vector<1x1x8x8xf32>
    %25 = vector.shape_cast %24 : vector<1x1x8x8xf32> to vector<8x8xf32>
    %cst_12 = arith.constant 1.000000e+00 : f32
    %26 = vector.broadcast %cst_12 : f32 to vector<8x8xf32>
    %27 = arith.subf %26, %6 : vector<8x8xf32>
    %28 = arith.mulf %25, %27 : vector<8x8xf32>
    %29 = arith.addf %28, %6 : vector<8x8xf32>
    %cst_13 = arith.constant dense<0.000000e+00> : vector<8xf32>
    %30 = vector.multi_reduction <add>, %29, %cst_13 [1] : vector<8x8xf32> to vector<8xf32>
    %31 = vector.shape_cast %30 : vector<8xf32> to vector<8x1xf32>
    %cst_14 = arith.constant 1.000000e+00 : f32
    %32 = vector.broadcast %cst_14 : f32 to vector<8x1xf32>
    %33 = arith.maximumf %31, %32 : vector<8x1xf32>
    %34 = math.rsqrt %33 : vector<8x1xf32>
    %35 = vector.extract_strided_slice %1 {offsets = [0, 8], sizes = [8, 8], strides = [1, 1]} : vector<8x16xf32> to vector<8x8xf32>
    %36 = vector.broadcast %34 : vector<8x1xf32> to vector<8x8xf32>
    %37 = arith.mulf %36, %35 : vector<8x8xf32>
    %cst_15 = arith.constant dense<0.000000e+00> : vector<8x8xf32>
    %38 = tpu.matmul %29, %37, %cst_15 {dimension_numbers = #tpu.dot_dimension_numbers<[1], [0], [0], [1], [0, 0, 1, 1], [], []>} : vector<8x8xf32>, vector<8x8xf32>, vector<8x8xf32> -> vector<8x8xf32>
    %39 = vector.broadcast %34 : vector<8x1xf32> to vector<8x8xf32>
    %40 = arith.mulf %39, %38 : vector<8x8xf32>
    %41 = tpu.concatenate %23, %40 in 1 : vector<8x8xf32>, vector<8x8xf32> -> vector<8x16xf32>
    %c0_16 = arith.constant 0 : index
    %c0_17 = arith.constant 0 : index
    %42 = vector.load %arg3[%c0_16, %c0_17] : memref<1x16xf32, #tpu.memory_space<vmem>>, vector<1x16xf32>
    %43 = vector.broadcast %42 : vector<1x16xf32> to vector<8x16xf32>
    %44 = arith.addf %41, %43 : vector<8x16xf32>
    %c0_18 = arith.constant 0 : index
    %c0_19 = arith.constant 0 : index
    %c0_20 = arith.constant 0 : index
    %45 = vector.load %arg4[%c0_18, %c0_19, %c0_20] : memref<1x8x16xf32, #tpu.memory_space<vmem>>, vector<1x8x16xf32>
    %46 = vector.shape_cast %45 : vector<1x8x16xf32> to vector<8x16xf32>
    %47 = vector.shape_cast %44 : vector<8x16xf32> to vector<1x8x16xf32>
    tpu.vector_store %arg4[%c0_18, %c0_19, %c0_20], %47 {strides = array<i32>} : memref<1x8x16xf32, #tpu.memory_space<vmem>>, vector<1x8x16xf32>,
    return
  }
  func.func @transform_0(%arg0: i32) -> (i32, i32, i32) {
    %c0_i32 = arith.constant 0 : i32
    %c0_i32_0 = arith.constant 0 : i32
    %c0_i32_1 = arith.constant 0 : i32
    return %arg0, %c0_i32, %c0_i32_0 : i32, i32, i32
  }
  func.func @transform_1(%arg0: i32) -> (i32, i32, i32, i32) {
    %c0_i32 = arith.constant 0 : i32
    %c0_i32_0 = arith.constant 0 : i32
    %c0_i32_1 = arith.constant 0 : i32
    %c0_i32_2 = arith.constant 0 : i32
    return %arg0, %c0_i32, %c0_i32_0, %c0_i32_1 : i32, i32, i32, i32
  }
  func.func @transform_2(%arg0: i32) -> (i32, i32) {
    %c0_i32 = arith.constant 0 : i32
    %c0_i32_0 = arith.constant 0 : i32
    %c0_i32_1 = arith.constant 0 : i32
    return %c0_i32, %c0_i32_0 : i32, i32
  }
  func.func @transform_3(%arg0: i32) -> (i32, i32, i32) {
    %c0_i32 = arith.constant 0 : i32
    %c0_i32_0 = arith.constant 0 : i32
    %c0_i32_1 = arith.constant 0 : i32
    return %arg0, %c0_i32, %c0_i32_0 : i32, i32, i32
  }
}

module attributes {stable_mosaic.version = 11 : i64} {
  func.func @_linear_kernel(%arg0: i32, %arg1: memref<16x16xf32, #tpu.memory_space<vmem>>, %arg2: memref<16x3xf32, #tpu.memory_space<vmem>>, %arg3: memref<1x3xf32, #tpu.memory_space<vmem>>, %arg4: memref<16x3xf32, #tpu.memory_space<vmem>>) attributes {dimension_semantics = [#tpu.dimension_semantics<parallel>], iteration_bounds = array<i64: 1>, scalar_prefetch = 0 : i64, scratch_operands = 0 : i64, tpu.core_type = #tpu.core_type<tc>, window_params = [{transform_indices = @transform_0, window_bounds = array<i64: 16, 16>}, {pipeline_mode = #tpu.pipeline_mode<synchronous>, transform_indices = @transform_1, window_bounds = array<i64: 16, 3>}, {pipeline_mode = #tpu.pipeline_mode<synchronous>, transform_indices = @transform_2, window_bounds = array<i64: 1, 3>}, {transform_indices = @transform_3, window_bounds = array<i64: 16, 3>}]} {
    %c0 = arith.constant 0 : index
    %c0_0 = arith.constant 0 : index
    %0 = vector.load %arg1[%c0, %c0_0] : memref<16x16xf32, #tpu.memory_space<vmem>>, vector<16x16xf32>
    %c0_1 = arith.constant 0 : index
    %c0_2 = arith.constant 0 : index
    %1 = vector.load %arg2[%c0_1, %c0_2] : memref<16x3xf32, #tpu.memory_space<vmem>>, vector<16x3xf32>
    %cst = arith.constant dense<0.000000e+00> : vector<16x3xf32>
    %2 = tpu.matmul %0, %1, %cst {dimension_numbers = #tpu.dot_dimension_numbers<[1], [0], [0], [1], [0, 0, 1, 1], [], []>} : vector<16x16xf32>, vector<16x3xf32>, vector<16x3xf32> -> vector<16x3xf32>
    %c0_3 = arith.constant 0 : index
    %c0_4 = arith.constant 0 : index
    %3 = vector.load %arg3[%c0_3, %c0_4] : memref<1x3xf32, #tpu.memory_space<vmem>>, vector<1x3xf32>
    %4 = vector.broadcast %3 : vector<1x3xf32> to vector<16x3xf32>
    %5 = arith.addf %2, %4 : vector<16x3xf32>
    %cst_5 = arith.constant 0.000000e+00 : f32
    %6 = vector.broadcast %cst_5 : f32 to vector<16x3xf32>
    %7 = arith.cmpf ogt, %5, %6 : vector<16x3xf32>
    %cst_6 = arith.constant 0.000000e+00 : f32
    %8 = vector.broadcast %cst_6 : f32 to vector<16x3xf32>
    %9 = arith.minimumf %5, %8 : vector<16x3xf32>
    %10 = math.exp %9 : vector<16x3xf32>
    %cst_7 = arith.constant 1.000000e+00 : f32
    %11 = vector.broadcast %cst_7 : f32 to vector<16x3xf32>
    %12 = arith.subf %10, %11 : vector<16x3xf32>
    %13 = arith.select %7, %5, %12 : vector<16x3xi1>, vector<16x3xf32>
    %c0_8 = arith.constant 0 : index
    %c0_9 = arith.constant 0 : index
    %14 = vector.load %arg4[%c0_8, %c0_9] : memref<16x3xf32, #tpu.memory_space<vmem>>, vector<16x3xf32>
    tpu.vector_store %arg4[%c0_8, %c0_9], %13 {strides = array<i32>} : memref<16x3xf32, #tpu.memory_space<vmem>>, vector<16x3xf32>,
    return
  }
  func.func @transform_0(%arg0: i32) -> (i32, i32) {
    %c0_i32 = arith.constant 0 : i32
    %c0_i32_0 = arith.constant 0 : i32
    return %arg0, %c0_i32 : i32, i32
  }
  func.func @transform_1(%arg0: i32) -> (i32, i32) {
    %c0_i32 = arith.constant 0 : i32
    %c0_i32_0 = arith.constant 0 : i32
    %c0_i32_1 = arith.constant 0 : i32
    return %c0_i32, %c0_i32_0 : i32, i32
  }
  func.func @transform_2(%arg0: i32) -> (i32, i32) {
    %c0_i32 = arith.constant 0 : i32
    %c0_i32_0 = arith.constant 0 : i32
    %c0_i32_1 = arith.constant 0 : i32
    return %c0_i32, %c0_i32_0 : i32, i32
  }
  func.func @transform_3(%arg0: i32) -> (i32, i32) {
    %c0_i32 = arith.constant 0 : i32
    %c0_i32_0 = arith.constant 0 : i32
    return %arg0, %c0_i32 : i32, i32
  }
}

module attributes {stable_mosaic.version = 11 : i64} {
  func.func @_linear_kernel(%arg0: i32, %arg1: memref<16x3xf32, #tpu.memory_space<vmem>>, %arg2: memref<3x8xf32, #tpu.memory_space<vmem>>, %arg3: memref<1x8xf32, #tpu.memory_space<vmem>>, %arg4: memref<16x8xf32, #tpu.memory_space<vmem>>) attributes {dimension_semantics = [#tpu.dimension_semantics<parallel>], iteration_bounds = array<i64: 1>, scalar_prefetch = 0 : i64, scratch_operands = 0 : i64, tpu.core_type = #tpu.core_type<tc>, window_params = [{transform_indices = @transform_0, window_bounds = array<i64: 16, 3>}, {pipeline_mode = #tpu.pipeline_mode<synchronous>, transform_indices = @transform_1, window_bounds = array<i64: 3, 8>}, {pipeline_mode = #tpu.pipeline_mode<synchronous>, transform_indices = @transform_2, window_bounds = array<i64: 1, 8>}, {transform_indices = @transform_3, window_bounds = array<i64: 16, 8>}]} {
    %c0 = arith.constant 0 : index
    %c0_0 = arith.constant 0 : index
    %0 = vector.load %arg1[%c0, %c0_0] : memref<16x3xf32, #tpu.memory_space<vmem>>, vector<16x3xf32>
    %c0_1 = arith.constant 0 : index
    %c0_2 = arith.constant 0 : index
    %1 = vector.load %arg2[%c0_1, %c0_2] : memref<3x8xf32, #tpu.memory_space<vmem>>, vector<3x8xf32>
    %cst = arith.constant dense<0.000000e+00> : vector<16x8xf32>
    %2 = tpu.matmul %0, %1, %cst {dimension_numbers = #tpu.dot_dimension_numbers<[1], [0], [0], [1], [0, 0, 1, 1], [], []>} : vector<16x3xf32>, vector<3x8xf32>, vector<16x8xf32> -> vector<16x8xf32>
    %c0_3 = arith.constant 0 : index
    %c0_4 = arith.constant 0 : index
    %3 = vector.load %arg3[%c0_3, %c0_4] : memref<1x8xf32, #tpu.memory_space<vmem>>, vector<1x8xf32>
    %4 = vector.broadcast %3 : vector<1x8xf32> to vector<16x8xf32>
    %5 = arith.addf %2, %4 : vector<16x8xf32>
    %6 = math.tanh %5 : vector<16x8xf32>
    %c0_5 = arith.constant 0 : index
    %c0_6 = arith.constant 0 : index
    %7 = vector.load %arg4[%c0_5, %c0_6] : memref<16x8xf32, #tpu.memory_space<vmem>>, vector<16x8xf32>
    tpu.vector_store %arg4[%c0_5, %c0_6], %6 {strides = array<i32>} : memref<16x8xf32, #tpu.memory_space<vmem>>, vector<16x8xf32>,
    return
  }
  func.func @transform_0(%arg0: i32) -> (i32, i32) {
    %c0_i32 = arith.constant 0 : i32
    %c0_i32_0 = arith.constant 0 : i32
    return %arg0, %c0_i32 : i32, i32
  }
  func.func @transform_1(%arg0: i32) -> (i32, i32) {
    %c0_i32 = arith.constant 0 : i32
    %c0_i32_0 = arith.constant 0 : i32
    %c0_i32_1 = arith.constant 0 : i32
    return %c0_i32, %c0_i32_0 : i32, i32
  }
  func.func @transform_2(%arg0: i32) -> (i32, i32) {
    %c0_i32 = arith.constant 0 : i32
    %c0_i32_0 = arith.constant 0 : i32
    %c0_i32_1 = arith.constant 0 : i32
    return %c0_i32, %c0_i32_0 : i32, i32
  }
  func.func @transform_3(%arg0: i32) -> (i32, i32) {
    %c0_i32 = arith.constant 0 : i32
    %c0_i32_0 = arith.constant 0 : i32
    return %arg0, %c0_i32 : i32, i32
  }
}

module attributes {stable_mosaic.version = 11 : i64} {
  func.func @_linear_kernel(%arg0: i32, %arg1: memref<16x8xf32, #tpu.memory_space<vmem>>, %arg2: memref<8x6xf32, #tpu.memory_space<vmem>>, %arg3: memref<1x6xf32, #tpu.memory_space<vmem>>, %arg4: memref<16x6xf32, #tpu.memory_space<vmem>>) attributes {dimension_semantics = [#tpu.dimension_semantics<parallel>], iteration_bounds = array<i64: 1>, scalar_prefetch = 0 : i64, scratch_operands = 0 : i64, tpu.core_type = #tpu.core_type<tc>, window_params = [{transform_indices = @transform_0, window_bounds = array<i64: 16, 8>}, {pipeline_mode = #tpu.pipeline_mode<synchronous>, transform_indices = @transform_1, window_bounds = array<i64: 8, 6>}, {pipeline_mode = #tpu.pipeline_mode<synchronous>, transform_indices = @transform_2, window_bounds = array<i64: 1, 6>}, {transform_indices = @transform_3, window_bounds = array<i64: 16, 6>}]} {
    %c0 = arith.constant 0 : index
    %c0_0 = arith.constant 0 : index
    %0 = vector.load %arg1[%c0, %c0_0] : memref<16x8xf32, #tpu.memory_space<vmem>>, vector<16x8xf32>
    %c0_1 = arith.constant 0 : index
    %c0_2 = arith.constant 0 : index
    %1 = vector.load %arg2[%c0_1, %c0_2] : memref<8x6xf32, #tpu.memory_space<vmem>>, vector<8x6xf32>
    %cst = arith.constant dense<0.000000e+00> : vector<16x6xf32>
    %2 = tpu.matmul %0, %1, %cst {dimension_numbers = #tpu.dot_dimension_numbers<[1], [0], [0], [1], [0, 0, 1, 1], [], []>} : vector<16x8xf32>, vector<8x6xf32>, vector<16x6xf32> -> vector<16x6xf32>
    %c0_3 = arith.constant 0 : index
    %c0_4 = arith.constant 0 : index
    %3 = vector.load %arg3[%c0_3, %c0_4] : memref<1x6xf32, #tpu.memory_space<vmem>>, vector<1x6xf32>
    %4 = vector.broadcast %3 : vector<1x6xf32> to vector<16x6xf32>
    %5 = arith.addf %2, %4 : vector<16x6xf32>
    %c0_5 = arith.constant 0 : index
    %c0_6 = arith.constant 0 : index
    %6 = vector.load %arg4[%c0_5, %c0_6] : memref<16x6xf32, #tpu.memory_space<vmem>>, vector<16x6xf32>
    tpu.vector_store %arg4[%c0_5, %c0_6], %5 {strides = array<i32>} : memref<16x6xf32, #tpu.memory_space<vmem>>, vector<16x6xf32>,
    return
  }
  func.func @transform_0(%arg0: i32) -> (i32, i32) {
    %c0_i32 = arith.constant 0 : i32
    %c0_i32_0 = arith.constant 0 : i32
    return %arg0, %c0_i32 : i32, i32
  }
  func.func @transform_1(%arg0: i32) -> (i32, i32) {
    %c0_i32 = arith.constant 0 : i32
    %c0_i32_0 = arith.constant 0 : i32
    %c0_i32_1 = arith.constant 0 : i32
    return %c0_i32, %c0_i32_0 : i32, i32
  }
  func.func @transform_2(%arg0: i32) -> (i32, i32) {
    %c0_i32 = arith.constant 0 : i32
    %c0_i32_0 = arith.constant 0 : i32
    %c0_i32_1 = arith.constant 0 : i32
    return %c0_i32, %c0_i32_0 : i32, i32
  }
  func.func @transform_3(%arg0: i32) -> (i32, i32) {
    %c0_i32 = arith.constant 0 : i32
    %c0_i32_0 = arith.constant 0 : i32
    return %arg0, %c0_i32 : i32, i32
  }
}

module attributes {stable_mosaic.version = 11 : i64} {
  func.func @_edge_mlp_kernel(%arg0: i32, %arg1: i32, %arg2: memref<1x8x3xf32, #tpu.memory_space<vmem>>, %arg3: memref<1x3x8xf32, #tpu.memory_space<vmem>>, %arg4: memref<1x2x8x8xf32, #tpu.memory_space<vmem>>, %arg5: memref<2x3xf32, #tpu.memory_space<smem>>, %arg6: memref<3xf32, #tpu.memory_space<smem>>, %arg7: memref<3x3xf32, #tpu.memory_space<smem>>, %arg8: memref<3xf32, #tpu.memory_space<smem>>, %arg9: memref<1x3x8x8xf32, #tpu.memory_space<vmem>>) attributes {dimension_semantics = [#tpu.dimension_semantics<parallel>, #tpu.dimension_semantics<parallel>], iteration_bounds = array<i64: 2, 1>, scalar_prefetch = 0 : i64, scratch_operands = 0 : i64, tpu.core_type = #tpu.core_type<tc>, window_params = [{transform_indices = @transform_0, window_bounds = array<i64: 1, 8, 3>}, {transform_indices = @transform_1, window_bounds = array<i64: 1, 3, 8>}, {transform_indices = @transform_2, window_bounds = array<i64: 1, 2, 8, 8>}, {transform_indices = @transform_3, window_bounds = array<i64: 2, 3>}, {transform_indices = @transform_4, window_bounds = array<i64: 3>}, {transform_indices = @transform_5, window_bounds = array<i64: 3, 3>}, {transform_indices = @transform_6, window_bounds = array<i64: 3>}, {transform_indices = @transform_7, window_bounds = array<i64: 1, 3, 8, 8>}]} {
    %c0 = arith.constant 0 : index
    %c0_0 = arith.constant 0 : index
    %c0_1 = arith.constant 0 : index
    %0 = vector.load %arg2[%c0, %c0_0, %c0_1] : memref<1x8x3xf32, #tpu.memory_space<vmem>>, vector<1x8x1xf32>
    %1 = vector.shape_cast %0 : vector<1x8x1xf32> to vector<8x1xf32>
    %c0_2 = arith.constant 0 : index
    %c0_3 = arith.constant 0 : index
    %c0_4 = arith.constant 0 : index
    %2 = vector.load %arg3[%c0_2, %c0_3, %c0_4] : memref<1x3x8xf32, #tpu.memory_space<vmem>>, vector<1x1x8xf32>
    %3 = vector.shape_cast %2 : vector<1x1x8xf32> to vector<1x8xf32>
    %4 = vector.broadcast %1 : vector<8x1xf32> to vector<8x8xf32>
    %5 = vector.broadcast %3 : vector<1x8xf32> to vector<8x8xf32>
    %6 = arith.addf %4, %5 : vector<8x8xf32>
    %c0_5 = arith.constant 0 : index
    %7 = memref.load %arg6[%c0_5] : memref<3xf32, #tpu.memory_space<smem>>
    %8 = vector.broadcast %7 : f32 to vector<8x8xf32>
    %9 = arith.addf %6, %8 : vector<8x8xf32>
    %c0_6 = arith.constant 0 : index
    %c0_7 = arith.constant 0 : index
    %10 = memref.load %arg5[%c0_6, %c0_7] : memref<2x3xf32, #tpu.memory_space<smem>>
    %c0_8 = arith.constant 0 : index
    %c0_9 = arith.constant 0 : index
    %c0_10 = arith.constant 0 : index
    %c0_11 = arith.constant 0 : index
    %11 = vector.load %arg4[%c0_8, %c0_9, %c0_10, %c0_11] : memref<1x2x8x8xf32, #tpu.memory_space<vmem>>, vector<1x1x8x8xf32>
    %12 = vector.shape_cast %11 : vector<1x1x8x8xf32> to vector<8x8xf32>
    %13 = vector.broadcast %10 : f32 to vector<8x8xf32>
    %14 = arith.mulf %13, %12 : vector<8x8xf32>
    %15 = arith.addf %9, %14 : vector<8x8xf32>
    %c1 = arith.constant 1 : index
    %c0_12 = arith.constant 0 : index
    %16 = memref.load %arg5[%c1, %c0_12] : memref<2x3xf32, #tpu.memory_space<smem>>
    %c0_13 = arith.constant 0 : index
    %c1_14 = arith.constant 1 : index
    %c0_15 = arith.constant 0 : index
    %c0_16 = arith.constant 0 : index
    %17 = vector.load %arg4[%c0_13, %c1_14, %c0_15, %c0_16] : memref<1x2x8x8xf32, #tpu.memory_space<vmem>>, vector<1x1x8x8xf32>
    %18 = vector.shape_cast %17 : vector<1x1x8x8xf32> to vector<8x8xf32>
    %19 = vector.broadcast %16 : f32 to vector<8x8xf32>
    %20 = arith.mulf %19, %18 : vector<8x8xf32>
    %21 = arith.addf %15, %20 : vector<8x8xf32>
    %c0_17 = arith.constant 0 : index
    %c0_18 = arith.constant 0 : index
    %c1_19 = arith.constant 1 : index
    %22 = vector.load %arg2[%c0_17, %c0_18, %c1_19] : memref<1x8x3xf32, #tpu.memory_space<vmem>>, vector<1x8x1xf32>
    %23 = vector.shape_cast %22 : vector<1x8x1xf32> to vector<8x1xf32>
    %c0_20 = arith.constant 0 : index
    %c1_21 = arith.constant 1 : index
    %c0_22 = arith.constant 0 : index
    %24 = vector.load %arg3[%c0_20, %c1_21, %c0_22] : memref<1x3x8xf32, #tpu.memory_space<vmem>>, vector<1x1x8xf32>
    %25 = vector.shape_cast %24 : vector<1x1x8xf32> to vector<1x8xf32>
    %26 = vector.broadcast %23 : vector<8x1xf32> to vector<8x8xf32>
    %27 = vector.broadcast %25 : vector<1x8xf32> to vector<8x8xf32>
    %28 = arith.addf %26, %27 : vector<8x8xf32>
    %c1_23 = arith.constant 1 : index
    %29 = memref.load %arg6[%c1_23] : memref<3xf32, #tpu.memory_space<smem>>
    %30 = vector.broadcast %29 : f32 to vector<8x8xf32>
    %31 = arith.addf %28, %30 : vector<8x8xf32>
    %c0_24 = arith.constant 0 : index
    %c1_25 = arith.constant 1 : index
    %32 = memref.load %arg5[%c0_24, %c1_25] : memref<2x3xf32, #tpu.memory_space<smem>>
    %c0_26 = arith.constant 0 : index
    %c0_27 = arith.constant 0 : index
    %c0_28 = arith.constant 0 : index
    %c0_29 = arith.constant 0 : index
    %33 = vector.load %arg4[%c0_26, %c0_27, %c0_28, %c0_29] : memref<1x2x8x8xf32, #tpu.memory_space<vmem>>, vector<1x1x8x8xf32>
    %34 = vector.shape_cast %33 : vector<1x1x8x8xf32> to vector<8x8xf32>
    %35 = vector.broadcast %32 : f32 to vector<8x8xf32>
    %36 = arith.mulf %35, %34 : vector<8x8xf32>
    %37 = arith.addf %31, %36 : vector<8x8xf32>
    %c1_30 = arith.constant 1 : index
    %c1_31 = arith.constant 1 : index
    %38 = memref.load %arg5[%c1_30, %c1_31] : memref<2x3xf32, #tpu.memory_space<smem>>
    %c0_32 = arith.constant 0 : index
    %c1_33 = arith.constant 1 : index
    %c0_34 = arith.constant 0 : index
    %c0_35 = arith.constant 0 : index
    %39 = vector.load %arg4[%c0_32, %c1_33, %c0_34, %c0_35] : memref<1x2x8x8xf32, #tpu.memory_space<vmem>>, vector<1x1x8x8xf32>
    %40 = vector.shape_cast %39 : vector<1x1x8x8xf32> to vector<8x8xf32>
    %41 = vector.broadcast %38 : f32 to vector<8x8xf32>
    %42 = arith.mulf %41, %40 : vector<8x8xf32>
    %43 = arith.addf %37, %42 : vector<8x8xf32>
    %c0_36 = arith.constant 0 : index
    %c0_37 = arith.constant 0 : index
    %c2 = arith.constant 2 : index
    %44 = vector.load %arg2[%c0_36, %c0_37, %c2] : memref<1x8x3xf32, #tpu.memory_space<vmem>>, vector<1x8x1xf32>
    %45 = vector.shape_cast %44 : vector<1x8x1xf32> to vector<8x1xf32>
    %c0_38 = arith.constant 0 : index
    %c2_39 = arith.constant 2 : index
    %c0_40 = arith.constant 0 : index
    %46 = vector.load %arg3[%c0_38, %c2_39, %c0_40] : memref<1x3x8xf32, #tpu.memory_space<vmem>>, vector<1x1x8xf32>
    %47 = vector.shape_cast %46 : vector<1x1x8xf32> to vector<1x8xf32>
    %48 = vector.broadcast %45 : vector<8x1xf32> to vector<8x8xf32>
    %49 = vector.broadcast %47 : vector<1x8xf32> to vector<8x8xf32>
    %50 = arith.addf %48, %49 : vector<8x8xf32>
    %c2_41 = arith.constant 2 : index
    %51 = memref.load %arg6[%c2_41] : memref<3xf32, #tpu.memory_space<smem>>
    %52 = vector.broadcast %51 : f32 to vector<8x8xf32>
    %53 = arith.addf %50, %52 : vector<8x8xf32>
    %c0_42 = arith.constant 0 : index
    %c2_43 = arith.constant 2 : index
    %54 = memref.load %arg5[%c0_42, %c2_43] : memref<2x3xf32, #tpu.memory_space<smem>>
    %c0_44 = arith.constant 0 : index
    %c0_45 = arith.constant 0 : index
    %c0_46 = arith.constant 0 : index
    %c0_47 = arith.constant 0 : index
    %55 = vector.load %arg4[%c0_44, %c0_45, %c0_46, %c0_47] : memref<1x2x8x8xf32, #tpu.memory_space<vmem>>, vector<1x1x8x8xf32>
    %56 = vector.shape_cast %55 : vector<1x1x8x8xf32> to vector<8x8xf32>
    %57 = vector.broadcast %54 : f32 to vector<8x8xf32>
    %58 = arith.mulf %57, %56 : vector<8x8xf32>
    %59 = arith.addf %53, %58 : vector<8x8xf32>
    %c1_48 = arith.constant 1 : index
    %c2_49 = arith.constant 2 : index
    %60 = memref.load %arg5[%c1_48, %c2_49] : memref<2x3xf32, #tpu.memory_space<smem>>
    %c0_50 = arith.constant 0 : index
    %c1_51 = arith.constant 1 : index
    %c0_52 = arith.constant 0 : index
    %c0_53 = arith.constant 0 : index
    %61 = vector.load %arg4[%c0_50, %c1_51, %c0_52, %c0_53] : memref<1x2x8x8xf32, #tpu.memory_space<vmem>>, vector<1x1x8x8xf32>
    %62 = vector.shape_cast %61 : vector<1x1x8x8xf32> to vector<8x8xf32>
    %63 = vector.broadcast %60 : f32 to vector<8x8xf32>
    %64 = arith.mulf %63, %62 : vector<8x8xf32>
    %65 = arith.addf %59, %64 : vector<8x8xf32>
    %cst = arith.constant 0.000000e+00 : f32
    %66 = vector.broadcast %cst : f32 to vector<8x8xf32>
    %67 = arith.cmpf ogt, %21, %66 : vector<8x8xf32>
    %cst_54 = arith.constant 0.000000e+00 : f32
    %68 = vector.broadcast %cst_54 : f32 to vector<8x8xf32>
    %69 = arith.minimumf %21, %68 : vector<8x8xf32>
    %70 = math.exp %69 : vector<8x8xf32>
    %cst_55 = arith.constant 1.000000e+00 : f32
    %71 = vector.broadcast %cst_55 : f32 to vector<8x8xf32>
    %72 = arith.subf %70, %71 : vector<8x8xf32>
    %73 = arith.select %67, %21, %72 : vector<8x8xi1>, vector<8x8xf32>
    %cst_56 = arith.constant 0.000000e+00 : f32
    %74 = vector.broadcast %cst_56 : f32 to vector<8x8xf32>
    %75 = arith.cmpf ogt, %43, %74 : vector<8x8xf32>
    %cst_57 = arith.constant 0.000000e+00 : f32
    %76 = vector.broadcast %cst_57 : f32 to vector<8x8xf32>
    %77 = arith.minimumf %43, %76 : vector<8x8xf32>
    %78 = math.exp %77 : vector<8x8xf32>
    %cst_58 = arith.constant 1.000000e+00 : f32
    %79 = vector.broadcast %cst_58 : f32 to vector<8x8xf32>
    %80 = arith.subf %78, %79 : vector<8x8xf32>
    %81 = arith.select %75, %43, %80 : vector<8x8xi1>, vector<8x8xf32>
    %cst_59 = arith.constant 0.000000e+00 : f32
    %82 = vector.broadcast %cst_59 : f32 to vector<8x8xf32>
    %83 = arith.cmpf ogt, %65, %82 : vector<8x8xf32>
    %cst_60 = arith.constant 0.000000e+00 : f32
    %84 = vector.broadcast %cst_60 : f32 to vector<8x8xf32>
    %85 = arith.minimumf %65, %84 : vector<8x8xf32>
    %86 = math.exp %85 : vector<8x8xf32>
    %cst_61 = arith.constant 1.000000e+00 : f32
    %87 = vector.broadcast %cst_61 : f32 to vector<8x8xf32>
    %88 = arith.subf %86, %87 : vector<8x8xf32>
    %89 = arith.select %83, %65, %88 : vector<8x8xi1>, vector<8x8xf32>
    %c0_62 = arith.constant 0 : index
    %90 = memref.load %arg8[%c0_62] : memref<3xf32, #tpu.memory_space<smem>>
    %c0_63 = arith.constant 0 : index
    %c0_64 = arith.constant 0 : index
    %91 = memref.load %arg7[%c0_63, %c0_64] : memref<3x3xf32, #tpu.memory_space<smem>>
    %92 = vector.broadcast %91 : f32 to vector<8x8xf32>
    %93 = arith.mulf %92, %73 : vector<8x8xf32>
    %94 = vector.broadcast %90 : f32 to vector<8x8xf32>
    %95 = arith.addf %94, %93 : vector<8x8xf32>
    %c1_65 = arith.constant 1 : index
    %c0_66 = arith.constant 0 : index
    %96 = memref.load %arg7[%c1_65, %c0_66] : memref<3x3xf32, #tpu.memory_space<smem>>
    %97 = vector.broadcast %96 : f32 to vector<8x8xf32>
    %98 = arith.mulf %97, %81 : vector<8x8xf32>
    %99 = arith.addf %95, %98 : vector<8x8xf32>
    %c2_67 = arith.constant 2 : index
    %c0_68 = arith.constant 0 : index
    %100 = memref.load %arg7[%c2_67, %c0_68] : memref<3x3xf32, #tpu.memory_space<smem>>
    %101 = vector.broadcast %100 : f32 to vector<8x8xf32>
    %102 = arith.mulf %101, %89 : vector<8x8xf32>
    %103 = arith.addf %99, %102 : vector<8x8xf32>
    %c1_69 = arith.constant 1 : index
    %104 = memref.load %arg8[%c1_69] : memref<3xf32, #tpu.memory_space<smem>>
    %c0_70 = arith.constant 0 : index
    %c1_71 = arith.constant 1 : index
    %105 = memref.load %arg7[%c0_70, %c1_71] : memref<3x3xf32, #tpu.memory_space<smem>>
    %106 = vector.broadcast %105 : f32 to vector<8x8xf32>
    %107 = arith.mulf %106, %73 : vector<8x8xf32>
    %108 = vector.broadcast %104 : f32 to vector<8x8xf32>
    %109 = arith.addf %108, %107 : vector<8x8xf32>
    %c1_72 = arith.constant 1 : index
    %c1_73 = arith.constant 1 : index
    %110 = memref.load %arg7[%c1_72, %c1_73] : memref<3x3xf32, #tpu.memory_space<smem>>
    %111 = vector.broadcast %110 : f32 to vector<8x8xf32>
    %112 = arith.mulf %111, %81 : vector<8x8xf32>
    %113 = arith.addf %109, %112 : vector<8x8xf32>
    %c2_74 = arith.constant 2 : index
    %c1_75 = arith.constant 1 : index
    %114 = memref.load %arg7[%c2_74, %c1_75] : memref<3x3xf32, #tpu.memory_space<smem>>
    %115 = vector.broadcast %114 : f32 to vector<8x8xf32>
    %116 = arith.mulf %115, %89 : vector<8x8xf32>
    %117 = arith.addf %113, %116 : vector<8x8xf32>
    %c2_76 = arith.constant 2 : index
    %118 = memref.load %arg8[%c2_76] : memref<3xf32, #tpu.memory_space<smem>>
    %c0_77 = arith.constant 0 : index
    %c2_78 = arith.constant 2 : index
    %119 = memref.load %arg7[%c0_77, %c2_78] : memref<3x3xf32, #tpu.memory_space<smem>>
    %120 = vector.broadcast %119 : f32 to vector<8x8xf32>
    %121 = arith.mulf %120, %73 : vector<8x8xf32>
    %122 = vector.broadcast %118 : f32 to vector<8x8xf32>
    %123 = arith.addf %122, %121 : vector<8x8xf32>
    %c1_79 = arith.constant 1 : index
    %c2_80 = arith.constant 2 : index
    %124 = memref.load %arg7[%c1_79, %c2_80] : memref<3x3xf32, #tpu.memory_space<smem>>
    %125 = vector.broadcast %124 : f32 to vector<8x8xf32>
    %126 = arith.mulf %125, %81 : vector<8x8xf32>
    %127 = arith.addf %123, %126 : vector<8x8xf32>
    %c2_81 = arith.constant 2 : index
    %c2_82 = arith.constant 2 : index
    %128 = memref.load %arg7[%c2_81, %c2_82] : memref<3x3xf32, #tpu.memory_space<smem>>
    %129 = vector.broadcast %128 : f32 to vector<8x8xf32>
    %130 = arith.mulf %129, %89 : vector<8x8xf32>
    %131 = arith.addf %127, %130 : vector<8x8xf32>
    %c0_83 = arith.constant 0 : index
    %c0_84 = arith.constant 0 : index
    %c0_85 = arith.constant 0 : index
    %c0_86 = arith.constant 0 : index
    %132 = vector.load %arg9[%c0_83, %c0_84, %c0_85, %c0_86] : memref<1x3x8x8xf32, #tpu.memory_space<vmem>>, vector<1x1x8x8xf32>
    %133 = vector.shape_cast %132 : vector<1x1x8x8xf32> to vector<8x8xf32>
    %134 = vector.shape_cast %103 : vector<8x8xf32> to vector<1x1x8x8xf32>
    tpu.vector_store %arg9[%c0_83, %c0_84, %c0_85, %c0_86], %134 {strides = array<i32>} : memref<1x3x8x8xf32, #tpu.memory_space<vmem>>, vector<1x1x8x8xf32>,
    %c0_87 = arith.constant 0 : index
    %c1_88 = arith.constant 1 : index
    %c0_89 = arith.constant 0 : index
    %c0_90 = arith.constant 0 : index
    %135 = vector.load %arg9[%c0_87, %c1_88, %c0_89, %c0_90] : memref<1x3x8x8xf32, #tpu.memory_space<vmem>>, vector<1x1x8x8xf32>
    %136 = vector.shape_cast %135 : vector<1x1x8x8xf32> to vector<8x8xf32>
    %137 = vector.shape_cast %117 : vector<8x8xf32> to vector<1x1x8x8xf32>
    tpu.vector_store %arg9[%c0_87, %c1_88, %c0_89, %c0_90], %137 {strides = array<i32>} : memref<1x3x8x8xf32, #tpu.memory_space<vmem>>, vector<1x1x8x8xf32>,
    %c0_91 = arith.constant 0 : index
    %c2_92 = arith.constant 2 : index
    %c0_93 = arith.constant 0 : index
    %c0_94 = arith.constant 0 : index
    %138 = vector.load %arg9[%c0_91, %c2_92, %c0_93, %c0_94] : memref<1x3x8x8xf32, #tpu.memory_space<vmem>>, vector<1x1x8x8xf32>
    %139 = vector.shape_cast %138 : vector<1x1x8x8xf32> to vector<8x8xf32>
    %140 = vector.shape_cast %131 : vector<8x8xf32> to vector<1x1x8x8xf32>
    tpu.vector_store %arg9[%c0_91, %c2_92, %c0_93, %c0_94], %140 {strides = array<i32>} : memref<1x3x8x8xf32, #tpu.memory_space<vmem>>, vector<1x1x8x8xf32>,
    return
  }
  func.func @transform_0(%arg0: i32, %arg1: i32) -> (i32, i32, i32) {
    %c0_i32 = arith.constant 0 : i32
    %c0_i32_0 = arith.constant 0 : i32
    return %arg0, %arg1, %c0_i32 : i32, i32, i32
  }
  func.func @transform_1(%arg0: i32, %arg1: i32) -> (i32, i32, i32) {
    %c0_i32 = arith.constant 0 : i32
    %c0_i32_0 = arith.constant 0 : i32
    %c0_i32_1 = arith.constant 0 : i32
    return %arg0, %c0_i32, %c0_i32_0 : i32, i32, i32
  }
  func.func @transform_2(%arg0: i32, %arg1: i32) -> (i32, i32, i32, i32) {
    %c0_i32 = arith.constant 0 : i32
    %c0_i32_0 = arith.constant 0 : i32
    %c0_i32_1 = arith.constant 0 : i32
    return %arg0, %c0_i32, %arg1, %c0_i32_0 : i32, i32, i32, i32
  }
  func.func @transform_3(%arg0: i32, %arg1: i32) -> (i32, i32) {
    %c0_i32 = arith.constant 0 : i32
    %c0_i32_0 = arith.constant 0 : i32
    %c0_i32_1 = arith.constant 0 : i32
    return %c0_i32, %c0_i32_0 : i32, i32
  }
  func.func @transform_4(%arg0: i32, %arg1: i32) -> i32 {
    %c0_i32 = arith.constant 0 : i32
    %c0_i32_0 = arith.constant 0 : i32
    return %c0_i32 : i32
  }
  func.func @transform_5(%arg0: i32, %arg1: i32) -> (i32, i32) {
    %c0_i32 = arith.constant 0 : i32
    %c0_i32_0 = arith.constant 0 : i32
    %c0_i32_1 = arith.constant 0 : i32
    return %c0_i32, %c0_i32_0 : i32, i32
  }
  func.func @transform_6(%arg0: i32, %arg1: i32) -> i32 {
    %c0_i32 = arith.constant 0 : i32
    %c0_i32_0 = arith.constant 0 : i32
    return %c0_i32 : i32
  }
  func.func @transform_7(%arg0: i32, %arg1: i32) -> (i32, i32, i32, i32) {
    %c0_i32 = arith.constant 0 : i32
    %c0_i32_0 = arith.constant 0 : i32
    %c0_i32_1 = arith.constant 0 : i32
    return %arg0, %c0_i32, %arg1, %c0_i32_0 : i32, i32, i32, i32
  }
}

module attributes {stable_mosaic.version = 11 : i64} {
  func.func @_linear_kernel(%arg0: i32, %arg1: memref<16x8xf32, #tpu.memory_space<vmem>>, %arg2: memref<8x24xf32, #tpu.memory_space<vmem>>, %arg3: memref<1x24xf32, #tpu.memory_space<vmem>>, %arg4: memref<16x24xf32, #tpu.memory_space<vmem>>) attributes {dimension_semantics = [#tpu.dimension_semantics<parallel>], iteration_bounds = array<i64: 1>, scalar_prefetch = 0 : i64, scratch_operands = 0 : i64, tpu.core_type = #tpu.core_type<tc>, window_params = [{transform_indices = @transform_0, window_bounds = array<i64: 16, 8>}, {pipeline_mode = #tpu.pipeline_mode<synchronous>, transform_indices = @transform_1, window_bounds = array<i64: 8, 24>}, {pipeline_mode = #tpu.pipeline_mode<synchronous>, transform_indices = @transform_2, window_bounds = array<i64: 1, 24>}, {transform_indices = @transform_3, window_bounds = array<i64: 16, 24>}]} {
    %c0 = arith.constant 0 : index
    %c0_0 = arith.constant 0 : index
    %0 = vector.load %arg1[%c0, %c0_0] : memref<16x8xf32, #tpu.memory_space<vmem>>, vector<16x8xf32>
    %c0_1 = arith.constant 0 : index
    %c0_2 = arith.constant 0 : index
    %1 = vector.load %arg2[%c0_1, %c0_2] : memref<8x24xf32, #tpu.memory_space<vmem>>, vector<8x24xf32>
    %cst = arith.constant dense<0.000000e+00> : vector<16x24xf32>
    %2 = tpu.matmul %0, %1, %cst {dimension_numbers = #tpu.dot_dimension_numbers<[1], [0], [0], [1], [0, 0, 1, 1], [], []>} : vector<16x8xf32>, vector<8x24xf32>, vector<16x24xf32> -> vector<16x24xf32>
    %c0_3 = arith.constant 0 : index
    %c0_4 = arith.constant 0 : index
    %3 = vector.load %arg3[%c0_3, %c0_4] : memref<1x24xf32, #tpu.memory_space<vmem>>, vector<1x24xf32>
    %4 = vector.broadcast %3 : vector<1x24xf32> to vector<16x24xf32>
    %5 = arith.addf %2, %4 : vector<16x24xf32>
    %c0_5 = arith.constant 0 : index
    %c0_6 = arith.constant 0 : index
    %6 = vector.load %arg4[%c0_5, %c0_6] : memref<16x24xf32, #tpu.memory_space<vmem>>, vector<16x24xf32>
    tpu.vector_store %arg4[%c0_5, %c0_6], %5 {strides = array<i32>} : memref<16x24xf32, #tpu.memory_space<vmem>>, vector<16x24xf32>,
    return
  }
  func.func @transform_0(%arg0: i32) -> (i32, i32) {
    %c0_i32 = arith.constant 0 : i32
    %c0_i32_0 = arith.constant 0 : i32
    return %arg0, %c0_i32 : i32, i32
  }
  func.func @transform_1(%arg0: i32) -> (i32, i32) {
    %c0_i32 = arith.constant 0 : i32
    %c0_i32_0 = arith.constant 0 : i32
    %c0_i32_1 = arith.constant 0 : i32
    return %c0_i32, %c0_i32_0 : i32, i32
  }
  func.func @transform_2(%arg0: i32) -> (i32, i32) {
    %c0_i32 = arith.constant 0 : i32
    %c0_i32_0 = arith.constant 0 : i32
    %c0_i32_1 = arith.constant 0 : i32
    return %c0_i32, %c0_i32_0 : i32, i32
  }
  func.func @transform_3(%arg0: i32) -> (i32, i32) {
    %c0_i32 = arith.constant 0 : i32
    %c0_i32_0 = arith.constant 0 : i32
    return %arg0, %c0_i32 : i32, i32
  }
}

module attributes {stable_mosaic.version = 11 : i64} {
  func.func @_gcn_kernel(%arg0: i32, %arg1: memref<1x8x24xf32, #tpu.memory_space<vmem>>, %arg2: memref<1x3x8x8xf32, #tpu.memory_space<vmem>>, %arg3: memref<1x24xf32, #tpu.memory_space<vmem>>, %arg4: memref<1x8x24xf32, #tpu.memory_space<vmem>>) attributes {dimension_semantics = [#tpu.dimension_semantics<parallel>], iteration_bounds = array<i64: 2>, scalar_prefetch = 0 : i64, scratch_operands = 0 : i64, tpu.core_type = #tpu.core_type<tc>, window_params = [{transform_indices = @transform_0, window_bounds = array<i64: 1, 8, 24>}, {transform_indices = @transform_1, window_bounds = array<i64: 1, 3, 8, 8>}, {pipeline_mode = #tpu.pipeline_mode<synchronous>, transform_indices = @transform_2, window_bounds = array<i64: 1, 24>}, {transform_indices = @transform_3, window_bounds = array<i64: 1, 8, 24>}]} {
    %c0 = arith.constant 0 : index
    %c0_0 = arith.constant 0 : index
    %c0_1 = arith.constant 0 : index
    %0 = vector.load %arg1[%c0, %c0_0, %c0_1] : memref<1x8x24xf32, #tpu.memory_space<vmem>>, vector<1x8x24xf32>
    %1 = vector.shape_cast %0 : vector<1x8x24xf32> to vector<8x24xf32>
    %2 = tpu.iota {dimensions = array<i32: 0>} : vector<8x8xi32>
    %3 = tpu.iota {dimensions = array<i32: 1>} : vector<8x8xi32>
    %4 = arith.cmpi eq, %2, %3 : vector<8x8xi32>
    %5 = arith.extui %4 : vector<8x8xi1> to vector<8x8xi32>
    %6 = arith.sitofp %5 : vector<8x8xi32> to vector<8x8xf32>
    %c0_2 = arith.constant 0 : index
    %c0_3 = arith.constant 0 : index
    %c0_4 = arith.constant 0 : index
    %c0_5 = arith.constant 0 : index
    %7 = vector.load %arg2[%c0_2, %c0_3, %c0_4, %c0_5] : memref<1x3x8x8xf32, #tpu.memory_space<vmem>>, vector<1x1x8x8xf32>
    %8 = vector.shape_cast %7 : vector<1x1x8x8xf32> to vector<8x8xf32>
    %cst = arith.constant 1.000000e+00 : f32
    %9 = vector.broadcast %cst : f32 to vector<8x8xf32>
    %10 = arith.subf %9, %6 : vector<8x8xf32>
    %11 = arith.mulf %8, %10 : vector<8x8xf32>
    %12 = arith.addf %11, %6 : vector<8x8xf32>
    %cst_6 = arith.constant dense<0.000000e+00> : vector<8xf32>
    %13 = vector.multi_reduction <add>, %12, %cst_6 [1] : vector<8x8xf32> to vector<8xf32>
    %14 = vector.shape_cast %13 : vector<8xf32> to vector<8x1xf32>
    %cst_7 = arith.constant 1.000000e+00 : f32
    %15 = vector.broadcast %cst_7 : f32 to vector<8x1xf32>
    %16 = arith.maximumf %14, %15 : vector<8x1xf32>
    %17 = math.rsqrt %16 : vector<8x1xf32>
    %18 = vector.extract_strided_slice %1 {offsets = [0, 0], sizes = [8, 8], strides = [1, 1]} : vector<8x24xf32> to vector<8x8xf32>
    %19 = vector.broadcast %17 : vector<8x1xf32> to vector<8x8xf32>
    %20 = arith.mulf %19, %18 : vector<8x8xf32>
    %cst_8 = arith.constant dense<0.000000e+00> : vector<8x8xf32>
    %21 = tpu.matmul %12, %20, %cst_8 {dimension_numbers = #tpu.dot_dimension_numbers<[1], [0], [0], [1], [0, 0, 1, 1], [], []>} : vector<8x8xf32>, vector<8x8xf32>, vector<8x8xf32> -> vector<8x8xf32>
    %22 = vector.broadcast %17 : vector<8x1xf32> to vector<8x8xf32>
    %23 = arith.mulf %22, %21 : vector<8x8xf32>
    %c0_9 = arith.constant 0 : index
    %c1 = arith.constant 1 : index
    %c0_10 = arith.constant 0 : index
    %c0_11 = arith.constant 0 : index
    %24 = vector.load %arg2[%c0_9, %c1, %c0_10, %c0_11] : memref<1x3x8x8xf32, #tpu.memory_space<vmem>>, vector<1x1x8x8xf32>
    %25 = vector.shape_cast %24 : vector<1x1x8x8xf32> to vector<8x8xf32>
    %cst_12 = arith.constant 1.000000e+00 : f32
    %26 = vector.broadcast %cst_12 : f32 to vector<8x8xf32>
    %27 = arith.subf %26, %6 : vector<8x8xf32>
    %28 = arith.mulf %25, %27 : vector<8x8xf32>
    %29 = arith.addf %28, %6 : vector<8x8xf32>
    %cst_13 = arith.constant dense<0.000000e+00> : vector<8xf32>
    %30 = vector.multi_reduction <add>, %29, %cst_13 [1] : vector<8x8xf32> to vector<8xf32>
    %31 = vector.shape_cast %30 : vector<8xf32> to vector<8x1xf32>
    %cst_14 = arith.constant 1.000000e+00 : f32
    %32 = vector.broadcast %cst_14 : f32 to vector<8x1xf32>
    %33 = arith.maximumf %31, %32 : vector<8x1xf32>
    %34 = math.rsqrt %33 : vector<8x1xf32>
    %35 = vector.extract_strided_slice %1 {offsets = [0, 8], sizes = [8, 8], strides = [1, 1]} : vector<8x24xf32> to vector<8x8xf32>
    %36 = vector.broadcast %34 : vector<8x1xf32> to vector<8x8xf32>
    %37 = arith.mulf %36, %35 : vector<8x8xf32>
    %cst_15 = arith.constant dense<0.000000e+00> : vector<8x8xf32>
    %38 = tpu.matmul %29, %37, %cst_15 {dimension_numbers = #tpu.dot_dimension_numbers<[1], [0], [0], [1], [0, 0, 1, 1], [], []>} : vector<8x8xf32>, vector<8x8xf32>, vector<8x8xf32> -> vector<8x8xf32>
    %39 = vector.broadcast %34 : vector<8x1xf32> to vector<8x8xf32>
    %40 = arith.mulf %39, %38 : vector<8x8xf32>
    %c0_16 = arith.constant 0 : index
    %c2 = arith.constant 2 : index
    %c0_17 = arith.constant 0 : index
    %c0_18 = arith.constant 0 : index
    %41 = vector.load %arg2[%c0_16, %c2, %c0_17, %c0_18] : memref<1x3x8x8xf32, #tpu.memory_space<vmem>>, vector<1x1x8x8xf32>
    %42 = vector.shape_cast %41 : vector<1x1x8x8xf32> to vector<8x8xf32>
    %cst_19 = arith.constant 1.000000e+00 : f32
    %43 = vector.broadcast %cst_19 : f32 to vector<8x8xf32>
    %44 = arith.subf %43, %6 : vector<8x8xf32>
    %45 = arith.mulf %42, %44 : vector<8x8xf32>
    %46 = arith.addf %45, %6 : vector<8x8xf32>
    %cst_20 = arith.constant dense<0.000000e+00> : vector<8xf32>
    %47 = vector.multi_reduction <add>, %46, %cst_20 [1] : vector<8x8xf32> to vector<8xf32>
    %48 = vector.shape_cast %47 : vector<8xf32> to vector<8x1xf32>
    %cst_21 = arith.constant 1.000000e+00 : f32
    %49 = vector.broadcast %cst_21 : f32 to vector<8x1xf32>
    %50 = arith.maximumf %48, %49 : vector<8x1xf32>
    %51 = math.rsqrt %50 : vector<8x1xf32>
    %52 = vector.extract_strided_slice %1 {offsets = [0, 16], sizes = [8, 8], strides = [1, 1]} : vector<8x24xf32> to vector<8x8xf32>
    %53 = vector.broadcast %51 : vector<8x1xf32> to vector<8x8xf32>
    %54 = arith.mulf %53, %52 : vector<8x8xf32>
    %cst_22 = arith.constant dense<0.000000e+00> : vector<8x8xf32>
    %55 = tpu.matmul %46, %54, %cst_22 {dimension_numbers = #tpu.dot_dimension_numbers<[1], [0], [0], [1], [0, 0, 1, 1], [], []>} : vector<8x8xf32>, vector<8x8xf32>, vector<8x8xf32> -> vector<8x8xf32>
    %56 = vector.broadcast %51 : vector<8x1xf32> to vector<8x8xf32>
    %57 = arith.mulf %56, %55 : vector<8x8xf32>
    %58 = tpu.concatenate %23, %40, %57 in 1 : vector<8x8xf32>, vector<8x8xf32>, vector<8x8xf32> -> vector<8x24xf32>
    %c0_23 = arith.constant 0 : index
    %c0_24 = arith.constant 0 : index
    %59 = vector.load %arg3[%c0_23, %c0_24] : memref<1x24xf32, #tpu.memory_space<vmem>>, vector<1x24xf32>
    %60 = vector.broadcast %59 : vector<1x24xf32> to vector<8x24xf32>
    %61 = arith.addf %58, %60 : vector<8x24xf32>
    %c0_25 = arith.constant 0 : index
    %c0_26 = arith.constant 0 : index
    %c0_27 = arith.constant 0 : index
    %62 = vector.load %arg4[%c0_25, %c0_26, %c0_27] : memref<1x8x24xf32, #tpu.memory_space<vmem>>, vector<1x8x24xf32>
    %63 = vector.shape_cast %62 : vector<1x8x24xf32> to vector<8x24xf32>
    %64 = vector.shape_cast %61 : vector<8x24xf32> to vector<1x8x24xf32>
    tpu.vector_store %arg4[%c0_25, %c0_26, %c0_27], %64 {strides = array<i32>} : memref<1x8x24xf32, #tpu.memory_space<vmem>>, vector<1x8x24xf32>,
    return
  }
  func.func @transform_0(%arg0: i32) -> (i32, i32, i32) {
    %c0_i32 = arith.constant 0 : i32
    %c0_i32_0 = arith.constant 0 : i32
    %c0_i32_1 = arith.constant 0 : i32
    return %arg0, %c0_i32, %c0_i32_0 : i32, i32, i32
  }
  func.func @transform_1(%arg0: i32) -> (i32, i32, i32, i32) {
    %c0_i32 = arith.constant 0 : i32
    %c0_i32_0 = arith.constant 0 : i32
    %c0_i32_1 = arith.constant 0 : i32
    %c0_i32_2 = arith.constant 0 : i32
    return %arg0, %c0_i32, %c0_i32_0, %c0_i32_1 : i32, i32, i32, i32
  }
  func.func @transform_2(%arg0: i32) -> (i32, i32) {
    %c0_i32 = arith.constant 0 : i32
    %c0_i32_0 = arith.constant 0 : i32
    %c0_i32_1 = arith.constant 0 : i32
    return %c0_i32, %c0_i32_0 : i32, i32
  }
  func.func @transform_3(%arg0: i32) -> (i32, i32, i32) {
    %c0_i32 = arith.constant 0 : i32
    %c0_i32_0 = arith.constant 0 : i32
    %c0_i32_1 = arith.constant 0 : i32
    return %arg0, %c0_i32, %c0_i32_0 : i32, i32, i32
  }
}

module attributes {stable_mosaic.version = 11 : i64} {
  func.func @_linear_kernel(%arg0: i32, %arg1: memref<16x24xf32, #tpu.memory_space<vmem>>, %arg2: memref<24x3xf32, #tpu.memory_space<vmem>>, %arg3: memref<1x3xf32, #tpu.memory_space<vmem>>, %arg4: memref<16x3xf32, #tpu.memory_space<vmem>>) attributes {dimension_semantics = [#tpu.dimension_semantics<parallel>], iteration_bounds = array<i64: 1>, scalar_prefetch = 0 : i64, scratch_operands = 0 : i64, tpu.core_type = #tpu.core_type<tc>, window_params = [{transform_indices = @transform_0, window_bounds = array<i64: 16, 24>}, {pipeline_mode = #tpu.pipeline_mode<synchronous>, transform_indices = @transform_1, window_bounds = array<i64: 24, 3>}, {pipeline_mode = #tpu.pipeline_mode<synchronous>, transform_indices = @transform_2, window_bounds = array<i64: 1, 3>}, {transform_indices = @transform_3, window_bounds = array<i64: 16, 3>}]} {
    %c0 = arith.constant 0 : index
    %c0_0 = arith.constant 0 : index
    %0 = vector.load %arg1[%c0, %c0_0] : memref<16x24xf32, #tpu.memory_space<vmem>>, vector<16x24xf32>
    %c0_1 = arith.constant 0 : index
    %c0_2 = arith.constant 0 : index
    %1 = vector.load %arg2[%c0_1, %c0_2] : memref<24x3xf32, #tpu.memory_space<vmem>>, vector<24x3xf32>
    %cst = arith.constant dense<0.000000e+00> : vector<16x3xf32>
    %2 = tpu.matmul %0, %1, %cst {dimension_numbers = #tpu.dot_dimension_numbers<[1], [0], [0], [1], [0, 0, 1, 1], [], []>} : vector<16x24xf32>, vector<24x3xf32>, vector<16x3xf32> -> vector<16x3xf32>
    %c0_3 = arith.constant 0 : index
    %c0_4 = arith.constant 0 : index
    %3 = vector.load %arg3[%c0_3, %c0_4] : memref<1x3xf32, #tpu.memory_space<vmem>>, vector<1x3xf32>
    %4 = vector.broadcast %3 : vector<1x3xf32> to vector<16x3xf32>
    %5 = arith.addf %2, %4 : vector<16x3xf32>
    %cst_5 = arith.constant 0.000000e+00 : f32
    %6 = vector.broadcast %cst_5 : f32 to vector<16x3xf32>
    %7 = arith.cmpf ogt, %5, %6 : vector<16x3xf32>
    %cst_6 = arith.constant 0.000000e+00 : f32
    %8 = vector.broadcast %cst_6 : f32 to vector<16x3xf32>
    %9 = arith.minimumf %5, %8 : vector<16x3xf32>
    %10 = math.exp %9 : vector<16x3xf32>
    %cst_7 = arith.constant 1.000000e+00 : f32
    %11 = vector.broadcast %cst_7 : f32 to vector<16x3xf32>
    %12 = arith.subf %10, %11 : vector<16x3xf32>
    %13 = arith.select %7, %5, %12 : vector<16x3xi1>, vector<16x3xf32>
    %c0_8 = arith.constant 0 : index
    %c0_9 = arith.constant 0 : index
    %14 = vector.load %arg4[%c0_8, %c0_9] : memref<16x3xf32, #tpu.memory_space<vmem>>, vector<16x3xf32>
    tpu.vector_store %arg4[%c0_8, %c0_9], %13 {strides = array<i32>} : memref<16x3xf32, #tpu.memory_space<vmem>>, vector<16x3xf32>,
    return
  }
  func.func @transform_0(%arg0: i32) -> (i32, i32) {
    %c0_i32 = arith.constant 0 : i32
    %c0_i32_0 = arith.constant 0 : i32
    return %arg0, %c0_i32 : i32, i32
  }
  func.func @transform_1(%arg0: i32) -> (i32, i32) {
    %c0_i32 = arith.constant 0 : i32
    %c0_i32_0 = arith.constant 0 : i32
    %c0_i32_1 = arith.constant 0 : i32
    return %c0_i32, %c0_i32_0 : i32, i32
  }
  func.func @transform_2(%arg0: i32) -> (i32, i32) {
    %c0_i32 = arith.constant 0 : i32
    %c0_i32_0 = arith.constant 0 : i32
    %c0_i32_1 = arith.constant 0 : i32
    return %c0_i32, %c0_i32_0 : i32, i32
  }
  func.func @transform_3(%arg0: i32) -> (i32, i32) {
    %c0_i32 = arith.constant 0 : i32
    %c0_i32_0 = arith.constant 0 : i32
    return %arg0, %c0_i32 : i32, i32
  }
}

module attributes {stable_mosaic.version = 11 : i64} {
  func.func @_edge_mlp_kernel(%arg0: i32, %arg1: i32, %arg2: memref<1x8x3xf32, #tpu.memory_space<vmem>>, %arg3: memref<1x3x8xf32, #tpu.memory_space<vmem>>, %arg4: memref<1x3x8x8xf32, #tpu.memory_space<vmem>>, %arg5: memref<3x3xf32, #tpu.memory_space<smem>>, %arg6: memref<3xf32, #tpu.memory_space<smem>>, %arg7: memref<3x2xf32, #tpu.memory_space<smem>>, %arg8: memref<2xf32, #tpu.memory_space<smem>>, %arg9: memref<1x2x8x8xf32, #tpu.memory_space<vmem>>) attributes {dimension_semantics = [#tpu.dimension_semantics<parallel>, #tpu.dimension_semantics<parallel>], iteration_bounds = array<i64: 2, 1>, scalar_prefetch = 0 : i64, scratch_operands = 0 : i64, tpu.core_type = #tpu.core_type<tc>, window_params = [{transform_indices = @transform_0, window_bounds = array<i64: 1, 8, 3>}, {transform_indices = @transform_1, window_bounds = array<i64: 1, 3, 8>}, {transform_indices = @transform_2, window_bounds = array<i64: 1, 3, 8, 8>}, {transform_indices = @transform_3, window_bounds = array<i64: 3, 3>}, {transform_indices = @transform_4, window_bounds = array<i64: 3>}, {transform_indices = @transform_5, window_bounds = array<i64: 3, 2>}, {transform_indices = @transform_6, window_bounds = array<i64: 2>}, {transform_indices = @transform_7, window_bounds = array<i64: 1, 2, 8, 8>}]} {
    %c0 = arith.constant 0 : index
    %c0_0 = arith.constant 0 : index
    %c0_1 = arith.constant 0 : index
    %0 = vector.load %arg2[%c0, %c0_0, %c0_1] : memref<1x8x3xf32, #tpu.memory_space<vmem>>, vector<1x8x1xf32>
    %1 = vector.shape_cast %0 : vector<1x8x1xf32> to vector<8x1xf32>
    %c0_2 = arith.constant 0 : index
    %c0_3 = arith.constant 0 : index
    %c0_4 = arith.constant 0 : index
    %2 = vector.load %arg3[%c0_2, %c0_3, %c0_4] : memref<1x3x8xf32, #tpu.memory_space<vmem>>, vector<1x1x8xf32>
    %3 = vector.shape_cast %2 : vector<1x1x8xf32> to vector<1x8xf32>
    %4 = vector.broadcast %1 : vector<8x1xf32> to vector<8x8xf32>
    %5 = vector.broadcast %3 : vector<1x8xf32> to vector<8x8xf32>
    %6 = arith.addf %4, %5 : vector<8x8xf32>
    %c0_5 = arith.constant 0 : index
    %7 = memref.load %arg6[%c0_5] : memref<3xf32, #tpu.memory_space<smem>>
    %8 = vector.broadcast %7 : f32 to vector<8x8xf32>
    %9 = arith.addf %6, %8 : vector<8x8xf32>
    %c0_6 = arith.constant 0 : index
    %c0_7 = arith.constant 0 : index
    %10 = memref.load %arg5[%c0_6, %c0_7] : memref<3x3xf32, #tpu.memory_space<smem>>
    %c0_8 = arith.constant 0 : index
    %c0_9 = arith.constant 0 : index
    %c0_10 = arith.constant 0 : index
    %c0_11 = arith.constant 0 : index
    %11 = vector.load %arg4[%c0_8, %c0_9, %c0_10, %c0_11] : memref<1x3x8x8xf32, #tpu.memory_space<vmem>>, vector<1x1x8x8xf32>
    %12 = vector.shape_cast %11 : vector<1x1x8x8xf32> to vector<8x8xf32>
    %13 = vector.broadcast %10 : f32 to vector<8x8xf32>
    %14 = arith.mulf %13, %12 : vector<8x8xf32>
    %15 = arith.addf %9, %14 : vector<8x8xf32>
    %c1 = arith.constant 1 : index
    %c0_12 = arith.constant 0 : index
    %16 = memref.load %arg5[%c1, %c0_12] : memref<3x3xf32, #tpu.memory_space<smem>>
    %c0_13 = arith.constant 0 : index
    %c1_14 = arith.constant 1 : index
    %c0_15 = arith.constant 0 : index
    %c0_16 = arith.constant 0 : index
    %17 = vector.load %arg4[%c0_13, %c1_14, %c0_15, %c0_16] : memref<1x3x8x8xf32, #tpu.memory_space<vmem>>, vector<1x1x8x8xf32>
    %18 = vector.shape_cast %17 : vector<1x1x8x8xf32> to vector<8x8xf32>
    %19 = vector.broadcast %16 : f32 to vector<8x8xf32>
    %20 = arith.mulf %19, %18 : vector<8x8xf32>
    %21 = arith.addf %15, %20 : vector<8x8xf32>
    %c2 = arith.constant 2 : index
    %c0_17 = arith.constant 0 : index
    %22 = memref.load %arg5[%c2, %c0_17] : memref<3x3xf32, #tpu.memory_space<smem>>
    %c0_18 = arith.constant 0 : index
    %c2_19 = arith.constant 2 : index
    %c0_20 = arith.constant 0 : index
    %c0_21 = arith.constant 0 : index
    %23 = vector.load %arg4[%c0_18, %c2_19, %c0_20, %c0_21] : memref<1x3x8x8xf32, #tpu.memory_space<vmem>>, vector<1x1x8x8xf32>
    %24 = vector.shape_cast %23 : vector<1x1x8x8xf32> to vector<8x8xf32>
    %25 = vector.broadcast %22 : f32 to vector<8x8xf32>
    %26 = arith.mulf %25, %24 : vector<8x8xf32>
    %27 = arith.addf %21, %26 : vector<8x8xf32>
    %c0_22 = arith.constant 0 : index
    %c0_23 = arith.constant 0 : index
    %c1_24 = arith.constant 1 : index
    %28 = vector.load %arg2[%c0_22, %c0_23, %c1_24] : memref<1x8x3xf32, #tpu.memory_space<vmem>>, vector<1x8x1xf32>
    %29 = vector.shape_cast %28 : vector<1x8x1xf32> to vector<8x1xf32>
    %c0_25 = arith.constant 0 : index
    %c1_26 = arith.constant 1 : index
    %c0_27 = arith.constant 0 : index
    %30 = vector.load %arg3[%c0_25, %c1_26, %c0_27] : memref<1x3x8xf32, #tpu.memory_space<vmem>>, vector<1x1x8xf32>
    %31 = vector.shape_cast %30 : vector<1x1x8xf32> to vector<1x8xf32>
    %32 = vector.broadcast %29 : vector<8x1xf32> to vector<8x8xf32>
    %33 = vector.broadcast %31 : vector<1x8xf32> to vector<8x8xf32>
    %34 = arith.addf %32, %33 : vector<8x8xf32>
    %c1_28 = arith.constant 1 : index
    %35 = memref.load %arg6[%c1_28] : memref<3xf32, #tpu.memory_space<smem>>
    %36 = vector.broadcast %35 : f32 to vector<8x8xf32>
    %37 = arith.addf %34, %36 : vector<8x8xf32>
    %c0_29 = arith.constant 0 : index
    %c1_30 = arith.constant 1 : index
    %38 = memref.load %arg5[%c0_29, %c1_30] : memref<3x3xf32, #tpu.memory_space<smem>>
    %c0_31 = arith.constant 0 : index
    %c0_32 = arith.constant 0 : index
    %c0_33 = arith.constant 0 : index
    %c0_34 = arith.constant 0 : index
    %39 = vector.load %arg4[%c0_31, %c0_32, %c0_33, %c0_34] : memref<1x3x8x8xf32, #tpu.memory_space<vmem>>, vector<1x1x8x8xf32>
    %40 = vector.shape_cast %39 : vector<1x1x8x8xf32> to vector<8x8xf32>
    %41 = vector.broadcast %38 : f32 to vector<8x8xf32>
    %42 = arith.mulf %41, %40 : vector<8x8xf32>
    %43 = arith.addf %37, %42 : vector<8x8xf32>
    %c1_35 = arith.constant 1 : index
    %c1_36 = arith.constant 1 : index
    %44 = memref.load %arg5[%c1_35, %c1_36] : memref<3x3xf32, #tpu.memory_space<smem>>
    %c0_37 = arith.constant 0 : index
    %c1_38 = arith.constant 1 : index
    %c0_39 = arith.constant 0 : index
    %c0_40 = arith.constant 0 : index
    %45 = vector.load %arg4[%c0_37, %c1_38, %c0_39, %c0_40] : memref<1x3x8x8xf32, #tpu.memory_space<vmem>>, vector<1x1x8x8xf32>
    %46 = vector.shape_cast %45 : vector<1x1x8x8xf32> to vector<8x8xf32>
    %47 = vector.broadcast %44 : f32 to vector<8x8xf32>
    %48 = arith.mulf %47, %46 : vector<8x8xf32>
    %49 = arith.addf %43, %48 : vector<8x8xf32>
    %c2_41 = arith.constant 2 : index
    %c1_42 = arith.constant 1 : index
    %50 = memref.load %arg5[%c2_41, %c1_42] : memref<3x3xf32, #tpu.memory_space<smem>>
    %c0_43 = arith.constant 0 : index
    %c2_44 = arith.constant 2 : index
    %c0_45 = arith.constant 0 : index
    %c0_46 = arith.constant 0 : index
    %51 = vector.load %arg4[%c0_43, %c2_44, %c0_45, %c0_46] : memref<1x3x8x8xf32, #tpu.memory_space<vmem>>, vector<1x1x8x8xf32>
    %52 = vector.shape_cast %51 : vector<1x1x8x8xf32> to vector<8x8xf32>
    %53 = vector.broadcast %50 : f32 to vector<8x8xf32>
    %54 = arith.mulf %53, %52 : vector<8x8xf32>
    %55 = arith.addf %49, %54 : vector<8x8xf32>
    %c0_47 = arith.constant 0 : index
    %c0_48 = arith.constant 0 : index
    %c2_49 = arith.constant 2 : index
    %56 = vector.load %arg2[%c0_47, %c0_48, %c2_49] : memref<1x8x3xf32, #tpu.memory_space<vmem>>, vector<1x8x1xf32>
    %57 = vector.shape_cast %56 : vector<1x8x1xf32> to vector<8x1xf32>
    %c0_50 = arith.constant 0 : index
    %c2_51 = arith.constant 2 : index
    %c0_52 = arith.constant 0 : index
    %58 = vector.load %arg3[%c0_50, %c2_51, %c0_52] : memref<1x3x8xf32, #tpu.memory_space<vmem>>, vector<1x1x8xf32>
    %59 = vector.shape_cast %58 : vector<1x1x8xf32> to vector<1x8xf32>
    %60 = vector.broadcast %57 : vector<8x1xf32> to vector<8x8xf32>
    %61 = vector.broadcast %59 : vector<1x8xf32> to vector<8x8xf32>
    %62 = arith.addf %60, %61 : vector<8x8xf32>
    %c2_53 = arith.constant 2 : index
    %63 = memref.load %arg6[%c2_53] : memref<3xf32, #tpu.memory_space<smem>>
    %64 = vector.broadcast %63 : f32 to vector<8x8xf32>
    %65 = arith.addf %62, %64 : vector<8x8xf32>
    %c0_54 = arith.constant 0 : index
    %c2_55 = arith.constant 2 : index
    %66 = memref.load %arg5[%c0_54, %c2_55] : memref<3x3xf32, #tpu.memory_space<smem>>
    %c0_56 = arith.constant 0 : index
    %c0_57 = arith.constant 0 : index
    %c0_58 = arith.constant 0 : index
    %c0_59 = arith.constant 0 : index
    %67 = vector.load %arg4[%c0_56, %c0_57, %c0_58, %c0_59] : memref<1x3x8x8xf32, #tpu.memory_space<vmem>>, vector<1x1x8x8xf32>
    %68 = vector.shape_cast %67 : vector<1x1x8x8xf32> to vector<8x8xf32>
    %69 = vector.broadcast %66 : f32 to vector<8x8xf32>
    %70 = arith.mulf %69, %68 : vector<8x8xf32>
    %71 = arith.addf %65, %70 : vector<8x8xf32>
    %c1_60 = arith.constant 1 : index
    %c2_61 = arith.constant 2 : index
    %72 = memref.load %arg5[%c1_60, %c2_61] : memref<3x3xf32, #tpu.memory_space<smem>>
    %c0_62 = arith.constant 0 : index
    %c1_63 = arith.constant 1 : index
    %c0_64 = arith.constant 0 : index
    %c0_65 = arith.constant 0 : index
    %73 = vector.load %arg4[%c0_62, %c1_63, %c0_64, %c0_65] : memref<1x3x8x8xf32, #tpu.memory_space<vmem>>, vector<1x1x8x8xf32>
    %74 = vector.shape_cast %73 : vector<1x1x8x8xf32> to vector<8x8xf32>
    %75 = vector.broadcast %72 : f32 to vector<8x8xf32>
    %76 = arith.mulf %75, %74 : vector<8x8xf32>
    %77 = arith.addf %71, %76 : vector<8x8xf32>
    %c2_66 = arith.constant 2 : index
    %c2_67 = arith.constant 2 : index
    %78 = memref.load %arg5[%c2_66, %c2_67] : memref<3x3xf32, #tpu.memory_space<smem>>
    %c0_68 = arith.constant 0 : index
    %c2_69 = arith.constant 2 : index
    %c0_70 = arith.constant 0 : index
    %c0_71 = arith.constant 0 : index
    %79 = vector.load %arg4[%c0_68, %c2_69, %c0_70, %c0_71] : memref<1x3x8x8xf32, #tpu.memory_space<vmem>>, vector<1x1x8x8xf32>
    %80 = vector.shape_cast %79 : vector<1x1x8x8xf32> to vector<8x8xf32>
    %81 = vector.broadcast %78 : f32 to vector<8x8xf32>
    %82 = arith.mulf %81, %80 : vector<8x8xf32>
    %83 = arith.addf %77, %82 : vector<8x8xf32>
    %cst = arith.constant 0.000000e+00 : f32
    %84 = vector.broadcast %cst : f32 to vector<8x8xf32>
    %85 = arith.cmpf ogt, %27, %84 : vector<8x8xf32>
    %cst_72 = arith.constant 0.000000e+00 : f32
    %86 = vector.broadcast %cst_72 : f32 to vector<8x8xf32>
    %87 = arith.minimumf %27, %86 : vector<8x8xf32>
    %88 = math.exp %87 : vector<8x8xf32>
    %cst_73 = arith.constant 1.000000e+00 : f32
    %89 = vector.broadcast %cst_73 : f32 to vector<8x8xf32>
    %90 = arith.subf %88, %89 : vector<8x8xf32>
    %91 = arith.select %85, %27, %90 : vector<8x8xi1>, vector<8x8xf32>
    %cst_74 = arith.constant 0.000000e+00 : f32
    %92 = vector.broadcast %cst_74 : f32 to vector<8x8xf32>
    %93 = arith.cmpf ogt, %55, %92 : vector<8x8xf32>
    %cst_75 = arith.constant 0.000000e+00 : f32
    %94 = vector.broadcast %cst_75 : f32 to vector<8x8xf32>
    %95 = arith.minimumf %55, %94 : vector<8x8xf32>
    %96 = math.exp %95 : vector<8x8xf32>
    %cst_76 = arith.constant 1.000000e+00 : f32
    %97 = vector.broadcast %cst_76 : f32 to vector<8x8xf32>
    %98 = arith.subf %96, %97 : vector<8x8xf32>
    %99 = arith.select %93, %55, %98 : vector<8x8xi1>, vector<8x8xf32>
    %cst_77 = arith.constant 0.000000e+00 : f32
    %100 = vector.broadcast %cst_77 : f32 to vector<8x8xf32>
    %101 = arith.cmpf ogt, %83, %100 : vector<8x8xf32>
    %cst_78 = arith.constant 0.000000e+00 : f32
    %102 = vector.broadcast %cst_78 : f32 to vector<8x8xf32>
    %103 = arith.minimumf %83, %102 : vector<8x8xf32>
    %104 = math.exp %103 : vector<8x8xf32>
    %cst_79 = arith.constant 1.000000e+00 : f32
    %105 = vector.broadcast %cst_79 : f32 to vector<8x8xf32>
    %106 = arith.subf %104, %105 : vector<8x8xf32>
    %107 = arith.select %101, %83, %106 : vector<8x8xi1>, vector<8x8xf32>
    %c0_80 = arith.constant 0 : index
    %108 = memref.load %arg8[%c0_80] : memref<2xf32, #tpu.memory_space<smem>>
    %c0_81 = arith.constant 0 : index
    %c0_82 = arith.constant 0 : index
    %109 = memref.load %arg7[%c0_81, %c0_82] : memref<3x2xf32, #tpu.memory_space<smem>>
    %110 = vector.broadcast %109 : f32 to vector<8x8xf32>
    %111 = arith.mulf %110, %91 : vector<8x8xf32>
    %112 = vector.broadcast %108 : f32 to vector<8x8xf32>
    %113 = arith.addf %112, %111 : vector<8x8xf32>
    %c1_83 = arith.constant 1 : index
    %c0_84 = arith.constant 0 : index
    %114 = memref.load %arg7[%c1_83, %c0_84] : memref<3x2xf32, #tpu.memory_space<smem>>
    %115 = vector.broadcast %114 : f32 to vector<8x8xf32>
    %116 = arith.mulf %115, %99 : vector<8x8xf32>
    %117 = arith.addf %113, %116 : vector<8x8xf32>
    %c2_85 = arith.constant 2 : index
    %c0_86 = arith.constant 0 : index
    %118 = memref.load %arg7[%c2_85, %c0_86] : memref<3x2xf32, #tpu.memory_space<smem>>
    %119 = vector.broadcast %118 : f32 to vector<8x8xf32>
    %120 = arith.mulf %119, %107 : vector<8x8xf32>
    %121 = arith.addf %117, %120 : vector<8x8xf32>
    %c1_87 = arith.constant 1 : index
    %122 = memref.load %arg8[%c1_87] : memref<2xf32, #tpu.memory_space<smem>>
    %c0_88 = arith.constant 0 : index
    %c1_89 = arith.constant 1 : index
    %123 = memref.load %arg7[%c0_88, %c1_89] : memref<3x2xf32, #tpu.memory_space<smem>>
    %124 = vector.broadcast %123 : f32 to vector<8x8xf32>
    %125 = arith.mulf %124, %91 : vector<8x8xf32>
    %126 = vector.broadcast %122 : f32 to vector<8x8xf32>
    %127 = arith.addf %126, %125 : vector<8x8xf32>
    %c1_90 = arith.constant 1 : index
    %c1_91 = arith.constant 1 : index
    %128 = memref.load %arg7[%c1_90, %c1_91] : memref<3x2xf32, #tpu.memory_space<smem>>
    %129 = vector.broadcast %128 : f32 to vector<8x8xf32>
    %130 = arith.mulf %129, %99 : vector<8x8xf32>
    %131 = arith.addf %127, %130 : vector<8x8xf32>
    %c2_92 = arith.constant 2 : index
    %c1_93 = arith.constant 1 : index
    %132 = memref.load %arg7[%c2_92, %c1_93] : memref<3x2xf32, #tpu.memory_space<smem>>
    %133 = vector.broadcast %132 : f32 to vector<8x8xf32>
    %134 = arith.mulf %133, %107 : vector<8x8xf32>
    %135 = arith.addf %131, %134 : vector<8x8xf32>
    %c0_94 = arith.constant 0 : index
    %c0_95 = arith.constant 0 : index
    %c0_96 = arith.constant 0 : index
    %c0_97 = arith.constant 0 : index
    %136 = vector.load %arg9[%c0_94, %c0_95, %c0_96, %c0_97] : memref<1x2x8x8xf32, #tpu.memory_space<vmem>>, vector<1x1x8x8xf32>
    %137 = vector.shape_cast %136 : vector<1x1x8x8xf32> to vector<8x8xf32>
    %138 = vector.shape_cast %121 : vector<8x8xf32> to vector<1x1x8x8xf32>
    tpu.vector_store %arg9[%c0_94, %c0_95, %c0_96, %c0_97], %138 {strides = array<i32>} : memref<1x2x8x8xf32, #tpu.memory_space<vmem>>, vector<1x1x8x8xf32>,
    %c0_98 = arith.constant 0 : index
    %c1_99 = arith.constant 1 : index
    %c0_100 = arith.constant 0 : index
    %c0_101 = arith.constant 0 : index
    %139 = vector.load %arg9[%c0_98, %c1_99, %c0_100, %c0_101] : memref<1x2x8x8xf32, #tpu.memory_space<vmem>>, vector<1x1x8x8xf32>
    %140 = vector.shape_cast %139 : vector<1x1x8x8xf32> to vector<8x8xf32>
    %141 = vector.shape_cast %135 : vector<8x8xf32> to vector<1x1x8x8xf32>
    tpu.vector_store %arg9[%c0_98, %c1_99, %c0_100, %c0_101], %141 {strides = array<i32>} : memref<1x2x8x8xf32, #tpu.memory_space<vmem>>, vector<1x1x8x8xf32>,
    return
  }
  func.func @transform_0(%arg0: i32, %arg1: i32) -> (i32, i32, i32) {
    %c0_i32 = arith.constant 0 : i32
    %c0_i32_0 = arith.constant 0 : i32
    return %arg0, %arg1, %c0_i32 : i32, i32, i32
  }
  func.func @transform_1(%arg0: i32, %arg1: i32) -> (i32, i32, i32) {
    %c0_i32 = arith.constant 0 : i32
    %c0_i32_0 = arith.constant 0 : i32
    %c0_i32_1 = arith.constant 0 : i32
    return %arg0, %c0_i32, %c0_i32_0 : i32, i32, i32
  }
  func.func @transform_2(%arg0: i32, %arg1: i32) -> (i32, i32, i32, i32) {
    %c0_i32 = arith.constant 0 : i32
    %c0_i32_0 = arith.constant 0 : i32
    %c0_i32_1 = arith.constant 0 : i32
    return %arg0, %c0_i32, %arg1, %c0_i32_0 : i32, i32, i32, i32
  }
  func.func @transform_3(%arg0: i32, %arg1: i32) -> (i32, i32) {
    %c0_i32 = arith.constant 0 : i32
    %c0_i32_0 = arith.constant 0 : i32
    %c0_i32_1 = arith.constant 0 : i32
    return %c0_i32, %c0_i32_0 : i32, i32
  }
  func.func @transform_4(%arg0: i32, %arg1: i32) -> i32 {
    %c0_i32 = arith.constant 0 : i32
    %c0_i32_0 = arith.constant 0 : i32
    return %c0_i32 : i32
  }
  func.func @transform_5(%arg0: i32, %arg1: i32) -> (i32, i32) {
    %c0_i32 = arith.constant 0 : i32
    %c0_i32_0 = arith.constant 0 : i32
    %c0_i32_1 = arith.constant 0 : i32
    return %c0_i32, %c0_i32_0 : i32, i32
  }
  func.func @transform_6(%arg0: i32, %arg1: i32) -> i32 {
    %c0_i32 = arith.constant 0 : i32
    %c0_i32_0 = arith.constant 0 : i32
    return %c0_i32 : i32
  }
  func.func @transform_7(%arg0: i32, %arg1: i32) -> (i32, i32, i32, i32) {
    %c0_i32 = arith.constant 0 : i32
    %c0_i32_0 = arith.constant 0 : i32
    %c0_i32_1 = arith.constant 0 : i32
    return %arg0, %c0_i32, %arg1, %c0_i32_0 : i32, i32, i32, i32
  }
}

module attributes {stable_mosaic.version = 11 : i64} {
  func.func @_chan_mlp_kernel(%arg0: i32, %arg1: i32, %arg2: memref<1x7x8x8xf32, #tpu.memory_space<vmem>>, %arg3: memref<7x14xf32, #tpu.memory_space<smem>>, %arg4: memref<14xf32, #tpu.memory_space<smem>>, %arg5: memref<14x14xf32, #tpu.memory_space<smem>>, %arg6: memref<14xf32, #tpu.memory_space<smem>>, %arg7: memref<14x1xf32, #tpu.memory_space<smem>>, %arg8: memref<1xf32, #tpu.memory_space<smem>>, %arg9: memref<1x1x8x8xf32, #tpu.memory_space<vmem>>) attributes {dimension_semantics = [#tpu.dimension_semantics<parallel>, #tpu.dimension_semantics<parallel>], iteration_bounds = array<i64: 2, 1>, scalar_prefetch = 0 : i64, scratch_operands = 0 : i64, tpu.core_type = #tpu.core_type<tc>, window_params = [{transform_indices = @transform_0, window_bounds = array<i64: 1, 7, 8, 8>}, {transform_indices = @transform_1, window_bounds = array<i64: 7, 14>}, {transform_indices = @transform_2, window_bounds = array<i64: 14>}, {transform_indices = @transform_3, window_bounds = array<i64: 14, 14>}, {transform_indices = @transform_4, window_bounds = array<i64: 14>}, {transform_indices = @transform_5, window_bounds = array<i64: 14, 1>}, {transform_indices = @transform_6, window_bounds = array<i64: 1>}, {transform_indices = @transform_7, window_bounds = array<i64: 1, 1, 8, 8>}]} {
    %c0 = arith.constant 0 : index
    %0 = memref.load %arg4[%c0] : memref<14xf32, #tpu.memory_space<smem>>
    %c0_0 = arith.constant 0 : index
    %c0_1 = arith.constant 0 : index
    %1 = memref.load %arg3[%c0_0, %c0_1] : memref<7x14xf32, #tpu.memory_space<smem>>
    %c0_2 = arith.constant 0 : index
    %c0_3 = arith.constant 0 : index
    %c0_4 = arith.constant 0 : index
    %c0_5 = arith.constant 0 : index
    %2 = vector.load %arg2[%c0_2, %c0_3, %c0_4, %c0_5] : memref<1x7x8x8xf32, #tpu.memory_space<vmem>>, vector<1x1x8x8xf32>
    %3 = vector.shape_cast %2 : vector<1x1x8x8xf32> to vector<8x8xf32>
    %4 = vector.broadcast %1 : f32 to vector<8x8xf32>
    %5 = arith.mulf %4, %3 : vector<8x8xf32>
    %6 = vector.broadcast %0 : f32 to vector<8x8xf32>
    %7 = arith.addf %6, %5 : vector<8x8xf32>
    %c1 = arith.constant 1 : index
    %c0_6 = arith.constant 0 : index
    %8 = memref.load %arg3[%c1, %c0_6] : memref<7x14xf32, #tpu.memory_space<smem>>
    %c0_7 = arith.constant 0 : index
    %c1_8 = arith.constant 1 : index
    %c0_9 = arith.constant 0 : index
    %c0_10 = arith.constant 0 : index
    %9 = vector.load %arg2[%c0_7, %c1_8, %c0_9, %c0_10] : memref<1x7x8x8xf32, #tpu.memory_space<vmem>>, vector<1x1x8x8xf32>
    %10 = vector.shape_cast %9 : vector<1x1x8x8xf32> to vector<8x8xf32>
    %11 = vector.broadcast %8 : f32 to vector<8x8xf32>
    %12 = arith.mulf %11, %10 : vector<8x8xf32>
    %13 = arith.addf %7, %12 : vector<8x8xf32>
    %c2 = arith.constant 2 : index
    %c0_11 = arith.constant 0 : index
    %14 = memref.load %arg3[%c2, %c0_11] : memref<7x14xf32, #tpu.memory_space<smem>>
    %c0_12 = arith.constant 0 : index
    %c2_13 = arith.constant 2 : index
    %c0_14 = arith.constant 0 : index
    %c0_15 = arith.constant 0 : index
    %15 = vector.load %arg2[%c0_12, %c2_13, %c0_14, %c0_15] : memref<1x7x8x8xf32, #tpu.memory_space<vmem>>, vector<1x1x8x8xf32>
    %16 = vector.shape_cast %15 : vector<1x1x8x8xf32> to vector<8x8xf32>
    %17 = vector.broadcast %14 : f32 to vector<8x8xf32>
    %18 = arith.mulf %17, %16 : vector<8x8xf32>
    %19 = arith.addf %13, %18 : vector<8x8xf32>
    %c3 = arith.constant 3 : index
    %c0_16 = arith.constant 0 : index
    %20 = memref.load %arg3[%c3, %c0_16] : memref<7x14xf32, #tpu.memory_space<smem>>
    %c0_17 = arith.constant 0 : index
    %c3_18 = arith.constant 3 : index
    %c0_19 = arith.constant 0 : index
    %c0_20 = arith.constant 0 : index
    %21 = vector.load %arg2[%c0_17, %c3_18, %c0_19, %c0_20] : memref<1x7x8x8xf32, #tpu.memory_space<vmem>>, vector<1x1x8x8xf32>
    %22 = vector.shape_cast %21 : vector<1x1x8x8xf32> to vector<8x8xf32>
    %23 = vector.broadcast %20 : f32 to vector<8x8xf32>
    %24 = arith.mulf %23, %22 : vector<8x8xf32>
    %25 = arith.addf %19, %24 : vector<8x8xf32>
    %c4 = arith.constant 4 : index
    %c0_21 = arith.constant 0 : index
    %26 = memref.load %arg3[%c4, %c0_21] : memref<7x14xf32, #tpu.memory_space<smem>>
    %c0_22 = arith.constant 0 : index
    %c4_23 = arith.constant 4 : index
    %c0_24 = arith.constant 0 : index
    %c0_25 = arith.constant 0 : index
    %27 = vector.load %arg2[%c0_22, %c4_23, %c0_24, %c0_25] : memref<1x7x8x8xf32, #tpu.memory_space<vmem>>, vector<1x1x8x8xf32>
    %28 = vector.shape_cast %27 : vector<1x1x8x8xf32> to vector<8x8xf32>
    %29 = vector.broadcast %26 : f32 to vector<8x8xf32>
    %30 = arith.mulf %29, %28 : vector<8x8xf32>
    %31 = arith.addf %25, %30 : vector<8x8xf32>
    %c5 = arith.constant 5 : index
    %c0_26 = arith.constant 0 : index
    %32 = memref.load %arg3[%c5, %c0_26] : memref<7x14xf32, #tpu.memory_space<smem>>
    %c0_27 = arith.constant 0 : index
    %c5_28 = arith.constant 5 : index
    %c0_29 = arith.constant 0 : index
    %c0_30 = arith.constant 0 : index
    %33 = vector.load %arg2[%c0_27, %c5_28, %c0_29, %c0_30] : memref<1x7x8x8xf32, #tpu.memory_space<vmem>>, vector<1x1x8x8xf32>
    %34 = vector.shape_cast %33 : vector<1x1x8x8xf32> to vector<8x8xf32>
    %35 = vector.broadcast %32 : f32 to vector<8x8xf32>
    %36 = arith.mulf %35, %34 : vector<8x8xf32>
    %37 = arith.addf %31, %36 : vector<8x8xf32>
    %c6 = arith.constant 6 : index
    %c0_31 = arith.constant 0 : index
    %38 = memref.load %arg3[%c6, %c0_31] : memref<7x14xf32, #tpu.memory_space<smem>>
    %c0_32 = arith.constant 0 : index
    %c6_33 = arith.constant 6 : index
    %c0_34 = arith.constant 0 : index
    %c0_35 = arith.constant 0 : index
    %39 = vector.load %arg2[%c0_32, %c6_33, %c0_34, %c0_35] : memref<1x7x8x8xf32, #tpu.memory_space<vmem>>, vector<1x1x8x8xf32>
    %40 = vector.shape_cast %39 : vector<1x1x8x8xf32> to vector<8x8xf32>
    %41 = vector.broadcast %38 : f32 to vector<8x8xf32>
    %42 = arith.mulf %41, %40 : vector<8x8xf32>
    %43 = arith.addf %37, %42 : vector<8x8xf32>
    %c1_36 = arith.constant 1 : index
    %44 = memref.load %arg4[%c1_36] : memref<14xf32, #tpu.memory_space<smem>>
    %c0_37 = arith.constant 0 : index
    %c1_38 = arith.constant 1 : index
    %45 = memref.load %arg3[%c0_37, %c1_38] : memref<7x14xf32, #tpu.memory_space<smem>>
    %c0_39 = arith.constant 0 : index
    %c0_40 = arith.constant 0 : index
    %c0_41 = arith.constant 0 : index
    %c0_42 = arith.constant 0 : index
    %46 = vector.load %arg2[%c0_39, %c0_40, %c0_41, %c0_42] : memref<1x7x8x8xf32, #tpu.memory_space<vmem>>, vector<1x1x8x8xf32>
    %47 = vector.shape_cast %46 : vector<1x1x8x8xf32> to vector<8x8xf32>
    %48 = vector.broadcast %45 : f32 to vector<8x8xf32>
    %49 = arith.mulf %48, %47 : vector<8x8xf32>
    %50 = vector.broadcast %44 : f32 to vector<8x8xf32>
    %51 = arith.addf %50, %49 : vector<8x8xf32>
    %c1_43 = arith.constant 1 : index
    %c1_44 = arith.constant 1 : index
    %52 = memref.load %arg3[%c1_43, %c1_44] : memref<7x14xf32, #tpu.memory_space<smem>>
    %c0_45 = arith.constant 0 : index
    %c1_46 = arith.constant 1 : index
    %c0_47 = arith.constant 0 : index
    %c0_48 = arith.constant 0 : index
    %53 = vector.load %arg2[%c0_45, %c1_46, %c0_47, %c0_48] : memref<1x7x8x8xf32, #tpu.memory_space<vmem>>, vector<1x1x8x8xf32>
    %54 = vector.shape_cast %53 : vector<1x1x8x8xf32> to vector<8x8xf32>
    %55 = vector.broadcast %52 : f32 to vector<8x8xf32>
    %56 = arith.mulf %55, %54 : vector<8x8xf32>
    %57 = arith.addf %51, %56 : vector<8x8xf32>
    %c2_49 = arith.constant 2 : index
    %c1_50 = arith.constant 1 : index
    %58 = memref.load %arg3[%c2_49, %c1_50] : memref<7x14xf32, #tpu.memory_space<smem>>
    %c0_51 = arith.constant 0 : index
    %c2_52 = arith.constant 2 : index
    %c0_53 = arith.constant 0 : index
    %c0_54 = arith.constant 0 : index
    %59 = vector.load %arg2[%c0_51, %c2_52, %c0_53, %c0_54] : memref<1x7x8x8xf32, #tpu.memory_space<vmem>>, vector<1x1x8x8xf32>
    %60 = vector.shape_cast %59 : vector<1x1x8x8xf32> to vector<8x8xf32>
    %61 = vector.broadcast %58 : f32 to vector<8x8xf32>
    %62 = arith.mulf %61, %60 : vector<8x8xf32>
    %63 = arith.addf %57, %62 : vector<8x8xf32>
    %c3_55 = arith.constant 3 : index
    %c1_56 = arith.constant 1 : index
    %64 = memref.load %arg3[%c3_55, %c1_56] : memref<7x14xf32, #tpu.memory_space<smem>>
    %c0_57 = arith.constant 0 : index
    %c3_58 = arith.constant 3 : index
    %c0_59 = arith.constant 0 : index
    %c0_60 = arith.constant 0 : index
    %65 = vector.load %arg2[%c0_57, %c3_58, %c0_59, %c0_60] : memref<1x7x8x8xf32, #tpu.memory_space<vmem>>, vector<1x1x8x8xf32>
    %66 = vector.shape_cast %65 : vector<1x1x8x8xf32> to vector<8x8xf32>
    %67 = vector.broadcast %64 : f32 to vector<8x8xf32>
    %68 = arith.mulf %67, %66 : vector<8x8xf32>
    %69 = arith.addf %63, %68 : vector<8x8xf32>
    %c4_61 = arith.constant 4 : index
    %c1_62 = arith.constant 1 : index
    %70 = memref.load %arg3[%c4_61, %c1_62] : memref<7x14xf32, #tpu.memory_space<smem>>
    %c0_63 = arith.constant 0 : index
    %c4_64 = arith.constant 4 : index
    %c0_65 = arith.constant 0 : index
    %c0_66 = arith.constant 0 : index
    %71 = vector.load %arg2[%c0_63, %c4_64, %c0_65, %c0_66] : memref<1x7x8x8xf32, #tpu.memory_space<vmem>>, vector<1x1x8x8xf32>
    %72 = vector.shape_cast %71 : vector<1x1x8x8xf32> to vector<8x8xf32>
    %73 = vector.broadcast %70 : f32 to vector<8x8xf32>
    %74 = arith.mulf %73, %72 : vector<8x8xf32>
    %75 = arith.addf %69, %74 : vector<8x8xf32>
    %c5_67 = arith.constant 5 : index
    %c1_68 = arith.constant 1 : index
    %76 = memref.load %arg3[%c5_67, %c1_68] : memref<7x14xf32, #tpu.memory_space<smem>>
    %c0_69 = arith.constant 0 : index
    %c5_70 = arith.constant 5 : index
    %c0_71 = arith.constant 0 : index
    %c0_72 = arith.constant 0 : index
    %77 = vector.load %arg2[%c0_69, %c5_70, %c0_71, %c0_72] : memref<1x7x8x8xf32, #tpu.memory_space<vmem>>, vector<1x1x8x8xf32>
    %78 = vector.shape_cast %77 : vector<1x1x8x8xf32> to vector<8x8xf32>
    %79 = vector.broadcast %76 : f32 to vector<8x8xf32>
    %80 = arith.mulf %79, %78 : vector<8x8xf32>
    %81 = arith.addf %75, %80 : vector<8x8xf32>
    %c6_73 = arith.constant 6 : index
    %c1_74 = arith.constant 1 : index
    %82 = memref.load %arg3[%c6_73, %c1_74] : memref<7x14xf32, #tpu.memory_space<smem>>
    %c0_75 = arith.constant 0 : index
    %c6_76 = arith.constant 6 : index
    %c0_77 = arith.constant 0 : index
    %c0_78 = arith.constant 0 : index
    %83 = vector.load %arg2[%c0_75, %c6_76, %c0_77, %c0_78] : memref<1x7x8x8xf32, #tpu.memory_space<vmem>>, vector<1x1x8x8xf32>
    %84 = vector.shape_cast %83 : vector<1x1x8x8xf32> to vector<8x8xf32>
    %85 = vector.broadcast %82 : f32 to vector<8x8xf32>
    %86 = arith.mulf %85, %84 : vector<8x8xf32>
    %87 = arith.addf %81, %86 : vector<8x8xf32>
    %c2_79 = arith.constant 2 : index
    %88 = memref.load %arg4[%c2_79] : memref<14xf32, #tpu.memory_space<smem>>
    %c0_80 = arith.constant 0 : index
    %c2_81 = arith.constant 2 : index
    %89 = memref.load %arg3[%c0_80, %c2_81] : memref<7x14xf32, #tpu.memory_space<smem>>
    %c0_82 = arith.constant 0 : index
    %c0_83 = arith.constant 0 : index
    %c0_84 = arith.constant 0 : index
    %c0_85 = arith.constant 0 : index
    %90 = vector.load %arg2[%c0_82, %c0_83, %c0_84, %c0_85] : memref<1x7x8x8xf32, #tpu.memory_space<vmem>>, vector<1x1x8x8xf32>
    %91 = vector.shape_cast %90 : vector<1x1x8x8xf32> to vector<8x8xf32>
    %92 = vector.broadcast %89 : f32 to vector<8x8xf32>
    %93 = arith.mulf %92, %91 : vector<8x8xf32>
    %94 = vector.broadcast %88 : f32 to vector<8x8xf32>
    %95 = arith.addf %94, %93 : vector<8x8xf32>
    %c1_86 = arith.constant 1 : index
    %c2_87 = arith.constant 2 : index
    %96 = memref.load %arg3[%c1_86, %c2_87] : memref<7x14xf32, #tpu.memory_space<smem>>
    %c0_88 = arith.constant 0 : index
    %c1_89 = arith.constant 1 : index
    %c0_90 = arith.constant 0 : index
    %c0_91 = arith.constant 0 : index
    %97 = vector.load %arg2[%c0_88, %c1_89, %c0_90, %c0_91] : memref<1x7x8x8xf32, #tpu.memory_space<vmem>>, vector<1x1x8x8xf32>
    %98 = vector.shape_cast %97 : vector<1x1x8x8xf32> to vector<8x8xf32>
    %99 = vector.broadcast %96 : f32 to vector<8x8xf32>
    %100 = arith.mulf %99, %98 : vector<8x8xf32>
    %101 = arith.addf %95, %100 : vector<8x8xf32>
    %c2_92 = arith.constant 2 : index
    %c2_93 = arith.constant 2 : index
    %102 = memref.load %arg3[%c2_92, %c2_93] : memref<7x14xf32, #tpu.memory_space<smem>>
    %c0_94 = arith.constant 0 : index
    %c2_95 = arith.constant 2 : index
    %c0_96 = arith.constant 0 : index
    %c0_97 = arith.constant 0 : index
    %103 = vector.load %arg2[%c0_94, %c2_95, %c0_96, %c0_97] : memref<1x7x8x8xf32, #tpu.memory_space<vmem>>, vector<1x1x8x8xf32>
    %104 = vector.shape_cast %103 : vector<1x1x8x8xf32> to vector<8x8xf32>
    %105 = vector.broadcast %102 : f32 to vector<8x8xf32>
    %106 = arith.mulf %105, %104 : vector<8x8xf32>
    %107 = arith.addf %101, %106 : vector<8x8xf32>
    %c3_98 = arith.constant 3 : index
    %c2_99 = arith.constant 2 : index
    %108 = memref.load %arg3[%c3_98, %c2_99] : memref<7x14xf32, #tpu.memory_space<smem>>
    %c0_100 = arith.constant 0 : index
    %c3_101 = arith.constant 3 : index
    %c0_102 = arith.constant 0 : index
    %c0_103 = arith.constant 0 : index
    %109 = vector.load %arg2[%c0_100, %c3_101, %c0_102, %c0_103] : memref<1x7x8x8xf32, #tpu.memory_space<vmem>>, vector<1x1x8x8xf32>
    %110 = vector.shape_cast %109 : vector<1x1x8x8xf32> to vector<8x8xf32>
    %111 = vector.broadcast %108 : f32 to vector<8x8xf32>
    %112 = arith.mulf %111, %110 : vector<8x8xf32>
    %113 = arith.addf %107, %112 : vector<8x8xf32>
    %c4_104 = arith.constant 4 : index
    %c2_105 = arith.constant 2 : index
    %114 = memref.load %arg3[%c4_104, %c2_105] : memref<7x14xf32, #tpu.memory_space<smem>>
    %c0_106 = arith.constant 0 : index
    %c4_107 = arith.constant 4 : index
    %c0_108 = arith.constant 0 : index
    %c0_109 = arith.constant 0 : index
    %115 = vector.load %arg2[%c0_106, %c4_107, %c0_108, %c0_109] : memref<1x7x8x8xf32, #tpu.memory_space<vmem>>, vector<1x1x8x8xf32>
    %116 = vector.shape_cast %115 : vector<1x1x8x8xf32> to vector<8x8xf32>
    %117 = vector.broadcast %114 : f32 to vector<8x8xf32>
    %118 = arith.mulf %117, %116 : vector<8x8xf32>
    %119 = arith.addf %113, %118 : vector<8x8xf32>
    %c5_110 = arith.constant 5 : index
    %c2_111 = arith.constant 2 : index
    %120 = memref.load %arg3[%c5_110, %c2_111] : memref<7x14xf32, #tpu.memory_space<smem>>
    %c0_112 = arith.constant 0 : index
    %c5_113 = arith.constant 5 : index
    %c0_114 = arith.constant 0 : index
    %c0_115 = arith.constant 0 : index
    %121 = vector.load %arg2[%c0_112, %c5_113, %c0_114, %c0_115] : memref<1x7x8x8xf32, #tpu.memory_space<vmem>>, vector<1x1x8x8xf32>
    %122 = vector.shape_cast %121 : vector<1x1x8x8xf32> to vector<8x8xf32>
    %123 = vector.broadcast %120 : f32 to vector<8x8xf32>
    %124 = arith.mulf %123, %122 : vector<8x8xf32>
    %125 = arith.addf %119, %124 : vector<8x8xf32>
    %c6_116 = arith.constant 6 : index
    %c2_117 = arith.constant 2 : index
    %126 = memref.load %arg3[%c6_116, %c2_117] : memref<7x14xf32, #tpu.memory_space<smem>>
    %c0_118 = arith.constant 0 : index
    %c6_119 = arith.constant 6 : index
    %c0_120 = arith.constant 0 : index
    %c0_121 = arith.constant 0 : index
    %127 = vector.load %arg2[%c0_118, %c6_119, %c0_120, %c0_121] : memref<1x7x8x8xf32, #tpu.memory_space<vmem>>, vector<1x1x8x8xf32>
    %128 = vector.shape_cast %127 : vector<1x1x8x8xf32> to vector<8x8xf32>
    %129 = vector.broadcast %126 : f32 to vector<8x8xf32>
    %130 = arith.mulf %129, %128 : vector<8x8xf32>
    %131 = arith.addf %125, %130 : vector<8x8xf32>
    %c3_122 = arith.constant 3 : index
    %132 = memref.load %arg4[%c3_122] : memref<14xf32, #tpu.memory_space<smem>>
    %c0_123 = arith.constant 0 : index
    %c3_124 = arith.constant 3 : index
    %133 = memref.load %arg3[%c0_123, %c3_124] : memref<7x14xf32, #tpu.memory_space<smem>>
    %c0_125 = arith.constant 0 : index
    %c0_126 = arith.constant 0 : index
    %c0_127 = arith.constant 0 : index
    %c0_128 = arith.constant 0 : index
    %134 = vector.load %arg2[%c0_125, %c0_126, %c0_127, %c0_128] : memref<1x7x8x8xf32, #tpu.memory_space<vmem>>, vector<1x1x8x8xf32>
    %135 = vector.shape_cast %134 : vector<1x1x8x8xf32> to vector<8x8xf32>
    %136 = vector.broadcast %133 : f32 to vector<8x8xf32>
    %137 = arith.mulf %136, %135 : vector<8x8xf32>
    %138 = vector.broadcast %132 : f32 to vector<8x8xf32>
    %139 = arith.addf %138, %137 : vector<8x8xf32>
    %c1_129 = arith.constant 1 : index
    %c3_130 = arith.constant 3 : index
    %140 = memref.load %arg3[%c1_129, %c3_130] : memref<7x14xf32, #tpu.memory_space<smem>>
    %c0_131 = arith.constant 0 : index
    %c1_132 = arith.constant 1 : index
    %c0_133 = arith.constant 0 : index
    %c0_134 = arith.constant 0 : index
    %141 = vector.load %arg2[%c0_131, %c1_132, %c0_133, %c0_134] : memref<1x7x8x8xf32, #tpu.memory_space<vmem>>, vector<1x1x8x8xf32>
    %142 = vector.shape_cast %141 : vector<1x1x8x8xf32> to vector<8x8xf32>
    %143 = vector.broadcast %140 : f32 to vector<8x8xf32>
    %144 = arith.mulf %143, %142 : vector<8x8xf32>
    %145 = arith.addf %139, %144 : vector<8x8xf32>
    %c2_135 = arith.constant 2 : index
    %c3_136 = arith.constant 3 : index
    %146 = memref.load %arg3[%c2_135, %c3_136] : memref<7x14xf32, #tpu.memory_space<smem>>
    %c0_137 = arith.constant 0 : index
    %c2_138 = arith.constant 2 : index
    %c0_139 = arith.constant 0 : index
    %c0_140 = arith.constant 0 : index
    %147 = vector.load %arg2[%c0_137, %c2_138, %c0_139, %c0_140] : memref<1x7x8x8xf32, #tpu.memory_space<vmem>>, vector<1x1x8x8xf32>
    %148 = vector.shape_cast %147 : vector<1x1x8x8xf32> to vector<8x8xf32>
    %149 = vector.broadcast %146 : f32 to vector<8x8xf32>
    %150 = arith.mulf %149, %148 : vector<8x8xf32>
    %151 = arith.addf %145, %150 : vector<8x8xf32>
    %c3_141 = arith.constant 3 : index
    %c3_142 = arith.constant 3 : index
    %152 = memref.load %arg3[%c3_141, %c3_142] : memref<7x14xf32, #tpu.memory_space<smem>>
    %c0_143 = arith.constant 0 : index
    %c3_144 = arith.constant 3 : index
    %c0_145 = arith.constant 0 : index
    %c0_146 = arith.constant 0 : index
    %153 = vector.load %arg2[%c0_143, %c3_144, %c0_145, %c0_146] : memref<1x7x8x8xf32, #tpu.memory_space<vmem>>, vector<1x1x8x8xf32>
    %154 = vector.shape_cast %153 : vector<1x1x8x8xf32> to vector<8x8xf32>
    %155 = vector.broadcast %152 : f32 to vector<8x8xf32>
    %156 = arith.mulf %155, %154 : vector<8x8xf32>
    %157 = arith.addf %151, %156 : vector<8x8xf32>
    %c4_147 = arith.constant 4 : index
    %c3_148 = arith.constant 3 : index
    %158 = memref.load %arg3[%c4_147, %c3_148] : memref<7x14xf32, #tpu.memory_space<smem>>
    %c0_149 = arith.constant 0 : index
    %c4_150 = arith.constant 4 : index
    %c0_151 = arith.constant 0 : index
    %c0_152 = arith.constant 0 : index
    %159 = vector.load %arg2[%c0_149, %c4_150, %c0_151, %c0_152] : memref<1x7x8x8xf32, #tpu.memory_space<vmem>>, vector<1x1x8x8xf32>
    %160 = vector.shape_cast %159 : vector<1x1x8x8xf32> to vector<8x8xf32>
    %161 = vector.broadcast %158 : f32 to vector<8x8xf32>
    %162 = arith.mulf %161, %160 : vector<8x8xf32>
    %163 = arith.addf %157, %162 : vector<8x8xf32>
    %c5_153 = arith.constant 5 : index
    %c3_154 = arith.constant 3 : index
    %164 = memref.load %arg3[%c5_153, %c3_154] : memref<7x14xf32, #tpu.memory_space<smem>>
    %c0_155 = arith.constant 0 : index
    %c5_156 = arith.constant 5 : index
    %c0_157 = arith.constant 0 : index
    %c0_158 = arith.constant 0 : index
    %165 = vector.load %arg2[%c0_155, %c5_156, %c0_157, %c0_158] : memref<1x7x8x8xf32, #tpu.memory_space<vmem>>, vector<1x1x8x8xf32>
    %166 = vector.shape_cast %165 : vector<1x1x8x8xf32> to vector<8x8xf32>
    %167 = vector.broadcast %164 : f32 to vector<8x8xf32>
    %168 = arith.mulf %167, %166 : vector<8x8xf32>
    %169 = arith.addf %163, %168 : vector<8x8xf32>
    %c6_159 = arith.constant 6 : index
    %c3_160 = arith.constant 3 : index
    %170 = memref.load %arg3[%c6_159, %c3_160] : memref<7x14xf32, #tpu.memory_space<smem>>
    %c0_161 = arith.constant 0 : index
    %c6_162 = arith.constant 6 : index
    %c0_163 = arith.constant 0 : index
    %c0_164 = arith.constant 0 : index
    %171 = vector.load %arg2[%c0_161, %c6_162, %c0_163, %c0_164] : memref<1x7x8x8xf32, #tpu.memory_space<vmem>>, vector<1x1x8x8xf32>
    %172 = vector.shape_cast %171 : vector<1x1x8x8xf32> to vector<8x8xf32>
    %173 = vector.broadcast %170 : f32 to vector<8x8xf32>
    %174 = arith.mulf %173, %172 : vector<8x8xf32>
    %175 = arith.addf %169, %174 : vector<8x8xf32>
    %c4_165 = arith.constant 4 : index
    %176 = memref.load %arg4[%c4_165] : memref<14xf32, #tpu.memory_space<smem>>
    %c0_166 = arith.constant 0 : index
    %c4_167 = arith.constant 4 : index
    %177 = memref.load %arg3[%c0_166, %c4_167] : memref<7x14xf32, #tpu.memory_space<smem>>
    %c0_168 = arith.constant 0 : index
    %c0_169 = arith.constant 0 : index
    %c0_170 = arith.constant 0 : index
    %c0_171 = arith.constant 0 : index
    %178 = vector.load %arg2[%c0_168, %c0_169, %c0_170, %c0_171] : memref<1x7x8x8xf32, #tpu.memory_space<vmem>>, vector<1x1x8x8xf32>
    %179 = vector.shape_cast %178 : vector<1x1x8x8xf32> to vector<8x8xf32>
    %180 = vector.broadcast %177 : f32 to vector<8x8xf32>
    %181 = arith.mulf %180, %179 : vector<8x8xf32>
    %182 = vector.broadcast %176 : f32 to vector<8x8xf32>
    %183 = arith.addf %182, %181 : vector<8x8xf32>
    %c1_172 = arith.constant 1 : index
    %c4_173 = arith.constant 4 : index
    %184 = memref.load %arg3[%c1_172, %c4_173] : memref<7x14xf32, #tpu.memory_space<smem>>
    %c0_174 = arith.constant 0 : index
    %c1_175 = arith.constant 1 : index
    %c0_176 = arith.constant 0 : index
    %c0_177 = arith.constant 0 : index
    %185 = vector.load %arg2[%c0_174, %c1_175, %c0_176, %c0_177] : memref<1x7x8x8xf32, #tpu.memory_space<vmem>>, vector<1x1x8x8xf32>
    %186 = vector.shape_cast %185 : vector<1x1x8x8xf32> to vector<8x8xf32>
    %187 = vector.broadcast %184 : f32 to vector<8x8xf32>
    %188 = arith.mulf %187, %186 : vector<8x8xf32>
    %189 = arith.addf %183, %188 : vector<8x8xf32>
    %c2_178 = arith.constant 2 : index
    %c4_179 = arith.constant 4 : index
    %190 = memref.load %arg3[%c2_178, %c4_179] : memref<7x14xf32, #tpu.memory_space<smem>>
    %c0_180 = arith.constant 0 : index
    %c2_181 = arith.constant 2 : index
    %c0_182 = arith.constant 0 : index
    %c0_183 = arith.constant 0 : index
    %191 = vector.load %arg2[%c0_180, %c2_181, %c0_182, %c0_183] : memref<1x7x8x8xf32, #tpu.memory_space<vmem>>, vector<1x1x8x8xf32>
    %192 = vector.shape_cast %191 : vector<1x1x8x8xf32> to vector<8x8xf32>
    %193 = vector.broadcast %190 : f32 to vector<8x8xf32>
    %194 = arith.mulf %193, %192 : vector<8x8xf32>
    %195 = arith.addf %189, %194 : vector<8x8xf32>
    %c3_184 = arith.constant 3 : index
    %c4_185 = arith.constant 4 : index
    %196 = memref.load %arg3[%c3_184, %c4_185] : memref<7x14xf32, #tpu.memory_space<smem>>
    %c0_186 = arith.constant 0 : index
    %c3_187 = arith.constant 3 : index
    %c0_188 = arith.constant 0 : index
    %c0_189 = arith.constant 0 : index
    %197 = vector.load %arg2[%c0_186, %c3_187, %c0_188, %c0_189] : memref<1x7x8x8xf32, #tpu.memory_space<vmem>>, vector<1x1x8x8xf32>
    %198 = vector.shape_cast %197 : vector<1x1x8x8xf32> to vector<8x8xf32>
    %199 = vector.broadcast %196 : f32 to vector<8x8xf32>
    %200 = arith.mulf %199, %198 : vector<8x8xf32>
    %201 = arith.addf %195, %200 : vector<8x8xf32>
    %c4_190 = arith.constant 4 : index
    %c4_191 = arith.constant 4 : index
    %202 = memref.load %arg3[%c4_190, %c4_191] : memref<7x14xf32, #tpu.memory_space<smem>>
    %c0_192 = arith.constant 0 : index
    %c4_193 = arith.constant 4 : index
    %c0_194 = arith.constant 0 : index
    %c0_195 = arith.constant 0 : index
    %203 = vector.load %arg2[%c0_192, %c4_193, %c0_194, %c0_195] : memref<1x7x8x8xf32, #tpu.memory_space<vmem>>, vector<1x1x8x8xf32>
    %204 = vector.shape_cast %203 : vector<1x1x8x8xf32> to vector<8x8xf32>
    %205 = vector.broadcast %202 : f32 to vector<8x8xf32>
    %206 = arith.mulf %205, %204 : vector<8x8xf32>
    %207 = arith.addf %201, %206 : vector<8x8xf32>
    %c5_196 = arith.constant 5 : index
    %c4_197 = arith.constant 4 : index
    %208 = memref.load %arg3[%c5_196, %c4_197] : memref<7x14xf32, #tpu.memory_space<smem>>
    %c0_198 = arith.constant 0 : index
    %c5_199 = arith.constant 5 : index
    %c0_200 = arith.constant 0 : index
    %c0_201 = arith.constant 0 : index
    %209 = vector.load %arg2[%c0_198, %c5_199, %c0_200, %c0_201] : memref<1x7x8x8xf32, #tpu.memory_space<vmem>>, vector<1x1x8x8xf32>
    %210 = vector.shape_cast %209 : vector<1x1x8x8xf32> to vector<8x8xf32>
    %211 = vector.broadcast %208 : f32 to vector<8x8xf32>
    %212 = arith.mulf %211, %210 : vector<8x8xf32>
    %213 = arith.addf %207, %212 : vector<8x8xf32>
    %c6_202 = arith.constant 6 : index
    %c4_203 = arith.constant 4 : index
    %214 = memref.load %arg3[%c6_202, %c4_203] : memref<7x14xf32, #tpu.memory_space<smem>>
    %c0_204 = arith.constant 0 : index
    %c6_205 = arith.constant 6 : index
    %c0_206 = arith.constant 0 : index
    %c0_207 = arith.constant 0 : index
    %215 = vector.load %arg2[%c0_204, %c6_205, %c0_206, %c0_207] : memref<1x7x8x8xf32, #tpu.memory_space<vmem>>, vector<1x1x8x8xf32>
    %216 = vector.shape_cast %215 : vector<1x1x8x8xf32> to vector<8x8xf32>
    %217 = vector.broadcast %214 : f32 to vector<8x8xf32>
    %218 = arith.mulf %217, %216 : vector<8x8xf32>
    %219 = arith.addf %213, %218 : vector<8x8xf32>
    %c5_208 = arith.constant 5 : index
    %220 = memref.load %arg4[%c5_208] : memref<14xf32, #tpu.memory_space<smem>>
    %c0_209 = arith.constant 0 : index
    %c5_210 = arith.constant 5 : index
    %221 = memref.load %arg3[%c0_209, %c5_210] : memref<7x14xf32, #tpu.memory_space<smem>>
    %c0_211 = arith.constant 0 : index
    %c0_212 = arith.constant 0 : index
    %c0_213 = arith.constant 0 : index
    %c0_214 = arith.constant 0 : index
    %222 = vector.load %arg2[%c0_211, %c0_212, %c0_213, %c0_214] : memref<1x7x8x8xf32, #tpu.memory_space<vmem>>, vector<1x1x8x8xf32>
    %223 = vector.shape_cast %222 : vector<1x1x8x8xf32> to vector<8x8xf32>
    %224 = vector.broadcast %221 : f32 to vector<8x8xf32>
    %225 = arith.mulf %224, %223 : vector<8x8xf32>
    %226 = vector.broadcast %220 : f32 to vector<8x8xf32>
    %227 = arith.addf %226, %225 : vector<8x8xf32>
    %c1_215 = arith.constant 1 : index
    %c5_216 = arith.constant 5 : index
    %228 = memref.load %arg3[%c1_215, %c5_216] : memref<7x14xf32, #tpu.memory_space<smem>>
    %c0_217 = arith.constant 0 : index
    %c1_218 = arith.constant 1 : index
    %c0_219 = arith.constant 0 : index
    %c0_220 = arith.constant 0 : index
    %229 = vector.load %arg2[%c0_217, %c1_218, %c0_219, %c0_220] : memref<1x7x8x8xf32, #tpu.memory_space<vmem>>, vector<1x1x8x8xf32>
    %230 = vector.shape_cast %229 : vector<1x1x8x8xf32> to vector<8x8xf32>
    %231 = vector.broadcast %228 : f32 to vector<8x8xf32>
    %232 = arith.mulf %231, %230 : vector<8x8xf32>
    %233 = arith.addf %227, %232 : vector<8x8xf32>
    %c2_221 = arith.constant 2 : index
    %c5_222 = arith.constant 5 : index
    %234 = memref.load %arg3[%c2_221, %c5_222] : memref<7x14xf32, #tpu.memory_space<smem>>
    %c0_223 = arith.constant 0 : index
    %c2_224 = arith.constant 2 : index
    %c0_225 = arith.constant 0 : index
    %c0_226 = arith.constant 0 : index
    %235 = vector.load %arg2[%c0_223, %c2_224, %c0_225, %c0_226] : memref<1x7x8x8xf32, #tpu.memory_space<vmem>>, vector<1x1x8x8xf32>
    %236 = vector.shape_cast %235 : vector<1x1x8x8xf32> to vector<8x8xf32>
    %237 = vector.broadcast %234 : f32 to vector<8x8xf32>
    %238 = arith.mulf %237, %236 : vector<8x8xf32>
    %239 = arith.addf %233, %238 : vector<8x8xf32>
    %c3_227 = arith.constant 3 : index
    %c5_228 = arith.constant 5 : index
    %240 = memref.load %arg3[%c3_227, %c5_228] : memref<7x14xf32, #tpu.memory_space<smem>>
    %c0_229 = arith.constant 0 : index
    %c3_230 = arith.constant 3 : index
    %c0_231 = arith.constant 0 : index
    %c0_232 = arith.constant 0 : index
    %241 = vector.load %arg2[%c0_229, %c3_230, %c0_231, %c0_232] : memref<1x7x8x8xf32, #tpu.memory_space<vmem>>, vector<1x1x8x8xf32>
    %242 = vector.shape_cast %241 : vector<1x1x8x8xf32> to vector<8x8xf32>
    %243 = vector.broadcast %240 : f32 to vector<8x8xf32>
    %244 = arith.mulf %243, %242 : vector<8x8xf32>
    %245 = arith.addf %239, %244 : vector<8x8xf32>
    %c4_233 = arith.constant 4 : index
    %c5_234 = arith.constant 5 : index
    %246 = memref.load %arg3[%c4_233, %c5_234] : memref<7x14xf32, #tpu.memory_space<smem>>
    %c0_235 = arith.constant 0 : index
    %c4_236 = arith.constant 4 : index
    %c0_237 = arith.constant 0 : index
    %c0_238 = arith.constant 0 : index
    %247 = vector.load %arg2[%c0_235, %c4_236, %c0_237, %c0_238] : memref<1x7x8x8xf32, #tpu.memory_space<vmem>>, vector<1x1x8x8xf32>
    %248 = vector.shape_cast %247 : vector<1x1x8x8xf32> to vector<8x8xf32>
    %249 = vector.broadcast %246 : f32 to vector<8x8xf32>
    %250 = arith.mulf %249, %248 : vector<8x8xf32>
    %251 = arith.addf %245, %250 : vector<8x8xf32>
    %c5_239 = arith.constant 5 : index
    %c5_240 = arith.constant 5 : index
    %252 = memref.load %arg3[%c5_239, %c5_240] : memref<7x14xf32, #tpu.memory_space<smem>>
    %c0_241 = arith.constant 0 : index
    %c5_242 = arith.constant 5 : index
    %c0_243 = arith.constant 0 : index
    %c0_244 = arith.constant 0 : index
    %253 = vector.load %arg2[%c0_241, %c5_242, %c0_243, %c0_244] : memref<1x7x8x8xf32, #tpu.memory_space<vmem>>, vector<1x1x8x8xf32>
    %254 = vector.shape_cast %253 : vector<1x1x8x8xf32> to vector<8x8xf32>
    %255 = vector.broadcast %252 : f32 to vector<8x8xf32>
    %256 = arith.mulf %255, %254 : vector<8x8xf32>
    %257 = arith.addf %251, %256 : vector<8x8xf32>
    %c6_245 = arith.constant 6 : index
    %c5_246 = arith.constant 5 : index
    %258 = memref.load %arg3[%c6_245, %c5_246] : memref<7x14xf32, #tpu.memory_space<smem>>
    %c0_247 = arith.constant 0 : index
    %c6_248 = arith.constant 6 : index
    %c0_249 = arith.constant 0 : index
    %c0_250 = arith.constant 0 : index
    %259 = vector.load %arg2[%c0_247, %c6_248, %c0_249, %c0_250] : memref<1x7x8x8xf32, #tpu.memory_space<vmem>>, vector<1x1x8x8xf32>
    %260 = vector.shape_cast %259 : vector<1x1x8x8xf32> to vector<8x8xf32>
    %261 = vector.broadcast %258 : f32 to vector<8x8xf32>
    %262 = arith.mulf %261, %260 : vector<8x8xf32>
    %263 = arith.addf %257, %262 : vector<8x8xf32>
    %c6_251 = arith.constant 6 : index
    %264 = memref.load %arg4[%c6_251] : memref<14xf32, #tpu.memory_space<smem>>
    %c0_252 = arith.constant 0 : index
    %c6_253 = arith.constant 6 : index
    %265 = memref.load %arg3[%c0_252, %c6_253] : memref<7x14xf32, #tpu.memory_space<smem>>
    %c0_254 = arith.constant 0 : index
    %c0_255 = arith.constant 0 : index
    %c0_256 = arith.constant 0 : index
    %c0_257 = arith.constant 0 : index
    %266 = vector.load %arg2[%c0_254, %c0_255, %c0_256, %c0_257] : memref<1x7x8x8xf32, #tpu.memory_space<vmem>>, vector<1x1x8x8xf32>
    %267 = vector.shape_cast %266 : vector<1x1x8x8xf32> to vector<8x8xf32>
    %268 = vector.broadcast %265 : f32 to vector<8x8xf32>
    %269 = arith.mulf %268, %267 : vector<8x8xf32>
    %270 = vector.broadcast %264 : f32 to vector<8x8xf32>
    %271 = arith.addf %270, %269 : vector<8x8xf32>
    %c1_258 = arith.constant 1 : index
    %c6_259 = arith.constant 6 : index
    %272 = memref.load %arg3[%c1_258, %c6_259] : memref<7x14xf32, #tpu.memory_space<smem>>
    %c0_260 = arith.constant 0 : index
    %c1_261 = arith.constant 1 : index
    %c0_262 = arith.constant 0 : index
    %c0_263 = arith.constant 0 : index
    %273 = vector.load %arg2[%c0_260, %c1_261, %c0_262, %c0_263] : memref<1x7x8x8xf32, #tpu.memory_space<vmem>>, vector<1x1x8x8xf32>
    %274 = vector.shape_cast %273 : vector<1x1x8x8xf32> to vector<8x8xf32>
    %275 = vector.broadcast %272 : f32 to vector<8x8xf32>
    %276 = arith.mulf %275, %274 : vector<8x8xf32>
    %277 = arith.addf %271, %276 : vector<8x8xf32>
    %c2_264 = arith.constant 2 : index
    %c6_265 = arith.constant 6 : index
    %278 = memref.load %arg3[%c2_264, %c6_265] : memref<7x14xf32, #tpu.memory_space<smem>>
    %c0_266 = arith.constant 0 : index
    %c2_267 = arith.constant 2 : index
    %c0_268 = arith.constant 0 : index
    %c0_269 = arith.constant 0 : index
    %279 = vector.load %arg2[%c0_266, %c2_267, %c0_268, %c0_269] : memref<1x7x8x8xf32, #tpu.memory_space<vmem>>, vector<1x1x8x8xf32>
    %280 = vector.shape_cast %279 : vector<1x1x8x8xf32> to vector<8x8xf32>
    %281 = vector.broadcast %278 : f32 to vector<8x8xf32>
    %282 = arith.mulf %281, %280 : vector<8x8xf32>
    %283 = arith.addf %277, %282 : vector<8x8xf32>
    %c3_270 = arith.constant 3 : index
    %c6_271 = arith.constant 6 : index
    %284 = memref.load %arg3[%c3_270, %c6_271] : memref<7x14xf32, #tpu.memory_space<smem>>
    %c0_272 = arith.constant 0 : index
    %c3_273 = arith.constant 3 : index
    %c0_274 = arith.constant 0 : index
    %c0_275 = arith.constant 0 : index
    %285 = vector.load %arg2[%c0_272, %c3_273, %c0_274, %c0_275] : memref<1x7x8x8xf32, #tpu.memory_space<vmem>>, vector<1x1x8x8xf32>
    %286 = vector.shape_cast %285 : vector<1x1x8x8xf32> to vector<8x8xf32>
    %287 = vector.broadcast %284 : f32 to vector<8x8xf32>
    %288 = arith.mulf %287, %286 : vector<8x8xf32>
    %289 = arith.addf %283, %288 : vector<8x8xf32>
    %c4_276 = arith.constant 4 : index
    %c6_277 = arith.constant 6 : index
    %290 = memref.load %arg3[%c4_276, %c6_277] : memref<7x14xf32, #tpu.memory_space<smem>>
    %c0_278 = arith.constant 0 : index
    %c4_279 = arith.constant 4 : index
    %c0_280 = arith.constant 0 : index
    %c0_281 = arith.constant 0 : index
    %291 = vector.load %arg2[%c0_278, %c4_279, %c0_280, %c0_281] : memref<1x7x8x8xf32, #tpu.memory_space<vmem>>, vector<1x1x8x8xf32>
    %292 = vector.shape_cast %291 : vector<1x1x8x8xf32> to vector<8x8xf32>
    %293 = vector.broadcast %290 : f32 to vector<8x8xf32>
    %294 = arith.mulf %293, %292 : vector<8x8xf32>
    %295 = arith.addf %289, %294 : vector<8x8xf32>
    %c5_282 = arith.constant 5 : index
    %c6_283 = arith.constant 6 : index
    %296 = memref.load %arg3[%c5_282, %c6_283] : memref<7x14xf32, #tpu.memory_space<smem>>
    %c0_284 = arith.constant 0 : index
    %c5_285 = arith.constant 5 : index
    %c0_286 = arith.constant 0 : index
    %c0_287 = arith.constant 0 : index
    %297 = vector.load %arg2[%c0_284, %c5_285, %c0_286, %c0_287] : memref<1x7x8x8xf32, #tpu.memory_space<vmem>>, vector<1x1x8x8xf32>
    %298 = vector.shape_cast %297 : vector<1x1x8x8xf32> to vector<8x8xf32>
    %299 = vector.broadcast %296 : f32 to vector<8x8xf32>
    %300 = arith.mulf %299, %298 : vector<8x8xf32>
    %301 = arith.addf %295, %300 : vector<8x8xf32>
    %c6_288 = arith.constant 6 : index
    %c6_289 = arith.constant 6 : index
    %302 = memref.load %arg3[%c6_288, %c6_289] : memref<7x14xf32, #tpu.memory_space<smem>>
    %c0_290 = arith.constant 0 : index
    %c6_291 = arith.constant 6 : index
    %c0_292 = arith.constant 0 : index
    %c0_293 = arith.constant 0 : index
    %303 = vector.load %arg2[%c0_290, %c6_291, %c0_292, %c0_293] : memref<1x7x8x8xf32, #tpu.memory_space<vmem>>, vector<1x1x8x8xf32>
    %304 = vector.shape_cast %303 : vector<1x1x8x8xf32> to vector<8x8xf32>
    %305 = vector.broadcast %302 : f32 to vector<8x8xf32>
    %306 = arith.mulf %305, %304 : vector<8x8xf32>
    %307 = arith.addf %301, %306 : vector<8x8xf32>
    %c7 = arith.constant 7 : index
    %308 = memref.load %arg4[%c7] : memref<14xf32, #tpu.memory_space<smem>>
    %c0_294 = arith.constant 0 : index
    %c7_295 = arith.constant 7 : index
    %309 = memref.load %arg3[%c0_294, %c7_295] : memref<7x14xf32, #tpu.memory_space<smem>>
    %c0_296 = arith.constant 0 : index
    %c0_297 = arith.constant 0 : index
    %c0_298 = arith.constant 0 : index
    %c0_299 = arith.constant 0 : index
    %310 = vector.load %arg2[%c0_296, %c0_297, %c0_298, %c0_299] : memref<1x7x8x8xf32, #tpu.memory_space<vmem>>, vector<1x1x8x8xf32>
    %311 = vector.shape_cast %310 : vector<1x1x8x8xf32> to vector<8x8xf32>
    %312 = vector.broadcast %309 : f32 to vector<8x8xf32>
    %313 = arith.mulf %312, %311 : vector<8x8xf32>
    %314 = vector.broadcast %308 : f32 to vector<8x8xf32>
    %315 = arith.addf %314, %313 : vector<8x8xf32>
    %c1_300 = arith.constant 1 : index
    %c7_301 = arith.constant 7 : index
    %316 = memref.load %arg3[%c1_300, %c7_301] : memref<7x14xf32, #tpu.memory_space<smem>>
    %c0_302 = arith.constant 0 : index
    %c1_303 = arith.constant 1 : index
    %c0_304 = arith.constant 0 : index
    %c0_305 = arith.constant 0 : index
    %317 = vector.load %arg2[%c0_302, %c1_303, %c0_304, %c0_305] : memref<1x7x8x8xf32, #tpu.memory_space<vmem>>, vector<1x1x8x8xf32>
    %318 = vector.shape_cast %317 : vector<1x1x8x8xf32> to vector<8x8xf32>
    %319 = vector.broadcast %316 : f32 to vector<8x8xf32>
    %320 = arith.mulf %319, %318 : vector<8x8xf32>
    %321 = arith.addf %315, %320 : vector<8x8xf32>
    %c2_306 = arith.constant 2 : index
    %c7_307 = arith.constant 7 : index
    %322 = memref.load %arg3[%c2_306, %c7_307] : memref<7x14xf32, #tpu.memory_space<smem>>
    %c0_308 = arith.constant 0 : index
    %c2_309 = arith.constant 2 : index
    %c0_310 = arith.constant 0 : index
    %c0_311 = arith.constant 0 : index
    %323 = vector.load %arg2[%c0_308, %c2_309, %c0_310, %c0_311] : memref<1x7x8x8xf32, #tpu.memory_space<vmem>>, vector<1x1x8x8xf32>
    %324 = vector.shape_cast %323 : vector<1x1x8x8xf32> to vector<8x8xf32>
    %325 = vector.broadcast %322 : f32 to vector<8x8xf32>
    %326 = arith.mulf %325, %324 : vector<8x8xf32>
    %327 = arith.addf %321, %326 : vector<8x8xf32>
    %c3_312 = arith.constant 3 : index
    %c7_313 = arith.constant 7 : index
    %328 = memref.load %arg3[%c3_312, %c7_313] : memref<7x14xf32, #tpu.memory_space<smem>>
    %c0_314 = arith.constant 0 : index
    %c3_315 = arith.constant 3 : index
    %c0_316 = arith.constant 0 : index
    %c0_317 = arith.constant 0 : index
    %329 = vector.load %arg2[%c0_314, %c3_315, %c0_316, %c0_317] : memref<1x7x8x8xf32, #tpu.memory_space<vmem>>, vector<1x1x8x8xf32>
    %330 = vector.shape_cast %329 : vector<1x1x8x8xf32> to vector<8x8xf32>
    %331 = vector.broadcast %328 : f32 to vector<8x8xf32>
    %332 = arith.mulf %331, %330 : vector<8x8xf32>
    %333 = arith.addf %327, %332 : vector<8x8xf32>
    %c4_318 = arith.constant 4 : index
    %c7_319 = arith.constant 7 : index
    %334 = memref.load %arg3[%c4_318, %c7_319] : memref<7x14xf32, #tpu.memory_space<smem>>
    %c0_320 = arith.constant 0 : index
    %c4_321 = arith.constant 4 : index
    %c0_322 = arith.constant 0 : index
    %c0_323 = arith.constant 0 : index
    %335 = vector.load %arg2[%c0_320, %c4_321, %c0_322, %c0_323] : memref<1x7x8x8xf32, #tpu.memory_space<vmem>>, vector<1x1x8x8xf32>
    %336 = vector.shape_cast %335 : vector<1x1x8x8xf32> to vector<8x8xf32>
    %337 = vector.broadcast %334 : f32 to vector<8x8xf32>
    %338 = arith.mulf %337, %336 : vector<8x8xf32>
    %339 = arith.addf %333, %338 : vector<8x8xf32>
    %c5_324 = arith.constant 5 : index
    %c7_325 = arith.constant 7 : index
    %340 = memref.load %arg3[%c5_324, %c7_325] : memref<7x14xf32, #tpu.memory_space<smem>>
    %c0_326 = arith.constant 0 : index
    %c5_327 = arith.constant 5 : index
    %c0_328 = arith.constant 0 : index
    %c0_329 = arith.constant 0 : index
    %341 = vector.load %arg2[%c0_326, %c5_327, %c0_328, %c0_329] : memref<1x7x8x8xf32, #tpu.memory_space<vmem>>, vector<1x1x8x8xf32>
    %342 = vector.shape_cast %341 : vector<1x1x8x8xf32> to vector<8x8xf32>
    %343 = vector.broadcast %340 : f32 to vector<8x8xf32>
    %344 = arith.mulf %343, %342 : vector<8x8xf32>
    %345 = arith.addf %339, %344 : vector<8x8xf32>
    %c6_330 = arith.constant 6 : index
    %c7_331 = arith.constant 7 : index
    %346 = memref.load %arg3[%c6_330, %c7_331] : memref<7x14xf32, #tpu.memory_space<smem>>
    %c0_332 = arith.constant 0 : index
    %c6_333 = arith.constant 6 : index
    %c0_334 = arith.constant 0 : index
    %c0_335 = arith.constant 0 : index
    %347 = vector.load %arg2[%c0_332, %c6_333, %c0_334, %c0_335] : memref<1x7x8x8xf32, #tpu.memory_space<vmem>>, vector<1x1x8x8xf32>
    %348 = vector.shape_cast %347 : vector<1x1x8x8xf32> to vector<8x8xf32>
    %349 = vector.broadcast %346 : f32 to vector<8x8xf32>
    %350 = arith.mulf %349, %348 : vector<8x8xf32>
    %351 = arith.addf %345, %350 : vector<8x8xf32>
    %c8 = arith.constant 8 : index
    %352 = memref.load %arg4[%c8] : memref<14xf32, #tpu.memory_space<smem>>
    %c0_336 = arith.constant 0 : index
    %c8_337 = arith.constant 8 : index
    %353 = memref.load %arg3[%c0_336, %c8_337] : memref<7x14xf32, #tpu.memory_space<smem>>
    %c0_338 = arith.constant 0 : index
    %c0_339 = arith.constant 0 : index
    %c0_340 = arith.constant 0 : index
    %c0_341 = arith.constant 0 : index
    %354 = vector.load %arg2[%c0_338, %c0_339, %c0_340, %c0_341] : memref<1x7x8x8xf32, #tpu.memory_space<vmem>>, vector<1x1x8x8xf32>
    %355 = vector.shape_cast %354 : vector<1x1x8x8xf32> to vector<8x8xf32>
    %356 = vector.broadcast %353 : f32 to vector<8x8xf32>
    %357 = arith.mulf %356, %355 : vector<8x8xf32>
    %358 = vector.broadcast %352 : f32 to vector<8x8xf32>
    %359 = arith.addf %358, %357 : vector<8x8xf32>
    %c1_342 = arith.constant 1 : index
    %c8_343 = arith.constant 8 : index
    %360 = memref.load %arg3[%c1_342, %c8_343] : memref<7x14xf32, #tpu.memory_space<smem>>
    %c0_344 = arith.constant 0 : index
    %c1_345 = arith.constant 1 : index
    %c0_346 = arith.constant 0 : index
    %c0_347 = arith.constant 0 : index
    %361 = vector.load %arg2[%c0_344, %c1_345, %c0_346, %c0_347] : memref<1x7x8x8xf32, #tpu.memory_space<vmem>>, vector<1x1x8x8xf32>
    %362 = vector.shape_cast %361 : vector<1x1x8x8xf32> to vector<8x8xf32>
    %363 = vector.broadcast %360 : f32 to vector<8x8xf32>
    %364 = arith.mulf %363, %362 : vector<8x8xf32>
    %365 = arith.addf %359, %364 : vector<8x8xf32>
    %c2_348 = arith.constant 2 : index
    %c8_349 = arith.constant 8 : index
    %366 = memref.load %arg3[%c2_348, %c8_349] : memref<7x14xf32, #tpu.memory_space<smem>>
    %c0_350 = arith.constant 0 : index
    %c2_351 = arith.constant 2 : index
    %c0_352 = arith.constant 0 : index
    %c0_353 = arith.constant 0 : index
    %367 = vector.load %arg2[%c0_350, %c2_351, %c0_352, %c0_353] : memref<1x7x8x8xf32, #tpu.memory_space<vmem>>, vector<1x1x8x8xf32>
    %368 = vector.shape_cast %367 : vector<1x1x8x8xf32> to vector<8x8xf32>
    %369 = vector.broadcast %366 : f32 to vector<8x8xf32>
    %370 = arith.mulf %369, %368 : vector<8x8xf32>
    %371 = arith.addf %365, %370 : vector<8x8xf32>
    %c3_354 = arith.constant 3 : index
    %c8_355 = arith.constant 8 : index
    %372 = memref.load %arg3[%c3_354, %c8_355] : memref<7x14xf32, #tpu.memory_space<smem>>
    %c0_356 = arith.constant 0 : index
    %c3_357 = arith.constant 3 : index
    %c0_358 = arith.constant 0 : index
    %c0_359 = arith.constant 0 : index
    %373 = vector.load %arg2[%c0_356, %c3_357, %c0_358, %c0_359] : memref<1x7x8x8xf32, #tpu.memory_space<vmem>>, vector<1x1x8x8xf32>
    %374 = vector.shape_cast %373 : vector<1x1x8x8xf32> to vector<8x8xf32>
    %375 = vector.broadcast %372 : f32 to vector<8x8xf32>
    %376 = arith.mulf %375, %374 : vector<8x8xf32>
    %377 = arith.addf %371, %376 : vector<8x8xf32>
    %c4_360 = arith.constant 4 : index
    %c8_361 = arith.constant 8 : index
    %378 = memref.load %arg3[%c4_360, %c8_361] : memref<7x14xf32, #tpu.memory_space<smem>>
    %c0_362 = arith.constant 0 : index
    %c4_363 = arith.constant 4 : index
    %c0_364 = arith.constant 0 : index
    %c0_365 = arith.constant 0 : index
    %379 = vector.load %arg2[%c0_362, %c4_363, %c0_364, %c0_365] : memref<1x7x8x8xf32, #tpu.memory_space<vmem>>, vector<1x1x8x8xf32>
    %380 = vector.shape_cast %379 : vector<1x1x8x8xf32> to vector<8x8xf32>
    %381 = vector.broadcast %378 : f32 to vector<8x8xf32>
    %382 = arith.mulf %381, %380 : vector<8x8xf32>
    %383 = arith.addf %377, %382 : vector<8x8xf32>
    %c5_366 = arith.constant 5 : index
    %c8_367 = arith.constant 8 : index
    %384 = memref.load %arg3[%c5_366, %c8_367] : memref<7x14xf32, #tpu.memory_space<smem>>
    %c0_368 = arith.constant 0 : index
    %c5_369 = arith.constant 5 : index
    %c0_370 = arith.constant 0 : index
    %c0_371 = arith.constant 0 : index
    %385 = vector.load %arg2[%c0_368, %c5_369, %c0_370, %c0_371] : memref<1x7x8x8xf32, #tpu.memory_space<vmem>>, vector<1x1x8x8xf32>
    %386 = vector.shape_cast %385 : vector<1x1x8x8xf32> to vector<8x8xf32>
    %387 = vector.broadcast %384 : f32 to vector<8x8xf32>
    %388 = arith.mulf %387, %386 : vector<8x8xf32>
    %389 = arith.addf %383, %388 : vector<8x8xf32>
    %c6_372 = arith.constant 6 : index
    %c8_373 = arith.constant 8 : index
    %390 = memref.load %arg3[%c6_372, %c8_373] : memref<7x14xf32, #tpu.memory_space<smem>>
    %c0_374 = arith.constant 0 : index
    %c6_375 = arith.constant 6 : index
    %c0_376 = arith.constant 0 : index
    %c0_377 = arith.constant 0 : index
    %391 = vector.load %arg2[%c0_374, %c6_375, %c0_376, %c0_377] : memref<1x7x8x8xf32, #tpu.memory_space<vmem>>, vector<1x1x8x8xf32>
    %392 = vector.shape_cast %391 : vector<1x1x8x8xf32> to vector<8x8xf32>
    %393 = vector.broadcast %390 : f32 to vector<8x8xf32>
    %394 = arith.mulf %393, %392 : vector<8x8xf32>
    %395 = arith.addf %389, %394 : vector<8x8xf32>
    %c9 = arith.constant 9 : index
    %396 = memref.load %arg4[%c9] : memref<14xf32, #tpu.memory_space<smem>>
    %c0_378 = arith.constant 0 : index
    %c9_379 = arith.constant 9 : index
    %397 = memref.load %arg3[%c0_378, %c9_379] : memref<7x14xf32, #tpu.memory_space<smem>>
    %c0_380 = arith.constant 0 : index
    %c0_381 = arith.constant 0 : index
    %c0_382 = arith.constant 0 : index
    %c0_383 = arith.constant 0 : index
    %398 = vector.load %arg2[%c0_380, %c0_381, %c0_382, %c0_383] : memref<1x7x8x8xf32, #tpu.memory_space<vmem>>, vector<1x1x8x8xf32>
    %399 = vector.shape_cast %398 : vector<1x1x8x8xf32> to vector<8x8xf32>
    %400 = vector.broadcast %397 : f32 to vector<8x8xf32>
    %401 = arith.mulf %400, %399 : vector<8x8xf32>
    %402 = vector.broadcast %396 : f32 to vector<8x8xf32>
    %403 = arith.addf %402, %401 : vector<8x8xf32>
    %c1_384 = arith.constant 1 : index
    %c9_385 = arith.constant 9 : index
    %404 = memref.load %arg3[%c1_384, %c9_385] : memref<7x14xf32, #tpu.memory_space<smem>>
    %c0_386 = arith.constant 0 : index
    %c1_387 = arith.constant 1 : index
    %c0_388 = arith.constant 0 : index
    %c0_389 = arith.constant 0 : index
    %405 = vector.load %arg2[%c0_386, %c1_387, %c0_388, %c0_389] : memref<1x7x8x8xf32, #tpu.memory_space<vmem>>, vector<1x1x8x8xf32>
    %406 = vector.shape_cast %405 : vector<1x1x8x8xf32> to vector<8x8xf32>
    %407 = vector.broadcast %404 : f32 to vector<8x8xf32>
    %408 = arith.mulf %407, %406 : vector<8x8xf32>
    %409 = arith.addf %403, %408 : vector<8x8xf32>
    %c2_390 = arith.constant 2 : index
    %c9_391 = arith.constant 9 : index
    %410 = memref.load %arg3[%c2_390, %c9_391] : memref<7x14xf32, #tpu.memory_space<smem>>
    %c0_392 = arith.constant 0 : index
    %c2_393 = arith.constant 2 : index
    %c0_394 = arith.constant 0 : index
    %c0_395 = arith.constant 0 : index
    %411 = vector.load %arg2[%c0_392, %c2_393, %c0_394, %c0_395] : memref<1x7x8x8xf32, #tpu.memory_space<vmem>>, vector<1x1x8x8xf32>
    %412 = vector.shape_cast %411 : vector<1x1x8x8xf32> to vector<8x8xf32>
    %413 = vector.broadcast %410 : f32 to vector<8x8xf32>
    %414 = arith.mulf %413, %412 : vector<8x8xf32>
    %415 = arith.addf %409, %414 : vector<8x8xf32>
    %c3_396 = arith.constant 3 : index
    %c9_397 = arith.constant 9 : index
    %416 = memref.load %arg3[%c3_396, %c9_397] : memref<7x14xf32, #tpu.memory_space<smem>>
    %c0_398 = arith.constant 0 : index
    %c3_399 = arith.constant 3 : index
    %c0_400 = arith.constant 0 : index
    %c0_401 = arith.constant 0 : index
    %417 = vector.load %arg2[%c0_398, %c3_399, %c0_400, %c0_401] : memref<1x7x8x8xf32, #tpu.memory_space<vmem>>, vector<1x1x8x8xf32>
    %418 = vector.shape_cast %417 : vector<1x1x8x8xf32> to vector<8x8xf32>
    %419 = vector.broadcast %416 : f32 to vector<8x8xf32>
    %420 = arith.mulf %419, %418 : vector<8x8xf32>
    %421 = arith.addf %415, %420 : vector<8x8xf32>
    %c4_402 = arith.constant 4 : index
    %c9_403 = arith.constant 9 : index
    %422 = memref.load %arg3[%c4_402, %c9_403] : memref<7x14xf32, #tpu.memory_space<smem>>
    %c0_404 = arith.constant 0 : index
    %c4_405 = arith.constant 4 : index
    %c0_406 = arith.constant 0 : index
    %c0_407 = arith.constant 0 : index
    %423 = vector.load %arg2[%c0_404, %c4_405, %c0_406, %c0_407] : memref<1x7x8x8xf32, #tpu.memory_space<vmem>>, vector<1x1x8x8xf32>
    %424 = vector.shape_cast %423 : vector<1x1x8x8xf32> to vector<8x8xf32>
    %425 = vector.broadcast %422 : f32 to vector<8x8xf32>
    %426 = arith.mulf %425, %424 : vector<8x8xf32>
    %427 = arith.addf %421, %426 : vector<8x8xf32>
    %c5_408 = arith.constant 5 : index
    %c9_409 = arith.constant 9 : index
    %428 = memref.load %arg3[%c5_408, %c9_409] : memref<7x14xf32, #tpu.memory_space<smem>>
    %c0_410 = arith.constant 0 : index
    %c5_411 = arith.constant 5 : index
    %c0_412 = arith.constant 0 : index
    %c0_413 = arith.constant 0 : index
    %429 = vector.load %arg2[%c0_410, %c5_411, %c0_412, %c0_413] : memref<1x7x8x8xf32, #tpu.memory_space<vmem>>, vector<1x1x8x8xf32>
    %430 = vector.shape_cast %429 : vector<1x1x8x8xf32> to vector<8x8xf32>
    %431 = vector.broadcast %428 : f32 to vector<8x8xf32>
    %432 = arith.mulf %431, %430 : vector<8x8xf32>
    %433 = arith.addf %427, %432 : vector<8x8xf32>
    %c6_414 = arith.constant 6 : index
    %c9_415 = arith.constant 9 : index
    %434 = memref.load %arg3[%c6_414, %c9_415] : memref<7x14xf32, #tpu.memory_space<smem>>
    %c0_416 = arith.constant 0 : index
    %c6_417 = arith.constant 6 : index
    %c0_418 = arith.constant 0 : index
    %c0_419 = arith.constant 0 : index
    %435 = vector.load %arg2[%c0_416, %c6_417, %c0_418, %c0_419] : memref<1x7x8x8xf32, #tpu.memory_space<vmem>>, vector<1x1x8x8xf32>
    %436 = vector.shape_cast %435 : vector<1x1x8x8xf32> to vector<8x8xf32>
    %437 = vector.broadcast %434 : f32 to vector<8x8xf32>
    %438 = arith.mulf %437, %436 : vector<8x8xf32>
    %439 = arith.addf %433, %438 : vector<8x8xf32>
    %c10 = arith.constant 10 : index
    %440 = memref.load %arg4[%c10] : memref<14xf32, #tpu.memory_space<smem>>
    %c0_420 = arith.constant 0 : index
    %c10_421 = arith.constant 10 : index
    %441 = memref.load %arg3[%c0_420, %c10_421] : memref<7x14xf32, #tpu.memory_space<smem>>
    %c0_422 = arith.constant 0 : index
    %c0_423 = arith.constant 0 : index
    %c0_424 = arith.constant 0 : index
    %c0_425 = arith.constant 0 : index
    %442 = vector.load %arg2[%c0_422, %c0_423, %c0_424, %c0_425] : memref<1x7x8x8xf32, #tpu.memory_space<vmem>>, vector<1x1x8x8xf32>
    %443 = vector.shape_cast %442 : vector<1x1x8x8xf32> to vector<8x8xf32>
    %444 = vector.broadcast %441 : f32 to vector<8x8xf32>
    %445 = arith.mulf %444, %443 : vector<8x8xf32>
    %446 = vector.broadcast %440 : f32 to vector<8x8xf32>
    %447 = arith.addf %446, %445 : vector<8x8xf32>
    %c1_426 = arith.constant 1 : index
    %c10_427 = arith.constant 10 : index
    %448 = memref.load %arg3[%c1_426, %c10_427] : memref<7x14xf32, #tpu.memory_space<smem>>
    %c0_428 = arith.constant 0 : index
    %c1_429 = arith.constant 1 : index
    %c0_430 = arith.constant 0 : index
    %c0_431 = arith.constant 0 : index
    %449 = vector.load %arg2[%c0_428, %c1_429, %c0_430, %c0_431] : memref<1x7x8x8xf32, #tpu.memory_space<vmem>>, vector<1x1x8x8xf32>
    %450 = vector.shape_cast %449 : vector<1x1x8x8xf32> to vector<8x8xf32>
    %451 = vector.broadcast %448 : f32 to vector<8x8xf32>
    %452 = arith.mulf %451, %450 : vector<8x8xf32>
    %453 = arith.addf %447, %452 : vector<8x8xf32>
    %c2_432 = arith.constant 2 : index
    %c10_433 = arith.constant 10 : index
    %454 = memref.load %arg3[%c2_432, %c10_433] : memref<7x14xf32, #tpu.memory_space<smem>>
    %c0_434 = arith.constant 0 : index
    %c2_435 = arith.constant 2 : index
    %c0_436 = arith.constant 0 : index
    %c0_437 = arith.constant 0 : index
    %455 = vector.load %arg2[%c0_434, %c2_435, %c0_436, %c0_437] : memref<1x7x8x8xf32, #tpu.memory_space<vmem>>, vector<1x1x8x8xf32>
    %456 = vector.shape_cast %455 : vector<1x1x8x8xf32> to vector<8x8xf32>
    %457 = vector.broadcast %454 : f32 to vector<8x8xf32>
    %458 = arith.mulf %457, %456 : vector<8x8xf32>
    %459 = arith.addf %453, %458 : vector<8x8xf32>
    %c3_438 = arith.constant 3 : index
    %c10_439 = arith.constant 10 : index
    %460 = memref.load %arg3[%c3_438, %c10_439] : memref<7x14xf32, #tpu.memory_space<smem>>
    %c0_440 = arith.constant 0 : index
    %c3_441 = arith.constant 3 : index
    %c0_442 = arith.constant 0 : index
    %c0_443 = arith.constant 0 : index
    %461 = vector.load %arg2[%c0_440, %c3_441, %c0_442, %c0_443] : memref<1x7x8x8xf32, #tpu.memory_space<vmem>>, vector<1x1x8x8xf32>
    %462 = vector.shape_cast %461 : vector<1x1x8x8xf32> to vector<8x8xf32>
    %463 = vector.broadcast %460 : f32 to vector<8x8xf32>
    %464 = arith.mulf %463, %462 : vector<8x8xf32>
    %465 = arith.addf %459, %464 : vector<8x8xf32>
    %c4_444 = arith.constant 4 : index
    %c10_445 = arith.constant 10 : index
    %466 = memref.load %arg3[%c4_444, %c10_445] : memref<7x14xf32, #tpu.memory_space<smem>>
    %c0_446 = arith.constant 0 : index
    %c4_447 = arith.constant 4 : index
    %c0_448 = arith.constant 0 : index
    %c0_449 = arith.constant 0 : index
    %467 = vector.load %arg2[%c0_446, %c4_447, %c0_448, %c0_449] : memref<1x7x8x8xf32, #tpu.memory_space<vmem>>, vector<1x1x8x8xf32>
    %468 = vector.shape_cast %467 : vector<1x1x8x8xf32> to vector<8x8xf32>
    %469 = vector.broadcast %466 : f32 to vector<8x8xf32>
    %470 = arith.mulf %469, %468 : vector<8x8xf32>
    %471 = arith.addf %465, %470 : vector<8x8xf32>
    %c5_450 = arith.constant 5 : index
    %c10_451 = arith.constant 10 : index
    %472 = memref.load %arg3[%c5_450, %c10_451] : memref<7x14xf32, #tpu.memory_space<smem>>
    %c0_452 = arith.constant 0 : index
    %c5_453 = arith.constant 5 : index
    %c0_454 = arith.constant 0 : index
    %c0_455 = arith.constant 0 : index
    %473 = vector.load %arg2[%c0_452, %c5_453, %c0_454, %c0_455] : memref<1x7x8x8xf32, #tpu.memory_space<vmem>>, vector<1x1x8x8xf32>
    %474 = vector.shape_cast %473 : vector<1x1x8x8xf32> to vector<8x8xf32>
    %475 = vector.broadcast %472 : f32 to vector<8x8xf32>
    %476 = arith.mulf %475, %474 : vector<8x8xf32>
    %477 = arith.addf %471, %476 : vector<8x8xf32>
    %c6_456 = arith.constant 6 : index
    %c10_457 = arith.constant 10 : index
    %478 = memref.load %arg3[%c6_456, %c10_457] : memref<7x14xf32, #tpu.memory_space<smem>>
    %c0_458 = arith.constant 0 : index
    %c6_459 = arith.constant 6 : index
    %c0_460 = arith.constant 0 : index
    %c0_461 = arith.constant 0 : index
    %479 = vector.load %arg2[%c0_458, %c6_459, %c0_460, %c0_461] : memref<1x7x8x8xf32, #tpu.memory_space<vmem>>, vector<1x1x8x8xf32>
    %480 = vector.shape_cast %479 : vector<1x1x8x8xf32> to vector<8x8xf32>
    %481 = vector.broadcast %478 : f32 to vector<8x8xf32>
    %482 = arith.mulf %481, %480 : vector<8x8xf32>
    %483 = arith.addf %477, %482 : vector<8x8xf32>
    %c11 = arith.constant 11 : index
    %484 = memref.load %arg4[%c11] : memref<14xf32, #tpu.memory_space<smem>>
    %c0_462 = arith.constant 0 : index
    %c11_463 = arith.constant 11 : index
    %485 = memref.load %arg3[%c0_462, %c11_463] : memref<7x14xf32, #tpu.memory_space<smem>>
    %c0_464 = arith.constant 0 : index
    %c0_465 = arith.constant 0 : index
    %c0_466 = arith.constant 0 : index
    %c0_467 = arith.constant 0 : index
    %486 = vector.load %arg2[%c0_464, %c0_465, %c0_466, %c0_467] : memref<1x7x8x8xf32, #tpu.memory_space<vmem>>, vector<1x1x8x8xf32>
    %487 = vector.shape_cast %486 : vector<1x1x8x8xf32> to vector<8x8xf32>
    %488 = vector.broadcast %485 : f32 to vector<8x8xf32>
    %489 = arith.mulf %488, %487 : vector<8x8xf32>
    %490 = vector.broadcast %484 : f32 to vector<8x8xf32>
    %491 = arith.addf %490, %489 : vector<8x8xf32>
    %c1_468 = arith.constant 1 : index
    %c11_469 = arith.constant 11 : index
    %492 = memref.load %arg3[%c1_468, %c11_469] : memref<7x14xf32, #tpu.memory_space<smem>>
    %c0_470 = arith.constant 0 : index
    %c1_471 = arith.constant 1 : index
    %c0_472 = arith.constant 0 : index
    %c0_473 = arith.constant 0 : index
    %493 = vector.load %arg2[%c0_470, %c1_471, %c0_472, %c0_473] : memref<1x7x8x8xf32, #tpu.memory_space<vmem>>, vector<1x1x8x8xf32>
    %494 = vector.shape_cast %493 : vector<1x1x8x8xf32> to vector<8x8xf32>
    %495 = vector.broadcast %492 : f32 to vector<8x8xf32>
    %496 = arith.mulf %495, %494 : vector<8x8xf32>
    %497 = arith.addf %491, %496 : vector<8x8xf32>
    %c2_474 = arith.constant 2 : index
    %c11_475 = arith.constant 11 : index
    %498 = memref.load %arg3[%c2_474, %c11_475] : memref<7x14xf32, #tpu.memory_space<smem>>
    %c0_476 = arith.constant 0 : index
    %c2_477 = arith.constant 2 : index
    %c0_478 = arith.constant 0 : index
    %c0_479 = arith.constant 0 : index
    %499 = vector.load %arg2[%c0_476, %c2_477, %c0_478, %c0_479] : memref<1x7x8x8xf32, #tpu.memory_space<vmem>>, vector<1x1x8x8xf32>
    %500 = vector.shape_cast %499 : vector<1x1x8x8xf32> to vector<8x8xf32>
    %501 = vector.broadcast %498 : f32 to vector<8x8xf32>
    %502 = arith.mulf %501, %500 : vector<8x8xf32>
    %503 = arith.addf %497, %502 : vector<8x8xf32>
    %c3_480 = arith.constant 3 : index
    %c11_481 = arith.constant 11 : index
    %504 = memref.load %arg3[%c3_480, %c11_481] : memref<7x14xf32, #tpu.memory_space<smem>>
    %c0_482 = arith.constant 0 : index
    %c3_483 = arith.constant 3 : index
    %c0_484 = arith.constant 0 : index
    %c0_485 = arith.constant 0 : index
    %505 = vector.load %arg2[%c0_482, %c3_483, %c0_484, %c0_485] : memref<1x7x8x8xf32, #tpu.memory_space<vmem>>, vector<1x1x8x8xf32>
    %506 = vector.shape_cast %505 : vector<1x1x8x8xf32> to vector<8x8xf32>
    %507 = vector.broadcast %504 : f32 to vector<8x8xf32>
    %508 = arith.mulf %507, %506 : vector<8x8xf32>
    %509 = arith.addf %503, %508 : vector<8x8xf32>
    %c4_486 = arith.constant 4 : index
    %c11_487 = arith.constant 11 : index
    %510 = memref.load %arg3[%c4_486, %c11_487] : memref<7x14xf32, #tpu.memory_space<smem>>
    %c0_488 = arith.constant 0 : index
    %c4_489 = arith.constant 4 : index
    %c0_490 = arith.constant 0 : index
    %c0_491 = arith.constant 0 : index
    %511 = vector.load %arg2[%c0_488, %c4_489, %c0_490, %c0_491] : memref<1x7x8x8xf32, #tpu.memory_space<vmem>>, vector<1x1x8x8xf32>
    %512 = vector.shape_cast %511 : vector<1x1x8x8xf32> to vector<8x8xf32>
    %513 = vector.broadcast %510 : f32 to vector<8x8xf32>
    %514 = arith.mulf %513, %512 : vector<8x8xf32>
    %515 = arith.addf %509, %514 : vector<8x8xf32>
    %c5_492 = arith.constant 5 : index
    %c11_493 = arith.constant 11 : index
    %516 = memref.load %arg3[%c5_492, %c11_493] : memref<7x14xf32, #tpu.memory_space<smem>>
    %c0_494 = arith.constant 0 : index
    %c5_495 = arith.constant 5 : index
    %c0_496 = arith.constant 0 : index
    %c0_497 = arith.constant 0 : index
    %517 = vector.load %arg2[%c0_494, %c5_495, %c0_496, %c0_497] : memref<1x7x8x8xf32, #tpu.memory_space<vmem>>, vector<1x1x8x8xf32>
    %518 = vector.shape_cast %517 : vector<1x1x8x8xf32> to vector<8x8xf32>
    %519 = vector.broadcast %516 : f32 to vector<8x8xf32>
    %520 = arith.mulf %519, %518 : vector<8x8xf32>
    %521 = arith.addf %515, %520 : vector<8x8xf32>
    %c6_498 = arith.constant 6 : index
    %c11_499 = arith.constant 11 : index
    %522 = memref.load %arg3[%c6_498, %c11_499] : memref<7x14xf32, #tpu.memory_space<smem>>
    %c0_500 = arith.constant 0 : index
    %c6_501 = arith.constant 6 : index
    %c0_502 = arith.constant 0 : index
    %c0_503 = arith.constant 0 : index
    %523 = vector.load %arg2[%c0_500, %c6_501, %c0_502, %c0_503] : memref<1x7x8x8xf32, #tpu.memory_space<vmem>>, vector<1x1x8x8xf32>
    %524 = vector.shape_cast %523 : vector<1x1x8x8xf32> to vector<8x8xf32>
    %525 = vector.broadcast %522 : f32 to vector<8x8xf32>
    %526 = arith.mulf %525, %524 : vector<8x8xf32>
    %527 = arith.addf %521, %526 : vector<8x8xf32>
    %c12 = arith.constant 12 : index
    %528 = memref.load %arg4[%c12] : memref<14xf32, #tpu.memory_space<smem>>
    %c0_504 = arith.constant 0 : index
    %c12_505 = arith.constant 12 : index
    %529 = memref.load %arg3[%c0_504, %c12_505] : memref<7x14xf32, #tpu.memory_space<smem>>
    %c0_506 = arith.constant 0 : index
    %c0_507 = arith.constant 0 : index
    %c0_508 = arith.constant 0 : index
    %c0_509 = arith.constant 0 : index
    %530 = vector.load %arg2[%c0_506, %c0_507, %c0_508, %c0_509] : memref<1x7x8x8xf32, #tpu.memory_space<vmem>>, vector<1x1x8x8xf32>
    %531 = vector.shape_cast %530 : vector<1x1x8x8xf32> to vector<8x8xf32>
    %532 = vector.broadcast %529 : f32 to vector<8x8xf32>
    %533 = arith.mulf %532, %531 : vector<8x8xf32>
    %534 = vector.broadcast %528 : f32 to vector<8x8xf32>
    %535 = arith.addf %534, %533 : vector<8x8xf32>
    %c1_510 = arith.constant 1 : index
    %c12_511 = arith.constant 12 : index
    %536 = memref.load %arg3[%c1_510, %c12_511] : memref<7x14xf32, #tpu.memory_space<smem>>
    %c0_512 = arith.constant 0 : index
    %c1_513 = arith.constant 1 : index
    %c0_514 = arith.constant 0 : index
    %c0_515 = arith.constant 0 : index
    %537 = vector.load %arg2[%c0_512, %c1_513, %c0_514, %c0_515] : memref<1x7x8x8xf32, #tpu.memory_space<vmem>>, vector<1x1x8x8xf32>
    %538 = vector.shape_cast %537 : vector<1x1x8x8xf32> to vector<8x8xf32>
    %539 = vector.broadcast %536 : f32 to vector<8x8xf32>
    %540 = arith.mulf %539, %538 : vector<8x8xf32>
    %541 = arith.addf %535, %540 : vector<8x8xf32>
    %c2_516 = arith.constant 2 : index
    %c12_517 = arith.constant 12 : index
    %542 = memref.load %arg3[%c2_516, %c12_517] : memref<7x14xf32, #tpu.memory_space<smem>>
    %c0_518 = arith.constant 0 : index
    %c2_519 = arith.constant 2 : index
    %c0_520 = arith.constant 0 : index
    %c0_521 = arith.constant 0 : index
    %543 = vector.load %arg2[%c0_518, %c2_519, %c0_520, %c0_521] : memref<1x7x8x8xf32, #tpu.memory_space<vmem>>, vector<1x1x8x8xf32>
    %544 = vector.shape_cast %543 : vector<1x1x8x8xf32> to vector<8x8xf32>
    %545 = vector.broadcast %542 : f32 to vector<8x8xf32>
    %546 = arith.mulf %545, %544 : vector<8x8xf32>
    %547 = arith.addf %541, %546 : vector<8x8xf32>
    %c3_522 = arith.constant 3 : index
    %c12_523 = arith.constant 12 : index
    %548 = memref.load %arg3[%c3_522, %c12_523] : memref<7x14xf32, #tpu.memory_space<smem>>
    %c0_524 = arith.constant 0 : index
    %c3_525 = arith.constant 3 : index
    %c0_526 = arith.constant 0 : index
    %c0_527 = arith.constant 0 : index
    %549 = vector.load %arg2[%c0_524, %c3_525, %c0_526, %c0_527] : memref<1x7x8x8xf32, #tpu.memory_space<vmem>>, vector<1x1x8x8xf32>
    %550 = vector.shape_cast %549 : vector<1x1x8x8xf32> to vector<8x8xf32>
    %551 = vector.broadcast %548 : f32 to vector<8x8xf32>
    %552 = arith.mulf %551, %550 : vector<8x8xf32>
    %553 = arith.addf %547, %552 : vector<8x8xf32>
    %c4_528 = arith.constant 4 : index
    %c12_529 = arith.constant 12 : index
    %554 = memref.load %arg3[%c4_528, %c12_529] : memref<7x14xf32, #tpu.memory_space<smem>>
    %c0_530 = arith.constant 0 : index
    %c4_531 = arith.constant 4 : index
    %c0_532 = arith.constant 0 : index
    %c0_533 = arith.constant 0 : index
    %555 = vector.load %arg2[%c0_530, %c4_531, %c0_532, %c0_533] : memref<1x7x8x8xf32, #tpu.memory_space<vmem>>, vector<1x1x8x8xf32>
    %556 = vector.shape_cast %555 : vector<1x1x8x8xf32> to vector<8x8xf32>
    %557 = vector.broadcast %554 : f32 to vector<8x8xf32>
    %558 = arith.mulf %557, %556 : vector<8x8xf32>
    %559 = arith.addf %553, %558 : vector<8x8xf32>
    %c5_534 = arith.constant 5 : index
    %c12_535 = arith.constant 12 : index
    %560 = memref.load %arg3[%c5_534, %c12_535] : memref<7x14xf32, #tpu.memory_space<smem>>
    %c0_536 = arith.constant 0 : index
    %c5_537 = arith.constant 5 : index
    %c0_538 = arith.constant 0 : index
    %c0_539 = arith.constant 0 : index
    %561 = vector.load %arg2[%c0_536, %c5_537, %c0_538, %c0_539] : memref<1x7x8x8xf32, #tpu.memory_space<vmem>>, vector<1x1x8x8xf32>
    %562 = vector.shape_cast %561 : vector<1x1x8x8xf32> to vector<8x8xf32>
    %563 = vector.broadcast %560 : f32 to vector<8x8xf32>
    %564 = arith.mulf %563, %562 : vector<8x8xf32>
    %565 = arith.addf %559, %564 : vector<8x8xf32>
    %c6_540 = arith.constant 6 : index
    %c12_541 = arith.constant 12 : index
    %566 = memref.load %arg3[%c6_540, %c12_541] : memref<7x14xf32, #tpu.memory_space<smem>>
    %c0_542 = arith.constant 0 : index
    %c6_543 = arith.constant 6 : index
    %c0_544 = arith.constant 0 : index
    %c0_545 = arith.constant 0 : index
    %567 = vector.load %arg2[%c0_542, %c6_543, %c0_544, %c0_545] : memref<1x7x8x8xf32, #tpu.memory_space<vmem>>, vector<1x1x8x8xf32>
    %568 = vector.shape_cast %567 : vector<1x1x8x8xf32> to vector<8x8xf32>
    %569 = vector.broadcast %566 : f32 to vector<8x8xf32>
    %570 = arith.mulf %569, %568 : vector<8x8xf32>
    %571 = arith.addf %565, %570 : vector<8x8xf32>
    %c13 = arith.constant 13 : index
    %572 = memref.load %arg4[%c13] : memref<14xf32, #tpu.memory_space<smem>>
    %c0_546 = arith.constant 0 : index
    %c13_547 = arith.constant 13 : index
    %573 = memref.load %arg3[%c0_546, %c13_547] : memref<7x14xf32, #tpu.memory_space<smem>>
    %c0_548 = arith.constant 0 : index
    %c0_549 = arith.constant 0 : index
    %c0_550 = arith.constant 0 : index
    %c0_551 = arith.constant 0 : index
    %574 = vector.load %arg2[%c0_548, %c0_549, %c0_550, %c0_551] : memref<1x7x8x8xf32, #tpu.memory_space<vmem>>, vector<1x1x8x8xf32>
    %575 = vector.shape_cast %574 : vector<1x1x8x8xf32> to vector<8x8xf32>
    %576 = vector.broadcast %573 : f32 to vector<8x8xf32>
    %577 = arith.mulf %576, %575 : vector<8x8xf32>
    %578 = vector.broadcast %572 : f32 to vector<8x8xf32>
    %579 = arith.addf %578, %577 : vector<8x8xf32>
    %c1_552 = arith.constant 1 : index
    %c13_553 = arith.constant 13 : index
    %580 = memref.load %arg3[%c1_552, %c13_553] : memref<7x14xf32, #tpu.memory_space<smem>>
    %c0_554 = arith.constant 0 : index
    %c1_555 = arith.constant 1 : index
    %c0_556 = arith.constant 0 : index
    %c0_557 = arith.constant 0 : index
    %581 = vector.load %arg2[%c0_554, %c1_555, %c0_556, %c0_557] : memref<1x7x8x8xf32, #tpu.memory_space<vmem>>, vector<1x1x8x8xf32>
    %582 = vector.shape_cast %581 : vector<1x1x8x8xf32> to vector<8x8xf32>
    %583 = vector.broadcast %580 : f32 to vector<8x8xf32>
    %584 = arith.mulf %583, %582 : vector<8x8xf32>
    %585 = arith.addf %579, %584 : vector<8x8xf32>
    %c2_558 = arith.constant 2 : index
    %c13_559 = arith.constant 13 : index
    %586 = memref.load %arg3[%c2_558, %c13_559] : memref<7x14xf32, #tpu.memory_space<smem>>
    %c0_560 = arith.constant 0 : index
    %c2_561 = arith.constant 2 : index
    %c0_562 = arith.constant 0 : index
    %c0_563 = arith.constant 0 : index
    %587 = vector.load %arg2[%c0_560, %c2_561, %c0_562, %c0_563] : memref<1x7x8x8xf32, #tpu.memory_space<vmem>>, vector<1x1x8x8xf32>
    %588 = vector.shape_cast %587 : vector<1x1x8x8xf32> to vector<8x8xf32>
    %589 = vector.broadcast %586 : f32 to vector<8x8xf32>
    %590 = arith.mulf %589, %588 : vector<8x8xf32>
    %591 = arith.addf %585, %590 : vector<8x8xf32>
    %c3_564 = arith.constant 3 : index
    %c13_565 = arith.constant 13 : index
    %592 = memref.load %arg3[%c3_564, %c13_565] : memref<7x14xf32, #tpu.memory_space<smem>>
    %c0_566 = arith.constant 0 : index
    %c3_567 = arith.constant 3 : index
    %c0_568 = arith.constant 0 : index
    %c0_569 = arith.constant 0 : index
    %593 = vector.load %arg2[%c0_566, %c3_567, %c0_568, %c0_569] : memref<1x7x8x8xf32, #tpu.memory_space<vmem>>, vector<1x1x8x8xf32>
    %594 = vector.shape_cast %593 : vector<1x1x8x8xf32> to vector<8x8xf32>
    %595 = vector.broadcast %592 : f32 to vector<8x8xf32>
    %596 = arith.mulf %595, %594 : vector<8x8xf32>
    %597 = arith.addf %591, %596 : vector<8x8xf32>
    %c4_570 = arith.constant 4 : index
    %c13_571 = arith.constant 13 : index
    %598 = memref.load %arg3[%c4_570, %c13_571] : memref<7x14xf32, #tpu.memory_space<smem>>
    %c0_572 = arith.constant 0 : index
    %c4_573 = arith.constant 4 : index
    %c0_574 = arith.constant 0 : index
    %c0_575 = arith.constant 0 : index
    %599 = vector.load %arg2[%c0_572, %c4_573, %c0_574, %c0_575] : memref<1x7x8x8xf32, #tpu.memory_space<vmem>>, vector<1x1x8x8xf32>
    %600 = vector.shape_cast %599 : vector<1x1x8x8xf32> to vector<8x8xf32>
    %601 = vector.broadcast %598 : f32 to vector<8x8xf32>
    %602 = arith.mulf %601, %600 : vector<8x8xf32>
    %603 = arith.addf %597, %602 : vector<8x8xf32>
    %c5_576 = arith.constant 5 : index
    %c13_577 = arith.constant 13 : index
    %604 = memref.load %arg3[%c5_576, %c13_577] : memref<7x14xf32, #tpu.memory_space<smem>>
    %c0_578 = arith.constant 0 : index
    %c5_579 = arith.constant 5 : index
    %c0_580 = arith.constant 0 : index
    %c0_581 = arith.constant 0 : index
    %605 = vector.load %arg2[%c0_578, %c5_579, %c0_580, %c0_581] : memref<1x7x8x8xf32, #tpu.memory_space<vmem>>, vector<1x1x8x8xf32>
    %606 = vector.shape_cast %605 : vector<1x1x8x8xf32> to vector<8x8xf32>
    %607 = vector.broadcast %604 : f32 to vector<8x8xf32>
    %608 = arith.mulf %607, %606 : vector<8x8xf32>
    %609 = arith.addf %603, %608 : vector<8x8xf32>
    %c6_582 = arith.constant 6 : index
    %c13_583 = arith.constant 13 : index
    %610 = memref.load %arg3[%c6_582, %c13_583] : memref<7x14xf32, #tpu.memory_space<smem>>
    %c0_584 = arith.constant 0 : index
    %c6_585 = arith.constant 6 : index
    %c0_586 = arith.constant 0 : index
    %c0_587 = arith.constant 0 : index
    %611 = vector.load %arg2[%c0_584, %c6_585, %c0_586, %c0_587] : memref<1x7x8x8xf32, #tpu.memory_space<vmem>>, vector<1x1x8x8xf32>
    %612 = vector.shape_cast %611 : vector<1x1x8x8xf32> to vector<8x8xf32>
    %613 = vector.broadcast %610 : f32 to vector<8x8xf32>
    %614 = arith.mulf %613, %612 : vector<8x8xf32>
    %615 = arith.addf %609, %614 : vector<8x8xf32>
    %cst = arith.constant 0.000000e+00 : f32
    %616 = vector.broadcast %cst : f32 to vector<8x8xf32>
    %617 = arith.cmpf ogt, %43, %616 : vector<8x8xf32>
    %cst_588 = arith.constant 0.000000e+00 : f32
    %618 = vector.broadcast %cst_588 : f32 to vector<8x8xf32>
    %619 = arith.minimumf %43, %618 : vector<8x8xf32>
    %620 = math.exp %619 : vector<8x8xf32>
    %cst_589 = arith.constant 1.000000e+00 : f32
    %621 = vector.broadcast %cst_589 : f32 to vector<8x8xf32>
    %622 = arith.subf %620, %621 : vector<8x8xf32>
    %623 = arith.select %617, %43, %622 : vector<8x8xi1>, vector<8x8xf32>
    %cst_590 = arith.constant 0.000000e+00 : f32
    %624 = vector.broadcast %cst_590 : f32 to vector<8x8xf32>
    %625 = arith.cmpf ogt, %87, %624 : vector<8x8xf32>
    %cst_591 = arith.constant 0.000000e+00 : f32
    %626 = vector.broadcast %cst_591 : f32 to vector<8x8xf32>
    %627 = arith.minimumf %87, %626 : vector<8x8xf32>
    %628 = math.exp %627 : vector<8x8xf32>
    %cst_592 = arith.constant 1.000000e+00 : f32
    %629 = vector.broadcast %cst_592 : f32 to vector<8x8xf32>
    %630 = arith.subf %628, %629 : vector<8x8xf32>
    %631 = arith.select %625, %87, %630 : vector<8x8xi1>, vector<8x8xf32>
    %cst_593 = arith.constant 0.000000e+00 : f32
    %632 = vector.broadcast %cst_593 : f32 to vector<8x8xf32>
    %633 = arith.cmpf ogt, %131, %632 : vector<8x8xf32>
    %cst_594 = arith.constant 0.000000e+00 : f32
    %634 = vector.broadcast %cst_594 : f32 to vector<8x8xf32>
    %635 = arith.minimumf %131, %634 : vector<8x8xf32>
    %636 = math.exp %635 : vector<8x8xf32>
    %cst_595 = arith.constant 1.000000e+00 : f32
    %637 = vector.broadcast %cst_595 : f32 to vector<8x8xf32>
    %638 = arith.subf %636, %637 : vector<8x8xf32>
    %639 = arith.select %633, %131, %638 : vector<8x8xi1>, vector<8x8xf32>
    %cst_596 = arith.constant 0.000000e+00 : f32
    %640 = vector.broadcast %cst_596 : f32 to vector<8x8xf32>
    %641 = arith.cmpf ogt, %175, %640 : vector<8x8xf32>
    %cst_597 = arith.constant 0.000000e+00 : f32
    %642 = vector.broadcast %cst_597 : f32 to vector<8x8xf32>
    %643 = arith.minimumf %175, %642 : vector<8x8xf32>
    %644 = math.exp %643 : vector<8x8xf32>
    %cst_598 = arith.constant 1.000000e+00 : f32
    %645 = vector.broadcast %cst_598 : f32 to vector<8x8xf32>
    %646 = arith.subf %644, %645 : vector<8x8xf32>
    %647 = arith.select %641, %175, %646 : vector<8x8xi1>, vector<8x8xf32>
    %cst_599 = arith.constant 0.000000e+00 : f32
    %648 = vector.broadcast %cst_599 : f32 to vector<8x8xf32>
    %649 = arith.cmpf ogt, %219, %648 : vector<8x8xf32>
    %cst_600 = arith.constant 0.000000e+00 : f32
    %650 = vector.broadcast %cst_600 : f32 to vector<8x8xf32>
    %651 = arith.minimumf %219, %650 : vector<8x8xf32>
    %652 = math.exp %651 : vector<8x8xf32>
    %cst_601 = arith.constant 1.000000e+00 : f32
    %653 = vector.broadcast %cst_601 : f32 to vector<8x8xf32>
    %654 = arith.subf %652, %653 : vector<8x8xf32>
    %655 = arith.select %649, %219, %654 : vector<8x8xi1>, vector<8x8xf32>
    %cst_602 = arith.constant 0.000000e+00 : f32
    %656 = vector.broadcast %cst_602 : f32 to vector<8x8xf32>
    %657 = arith.cmpf ogt, %263, %656 : vector<8x8xf32>
    %cst_603 = arith.constant 0.000000e+00 : f32
    %658 = vector.broadcast %cst_603 : f32 to vector<8x8xf32>
    %659 = arith.minimumf %263, %658 : vector<8x8xf32>
    %660 = math.exp %659 : vector<8x8xf32>
    %cst_604 = arith.constant 1.000000e+00 : f32
    %661 = vector.broadcast %cst_604 : f32 to vector<8x8xf32>
    %662 = arith.subf %660, %661 : vector<8x8xf32>
    %663 = arith.select %657, %263, %662 : vector<8x8xi1>, vector<8x8xf32>
    %cst_605 = arith.constant 0.000000e+00 : f32
    %664 = vector.broadcast %cst_605 : f32 to vector<8x8xf32>
    %665 = arith.cmpf ogt, %307, %664 : vector<8x8xf32>
    %cst_606 = arith.constant 0.000000e+00 : f32
    %666 = vector.broadcast %cst_606 : f32 to vector<8x8xf32>
    %667 = arith.minimumf %307, %666 : vector<8x8xf32>
    %668 = math.exp %667 : vector<8x8xf32>
    %cst_607 = arith.constant 1.000000e+00 : f32
    %669 = vector.broadcast %cst_607 : f32 to vector<8x8xf32>
    %670 = arith.subf %668, %669 : vector<8x8xf32>
    %671 = arith.select %665, %307, %670 : vector<8x8xi1>, vector<8x8xf32>
    %cst_608 = arith.constant 0.000000e+00 : f32
    %672 = vector.broadcast %cst_608 : f32 to vector<8x8xf32>
    %673 = arith.cmpf ogt, %351, %672 : vector<8x8xf32>
    %cst_609 = arith.constant 0.000000e+00 : f32
    %674 = vector.broadcast %cst_609 : f32 to vector<8x8xf32>
    %675 = arith.minimumf %351, %674 : vector<8x8xf32>
    %676 = math.exp %675 : vector<8x8xf32>
    %cst_610 = arith.constant 1.000000e+00 : f32
    %677 = vector.broadcast %cst_610 : f32 to vector<8x8xf32>
    %678 = arith.subf %676, %677 : vector<8x8xf32>
    %679 = arith.select %673, %351, %678 : vector<8x8xi1>, vector<8x8xf32>
    %cst_611 = arith.constant 0.000000e+00 : f32
    %680 = vector.broadcast %cst_611 : f32 to vector<8x8xf32>
    %681 = arith.cmpf ogt, %395, %680 : vector<8x8xf32>
    %cst_612 = arith.constant 0.000000e+00 : f32
    %682 = vector.broadcast %cst_612 : f32 to vector<8x8xf32>
    %683 = arith.minimumf %395, %682 : vector<8x8xf32>
    %684 = math.exp %683 : vector<8x8xf32>
    %cst_613 = arith.constant 1.000000e+00 : f32
    %685 = vector.broadcast %cst_613 : f32 to vector<8x8xf32>
    %686 = arith.subf %684, %685 : vector<8x8xf32>
    %687 = arith.select %681, %395, %686 : vector<8x8xi1>, vector<8x8xf32>
    %cst_614 = arith.constant 0.000000e+00 : f32
    %688 = vector.broadcast %cst_614 : f32 to vector<8x8xf32>
    %689 = arith.cmpf ogt, %439, %688 : vector<8x8xf32>
    %cst_615 = arith.constant 0.000000e+00 : f32
    %690 = vector.broadcast %cst_615 : f32 to vector<8x8xf32>
    %691 = arith.minimumf %439, %690 : vector<8x8xf32>
    %692 = math.exp %691 : vector<8x8xf32>
    %cst_616 = arith.constant 1.000000e+00 : f32
    %693 = vector.broadcast %cst_616 : f32 to vector<8x8xf32>
    %694 = arith.subf %692, %693 : vector<8x8xf32>
    %695 = arith.select %689, %439, %694 : vector<8x8xi1>, vector<8x8xf32>
    %cst_617 = arith.constant 0.000000e+00 : f32
    %696 = vector.broadcast %cst_617 : f32 to vector<8x8xf32>
    %697 = arith.cmpf ogt, %483, %696 : vector<8x8xf32>
    %cst_618 = arith.constant 0.000000e+00 : f32
    %698 = vector.broadcast %cst_618 : f32 to vector<8x8xf32>
    %699 = arith.minimumf %483, %698 : vector<8x8xf32>
    %700 = math.exp %699 : vector<8x8xf32>
    %cst_619 = arith.constant 1.000000e+00 : f32
    %701 = vector.broadcast %cst_619 : f32 to vector<8x8xf32>
    %702 = arith.subf %700, %701 : vector<8x8xf32>
    %703 = arith.select %697, %483, %702 : vector<8x8xi1>, vector<8x8xf32>
    %cst_620 = arith.constant 0.000000e+00 : f32
    %704 = vector.broadcast %cst_620 : f32 to vector<8x8xf32>
    %705 = arith.cmpf ogt, %527, %704 : vector<8x8xf32>
    %cst_621 = arith.constant 0.000000e+00 : f32
    %706 = vector.broadcast %cst_621 : f32 to vector<8x8xf32>
    %707 = arith.minimumf %527, %706 : vector<8x8xf32>
    %708 = math.exp %707 : vector<8x8xf32>
    %cst_622 = arith.constant 1.000000e+00 : f32
    %709 = vector.broadcast %cst_622 : f32 to vector<8x8xf32>
    %710 = arith.subf %708, %709 : vector<8x8xf32>
    %711 = arith.select %705, %527, %710 : vector<8x8xi1>, vector<8x8xf32>
    %cst_623 = arith.constant 0.000000e+00 : f32
    %712 = vector.broadcast %cst_623 : f32 to vector<8x8xf32>
    %713 = arith.cmpf ogt, %571, %712 : vector<8x8xf32>
    %cst_624 = arith.constant 0.000000e+00 : f32
    %714 = vector.broadcast %cst_624 : f32 to vector<8x8xf32>
    %715 = arith.minimumf %571, %714 : vector<8x8xf32>
    %716 = math.exp %715 : vector<8x8xf32>
    %cst_625 = arith.constant 1.000000e+00 : f32
    %717 = vector.broadcast %cst_625 : f32 to vector<8x8xf32>
    %718 = arith.subf %716, %717 : vector<8x8xf32>
    %719 = arith.select %713, %571, %718 : vector<8x8xi1>, vector<8x8xf32>
    %cst_626 = arith.constant 0.000000e+00 : f32
    %720 = vector.broadcast %cst_626 : f32 to vector<8x8xf32>
    %721 = arith.cmpf ogt, %615, %720 : vector<8x8xf32>
    %cst_627 = arith.constant 0.000000e+00 : f32
    %722 = vector.broadcast %cst_627 : f32 to vector<8x8xf32>
    %723 = arith.minimumf %615, %722 : vector<8x8xf32>
    %724 = math.exp %723 : vector<8x8xf32>
    %cst_628 = arith.constant 1.000000e+00 : f32
    %725 = vector.broadcast %cst_628 : f32 to vector<8x8xf32>
    %726 = arith.subf %724, %725 : vector<8x8xf32>
    %727 = arith.select %721, %615, %726 : vector<8x8xi1>, vector<8x8xf32>
    %c0_629 = arith.constant 0 : index
    %728 = memref.load %arg6[%c0_629] : memref<14xf32, #tpu.memory_space<smem>>
    %c0_630 = arith.constant 0 : index
    %c0_631 = arith.constant 0 : index
    %729 = memref.load %arg5[%c0_630, %c0_631] : memref<14x14xf32, #tpu.memory_space<smem>>
    %730 = vector.broadcast %729 : f32 to vector<8x8xf32>
    %731 = arith.mulf %730, %623 : vector<8x8xf32>
    %732 = vector.broadcast %728 : f32 to vector<8x8xf32>
    %733 = arith.addf %732, %731 : vector<8x8xf32>
    %c1_632 = arith.constant 1 : index
    %c0_633 = arith.constant 0 : index
    %734 = memref.load %arg5[%c1_632, %c0_633] : memref<14x14xf32, #tpu.memory_space<smem>>
    %735 = vector.broadcast %734 : f32 to vector<8x8xf32>
    %736 = arith.mulf %735, %631 : vector<8x8xf32>
    %737 = arith.addf %733, %736 : vector<8x8xf32>
    %c2_634 = arith.constant 2 : index
    %c0_635 = arith.constant 0 : index
    %738 = memref.load %arg5[%c2_634, %c0_635] : memref<14x14xf32, #tpu.memory_space<smem>>
    %739 = vector.broadcast %738 : f32 to vector<8x8xf32>
    %740 = arith.mulf %739, %639 : vector<8x8xf32>
    %741 = arith.addf %737, %740 : vector<8x8xf32>
    %c3_636 = arith.constant 3 : index
    %c0_637 = arith.constant 0 : index
    %742 = memref.load %arg5[%c3_636, %c0_637] : memref<14x14xf32, #tpu.memory_space<smem>>
    %743 = vector.broadcast %742 : f32 to vector<8x8xf32>
    %744 = arith.mulf %743, %647 : vector<8x8xf32>
    %745 = arith.addf %741, %744 : vector<8x8xf32>
    %c4_638 = arith.constant 4 : index
    %c0_639 = arith.constant 0 : index
    %746 = memref.load %arg5[%c4_638, %c0_639] : memref<14x14xf32, #tpu.memory_space<smem>>
    %747 = vector.broadcast %746 : f32 to vector<8x8xf32>
    %748 = arith.mulf %747, %655 : vector<8x8xf32>
    %749 = arith.addf %745, %748 : vector<8x8xf32>
    %c5_640 = arith.constant 5 : index
    %c0_641 = arith.constant 0 : index
    %750 = memref.load %arg5[%c5_640, %c0_641] : memref<14x14xf32, #tpu.memory_space<smem>>
    %751 = vector.broadcast %750 : f32 to vector<8x8xf32>
    %752 = arith.mulf %751, %663 : vector<8x8xf32>
    %753 = arith.addf %749, %752 : vector<8x8xf32>
    %c6_642 = arith.constant 6 : index
    %c0_643 = arith.constant 0 : index
    %754 = memref.load %arg5[%c6_642, %c0_643] : memref<14x14xf32, #tpu.memory_space<smem>>
    %755 = vector.broadcast %754 : f32 to vector<8x8xf32>
    %756 = arith.mulf %755, %671 : vector<8x8xf32>
    %757 = arith.addf %753, %756 : vector<8x8xf32>
    %c7_644 = arith.constant 7 : index
    %c0_645 = arith.constant 0 : index
    %758 = memref.load %arg5[%c7_644, %c0_645] : memref<14x14xf32, #tpu.memory_space<smem>>
    %759 = vector.broadcast %758 : f32 to vector<8x8xf32>
    %760 = arith.mulf %759, %679 : vector<8x8xf32>
    %761 = arith.addf %757, %760 : vector<8x8xf32>
    %c8_646 = arith.constant 8 : index
    %c0_647 = arith.constant 0 : index
    %762 = memref.load %arg5[%c8_646, %c0_647] : memref<14x14xf32, #tpu.memory_space<smem>>
    %763 = vector.broadcast %762 : f32 to vector<8x8xf32>
    %764 = arith.mulf %763, %687 : vector<8x8xf32>
    %765 = arith.addf %761, %764 : vector<8x8xf32>
    %c9_648 = arith.constant 9 : index
    %c0_649 = arith.constant 0 : index
    %766 = memref.load %arg5[%c9_648, %c0_649] : memref<14x14xf32, #tpu.memory_space<smem>>
    %767 = vector.broadcast %766 : f32 to vector<8x8xf32>
    %768 = arith.mulf %767, %695 : vector<8x8xf32>
    %769 = arith.addf %765, %768 : vector<8x8xf32>
    %c10_650 = arith.constant 10 : index
    %c0_651 = arith.constant 0 : index
    %770 = memref.load %arg5[%c10_650, %c0_651] : memref<14x14xf32, #tpu.memory_space<smem>>
    %771 = vector.broadcast %770 : f32 to vector<8x8xf32>
    %772 = arith.mulf %771, %703 : vector<8x8xf32>
    %773 = arith.addf %769, %772 : vector<8x8xf32>
    %c11_652 = arith.constant 11 : index
    %c0_653 = arith.constant 0 : index
    %774 = memref.load %arg5[%c11_652, %c0_653] : memref<14x14xf32, #tpu.memory_space<smem>>
    %775 = vector.broadcast %774 : f32 to vector<8x8xf32>
    %776 = arith.mulf %775, %711 : vector<8x8xf32>
    %777 = arith.addf %773, %776 : vector<8x8xf32>
    %c12_654 = arith.constant 12 : index
    %c0_655 = arith.constant 0 : index
    %778 = memref.load %arg5[%c12_654, %c0_655] : memref<14x14xf32, #tpu.memory_space<smem>>
    %779 = vector.broadcast %778 : f32 to vector<8x8xf32>
    %780 = arith.mulf %779, %719 : vector<8x8xf32>
    %781 = arith.addf %777, %780 : vector<8x8xf32>
    %c13_656 = arith.constant 13 : index
    %c0_657 = arith.constant 0 : index
    %782 = memref.load %arg5[%c13_656, %c0_657] : memref<14x14xf32, #tpu.memory_space<smem>>
    %783 = vector.broadcast %782 : f32 to vector<8x8xf32>
    %784 = arith.mulf %783, %727 : vector<8x8xf32>
    %785 = arith.addf %781, %784 : vector<8x8xf32>
    %c1_658 = arith.constant 1 : index
    %786 = memref.load %arg6[%c1_658] : memref<14xf32, #tpu.memory_space<smem>>
    %c0_659 = arith.constant 0 : index
    %c1_660 = arith.constant 1 : index
    %787 = memref.load %arg5[%c0_659, %c1_660] : memref<14x14xf32, #tpu.memory_space<smem>>
    %788 = vector.broadcast %787 : f32 to vector<8x8xf32>
    %789 = arith.mulf %788, %623 : vector<8x8xf32>
    %790 = vector.broadcast %786 : f32 to vector<8x8xf32>
    %791 = arith.addf %790, %789 : vector<8x8xf32>
    %c1_661 = arith.constant 1 : index
    %c1_662 = arith.constant 1 : index
    %792 = memref.load %arg5[%c1_661, %c1_662] : memref<14x14xf32, #tpu.memory_space<smem>>
    %793 = vector.broadcast %792 : f32 to vector<8x8xf32>
    %794 = arith.mulf %793, %631 : vector<8x8xf32>
    %795 = arith.addf %791, %794 : vector<8x8xf32>
    %c2_663 = arith.constant 2 : index
    %c1_664 = arith.constant 1 : index
    %796 = memref.load %arg5[%c2_663, %c1_664] : memref<14x14xf32, #tpu.memory_space<smem>>
    %797 = vector.broadcast %796 : f32 to vector<8x8xf32>
    %798 = arith.mulf %797, %639 : vector<8x8xf32>
    %799 = arith.addf %795, %798 : vector<8x8xf32>
    %c3_665 = arith.constant 3 : index
    %c1_666 = arith.constant 1 : index
    %800 = memref.load %arg5[%c3_665, %c1_666] : memref<14x14xf32, #tpu.memory_space<smem>>
    %801 = vector.broadcast %800 : f32 to vector<8x8xf32>
    %802 = arith.mulf %801, %647 : vector<8x8xf32>
    %803 = arith.addf %799, %802 : vector<8x8xf32>
    %c4_667 = arith.constant 4 : index
    %c1_668 = arith.constant 1 : index
    %804 = memref.load %arg5[%c4_667, %c1_668] : memref<14x14xf32, #tpu.memory_space<smem>>
    %805 = vector.broadcast %804 : f32 to vector<8x8xf32>
    %806 = arith.mulf %805, %655 : vector<8x8xf32>
    %807 = arith.addf %803, %806 : vector<8x8xf32>
    %c5_669 = arith.constant 5 : index
    %c1_670 = arith.constant 1 : index
    %808 = memref.load %arg5[%c5_669, %c1_670] : memref<14x14xf32, #tpu.memory_space<smem>>
    %809 = vector.broadcast %808 : f32 to vector<8x8xf32>
    %810 = arith.mulf %809, %663 : vector<8x8xf32>
    %811 = arith.addf %807, %810 : vector<8x8xf32>
    %c6_671 = arith.constant 6 : index
    %c1_672 = arith.constant 1 : index
    %812 = memref.load %arg5[%c6_671, %c1_672] : memref<14x14xf32, #tpu.memory_space<smem>>
    %813 = vector.broadcast %812 : f32 to vector<8x8xf32>
    %814 = arith.mulf %813, %671 : vector<8x8xf32>
    %815 = arith.addf %811, %814 : vector<8x8xf32>
    %c7_673 = arith.constant 7 : index
    %c1_674 = arith.constant 1 : index
    %816 = memref.load %arg5[%c7_673, %c1_674] : memref<14x14xf32, #tpu.memory_space<smem>>
    %817 = vector.broadcast %816 : f32 to vector<8x8xf32>
    %818 = arith.mulf %817, %679 : vector<8x8xf32>
    %819 = arith.addf %815, %818 : vector<8x8xf32>
    %c8_675 = arith.constant 8 : index
    %c1_676 = arith.constant 1 : index
    %820 = memref.load %arg5[%c8_675, %c1_676] : memref<14x14xf32, #tpu.memory_space<smem>>
    %821 = vector.broadcast %820 : f32 to vector<8x8xf32>
    %822 = arith.mulf %821, %687 : vector<8x8xf32>
    %823 = arith.addf %819, %822 : vector<8x8xf32>
    %c9_677 = arith.constant 9 : index
    %c1_678 = arith.constant 1 : index
    %824 = memref.load %arg5[%c9_677, %c1_678] : memref<14x14xf32, #tpu.memory_space<smem>>
    %825 = vector.broadcast %824 : f32 to vector<8x8xf32>
    %826 = arith.mulf %825, %695 : vector<8x8xf32>
    %827 = arith.addf %823, %826 : vector<8x8xf32>
    %c10_679 = arith.constant 10 : index
    %c1_680 = arith.constant 1 : index
    %828 = memref.load %arg5[%c10_679, %c1_680] : memref<14x14xf32, #tpu.memory_space<smem>>
    %829 = vector.broadcast %828 : f32 to vector<8x8xf32>
    %830 = arith.mulf %829, %703 : vector<8x8xf32>
    %831 = arith.addf %827, %830 : vector<8x8xf32>
    %c11_681 = arith.constant 11 : index
    %c1_682 = arith.constant 1 : index
    %832 = memref.load %arg5[%c11_681, %c1_682] : memref<14x14xf32, #tpu.memory_space<smem>>
    %833 = vector.broadcast %832 : f32 to vector<8x8xf32>
    %834 = arith.mulf %833, %711 : vector<8x8xf32>
    %835 = arith.addf %831, %834 : vector<8x8xf32>
    %c12_683 = arith.constant 12 : index
    %c1_684 = arith.constant 1 : index
    %836 = memref.load %arg5[%c12_683, %c1_684] : memref<14x14xf32, #tpu.memory_space<smem>>
    %837 = vector.broadcast %836 : f32 to vector<8x8xf32>
    %838 = arith.mulf %837, %719 : vector<8x8xf32>
    %839 = arith.addf %835, %838 : vector<8x8xf32>
    %c13_685 = arith.constant 13 : index
    %c1_686 = arith.constant 1 : index
    %840 = memref.load %arg5[%c13_685, %c1_686] : memref<14x14xf32, #tpu.memory_space<smem>>
    %841 = vector.broadcast %840 : f32 to vector<8x8xf32>
    %842 = arith.mulf %841, %727 : vector<8x8xf32>
    %843 = arith.addf %839, %842 : vector<8x8xf32>
    %c2_687 = arith.constant 2 : index
    %844 = memref.load %arg6[%c2_687] : memref<14xf32, #tpu.memory_space<smem>>
    %c0_688 = arith.constant 0 : index
    %c2_689 = arith.constant 2 : index
    %845 = memref.load %arg5[%c0_688, %c2_689] : memref<14x14xf32, #tpu.memory_space<smem>>
    %846 = vector.broadcast %845 : f32 to vector<8x8xf32>
    %847 = arith.mulf %846, %623 : vector<8x8xf32>
    %848 = vector.broadcast %844 : f32 to vector<8x8xf32>
    %849 = arith.addf %848, %847 : vector<8x8xf32>
    %c1_690 = arith.constant 1 : index
    %c2_691 = arith.constant 2 : index
    %850 = memref.load %arg5[%c1_690, %c2_691] : memref<14x14xf32, #tpu.memory_space<smem>>
    %851 = vector.broadcast %850 : f32 to vector<8x8xf32>
    %852 = arith.mulf %851, %631 : vector<8x8xf32>
    %853 = arith.addf %849, %852 : vector<8x8xf32>
    %c2_692 = arith.constant 2 : index
    %c2_693 = arith.constant 2 : index
    %854 = memref.load %arg5[%c2_692, %c2_693] : memref<14x14xf32, #tpu.memory_space<smem>>
    %855 = vector.broadcast %854 : f32 to vector<8x8xf32>
    %856 = arith.mulf %855, %639 : vector<8x8xf32>
    %857 = arith.addf %853, %856 : vector<8x8xf32>
    %c3_694 = arith.constant 3 : index
    %c2_695 = arith.constant 2 : index
    %858 = memref.load %arg5[%c3_694, %c2_695] : memref<14x14xf32, #tpu.memory_space<smem>>
    %859 = vector.broadcast %858 : f32 to vector<8x8xf32>
    %860 = arith.mulf %859, %647 : vector<8x8xf32>
    %861 = arith.addf %857, %860 : vector<8x8xf32>
    %c4_696 = arith.constant 4 : index
    %c2_697 = arith.constant 2 : index
    %862 = memref.load %arg5[%c4_696, %c2_697] : memref<14x14xf32, #tpu.memory_space<smem>>
    %863 = vector.broadcast %862 : f32 to vector<8x8xf32>
    %864 = arith.mulf %863, %655 : vector<8x8xf32>
    %865 = arith.addf %861, %864 : vector<8x8xf32>
    %c5_698 = arith.constant 5 : index
    %c2_699 = arith.constant 2 : index
    %866 = memref.load %arg5[%c5_698, %c2_699] : memref<14x14xf32, #tpu.memory_space<smem>>
    %867 = vector.broadcast %866 : f32 to vector<8x8xf32>
    %868 = arith.mulf %867, %663 : vector<8x8xf32>
    %869 = arith.addf %865, %868 : vector<8x8xf32>
    %c6_700 = arith.constant 6 : index
    %c2_701 = arith.constant 2 : index
    %870 = memref.load %arg5[%c6_700, %c2_701] : memref<14x14xf32, #tpu.memory_space<smem>>
    %871 = vector.broadcast %870 : f32 to vector<8x8xf32>
    %872 = arith.mulf %871, %671 : vector<8x8xf32>
    %873 = arith.addf %869, %872 : vector<8x8xf32>
    %c7_702 = arith.constant 7 : index
    %c2_703 = arith.constant 2 : index
    %874 = memref.load %arg5[%c7_702, %c2_703] : memref<14x14xf32, #tpu.memory_space<smem>>
    %875 = vector.broadcast %874 : f32 to vector<8x8xf32>
    %876 = arith.mulf %875, %679 : vector<8x8xf32>
    %877 = arith.addf %873, %876 : vector<8x8xf32>
    %c8_704 = arith.constant 8 : index
    %c2_705 = arith.constant 2 : index
    %878 = memref.load %arg5[%c8_704, %c2_705] : memref<14x14xf32, #tpu.memory_space<smem>>
    %879 = vector.broadcast %878 : f32 to vector<8x8xf32>
    %880 = arith.mulf %879, %687 : vector<8x8xf32>
    %881 = arith.addf %877, %880 : vector<8x8xf32>
    %c9_706 = arith.constant 9 : index
    %c2_707 = arith.constant 2 : index
    %882 = memref.load %arg5[%c9_706, %c2_707] : memref<14x14xf32, #tpu.memory_space<smem>>
    %883 = vector.broadcast %882 : f32 to vector<8x8xf32>
    %884 = arith.mulf %883, %695 : vector<8x8xf32>
    %885 = arith.addf %881, %884 : vector<8x8xf32>
    %c10_708 = arith.constant 10 : index
    %c2_709 = arith.constant 2 : index
    %886 = memref.load %arg5[%c10_708, %c2_709] : memref<14x14xf32, #tpu.memory_space<smem>>
    %887 = vector.broadcast %886 : f32 to vector<8x8xf32>
    %888 = arith.mulf %887, %703 : vector<8x8xf32>
    %889 = arith.addf %885, %888 : vector<8x8xf32>
    %c11_710 = arith.constant 11 : index
    %c2_711 = arith.constant 2 : index
    %890 = memref.load %arg5[%c11_710, %c2_711] : memref<14x14xf32, #tpu.memory_space<smem>>
    %891 = vector.broadcast %890 : f32 to vector<8x8xf32>
    %892 = arith.mulf %891, %711 : vector<8x8xf32>
    %893 = arith.addf %889, %892 : vector<8x8xf32>
    %c12_712 = arith.constant 12 : index
    %c2_713 = arith.constant 2 : index
    %894 = memref.load %arg5[%c12_712, %c2_713] : memref<14x14xf32, #tpu.memory_space<smem>>
    %895 = vector.broadcast %894 : f32 to vector<8x8xf32>
    %896 = arith.mulf %895, %719 : vector<8x8xf32>
    %897 = arith.addf %893, %896 : vector<8x8xf32>
    %c13_714 = arith.constant 13 : index
    %c2_715 = arith.constant 2 : index
    %898 = memref.load %arg5[%c13_714, %c2_715] : memref<14x14xf32, #tpu.memory_space<smem>>
    %899 = vector.broadcast %898 : f32 to vector<8x8xf32>
    %900 = arith.mulf %899, %727 : vector<8x8xf32>
    %901 = arith.addf %897, %900 : vector<8x8xf32>
    %c3_716 = arith.constant 3 : index
    %902 = memref.load %arg6[%c3_716] : memref<14xf32, #tpu.memory_space<smem>>
    %c0_717 = arith.constant 0 : index
    %c3_718 = arith.constant 3 : index
    %903 = memref.load %arg5[%c0_717, %c3_718] : memref<14x14xf32, #tpu.memory_space<smem>>
    %904 = vector.broadcast %903 : f32 to vector<8x8xf32>
    %905 = arith.mulf %904, %623 : vector<8x8xf32>
    %906 = vector.broadcast %902 : f32 to vector<8x8xf32>
    %907 = arith.addf %906, %905 : vector<8x8xf32>
    %c1_719 = arith.constant 1 : index
    %c3_720 = arith.constant 3 : index
    %908 = memref.load %arg5[%c1_719, %c3_720] : memref<14x14xf32, #tpu.memory_space<smem>>
    %909 = vector.broadcast %908 : f32 to vector<8x8xf32>
    %910 = arith.mulf %909, %631 : vector<8x8xf32>
    %911 = arith.addf %907, %910 : vector<8x8xf32>
    %c2_721 = arith.constant 2 : index
    %c3_722 = arith.constant 3 : index
    %912 = memref.load %arg5[%c2_721, %c3_722] : memref<14x14xf32, #tpu.memory_space<smem>>
    %913 = vector.broadcast %912 : f32 to vector<8x8xf32>
    %914 = arith.mulf %913, %639 : vector<8x8xf32>
    %915 = arith.addf %911, %914 : vector<8x8xf32>
    %c3_723 = arith.constant 3 : index
    %c3_724 = arith.constant 3 : index
    %916 = memref.load %arg5[%c3_723, %c3_724] : memref<14x14xf32, #tpu.memory_space<smem>>
    %917 = vector.broadcast %916 : f32 to vector<8x8xf32>
    %918 = arith.mulf %917, %647 : vector<8x8xf32>
    %919 = arith.addf %915, %918 : vector<8x8xf32>
    %c4_725 = arith.constant 4 : index
    %c3_726 = arith.constant 3 : index
    %920 = memref.load %arg5[%c4_725, %c3_726] : memref<14x14xf32, #tpu.memory_space<smem>>
    %921 = vector.broadcast %920 : f32 to vector<8x8xf32>
    %922 = arith.mulf %921, %655 : vector<8x8xf32>
    %923 = arith.addf %919, %922 : vector<8x8xf32>
    %c5_727 = arith.constant 5 : index
    %c3_728 = arith.constant 3 : index
    %924 = memref.load %arg5[%c5_727, %c3_728] : memref<14x14xf32, #tpu.memory_space<smem>>
    %925 = vector.broadcast %924 : f32 to vector<8x8xf32>
    %926 = arith.mulf %925, %663 : vector<8x8xf32>
    %927 = arith.addf %923, %926 : vector<8x8xf32>
    %c6_729 = arith.constant 6 : index
    %c3_730 = arith.constant 3 : index
    %928 = memref.load %arg5[%c6_729, %c3_730] : memref<14x14xf32, #tpu.memory_space<smem>>
    %929 = vector.broadcast %928 : f32 to vector<8x8xf32>
    %930 = arith.mulf %929, %671 : vector<8x8xf32>
    %931 = arith.addf %927, %930 : vector<8x8xf32>
    %c7_731 = arith.constant 7 : index
    %c3_732 = arith.constant 3 : index
    %932 = memref.load %arg5[%c7_731, %c3_732] : memref<14x14xf32, #tpu.memory_space<smem>>
    %933 = vector.broadcast %932 : f32 to vector<8x8xf32>
    %934 = arith.mulf %933, %679 : vector<8x8xf32>
    %935 = arith.addf %931, %934 : vector<8x8xf32>
    %c8_733 = arith.constant 8 : index
    %c3_734 = arith.constant 3 : index
    %936 = memref.load %arg5[%c8_733, %c3_734] : memref<14x14xf32, #tpu.memory_space<smem>>
    %937 = vector.broadcast %936 : f32 to vector<8x8xf32>
    %938 = arith.mulf %937, %687 : vector<8x8xf32>
    %939 = arith.addf %935, %938 : vector<8x8xf32>
    %c9_735 = arith.constant 9 : index
    %c3_736 = arith.constant 3 : index
    %940 = memref.load %arg5[%c9_735, %c3_736] : memref<14x14xf32, #tpu.memory_space<smem>>
    %941 = vector.broadcast %940 : f32 to vector<8x8xf32>
    %942 = arith.mulf %941, %695 : vector<8x8xf32>
    %943 = arith.addf %939, %942 : vector<8x8xf32>
    %c10_737 = arith.constant 10 : index
    %c3_738 = arith.constant 3 : index
    %944 = memref.load %arg5[%c10_737, %c3_738] : memref<14x14xf32, #tpu.memory_space<smem>>
    %945 = vector.broadcast %944 : f32 to vector<8x8xf32>
    %946 = arith.mulf %945, %703 : vector<8x8xf32>
    %947 = arith.addf %943, %946 : vector<8x8xf32>
    %c11_739 = arith.constant 11 : index
    %c3_740 = arith.constant 3 : index
    %948 = memref.load %arg5[%c11_739, %c3_740] : memref<14x14xf32, #tpu.memory_space<smem>>
    %949 = vector.broadcast %948 : f32 to vector<8x8xf32>
    %950 = arith.mulf %949, %711 : vector<8x8xf32>
    %951 = arith.addf %947, %950 : vector<8x8xf32>
    %c12_741 = arith.constant 12 : index
    %c3_742 = arith.constant 3 : index
    %952 = memref.load %arg5[%c12_741, %c3_742] : memref<14x14xf32, #tpu.memory_space<smem>>
    %953 = vector.broadcast %952 : f32 to vector<8x8xf32>
    %954 = arith.mulf %953, %719 : vector<8x8xf32>
    %955 = arith.addf %951, %954 : vector<8x8xf32>
    %c13_743 = arith.constant 13 : index
    %c3_744 = arith.constant 3 : index
    %956 = memref.load %arg5[%c13_743, %c3_744] : memref<14x14xf32, #tpu.memory_space<smem>>
    %957 = vector.broadcast %956 : f32 to vector<8x8xf32>
    %958 = arith.mulf %957, %727 : vector<8x8xf32>
    %959 = arith.addf %955, %958 : vector<8x8xf32>
    %c4_745 = arith.constant 4 : index
    %960 = memref.load %arg6[%c4_745] : memref<14xf32, #tpu.memory_space<smem>>
    %c0_746 = arith.constant 0 : index
    %c4_747 = arith.constant 4 : index
    %961 = memref.load %arg5[%c0_746, %c4_747] : memref<14x14xf32, #tpu.memory_space<smem>>
    %962 = vector.broadcast %961 : f32 to vector<8x8xf32>
    %963 = arith.mulf %962, %623 : vector<8x8xf32>
    %964 = vector.broadcast %960 : f32 to vector<8x8xf32>
    %965 = arith.addf %964, %963 : vector<8x8xf32>
    %c1_748 = arith.constant 1 : index
    %c4_749 = arith.constant 4 : index
    %966 = memref.load %arg5[%c1_748, %c4_749] : memref<14x14xf32, #tpu.memory_space<smem>>
    %967 = vector.broadcast %966 : f32 to vector<8x8xf32>
    %968 = arith.mulf %967, %631 : vector<8x8xf32>
    %969 = arith.addf %965, %968 : vector<8x8xf32>
    %c2_750 = arith.constant 2 : index
    %c4_751 = arith.constant 4 : index
    %970 = memref.load %arg5[%c2_750, %c4_751] : memref<14x14xf32, #tpu.memory_space<smem>>
    %971 = vector.broadcast %970 : f32 to vector<8x8xf32>
    %972 = arith.mulf %971, %639 : vector<8x8xf32>
    %973 = arith.addf %969, %972 : vector<8x8xf32>
    %c3_752 = arith.constant 3 : index
    %c4_753 = arith.constant 4 : index
    %974 = memref.load %arg5[%c3_752, %c4_753] : memref<14x14xf32, #tpu.memory_space<smem>>
    %975 = vector.broadcast %974 : f32 to vector<8x8xf32>
    %976 = arith.mulf %975, %647 : vector<8x8xf32>
    %977 = arith.addf %973, %976 : vector<8x8xf32>
    %c4_754 = arith.constant 4 : index
    %c4_755 = arith.constant 4 : index
    %978 = memref.load %arg5[%c4_754, %c4_755] : memref<14x14xf32, #tpu.memory_space<smem>>
    %979 = vector.broadcast %978 : f32 to vector<8x8xf32>
    %980 = arith.mulf %979, %655 : vector<8x8xf32>
    %981 = arith.addf %977, %980 : vector<8x8xf32>
    %c5_756 = arith.constant 5 : index
    %c4_757 = arith.constant 4 : index
    %982 = memref.load %arg5[%c5_756, %c4_757] : memref<14x14xf32, #tpu.memory_space<smem>>
    %983 = vector.broadcast %982 : f32 to vector<8x8xf32>
    %984 = arith.mulf %983, %663 : vector<8x8xf32>
    %985 = arith.addf %981, %984 : vector<8x8xf32>
    %c6_758 = arith.constant 6 : index
    %c4_759 = arith.constant 4 : index
    %986 = memref.load %arg5[%c6_758, %c4_759] : memref<14x14xf32, #tpu.memory_space<smem>>
    %987 = vector.broadcast %986 : f32 to vector<8x8xf32>
    %988 = arith.mulf %987, %671 : vector<8x8xf32>
    %989 = arith.addf %985, %988 : vector<8x8xf32>
    %c7_760 = arith.constant 7 : index
    %c4_761 = arith.constant 4 : index
    %990 = memref.load %arg5[%c7_760, %c4_761] : memref<14x14xf32, #tpu.memory_space<smem>>
    %991 = vector.broadcast %990 : f32 to vector<8x8xf32>
    %992 = arith.mulf %991, %679 : vector<8x8xf32>
    %993 = arith.addf %989, %992 : vector<8x8xf32>
    %c8_762 = arith.constant 8 : index
    %c4_763 = arith.constant 4 : index
    %994 = memref.load %arg5[%c8_762, %c4_763] : memref<14x14xf32, #tpu.memory_space<smem>>
    %995 = vector.broadcast %994 : f32 to vector<8x8xf32>
    %996 = arith.mulf %995, %687 : vector<8x8xf32>
    %997 = arith.addf %993, %996 : vector<8x8xf32>
    %c9_764 = arith.constant 9 : index
    %c4_765 = arith.constant 4 : index
    %998 = memref.load %arg5[%c9_764, %c4_765] : memref<14x14xf32, #tpu.memory_space<smem>>
    %999 = vector.broadcast %998 : f32 to vector<8x8xf32>
    %1000 = arith.mulf %999, %695 : vector<8x8xf32>
    %1001 = arith.addf %997, %1000 : vector<8x8xf32>
    %c10_766 = arith.constant 10 : index
    %c4_767 = arith.constant 4 : index
    %1002 = memref.load %arg5[%c10_766, %c4_767] : memref<14x14xf32, #tpu.memory_space<smem>>
    %1003 = vector.broadcast %1002 : f32 to vector<8x8xf32>
    %1004 = arith.mulf %1003, %703 : vector<8x8xf32>
    %1005 = arith.addf %1001, %1004 : vector<8x8xf32>
    %c11_768 = arith.constant 11 : index
    %c4_769 = arith.constant 4 : index
    %1006 = memref.load %arg5[%c11_768, %c4_769] : memref<14x14xf32, #tpu.memory_space<smem>>
    %1007 = vector.broadcast %1006 : f32 to vector<8x8xf32>
    %1008 = arith.mulf %1007, %711 : vector<8x8xf32>
    %1009 = arith.addf %1005, %1008 : vector<8x8xf32>
    %c12_770 = arith.constant 12 : index
    %c4_771 = arith.constant 4 : index
    %1010 = memref.load %arg5[%c12_770, %c4_771] : memref<14x14xf32, #tpu.memory_space<smem>>
    %1011 = vector.broadcast %1010 : f32 to vector<8x8xf32>
    %1012 = arith.mulf %1011, %719 : vector<8x8xf32>
    %1013 = arith.addf %1009, %1012 : vector<8x8xf32>
    %c13_772 = arith.constant 13 : index
    %c4_773 = arith.constant 4 : index
    %1014 = memref.load %arg5[%c13_772, %c4_773] : memref<14x14xf32, #tpu.memory_space<smem>>
    %1015 = vector.broadcast %1014 : f32 to vector<8x8xf32>
    %1016 = arith.mulf %1015, %727 : vector<8x8xf32>
    %1017 = arith.addf %1013, %1016 : vector<8x8xf32>
    %c5_774 = arith.constant 5 : index
    %1018 = memref.load %arg6[%c5_774] : memref<14xf32, #tpu.memory_space<smem>>
    %c0_775 = arith.constant 0 : index
    %c5_776 = arith.constant 5 : index
    %1019 = memref.load %arg5[%c0_775, %c5_776] : memref<14x14xf32, #tpu.memory_space<smem>>
    %1020 = vector.broadcast %1019 : f32 to vector<8x8xf32>
    %1021 = arith.mulf %1020, %623 : vector<8x8xf32>
    %1022 = vector.broadcast %1018 : f32 to vector<8x8xf32>
    %1023 = arith.addf %1022, %1021 : vector<8x8xf32>
    %c1_777 = arith.constant 1 : index
    %c5_778 = arith.constant 5 : index
    %1024 = memref.load %arg5[%c1_777, %c5_778] : memref<14x14xf32, #tpu.memory_space<smem>>
    %1025 = vector.broadcast %1024 : f32 to vector<8x8xf32>
    %1026 = arith.mulf %1025, %631 : vector<8x8xf32>
    %1027 = arith.addf %1023, %1026 : vector<8x8xf32>
    %c2_779 = arith.constant 2 : index
    %c5_780 = arith.constant 5 : index
    %1028 = memref.load %arg5[%c2_779, %c5_780] : memref<14x14xf32, #tpu.memory_space<smem>>
    %1029 = vector.broadcast %1028 : f32 to vector<8x8xf32>
    %1030 = arith.mulf %1029, %639 : vector<8x8xf32>
    %1031 = arith.addf %1027, %1030 : vector<8x8xf32>
    %c3_781 = arith.constant 3 : index
    %c5_782 = arith.constant 5 : index
    %1032 = memref.load %arg5[%c3_781, %c5_782] : memref<14x14xf32, #tpu.memory_space<smem>>
    %1033 = vector.broadcast %1032 : f32 to vector<8x8xf32>
    %1034 = arith.mulf %1033, %647 : vector<8x8xf32>
    %1035 = arith.addf %1031, %1034 : vector<8x8xf32>
    %c4_783 = arith.constant 4 : index
    %c5_784 = arith.constant 5 : index
    %1036 = memref.load %arg5[%c4_783, %c5_784] : memref<14x14xf32, #tpu.memory_space<smem>>
    %1037 = vector.broadcast %1036 : f32 to vector<8x8xf32>
    %1038 = arith.mulf %1037, %655 : vector<8x8xf32>
    %1039 = arith.addf %1035, %1038 : vector<8x8xf32>
    %c5_785 = arith.constant 5 : index
    %c5_786 = arith.constant 5 : index
    %1040 = memref.load %arg5[%c5_785, %c5_786] : memref<14x14xf32, #tpu.memory_space<smem>>
    %1041 = vector.broadcast %1040 : f32 to vector<8x8xf32>
    %1042 = arith.mulf %1041, %663 : vector<8x8xf32>
    %1043 = arith.addf %1039, %1042 : vector<8x8xf32>
    %c6_787 = arith.constant 6 : index
    %c5_788 = arith.constant 5 : index
    %1044 = memref.load %arg5[%c6_787, %c5_788] : memref<14x14xf32, #tpu.memory_space<smem>>
    %1045 = vector.broadcast %1044 : f32 to vector<8x8xf32>
    %1046 = arith.mulf %1045, %671 : vector<8x8xf32>
    %1047 = arith.addf %1043, %1046 : vector<8x8xf32>
    %c7_789 = arith.constant 7 : index
    %c5_790 = arith.constant 5 : index
    %1048 = memref.load %arg5[%c7_789, %c5_790] : memref<14x14xf32, #tpu.memory_space<smem>>
    %1049 = vector.broadcast %1048 : f32 to vector<8x8xf32>
    %1050 = arith.mulf %1049, %679 : vector<8x8xf32>
    %1051 = arith.addf %1047, %1050 : vector<8x8xf32>
    %c8_791 = arith.constant 8 : index
    %c5_792 = arith.constant 5 : index
    %1052 = memref.load %arg5[%c8_791, %c5_792] : memref<14x14xf32, #tpu.memory_space<smem>>
    %1053 = vector.broadcast %1052 : f32 to vector<8x8xf32>
    %1054 = arith.mulf %1053, %687 : vector<8x8xf32>
    %1055 = arith.addf %1051, %1054 : vector<8x8xf32>
    %c9_793 = arith.constant 9 : index
    %c5_794 = arith.constant 5 : index
    %1056 = memref.load %arg5[%c9_793, %c5_794] : memref<14x14xf32, #tpu.memory_space<smem>>
    %1057 = vector.broadcast %1056 : f32 to vector<8x8xf32>
    %1058 = arith.mulf %1057, %695 : vector<8x8xf32>
    %1059 = arith.addf %1055, %1058 : vector<8x8xf32>
    %c10_795 = arith.constant 10 : index
    %c5_796 = arith.constant 5 : index
    %1060 = memref.load %arg5[%c10_795, %c5_796] : memref<14x14xf32, #tpu.memory_space<smem>>
    %1061 = vector.broadcast %1060 : f32 to vector<8x8xf32>
    %1062 = arith.mulf %1061, %703 : vector<8x8xf32>
    %1063 = arith.addf %1059, %1062 : vector<8x8xf32>
    %c11_797 = arith.constant 11 : index
    %c5_798 = arith.constant 5 : index
    %1064 = memref.load %arg5[%c11_797, %c5_798] : memref<14x14xf32, #tpu.memory_space<smem>>
    %1065 = vector.broadcast %1064 : f32 to vector<8x8xf32>
    %1066 = arith.mulf %1065, %711 : vector<8x8xf32>
    %1067 = arith.addf %1063, %1066 : vector<8x8xf32>
    %c12_799 = arith.constant 12 : index
    %c5_800 = arith.constant 5 : index
    %1068 = memref.load %arg5[%c12_799, %c5_800] : memref<14x14xf32, #tpu.memory_space<smem>>
    %1069 = vector.broadcast %1068 : f32 to vector<8x8xf32>
    %1070 = arith.mulf %1069, %719 : vector<8x8xf32>
    %1071 = arith.addf %1067, %1070 : vector<8x8xf32>
    %c13_801 = arith.constant 13 : index
    %c5_802 = arith.constant 5 : index
    %1072 = memref.load %arg5[%c13_801, %c5_802] : memref<14x14xf32, #tpu.memory_space<smem>>
    %1073 = vector.broadcast %1072 : f32 to vector<8x8xf32>
    %1074 = arith.mulf %1073, %727 : vector<8x8xf32>
    %1075 = arith.addf %1071, %1074 : vector<8x8xf32>
    %c6_803 = arith.constant 6 : index
    %1076 = memref.load %arg6[%c6_803] : memref<14xf32, #tpu.memory_space<smem>>
    %c0_804 = arith.constant 0 : index
    %c6_805 = arith.constant 6 : index
    %1077 = memref.load %arg5[%c0_804, %c6_805] : memref<14x14xf32, #tpu.memory_space<smem>>
    %1078 = vector.broadcast %1077 : f32 to vector<8x8xf32>
    %1079 = arith.mulf %1078, %623 : vector<8x8xf32>
    %1080 = vector.broadcast %1076 : f32 to vector<8x8xf32>
    %1081 = arith.addf %1080, %1079 : vector<8x8xf32>
    %c1_806 = arith.constant 1 : index
    %c6_807 = arith.constant 6 : index
    %1082 = memref.load %arg5[%c1_806, %c6_807] : memref<14x14xf32, #tpu.memory_space<smem>>
    %1083 = vector.broadcast %1082 : f32 to vector<8x8xf32>
    %1084 = arith.mulf %1083, %631 : vector<8x8xf32>
    %1085 = arith.addf %1081, %1084 : vector<8x8xf32>
    %c2_808 = arith.constant 2 : index
    %c6_809 = arith.constant 6 : index
    %1086 = memref.load %arg5[%c2_808, %c6_809] : memref<14x14xf32, #tpu.memory_space<smem>>
    %1087 = vector.broadcast %1086 : f32 to vector<8x8xf32>
    %1088 = arith.mulf %1087, %639 : vector<8x8xf32>
    %1089 = arith.addf %1085, %1088 : vector<8x8xf32>
    %c3_810 = arith.constant 3 : index
    %c6_811 = arith.constant 6 : index
    %1090 = memref.load %arg5[%c3_810, %c6_811] : memref<14x14xf32, #tpu.memory_space<smem>>
    %1091 = vector.broadcast %1090 : f32 to vector<8x8xf32>
    %1092 = arith.mulf %1091, %647 : vector<8x8xf32>
    %1093 = arith.addf %1089, %1092 : vector<8x8xf32>
    %c4_812 = arith.constant 4 : index
    %c6_813 = arith.constant 6 : index
    %1094 = memref.load %arg5[%c4_812, %c6_813] : memref<14x14xf32, #tpu.memory_space<smem>>
    %1095 = vector.broadcast %1094 : f32 to vector<8x8xf32>
    %1096 = arith.mulf %1095, %655 : vector<8x8xf32>
    %1097 = arith.addf %1093, %1096 : vector<8x8xf32>
    %c5_814 = arith.constant 5 : index
    %c6_815 = arith.constant 6 : index
    %1098 = memref.load %arg5[%c5_814, %c6_815] : memref<14x14xf32, #tpu.memory_space<smem>>
    %1099 = vector.broadcast %1098 : f32 to vector<8x8xf32>
    %1100 = arith.mulf %1099, %663 : vector<8x8xf32>
    %1101 = arith.addf %1097, %1100 : vector<8x8xf32>
    %c6_816 = arith.constant 6 : index
    %c6_817 = arith.constant 6 : index
    %1102 = memref.load %arg5[%c6_816, %c6_817] : memref<14x14xf32, #tpu.memory_space<smem>>
    %1103 = vector.broadcast %1102 : f32 to vector<8x8xf32>
    %1104 = arith.mulf %1103, %671 : vector<8x8xf32>
    %1105 = arith.addf %1101, %1104 : vector<8x8xf32>
    %c7_818 = arith.constant 7 : index
    %c6_819 = arith.constant 6 : index
    %1106 = memref.load %arg5[%c7_818, %c6_819] : memref<14x14xf32, #tpu.memory_space<smem>>
    %1107 = vector.broadcast %1106 : f32 to vector<8x8xf32>
    %1108 = arith.mulf %1107, %679 : vector<8x8xf32>
    %1109 = arith.addf %1105, %1108 : vector<8x8xf32>
    %c8_820 = arith.constant 8 : index
    %c6_821 = arith.constant 6 : index
    %1110 = memref.load %arg5[%c8_820, %c6_821] : memref<14x14xf32, #tpu.memory_space<smem>>
    %1111 = vector.broadcast %1110 : f32 to vector<8x8xf32>
    %1112 = arith.mulf %1111, %687 : vector<8x8xf32>
    %1113 = arith.addf %1109, %1112 : vector<8x8xf32>
    %c9_822 = arith.constant 9 : index
    %c6_823 = arith.constant 6 : index
    %1114 = memref.load %arg5[%c9_822, %c6_823] : memref<14x14xf32, #tpu.memory_space<smem>>
    %1115 = vector.broadcast %1114 : f32 to vector<8x8xf32>
    %1116 = arith.mulf %1115, %695 : vector<8x8xf32>
    %1117 = arith.addf %1113, %1116 : vector<8x8xf32>
    %c10_824 = arith.constant 10 : index
    %c6_825 = arith.constant 6 : index
    %1118 = memref.load %arg5[%c10_824, %c6_825] : memref<14x14xf32, #tpu.memory_space<smem>>
    %1119 = vector.broadcast %1118 : f32 to vector<8x8xf32>
    %1120 = arith.mulf %1119, %703 : vector<8x8xf32>
    %1121 = arith.addf %1117, %1120 : vector<8x8xf32>
    %c11_826 = arith.constant 11 : index
    %c6_827 = arith.constant 6 : index
    %1122 = memref.load %arg5[%c11_826, %c6_827] : memref<14x14xf32, #tpu.memory_space<smem>>
    %1123 = vector.broadcast %1122 : f32 to vector<8x8xf32>
    %1124 = arith.mulf %1123, %711 : vector<8x8xf32>
    %1125 = arith.addf %1121, %1124 : vector<8x8xf32>
    %c12_828 = arith.constant 12 : index
    %c6_829 = arith.constant 6 : index
    %1126 = memref.load %arg5[%c12_828, %c6_829] : memref<14x14xf32, #tpu.memory_space<smem>>
    %1127 = vector.broadcast %1126 : f32 to vector<8x8xf32>
    %1128 = arith.mulf %1127, %719 : vector<8x8xf32>
    %1129 = arith.addf %1125, %1128 : vector<8x8xf32>
    %c13_830 = arith.constant 13 : index
    %c6_831 = arith.constant 6 : index
    %1130 = memref.load %arg5[%c13_830, %c6_831] : memref<14x14xf32, #tpu.memory_space<smem>>
    %1131 = vector.broadcast %1130 : f32 to vector<8x8xf32>
    %1132 = arith.mulf %1131, %727 : vector<8x8xf32>
    %1133 = arith.addf %1129, %1132 : vector<8x8xf32>
    %c7_832 = arith.constant 7 : index
    %1134 = memref.load %arg6[%c7_832] : memref<14xf32, #tpu.memory_space<smem>>
    %c0_833 = arith.constant 0 : index
    %c7_834 = arith.constant 7 : index
    %1135 = memref.load %arg5[%c0_833, %c7_834] : memref<14x14xf32, #tpu.memory_space<smem>>
    %1136 = vector.broadcast %1135 : f32 to vector<8x8xf32>
    %1137 = arith.mulf %1136, %623 : vector<8x8xf32>
    %1138 = vector.broadcast %1134 : f32 to vector<8x8xf32>
    %1139 = arith.addf %1138, %1137 : vector<8x8xf32>
    %c1_835 = arith.constant 1 : index
    %c7_836 = arith.constant 7 : index
    %1140 = memref.load %arg5[%c1_835, %c7_836] : memref<14x14xf32, #tpu.memory_space<smem>>
    %1141 = vector.broadcast %1140 : f32 to vector<8x8xf32>
    %1142 = arith.mulf %1141, %631 : vector<8x8xf32>
    %1143 = arith.addf %1139, %1142 : vector<8x8xf32>
    %c2_837 = arith.constant 2 : index
    %c7_838 = arith.constant 7 : index
    %1144 = memref.load %arg5[%c2_837, %c7_838] : memref<14x14xf32, #tpu.memory_space<smem>>
    %1145 = vector.broadcast %1144 : f32 to vector<8x8xf32>
    %1146 = arith.mulf %1145, %639 : vector<8x8xf32>
    %1147 = arith.addf %1143, %1146 : vector<8x8xf32>
    %c3_839 = arith.constant 3 : index
    %c7_840 = arith.constant 7 : index
    %1148 = memref.load %arg5[%c3_839, %c7_840] : memref<14x14xf32, #tpu.memory_space<smem>>
    %1149 = vector.broadcast %1148 : f32 to vector<8x8xf32>
    %1150 = arith.mulf %1149, %647 : vector<8x8xf32>
    %1151 = arith.addf %1147, %1150 : vector<8x8xf32>
    %c4_841 = arith.constant 4 : index
    %c7_842 = arith.constant 7 : index
    %1152 = memref.load %arg5[%c4_841, %c7_842] : memref<14x14xf32, #tpu.memory_space<smem>>
    %1153 = vector.broadcast %1152 : f32 to vector<8x8xf32>
    %1154 = arith.mulf %1153, %655 : vector<8x8xf32>
    %1155 = arith.addf %1151, %1154 : vector<8x8xf32>
    %c5_843 = arith.constant 5 : index
    %c7_844 = arith.constant 7 : index
    %1156 = memref.load %arg5[%c5_843, %c7_844] : memref<14x14xf32, #tpu.memory_space<smem>>
    %1157 = vector.broadcast %1156 : f32 to vector<8x8xf32>
    %1158 = arith.mulf %1157, %663 : vector<8x8xf32>
    %1159 = arith.addf %1155, %1158 : vector<8x8xf32>
    %c6_845 = arith.constant 6 : index
    %c7_846 = arith.constant 7 : index
    %1160 = memref.load %arg5[%c6_845, %c7_846] : memref<14x14xf32, #tpu.memory_space<smem>>
    %1161 = vector.broadcast %1160 : f32 to vector<8x8xf32>
    %1162 = arith.mulf %1161, %671 : vector<8x8xf32>
    %1163 = arith.addf %1159, %1162 : vector<8x8xf32>
    %c7_847 = arith.constant 7 : index
    %c7_848 = arith.constant 7 : index
    %1164 = memref.load %arg5[%c7_847, %c7_848] : memref<14x14xf32, #tpu.memory_space<smem>>
    %1165 = vector.broadcast %1164 : f32 to vector<8x8xf32>
    %1166 = arith.mulf %1165, %679 : vector<8x8xf32>
    %1167 = arith.addf %1163, %1166 : vector<8x8xf32>
    %c8_849 = arith.constant 8 : index
    %c7_850 = arith.constant 7 : index
    %1168 = memref.load %arg5[%c8_849, %c7_850] : memref<14x14xf32, #tpu.memory_space<smem>>
    %1169 = vector.broadcast %1168 : f32 to vector<8x8xf32>
    %1170 = arith.mulf %1169, %687 : vector<8x8xf32>
    %1171 = arith.addf %1167, %1170 : vector<8x8xf32>
    %c9_851 = arith.constant 9 : index
    %c7_852 = arith.constant 7 : index
    %1172 = memref.load %arg5[%c9_851, %c7_852] : memref<14x14xf32, #tpu.memory_space<smem>>
    %1173 = vector.broadcast %1172 : f32 to vector<8x8xf32>
    %1174 = arith.mulf %1173, %695 : vector<8x8xf32>
    %1175 = arith.addf %1171, %1174 : vector<8x8xf32>
    %c10_853 = arith.constant 10 : index
    %c7_854 = arith.constant 7 : index
    %1176 = memref.load %arg5[%c10_853, %c7_854] : memref<14x14xf32, #tpu.memory_space<smem>>
    %1177 = vector.broadcast %1176 : f32 to vector<8x8xf32>
    %1178 = arith.mulf %1177, %703 : vector<8x8xf32>
    %1179 = arith.addf %1175, %1178 : vector<8x8xf32>
    %c11_855 = arith.constant 11 : index
    %c7_856 = arith.constant 7 : index
    %1180 = memref.load %arg5[%c11_855, %c7_856] : memref<14x14xf32, #tpu.memory_space<smem>>
    %1181 = vector.broadcast %1180 : f32 to vector<8x8xf32>
    %1182 = arith.mulf %1181, %711 : vector<8x8xf32>
    %1183 = arith.addf %1179, %1182 : vector<8x8xf32>
    %c12_857 = arith.constant 12 : index
    %c7_858 = arith.constant 7 : index
    %1184 = memref.load %arg5[%c12_857, %c7_858] : memref<14x14xf32, #tpu.memory_space<smem>>
    %1185 = vector.broadcast %1184 : f32 to vector<8x8xf32>
    %1186 = arith.mulf %1185, %719 : vector<8x8xf32>
    %1187 = arith.addf %1183, %1186 : vector<8x8xf32>
    %c13_859 = arith.constant 13 : index
    %c7_860 = arith.constant 7 : index
    %1188 = memref.load %arg5[%c13_859, %c7_860] : memref<14x14xf32, #tpu.memory_space<smem>>
    %1189 = vector.broadcast %1188 : f32 to vector<8x8xf32>
    %1190 = arith.mulf %1189, %727 : vector<8x8xf32>
    %1191 = arith.addf %1187, %1190 : vector<8x8xf32>
    %c8_861 = arith.constant 8 : index
    %1192 = memref.load %arg6[%c8_861] : memref<14xf32, #tpu.memory_space<smem>>
    %c0_862 = arith.constant 0 : index
    %c8_863 = arith.constant 8 : index
    %1193 = memref.load %arg5[%c0_862, %c8_863] : memref<14x14xf32, #tpu.memory_space<smem>>
    %1194 = vector.broadcast %1193 : f32 to vector<8x8xf32>
    %1195 = arith.mulf %1194, %623 : vector<8x8xf32>
    %1196 = vector.broadcast %1192 : f32 to vector<8x8xf32>
    %1197 = arith.addf %1196, %1195 : vector<8x8xf32>
    %c1_864 = arith.constant 1 : index
    %c8_865 = arith.constant 8 : index
    %1198 = memref.load %arg5[%c1_864, %c8_865] : memref<14x14xf32, #tpu.memory_space<smem>>
    %1199 = vector.broadcast %1198 : f32 to vector<8x8xf32>
    %1200 = arith.mulf %1199, %631 : vector<8x8xf32>
    %1201 = arith.addf %1197, %1200 : vector<8x8xf32>
    %c2_866 = arith.constant 2 : index
    %c8_867 = arith.constant 8 : index
    %1202 = memref.load %arg5[%c2_866, %c8_867] : memref<14x14xf32, #tpu.memory_space<smem>>
    %1203 = vector.broadcast %1202 : f32 to vector<8x8xf32>
    %1204 = arith.mulf %1203, %639 : vector<8x8xf32>
    %1205 = arith.addf %1201, %1204 : vector<8x8xf32>
    %c3_868 = arith.constant 3 : index
    %c8_869 = arith.constant 8 : index
    %1206 = memref.load %arg5[%c3_868, %c8_869] : memref<14x14xf32, #tpu.memory_space<smem>>
    %1207 = vector.broadcast %1206 : f32 to vector<8x8xf32>
    %1208 = arith.mulf %1207, %647 : vector<8x8xf32>
    %1209 = arith.addf %1205, %1208 : vector<8x8xf32>
    %c4_870 = arith.constant 4 : index
    %c8_871 = arith.constant 8 : index
    %1210 = memref.load %arg5[%c4_870, %c8_871] : memref<14x14xf32, #tpu.memory_space<smem>>
    %1211 = vector.broadcast %1210 : f32 to vector<8x8xf32>
    %1212 = arith.mulf %1211, %655 : vector<8x8xf32>
    %1213 = arith.addf %1209, %1212 : vector<8x8xf32>
    %c5_872 = arith.constant 5 : index
    %c8_873 = arith.constant 8 : index
    %1214 = memref.load %arg5[%c5_872, %c8_873] : memref<14x14xf32, #tpu.memory_space<smem>>
    %1215 = vector.broadcast %1214 : f32 to vector<8x8xf32>
    %1216 = arith.mulf %1215, %663 : vector<8x8xf32>
    %1217 = arith.addf %1213, %1216 : vector<8x8xf32>
    %c6_874 = arith.constant 6 : index
    %c8_875 = arith.constant 8 : index
    %1218 = memref.load %arg5[%c6_874, %c8_875] : memref<14x14xf32, #tpu.memory_space<smem>>
    %1219 = vector.broadcast %1218 : f32 to vector<8x8xf32>
    %1220 = arith.mulf %1219, %671 : vector<8x8xf32>
    %1221 = arith.addf %1217, %1220 : vector<8x8xf32>
    %c7_876 = arith.constant 7 : index
    %c8_877 = arith.constant 8 : index
    %1222 = memref.load %arg5[%c7_876, %c8_877] : memref<14x14xf32, #tpu.memory_space<smem>>
    %1223 = vector.broadcast %1222 : f32 to vector<8x8xf32>
    %1224 = arith.mulf %1223, %679 : vector<8x8xf32>
    %1225 = arith.addf %1221, %1224 : vector<8x8xf32>
    %c8_878 = arith.constant 8 : index
    %c8_879 = arith.constant 8 : index
    %1226 = memref.load %arg5[%c8_878, %c8_879] : memref<14x14xf32, #tpu.memory_space<smem>>
    %1227 = vector.broadcast %1226 : f32 to vector<8x8xf32>
    %1228 = arith.mulf %1227, %687 : vector<8x8xf32>
    %1229 = arith.addf %1225, %1228 : vector<8x8xf32>
    %c9_880 = arith.constant 9 : index
    %c8_881 = arith.constant 8 : index
    %1230 = memref.load %arg5[%c9_880, %c8_881] : memref<14x14xf32, #tpu.memory_space<smem>>
    %1231 = vector.broadcast %1230 : f32 to vector<8x8xf32>
    %1232 = arith.mulf %1231, %695 : vector<8x8xf32>
    %1233 = arith.addf %1229, %1232 : vector<8x8xf32>
    %c10_882 = arith.constant 10 : index
    %c8_883 = arith.constant 8 : index
    %1234 = memref.load %arg5[%c10_882, %c8_883] : memref<14x14xf32, #tpu.memory_space<smem>>
    %1235 = vector.broadcast %1234 : f32 to vector<8x8xf32>
    %1236 = arith.mulf %1235, %703 : vector<8x8xf32>
    %1237 = arith.addf %1233, %1236 : vector<8x8xf32>
    %c11_884 = arith.constant 11 : index
    %c8_885 = arith.constant 8 : index
    %1238 = memref.load %arg5[%c11_884, %c8_885] : memref<14x14xf32, #tpu.memory_space<smem>>
    %1239 = vector.broadcast %1238 : f32 to vector<8x8xf32>
    %1240 = arith.mulf %1239, %711 : vector<8x8xf32>
    %1241 = arith.addf %1237, %1240 : vector<8x8xf32>
    %c12_886 = arith.constant 12 : index
    %c8_887 = arith.constant 8 : index
    %1242 = memref.load %arg5[%c12_886, %c8_887] : memref<14x14xf32, #tpu.memory_space<smem>>
    %1243 = vector.broadcast %1242 : f32 to vector<8x8xf32>
    %1244 = arith.mulf %1243, %719 : vector<8x8xf32>
    %1245 = arith.addf %1241, %1244 : vector<8x8xf32>
    %c13_888 = arith.constant 13 : index
    %c8_889 = arith.constant 8 : index
    %1246 = memref.load %arg5[%c13_888, %c8_889] : memref<14x14xf32, #tpu.memory_space<smem>>
    %1247 = vector.broadcast %1246 : f32 to vector<8x8xf32>
    %1248 = arith.mulf %1247, %727 : vector<8x8xf32>
    %1249 = arith.addf %1245, %1248 : vector<8x8xf32>
    %c9_890 = arith.constant 9 : index
    %1250 = memref.load %arg6[%c9_890] : memref<14xf32, #tpu.memory_space<smem>>
    %c0_891 = arith.constant 0 : index
    %c9_892 = arith.constant 9 : index
    %1251 = memref.load %arg5[%c0_891, %c9_892] : memref<14x14xf32, #tpu.memory_space<smem>>
    %1252 = vector.broadcast %1251 : f32 to vector<8x8xf32>
    %1253 = arith.mulf %1252, %623 : vector<8x8xf32>
    %1254 = vector.broadcast %1250 : f32 to vector<8x8xf32>
    %1255 = arith.addf %1254, %1253 : vector<8x8xf32>
    %c1_893 = arith.constant 1 : index
    %c9_894 = arith.constant 9 : index
    %1256 = memref.load %arg5[%c1_893, %c9_894] : memref<14x14xf32, #tpu.memory_space<smem>>
    %1257 = vector.broadcast %1256 : f32 to vector<8x8xf32>
    %1258 = arith.mulf %1257, %631 : vector<8x8xf32>
    %1259 = arith.addf %1255, %1258 : vector<8x8xf32>
    %c2_895 = arith.constant 2 : index
    %c9_896 = arith.constant 9 : index
    %1260 = memref.load %arg5[%c2_895, %c9_896] : memref<14x14xf32, #tpu.memory_space<smem>>
    %1261 = vector.broadcast %1260 : f32 to vector<8x8xf32>
    %1262 = arith.mulf %1261, %639 : vector<8x8xf32>
    %1263 = arith.addf %1259, %1262 : vector<8x8xf32>
    %c3_897 = arith.constant 3 : index
    %c9_898 = arith.constant 9 : index
    %1264 = memref.load %arg5[%c3_897, %c9_898] : memref<14x14xf32, #tpu.memory_space<smem>>
    %1265 = vector.broadcast %1264 : f32 to vector<8x8xf32>
    %1266 = arith.mulf %1265, %647 : vector<8x8xf32>
    %1267 = arith.addf %1263, %1266 : vector<8x8xf32>
    %c4_899 = arith.constant 4 : index
    %c9_900 = arith.constant 9 : index
    %1268 = memref.load %arg5[%c4_899, %c9_900] : memref<14x14xf32, #tpu.memory_space<smem>>
    %1269 = vector.broadcast %1268 : f32 to vector<8x8xf32>
    %1270 = arith.mulf %1269, %655 : vector<8x8xf32>
    %1271 = arith.addf %1267, %1270 : vector<8x8xf32>
    %c5_901 = arith.constant 5 : index
    %c9_902 = arith.constant 9 : index
    %1272 = memref.load %arg5[%c5_901, %c9_902] : memref<14x14xf32, #tpu.memory_space<smem>>
    %1273 = vector.broadcast %1272 : f32 to vector<8x8xf32>
    %1274 = arith.mulf %1273, %663 : vector<8x8xf32>
    %1275 = arith.addf %1271, %1274 : vector<8x8xf32>
    %c6_903 = arith.constant 6 : index
    %c9_904 = arith.constant 9 : index
    %1276 = memref.load %arg5[%c6_903, %c9_904] : memref<14x14xf32, #tpu.memory_space<smem>>
    %1277 = vector.broadcast %1276 : f32 to vector<8x8xf32>
    %1278 = arith.mulf %1277, %671 : vector<8x8xf32>
    %1279 = arith.addf %1275, %1278 : vector<8x8xf32>
    %c7_905 = arith.constant 7 : index
    %c9_906 = arith.constant 9 : index
    %1280 = memref.load %arg5[%c7_905, %c9_906] : memref<14x14xf32, #tpu.memory_space<smem>>
    %1281 = vector.broadcast %1280 : f32 to vector<8x8xf32>
    %1282 = arith.mulf %1281, %679 : vector<8x8xf32>
    %1283 = arith.addf %1279, %1282 : vector<8x8xf32>
    %c8_907 = arith.constant 8 : index
    %c9_908 = arith.constant 9 : index
    %1284 = memref.load %arg5[%c8_907, %c9_908] : memref<14x14xf32, #tpu.memory_space<smem>>
    %1285 = vector.broadcast %1284 : f32 to vector<8x8xf32>
    %1286 = arith.mulf %1285, %687 : vector<8x8xf32>
    %1287 = arith.addf %1283, %1286 : vector<8x8xf32>
    %c9_909 = arith.constant 9 : index
    %c9_910 = arith.constant 9 : index
    %1288 = memref.load %arg5[%c9_909, %c9_910] : memref<14x14xf32, #tpu.memory_space<smem>>
    %1289 = vector.broadcast %1288 : f32 to vector<8x8xf32>
    %1290 = arith.mulf %1289, %695 : vector<8x8xf32>
    %1291 = arith.addf %1287, %1290 : vector<8x8xf32>
    %c10_911 = arith.constant 10 : index
    %c9_912 = arith.constant 9 : index
    %1292 = memref.load %arg5[%c10_911, %c9_912] : memref<14x14xf32, #tpu.memory_space<smem>>
    %1293 = vector.broadcast %1292 : f32 to vector<8x8xf32>
    %1294 = arith.mulf %1293, %703 : vector<8x8xf32>
    %1295 = arith.addf %1291, %1294 : vector<8x8xf32>
    %c11_913 = arith.constant 11 : index
    %c9_914 = arith.constant 9 : index
    %1296 = memref.load %arg5[%c11_913, %c9_914] : memref<14x14xf32, #tpu.memory_space<smem>>
    %1297 = vector.broadcast %1296 : f32 to vector<8x8xf32>
    %1298 = arith.mulf %1297, %711 : vector<8x8xf32>
    %1299 = arith.addf %1295, %1298 : vector<8x8xf32>
    %c12_915 = arith.constant 12 : index
    %c9_916 = arith.constant 9 : index
    %1300 = memref.load %arg5[%c12_915, %c9_916] : memref<14x14xf32, #tpu.memory_space<smem>>
    %1301 = vector.broadcast %1300 : f32 to vector<8x8xf32>
    %1302 = arith.mulf %1301, %719 : vector<8x8xf32>
    %1303 = arith.addf %1299, %1302 : vector<8x8xf32>
    %c13_917 = arith.constant 13 : index
    %c9_918 = arith.constant 9 : index
    %1304 = memref.load %arg5[%c13_917, %c9_918] : memref<14x14xf32, #tpu.memory_space<smem>>
    %1305 = vector.broadcast %1304 : f32 to vector<8x8xf32>
    %1306 = arith.mulf %1305, %727 : vector<8x8xf32>
    %1307 = arith.addf %1303, %1306 : vector<8x8xf32>
    %c10_919 = arith.constant 10 : index
    %1308 = memref.load %arg6[%c10_919] : memref<14xf32, #tpu.memory_space<smem>>
    %c0_920 = arith.constant 0 : index
    %c10_921 = arith.constant 10 : index
    %1309 = memref.load %arg5[%c0_920, %c10_921] : memref<14x14xf32, #tpu.memory_space<smem>>
    %1310 = vector.broadcast %1309 : f32 to vector<8x8xf32>
    %1311 = arith.mulf %1310, %623 : vector<8x8xf32>
    %1312 = vector.broadcast %1308 : f32 to vector<8x8xf32>
    %1313 = arith.addf %1312, %1311 : vector<8x8xf32>
    %c1_922 = arith.constant 1 : index
    %c10_923 = arith.constant 10 : index
    %1314 = memref.load %arg5[%c1_922, %c10_923] : memref<14x14xf32, #tpu.memory_space<smem>>
    %1315 = vector.broadcast %1314 : f32 to vector<8x8xf32>
    %1316 = arith.mulf %1315, %631 : vector<8x8xf32>
    %1317 = arith.addf %1313, %1316 : vector<8x8xf32>
    %c2_924 = arith.constant 2 : index
    %c10_925 = arith.constant 10 : index
    %1318 = memref.load %arg5[%c2_924, %c10_925] : memref<14x14xf32, #tpu.memory_space<smem>>
    %1319 = vector.broadcast %1318 : f32 to vector<8x8xf32>
    %1320 = arith.mulf %1319, %639 : vector<8x8xf32>
    %1321 = arith.addf %1317, %1320 : vector<8x8xf32>
    %c3_926 = arith.constant 3 : index
    %c10_927 = arith.constant 10 : index
    %1322 = memref.load %arg5[%c3_926, %c10_927] : memref<14x14xf32, #tpu.memory_space<smem>>
    %1323 = vector.broadcast %1322 : f32 to vector<8x8xf32>
    %1324 = arith.mulf %1323, %647 : vector<8x8xf32>
    %1325 = arith.addf %1321, %1324 : vector<8x8xf32>
    %c4_928 = arith.constant 4 : index
    %c10_929 = arith.constant 10 : index
    %1326 = memref.load %arg5[%c4_928, %c10_929] : memref<14x14xf32, #tpu.memory_space<smem>>
    %1327 = vector.broadcast %1326 : f32 to vector<8x8xf32>
    %1328 = arith.mulf %1327, %655 : vector<8x8xf32>
    %1329 = arith.addf %1325, %1328 : vector<8x8xf32>
    %c5_930 = arith.constant 5 : index
    %c10_931 = arith.constant 10 : index
    %1330 = memref.load %arg5[%c5_930, %c10_931] : memref<14x14xf32, #tpu.memory_space<smem>>
    %1331 = vector.broadcast %1330 : f32 to vector<8x8xf32>
    %1332 = arith.mulf %1331, %663 : vector<8x8xf32>
    %1333 = arith.addf %1329, %1332 : vector<8x8xf32>
    %c6_932 = arith.constant 6 : index
    %c10_933 = arith.constant 10 : index
    %1334 = memref.load %arg5[%c6_932, %c10_933] : memref<14x14xf32, #tpu.memory_space<smem>>
    %1335 = vector.broadcast %1334 : f32 to vector<8x8xf32>
    %1336 = arith.mulf %1335, %671 : vector<8x8xf32>
    %1337 = arith.addf %1333, %1336 : vector<8x8xf32>
    %c7_934 = arith.constant 7 : index
    %c10_935 = arith.constant 10 : index
    %1338 = memref.load %arg5[%c7_934, %c10_935] : memref<14x14xf32, #tpu.memory_space<smem>>
    %1339 = vector.broadcast %1338 : f32 to vector<8x8xf32>
    %1340 = arith.mulf %1339, %679 : vector<8x8xf32>
    %1341 = arith.addf %1337, %1340 : vector<8x8xf32>
    %c8_936 = arith.constant 8 : index
    %c10_937 = arith.constant 10 : index
    %1342 = memref.load %arg5[%c8_936, %c10_937] : memref<14x14xf32, #tpu.memory_space<smem>>
    %1343 = vector.broadcast %1342 : f32 to vector<8x8xf32>
    %1344 = arith.mulf %1343, %687 : vector<8x8xf32>
    %1345 = arith.addf %1341, %1344 : vector<8x8xf32>
    %c9_938 = arith.constant 9 : index
    %c10_939 = arith.constant 10 : index
    %1346 = memref.load %arg5[%c9_938, %c10_939] : memref<14x14xf32, #tpu.memory_space<smem>>
    %1347 = vector.broadcast %1346 : f32 to vector<8x8xf32>
    %1348 = arith.mulf %1347, %695 : vector<8x8xf32>
    %1349 = arith.addf %1345, %1348 : vector<8x8xf32>
    %c10_940 = arith.constant 10 : index
    %c10_941 = arith.constant 10 : index
    %1350 = memref.load %arg5[%c10_940, %c10_941] : memref<14x14xf32, #tpu.memory_space<smem>>
    %1351 = vector.broadcast %1350 : f32 to vector<8x8xf32>
    %1352 = arith.mulf %1351, %703 : vector<8x8xf32>
    %1353 = arith.addf %1349, %1352 : vector<8x8xf32>
    %c11_942 = arith.constant 11 : index
    %c10_943 = arith.constant 10 : index
    %1354 = memref.load %arg5[%c11_942, %c10_943] : memref<14x14xf32, #tpu.memory_space<smem>>
    %1355 = vector.broadcast %1354 : f32 to vector<8x8xf32>
    %1356 = arith.mulf %1355, %711 : vector<8x8xf32>
    %1357 = arith.addf %1353, %1356 : vector<8x8xf32>
    %c12_944 = arith.constant 12 : index
    %c10_945 = arith.constant 10 : index
    %1358 = memref.load %arg5[%c12_944, %c10_945] : memref<14x14xf32, #tpu.memory_space<smem>>
    %1359 = vector.broadcast %1358 : f32 to vector<8x8xf32>
    %1360 = arith.mulf %1359, %719 : vector<8x8xf32>
    %1361 = arith.addf %1357, %1360 : vector<8x8xf32>
    %c13_946 = arith.constant 13 : index
    %c10_947 = arith.constant 10 : index
    %1362 = memref.load %arg5[%c13_946, %c10_947] : memref<14x14xf32, #tpu.memory_space<smem>>
    %1363 = vector.broadcast %1362 : f32 to vector<8x8xf32>
    %1364 = arith.mulf %1363, %727 : vector<8x8xf32>
    %1365 = arith.addf %1361, %1364 : vector<8x8xf32>
    %c11_948 = arith.constant 11 : index
    %1366 = memref.load %arg6[%c11_948] : memref<14xf32, #tpu.memory_space<smem>>
    %c0_949 = arith.constant 0 : index
    %c11_950 = arith.constant 11 : index
    %1367 = memref.load %arg5[%c0_949, %c11_950] : memref<14x14xf32, #tpu.memory_space<smem>>
    %1368 = vector.broadcast %1367 : f32 to vector<8x8xf32>
    %1369 = arith.mulf %1368, %623 : vector<8x8xf32>
    %1370 = vector.broadcast %1366 : f32 to vector<8x8xf32>
    %1371 = arith.addf %1370, %1369 : vector<8x8xf32>
    %c1_951 = arith.constant 1 : index
    %c11_952 = arith.constant 11 : index
    %1372 = memref.load %arg5[%c1_951, %c11_952] : memref<14x14xf32, #tpu.memory_space<smem>>
    %1373 = vector.broadcast %1372 : f32 to vector<8x8xf32>
    %1374 = arith.mulf %1373, %631 : vector<8x8xf32>
    %1375 = arith.addf %1371, %1374 : vector<8x8xf32>
    %c2_953 = arith.constant 2 : index
    %c11_954 = arith.constant 11 : index
    %1376 = memref.load %arg5[%c2_953, %c11_954] : memref<14x14xf32, #tpu.memory_space<smem>>
    %1377 = vector.broadcast %1376 : f32 to vector<8x8xf32>
    %1378 = arith.mulf %1377, %639 : vector<8x8xf32>
    %1379 = arith.addf %1375, %1378 : vector<8x8xf32>
    %c3_955 = arith.constant 3 : index
    %c11_956 = arith.constant 11 : index
    %1380 = memref.load %arg5[%c3_955, %c11_956] : memref<14x14xf32, #tpu.memory_space<smem>>
    %1381 = vector.broadcast %1380 : f32 to vector<8x8xf32>
    %1382 = arith.mulf %1381, %647 : vector<8x8xf32>
    %1383 = arith.addf %1379, %1382 : vector<8x8xf32>
    %c4_957 = arith.constant 4 : index
    %c11_958 = arith.constant 11 : index
    %1384 = memref.load %arg5[%c4_957, %c11_958] : memref<14x14xf32, #tpu.memory_space<smem>>
    %1385 = vector.broadcast %1384 : f32 to vector<8x8xf32>
    %1386 = arith.mulf %1385, %655 : vector<8x8xf32>
    %1387 = arith.addf %1383, %1386 : vector<8x8xf32>
    %c5_959 = arith.constant 5 : index
    %c11_960 = arith.constant 11 : index
    %1388 = memref.load %arg5[%c5_959, %c11_960] : memref<14x14xf32, #tpu.memory_space<smem>>
    %1389 = vector.broadcast %1388 : f32 to vector<8x8xf32>
    %1390 = arith.mulf %1389, %663 : vector<8x8xf32>
    %1391 = arith.addf %1387, %1390 : vector<8x8xf32>
    %c6_961 = arith.constant 6 : index
    %c11_962 = arith.constant 11 : index
    %1392 = memref.load %arg5[%c6_961, %c11_962] : memref<14x14xf32, #tpu.memory_space<smem>>
    %1393 = vector.broadcast %1392 : f32 to vector<8x8xf32>
    %1394 = arith.mulf %1393, %671 : vector<8x8xf32>
    %1395 = arith.addf %1391, %1394 : vector<8x8xf32>
    %c7_963 = arith.constant 7 : index
    %c11_964 = arith.constant 11 : index
    %1396 = memref.load %arg5[%c7_963, %c11_964] : memref<14x14xf32, #tpu.memory_space<smem>>
    %1397 = vector.broadcast %1396 : f32 to vector<8x8xf32>
    %1398 = arith.mulf %1397, %679 : vector<8x8xf32>
    %1399 = arith.addf %1395, %1398 : vector<8x8xf32>
    %c8_965 = arith.constant 8 : index
    %c11_966 = arith.constant 11 : index
    %1400 = memref.load %arg5[%c8_965, %c11_966] : memref<14x14xf32, #tpu.memory_space<smem>>
    %1401 = vector.broadcast %1400 : f32 to vector<8x8xf32>
    %1402 = arith.mulf %1401, %687 : vector<8x8xf32>
    %1403 = arith.addf %1399, %1402 : vector<8x8xf32>
    %c9_967 = arith.constant 9 : index
    %c11_968 = arith.constant 11 : index
    %1404 = memref.load %arg5[%c9_967, %c11_968] : memref<14x14xf32, #tpu.memory_space<smem>>
    %1405 = vector.broadcast %1404 : f32 to vector<8x8xf32>
    %1406 = arith.mulf %1405, %695 : vector<8x8xf32>
    %1407 = arith.addf %1403, %1406 : vector<8x8xf32>
    %c10_969 = arith.constant 10 : index
    %c11_970 = arith.constant 11 : index
    %1408 = memref.load %arg5[%c10_969, %c11_970] : memref<14x14xf32, #tpu.memory_space<smem>>
    %1409 = vector.broadcast %1408 : f32 to vector<8x8xf32>
    %1410 = arith.mulf %1409, %703 : vector<8x8xf32>
    %1411 = arith.addf %1407, %1410 : vector<8x8xf32>
    %c11_971 = arith.constant 11 : index
    %c11_972 = arith.constant 11 : index
    %1412 = memref.load %arg5[%c11_971, %c11_972] : memref<14x14xf32, #tpu.memory_space<smem>>
    %1413 = vector.broadcast %1412 : f32 to vector<8x8xf32>
    %1414 = arith.mulf %1413, %711 : vector<8x8xf32>
    %1415 = arith.addf %1411, %1414 : vector<8x8xf32>
    %c12_973 = arith.constant 12 : index
    %c11_974 = arith.constant 11 : index
    %1416 = memref.load %arg5[%c12_973, %c11_974] : memref<14x14xf32, #tpu.memory_space<smem>>
    %1417 = vector.broadcast %1416 : f32 to vector<8x8xf32>
    %1418 = arith.mulf %1417, %719 : vector<8x8xf32>
    %1419 = arith.addf %1415, %1418 : vector<8x8xf32>
    %c13_975 = arith.constant 13 : index
    %c11_976 = arith.constant 11 : index
    %1420 = memref.load %arg5[%c13_975, %c11_976] : memref<14x14xf32, #tpu.memory_space<smem>>
    %1421 = vector.broadcast %1420 : f32 to vector<8x8xf32>
    %1422 = arith.mulf %1421, %727 : vector<8x8xf32>
    %1423 = arith.addf %1419, %1422 : vector<8x8xf32>
    %c12_977 = arith.constant 12 : index
    %1424 = memref.load %arg6[%c12_977] : memref<14xf32, #tpu.memory_space<smem>>
    %c0_978 = arith.constant 0 : index
    %c12_979 = arith.constant 12 : index
    %1425 = memref.load %arg5[%c0_978, %c12_979] : memref<14x14xf32, #tpu.memory_space<smem>>
    %1426 = vector.broadcast %1425 : f32 to vector<8x8xf32>
    %1427 = arith.mulf %1426, %623 : vector<8x8xf32>
    %1428 = vector.broadcast %1424 : f32 to vector<8x8xf32>
    %1429 = arith.addf %1428, %1427 : vector<8x8xf32>
    %c1_980 = arith.constant 1 : index
    %c12_981 = arith.constant 12 : index
    %1430 = memref.load %arg5[%c1_980, %c12_981] : memref<14x14xf32, #tpu.memory_space<smem>>
    %1431 = vector.broadcast %1430 : f32 to vector<8x8xf32>
    %1432 = arith.mulf %1431, %631 : vector<8x8xf32>
    %1433 = arith.addf %1429, %1432 : vector<8x8xf32>
    %c2_982 = arith.constant 2 : index
    %c12_983 = arith.constant 12 : index
    %1434 = memref.load %arg5[%c2_982, %c12_983] : memref<14x14xf32, #tpu.memory_space<smem>>
    %1435 = vector.broadcast %1434 : f32 to vector<8x8xf32>
    %1436 = arith.mulf %1435, %639 : vector<8x8xf32>
    %1437 = arith.addf %1433, %1436 : vector<8x8xf32>
    %c3_984 = arith.constant 3 : index
    %c12_985 = arith.constant 12 : index
    %1438 = memref.load %arg5[%c3_984, %c12_985] : memref<14x14xf32, #tpu.memory_space<smem>>
    %1439 = vector.broadcast %1438 : f32 to vector<8x8xf32>
    %1440 = arith.mulf %1439, %647 : vector<8x8xf32>
    %1441 = arith.addf %1437, %1440 : vector<8x8xf32>
    %c4_986 = arith.constant 4 : index
    %c12_987 = arith.constant 12 : index
    %1442 = memref.load %arg5[%c4_986, %c12_987] : memref<14x14xf32, #tpu.memory_space<smem>>
    %1443 = vector.broadcast %1442 : f32 to vector<8x8xf32>
    %1444 = arith.mulf %1443, %655 : vector<8x8xf32>
    %1445 = arith.addf %1441, %1444 : vector<8x8xf32>
    %c5_988 = arith.constant 5 : index
    %c12_989 = arith.constant 12 : index
    %1446 = memref.load %arg5[%c5_988, %c12_989] : memref<14x14xf32, #tpu.memory_space<smem>>
    %1447 = vector.broadcast %1446 : f32 to vector<8x8xf32>
    %1448 = arith.mulf %1447, %663 : vector<8x8xf32>
    %1449 = arith.addf %1445, %1448 : vector<8x8xf32>
    %c6_990 = arith.constant 6 : index
    %c12_991 = arith.constant 12 : index
    %1450 = memref.load %arg5[%c6_990, %c12_991] : memref<14x14xf32, #tpu.memory_space<smem>>
    %1451 = vector.broadcast %1450 : f32 to vector<8x8xf32>
    %1452 = arith.mulf %1451, %671 : vector<8x8xf32>
    %1453 = arith.addf %1449, %1452 : vector<8x8xf32>
    %c7_992 = arith.constant 7 : index
    %c12_993 = arith.constant 12 : index
    %1454 = memref.load %arg5[%c7_992, %c12_993] : memref<14x14xf32, #tpu.memory_space<smem>>
    %1455 = vector.broadcast %1454 : f32 to vector<8x8xf32>
    %1456 = arith.mulf %1455, %679 : vector<8x8xf32>
    %1457 = arith.addf %1453, %1456 : vector<8x8xf32>
    %c8_994 = arith.constant 8 : index
    %c12_995 = arith.constant 12 : index
    %1458 = memref.load %arg5[%c8_994, %c12_995] : memref<14x14xf32, #tpu.memory_space<smem>>
    %1459 = vector.broadcast %1458 : f32 to vector<8x8xf32>
    %1460 = arith.mulf %1459, %687 : vector<8x8xf32>
    %1461 = arith.addf %1457, %1460 : vector<8x8xf32>
    %c9_996 = arith.constant 9 : index
    %c12_997 = arith.constant 12 : index
    %1462 = memref.load %arg5[%c9_996, %c12_997] : memref<14x14xf32, #tpu.memory_space<smem>>
    %1463 = vector.broadcast %1462 : f32 to vector<8x8xf32>
    %1464 = arith.mulf %1463, %695 : vector<8x8xf32>
    %1465 = arith.addf %1461, %1464 : vector<8x8xf32>
    %c10_998 = arith.constant 10 : index
    %c12_999 = arith.constant 12 : index
    %1466 = memref.load %arg5[%c10_998, %c12_999] : memref<14x14xf32, #tpu.memory_space<smem>>
    %1467 = vector.broadcast %1466 : f32 to vector<8x8xf32>
    %1468 = arith.mulf %1467, %703 : vector<8x8xf32>
    %1469 = arith.addf %1465, %1468 : vector<8x8xf32>
    %c11_1000 = arith.constant 11 : index
    %c12_1001 = arith.constant 12 : index
    %1470 = memref.load %arg5[%c11_1000, %c12_1001] : memref<14x14xf32, #tpu.memory_space<smem>>
    %1471 = vector.broadcast %1470 : f32 to vector<8x8xf32>
    %1472 = arith.mulf %1471, %711 : vector<8x8xf32>
    %1473 = arith.addf %1469, %1472 : vector<8x8xf32>
    %c12_1002 = arith.constant 12 : index
    %c12_1003 = arith.constant 12 : index
    %1474 = memref.load %arg5[%c12_1002, %c12_1003] : memref<14x14xf32, #tpu.memory_space<smem>>
    %1475 = vector.broadcast %1474 : f32 to vector<8x8xf32>
    %1476 = arith.mulf %1475, %719 : vector<8x8xf32>
    %1477 = arith.addf %1473, %1476 : vector<8x8xf32>
    %c13_1004 = arith.constant 13 : index
    %c12_1005 = arith.constant 12 : index
    %1478 = memref.load %arg5[%c13_1004, %c12_1005] : memref<14x14xf32, #tpu.memory_space<smem>>
    %1479 = vector.broadcast %1478 : f32 to vector<8x8xf32>
    %1480 = arith.mulf %1479, %727 : vector<8x8xf32>
    %1481 = arith.addf %1477, %1480 : vector<8x8xf32>
    %c13_1006 = arith.constant 13 : index
    %1482 = memref.load %arg6[%c13_1006] : memref<14xf32, #tpu.memory_space<smem>>
    %c0_1007 = arith.constant 0 : index
    %c13_1008 = arith.constant 13 : index
    %1483 = memref.load %arg5[%c0_1007, %c13_1008] : memref<14x14xf32, #tpu.memory_space<smem>>
    %1484 = vector.broadcast %1483 : f32 to vector<8x8xf32>
    %1485 = arith.mulf %1484, %623 : vector<8x8xf32>
    %1486 = vector.broadcast %1482 : f32 to vector<8x8xf32>
    %1487 = arith.addf %1486, %1485 : vector<8x8xf32>
    %c1_1009 = arith.constant 1 : index
    %c13_1010 = arith.constant 13 : index
    %1488 = memref.load %arg5[%c1_1009, %c13_1010] : memref<14x14xf32, #tpu.memory_space<smem>>
    %1489 = vector.broadcast %1488 : f32 to vector<8x8xf32>
    %1490 = arith.mulf %1489, %631 : vector<8x8xf32>
    %1491 = arith.addf %1487, %1490 : vector<8x8xf32>
    %c2_1011 = arith.constant 2 : index
    %c13_1012 = arith.constant 13 : index
    %1492 = memref.load %arg5[%c2_1011, %c13_1012] : memref<14x14xf32, #tpu.memory_space<smem>>
    %1493 = vector.broadcast %1492 : f32 to vector<8x8xf32>
    %1494 = arith.mulf %1493, %639 : vector<8x8xf32>
    %1495 = arith.addf %1491, %1494 : vector<8x8xf32>
    %c3_1013 = arith.constant 3 : index
    %c13_1014 = arith.constant 13 : index
    %1496 = memref.load %arg5[%c3_1013, %c13_1014] : memref<14x14xf32, #tpu.memory_space<smem>>
    %1497 = vector.broadcast %1496 : f32 to vector<8x8xf32>
    %1498 = arith.mulf %1497, %647 : vector<8x8xf32>
    %1499 = arith.addf %1495, %1498 : vector<8x8xf32>
    %c4_1015 = arith.constant 4 : index
    %c13_1016 = arith.constant 13 : index
    %1500 = memref.load %arg5[%c4_1015, %c13_1016] : memref<14x14xf32, #tpu.memory_space<smem>>
    %1501 = vector.broadcast %1500 : f32 to vector<8x8xf32>
    %1502 = arith.mulf %1501, %655 : vector<8x8xf32>
    %1503 = arith.addf %1499, %1502 : vector<8x8xf32>
    %c5_1017 = arith.constant 5 : index
    %c13_1018 = arith.constant 13 : index
    %1504 = memref.load %arg5[%c5_1017, %c13_1018] : memref<14x14xf32, #tpu.memory_space<smem>>
    %1505 = vector.broadcast %1504 : f32 to vector<8x8xf32>
    %1506 = arith.mulf %1505, %663 : vector<8x8xf32>
    %1507 = arith.addf %1503, %1506 : vector<8x8xf32>
    %c6_1019 = arith.constant 6 : index
    %c13_1020 = arith.constant 13 : index
    %1508 = memref.load %arg5[%c6_1019, %c13_1020] : memref<14x14xf32, #tpu.memory_space<smem>>
    %1509 = vector.broadcast %1508 : f32 to vector<8x8xf32>
    %1510 = arith.mulf %1509, %671 : vector<8x8xf32>
    %1511 = arith.addf %1507, %1510 : vector<8x8xf32>
    %c7_1021 = arith.constant 7 : index
    %c13_1022 = arith.constant 13 : index
    %1512 = memref.load %arg5[%c7_1021, %c13_1022] : memref<14x14xf32, #tpu.memory_space<smem>>
    %1513 = vector.broadcast %1512 : f32 to vector<8x8xf32>
    %1514 = arith.mulf %1513, %679 : vector<8x8xf32>
    %1515 = arith.addf %1511, %1514 : vector<8x8xf32>
    %c8_1023 = arith.constant 8 : index
    %c13_1024 = arith.constant 13 : index
    %1516 = memref.load %arg5[%c8_1023, %c13_1024] : memref<14x14xf32, #tpu.memory_space<smem>>
    %1517 = vector.broadcast %1516 : f32 to vector<8x8xf32>
    %1518 = arith.mulf %1517, %687 : vector<8x8xf32>
    %1519 = arith.addf %1515, %1518 : vector<8x8xf32>
    %c9_1025 = arith.constant 9 : index
    %c13_1026 = arith.constant 13 : index
    %1520 = memref.load %arg5[%c9_1025, %c13_1026] : memref<14x14xf32, #tpu.memory_space<smem>>
    %1521 = vector.broadcast %1520 : f32 to vector<8x8xf32>
    %1522 = arith.mulf %1521, %695 : vector<8x8xf32>
    %1523 = arith.addf %1519, %1522 : vector<8x8xf32>
    %c10_1027 = arith.constant 10 : index
    %c13_1028 = arith.constant 13 : index
    %1524 = memref.load %arg5[%c10_1027, %c13_1028] : memref<14x14xf32, #tpu.memory_space<smem>>
    %1525 = vector.broadcast %1524 : f32 to vector<8x8xf32>
    %1526 = arith.mulf %1525, %703 : vector<8x8xf32>
    %1527 = arith.addf %1523, %1526 : vector<8x8xf32>
    %c11_1029 = arith.constant 11 : index
    %c13_1030 = arith.constant 13 : index
    %1528 = memref.load %arg5[%c11_1029, %c13_1030] : memref<14x14xf32, #tpu.memory_space<smem>>
    %1529 = vector.broadcast %1528 : f32 to vector<8x8xf32>
    %1530 = arith.mulf %1529, %711 : vector<8x8xf32>
    %1531 = arith.addf %1527, %1530 : vector<8x8xf32>
    %c12_1031 = arith.constant 12 : index
    %c13_1032 = arith.constant 13 : index
    %1532 = memref.load %arg5[%c12_1031, %c13_1032] : memref<14x14xf32, #tpu.memory_space<smem>>
    %1533 = vector.broadcast %1532 : f32 to vector<8x8xf32>
    %1534 = arith.mulf %1533, %719 : vector<8x8xf32>
    %1535 = arith.addf %1531, %1534 : vector<8x8xf32>
    %c13_1033 = arith.constant 13 : index
    %c13_1034 = arith.constant 13 : index
    %1536 = memref.load %arg5[%c13_1033, %c13_1034] : memref<14x14xf32, #tpu.memory_space<smem>>
    %1537 = vector.broadcast %1536 : f32 to vector<8x8xf32>
    %1538 = arith.mulf %1537, %727 : vector<8x8xf32>
    %1539 = arith.addf %1535, %1538 : vector<8x8xf32>
    %cst_1035 = arith.constant 0.000000e+00 : f32
    %1540 = vector.broadcast %cst_1035 : f32 to vector<8x8xf32>
    %1541 = arith.cmpf ogt, %785, %1540 : vector<8x8xf32>
    %cst_1036 = arith.constant 0.000000e+00 : f32
    %1542 = vector.broadcast %cst_1036 : f32 to vector<8x8xf32>
    %1543 = arith.minimumf %785, %1542 : vector<8x8xf32>
    %1544 = math.exp %1543 : vector<8x8xf32>
    %cst_1037 = arith.constant 1.000000e+00 : f32
    %1545 = vector.broadcast %cst_1037 : f32 to vector<8x8xf32>
    %1546 = arith.subf %1544, %1545 : vector<8x8xf32>
    %1547 = arith.select %1541, %785, %1546 : vector<8x8xi1>, vector<8x8xf32>
    %cst_1038 = arith.constant 0.000000e+00 : f32
    %1548 = vector.broadcast %cst_1038 : f32 to vector<8x8xf32>
    %1549 = arith.cmpf ogt, %843, %1548 : vector<8x8xf32>
    %cst_1039 = arith.constant 0.000000e+00 : f32
    %1550 = vector.broadcast %cst_1039 : f32 to vector<8x8xf32>
    %1551 = arith.minimumf %843, %1550 : vector<8x8xf32>
    %1552 = math.exp %1551 : vector<8x8xf32>
    %cst_1040 = arith.constant 1.000000e+00 : f32
    %1553 = vector.broadcast %cst_1040 : f32 to vector<8x8xf32>
    %1554 = arith.subf %1552, %1553 : vector<8x8xf32>
    %1555 = arith.select %1549, %843, %1554 : vector<8x8xi1>, vector<8x8xf32>
    %cst_1041 = arith.constant 0.000000e+00 : f32
    %1556 = vector.broadcast %cst_1041 : f32 to vector<8x8xf32>
    %1557 = arith.cmpf ogt, %901, %1556 : vector<8x8xf32>
    %cst_1042 = arith.constant 0.000000e+00 : f32
    %1558 = vector.broadcast %cst_1042 : f32 to vector<8x8xf32>
    %1559 = arith.minimumf %901, %1558 : vector<8x8xf32>
    %1560 = math.exp %1559 : vector<8x8xf32>
    %cst_1043 = arith.constant 1.000000e+00 : f32
    %1561 = vector.broadcast %cst_1043 : f32 to vector<8x8xf32>
    %1562 = arith.subf %1560, %1561 : vector<8x8xf32>
    %1563 = arith.select %1557, %901, %1562 : vector<8x8xi1>, vector<8x8xf32>
    %cst_1044 = arith.constant 0.000000e+00 : f32
    %1564 = vector.broadcast %cst_1044 : f32 to vector<8x8xf32>
    %1565 = arith.cmpf ogt, %959, %1564 : vector<8x8xf32>
    %cst_1045 = arith.constant 0.000000e+00 : f32
    %1566 = vector.broadcast %cst_1045 : f32 to vector<8x8xf32>
    %1567 = arith.minimumf %959, %1566 : vector<8x8xf32>
    %1568 = math.exp %1567 : vector<8x8xf32>
    %cst_1046 = arith.constant 1.000000e+00 : f32
    %1569 = vector.broadcast %cst_1046 : f32 to vector<8x8xf32>
    %1570 = arith.subf %1568, %1569 : vector<8x8xf32>
    %1571 = arith.select %1565, %959, %1570 : vector<8x8xi1>, vector<8x8xf32>
    %cst_1047 = arith.constant 0.000000e+00 : f32
    %1572 = vector.broadcast %cst_1047 : f32 to vector<8x8xf32>
    %1573 = arith.cmpf ogt, %1017, %1572 : vector<8x8xf32>
    %cst_1048 = arith.constant 0.000000e+00 : f32
    %1574 = vector.broadcast %cst_1048 : f32 to vector<8x8xf32>
    %1575 = arith.minimumf %1017, %1574 : vector<8x8xf32>
    %1576 = math.exp %1575 : vector<8x8xf32>
    %cst_1049 = arith.constant 1.000000e+00 : f32
    %1577 = vector.broadcast %cst_1049 : f32 to vector<8x8xf32>
    %1578 = arith.subf %1576, %1577 : vector<8x8xf32>
    %1579 = arith.select %1573, %1017, %1578 : vector<8x8xi1>, vector<8x8xf32>
    %cst_1050 = arith.constant 0.000000e+00 : f32
    %1580 = vector.broadcast %cst_1050 : f32 to vector<8x8xf32>
    %1581 = arith.cmpf ogt, %1075, %1580 : vector<8x8xf32>
    %cst_1051 = arith.constant 0.000000e+00 : f32
    %1582 = vector.broadcast %cst_1051 : f32 to vector<8x8xf32>
    %1583 = arith.minimumf %1075, %1582 : vector<8x8xf32>
    %1584 = math.exp %1583 : vector<8x8xf32>
    %cst_1052 = arith.constant 1.000000e+00 : f32
    %1585 = vector.broadcast %cst_1052 : f32 to vector<8x8xf32>
    %1586 = arith.subf %1584, %1585 : vector<8x8xf32>
    %1587 = arith.select %1581, %1075, %1586 : vector<8x8xi1>, vector<8x8xf32>
    %cst_1053 = arith.constant 0.000000e+00 : f32
    %1588 = vector.broadcast %cst_1053 : f32 to vector<8x8xf32>
    %1589 = arith.cmpf ogt, %1133, %1588 : vector<8x8xf32>
    %cst_1054 = arith.constant 0.000000e+00 : f32
    %1590 = vector.broadcast %cst_1054 : f32 to vector<8x8xf32>
    %1591 = arith.minimumf %1133, %1590 : vector<8x8xf32>
    %1592 = math.exp %1591 : vector<8x8xf32>
    %cst_1055 = arith.constant 1.000000e+00 : f32
    %1593 = vector.broadcast %cst_1055 : f32 to vector<8x8xf32>
    %1594 = arith.subf %1592, %1593 : vector<8x8xf32>
    %1595 = arith.select %1589, %1133, %1594 : vector<8x8xi1>, vector<8x8xf32>
    %cst_1056 = arith.constant 0.000000e+00 : f32
    %1596 = vector.broadcast %cst_1056 : f32 to vector<8x8xf32>
    %1597 = arith.cmpf ogt, %1191, %1596 : vector<8x8xf32>
    %cst_1057 = arith.constant 0.000000e+00 : f32
    %1598 = vector.broadcast %cst_1057 : f32 to vector<8x8xf32>
    %1599 = arith.minimumf %1191, %1598 : vector<8x8xf32>
    %1600 = math.exp %1599 : vector<8x8xf32>
    %cst_1058 = arith.constant 1.000000e+00 : f32
    %1601 = vector.broadcast %cst_1058 : f32 to vector<8x8xf32>
    %1602 = arith.subf %1600, %1601 : vector<8x8xf32>
    %1603 = arith.select %1597, %1191, %1602 : vector<8x8xi1>, vector<8x8xf32>
    %cst_1059 = arith.constant 0.000000e+00 : f32
    %1604 = vector.broadcast %cst_1059 : f32 to vector<8x8xf32>
    %1605 = arith.cmpf ogt, %1249, %1604 : vector<8x8xf32>
    %cst_1060 = arith.constant 0.000000e+00 : f32
    %1606 = vector.broadcast %cst_1060 : f32 to vector<8x8xf32>
    %1607 = arith.minimumf %1249, %1606 : vector<8x8xf32>
    %1608 = math.exp %1607 : vector<8x8xf32>
    %cst_1061 = arith.constant 1.000000e+00 : f32
    %1609 = vector.broadcast %cst_1061 : f32 to vector<8x8xf32>
    %1610 = arith.subf %1608, %1609 : vector<8x8xf32>
    %1611 = arith.select %1605, %1249, %1610 : vector<8x8xi1>, vector<8x8xf32>
    %cst_1062 = arith.constant 0.000000e+00 : f32
    %1612 = vector.broadcast %cst_1062 : f32 to vector<8x8xf32>
    %1613 = arith.cmpf ogt, %1307, %1612 : vector<8x8xf32>
    %cst_1063 = arith.constant 0.000000e+00 : f32
    %1614 = vector.broadcast %cst_1063 : f32 to vector<8x8xf32>
    %1615 = arith.minimumf %1307, %1614 : vector<8x8xf32>
    %1616 = math.exp %1615 : vector<8x8xf32>
    %cst_1064 = arith.constant 1.000000e+00 : f32
    %1617 = vector.broadcast %cst_1064 : f32 to vector<8x8xf32>
    %1618 = arith.subf %1616, %1617 : vector<8x8xf32>
    %1619 = arith.select %1613, %1307, %1618 : vector<8x8xi1>, vector<8x8xf32>
    %cst_1065 = arith.constant 0.000000e+00 : f32
    %1620 = vector.broadcast %cst_1065 : f32 to vector<8x8xf32>
    %1621 = arith.cmpf ogt, %1365, %1620 : vector<8x8xf32>
    %cst_1066 = arith.constant 0.000000e+00 : f32
    %1622 = vector.broadcast %cst_1066 : f32 to vector<8x8xf32>
    %1623 = arith.minimumf %1365, %1622 : vector<8x8xf32>
    %1624 = math.exp %1623 : vector<8x8xf32>
    %cst_1067 = arith.constant 1.000000e+00 : f32
    %1625 = vector.broadcast %cst_1067 : f32 to vector<8x8xf32>
    %1626 = arith.subf %1624, %1625 : vector<8x8xf32>
    %1627 = arith.select %1621, %1365, %1626 : vector<8x8xi1>, vector<8x8xf32>
    %cst_1068 = arith.constant 0.000000e+00 : f32
    %1628 = vector.broadcast %cst_1068 : f32 to vector<8x8xf32>
    %1629 = arith.cmpf ogt, %1423, %1628 : vector<8x8xf32>
    %cst_1069 = arith.constant 0.000000e+00 : f32
    %1630 = vector.broadcast %cst_1069 : f32 to vector<8x8xf32>
    %1631 = arith.minimumf %1423, %1630 : vector<8x8xf32>
    %1632 = math.exp %1631 : vector<8x8xf32>
    %cst_1070 = arith.constant 1.000000e+00 : f32
    %1633 = vector.broadcast %cst_1070 : f32 to vector<8x8xf32>
    %1634 = arith.subf %1632, %1633 : vector<8x8xf32>
    %1635 = arith.select %1629, %1423, %1634 : vector<8x8xi1>, vector<8x8xf32>
    %cst_1071 = arith.constant 0.000000e+00 : f32
    %1636 = vector.broadcast %cst_1071 : f32 to vector<8x8xf32>
    %1637 = arith.cmpf ogt, %1481, %1636 : vector<8x8xf32>
    %cst_1072 = arith.constant 0.000000e+00 : f32
    %1638 = vector.broadcast %cst_1072 : f32 to vector<8x8xf32>
    %1639 = arith.minimumf %1481, %1638 : vector<8x8xf32>
    %1640 = math.exp %1639 : vector<8x8xf32>
    %cst_1073 = arith.constant 1.000000e+00 : f32
    %1641 = vector.broadcast %cst_1073 : f32 to vector<8x8xf32>
    %1642 = arith.subf %1640, %1641 : vector<8x8xf32>
    %1643 = arith.select %1637, %1481, %1642 : vector<8x8xi1>, vector<8x8xf32>
    %cst_1074 = arith.constant 0.000000e+00 : f32
    %1644 = vector.broadcast %cst_1074 : f32 to vector<8x8xf32>
    %1645 = arith.cmpf ogt, %1539, %1644 : vector<8x8xf32>
    %cst_1075 = arith.constant 0.000000e+00 : f32
    %1646 = vector.broadcast %cst_1075 : f32 to vector<8x8xf32>
    %1647 = arith.minimumf %1539, %1646 : vector<8x8xf32>
    %1648 = math.exp %1647 : vector<8x8xf32>
    %cst_1076 = arith.constant 1.000000e+00 : f32
    %1649 = vector.broadcast %cst_1076 : f32 to vector<8x8xf32>
    %1650 = arith.subf %1648, %1649 : vector<8x8xf32>
    %1651 = arith.select %1645, %1539, %1650 : vector<8x8xi1>, vector<8x8xf32>
    %c0_1077 = arith.constant 0 : index
    %1652 = memref.load %arg8[%c0_1077] : memref<1xf32, #tpu.memory_space<smem>>
    %c0_1078 = arith.constant 0 : index
    %c0_1079 = arith.constant 0 : index
    %1653 = memref.load %arg7[%c0_1078, %c0_1079] : memref<14x1xf32, #tpu.memory_space<smem>>
    %1654 = vector.broadcast %1653 : f32 to vector<8x8xf32>
    %1655 = arith.mulf %1654, %1547 : vector<8x8xf32>
    %1656 = vector.broadcast %1652 : f32 to vector<8x8xf32>
    %1657 = arith.addf %1656, %1655 : vector<8x8xf32>
    %c1_1080 = arith.constant 1 : index
    %c0_1081 = arith.constant 0 : index
    %1658 = memref.load %arg7[%c1_1080, %c0_1081] : memref<14x1xf32, #tpu.memory_space<smem>>
    %1659 = vector.broadcast %1658 : f32 to vector<8x8xf32>
    %1660 = arith.mulf %1659, %1555 : vector<8x8xf32>
    %1661 = arith.addf %1657, %1660 : vector<8x8xf32>
    %c2_1082 = arith.constant 2 : index
    %c0_1083 = arith.constant 0 : index
    %1662 = memref.load %arg7[%c2_1082, %c0_1083] : memref<14x1xf32, #tpu.memory_space<smem>>
    %1663 = vector.broadcast %1662 : f32 to vector<8x8xf32>
    %1664 = arith.mulf %1663, %1563 : vector<8x8xf32>
    %1665 = arith.addf %1661, %1664 : vector<8x8xf32>
    %c3_1084 = arith.constant 3 : index
    %c0_1085 = arith.constant 0 : index
    %1666 = memref.load %arg7[%c3_1084, %c0_1085] : memref<14x1xf32, #tpu.memory_space<smem>>
    %1667 = vector.broadcast %1666 : f32 to vector<8x8xf32>
    %1668 = arith.mulf %1667, %1571 : vector<8x8xf32>
    %1669 = arith.addf %1665, %1668 : vector<8x8xf32>
    %c4_1086 = arith.constant 4 : index
    %c0_1087 = arith.constant 0 : index
    %1670 = memref.load %arg7[%c4_1086, %c0_1087] : memref<14x1xf32, #tpu.memory_space<smem>>
    %1671 = vector.broadcast %1670 : f32 to vector<8x8xf32>
    %1672 = arith.mulf %1671, %1579 : vector<8x8xf32>
    %1673 = arith.addf %1669, %1672 : vector<8x8xf32>
    %c5_1088 = arith.constant 5 : index
    %c0_1089 = arith.constant 0 : index
    %1674 = memref.load %arg7[%c5_1088, %c0_1089] : memref<14x1xf32, #tpu.memory_space<smem>>
    %1675 = vector.broadcast %1674 : f32 to vector<8x8xf32>
    %1676 = arith.mulf %1675, %1587 : vector<8x8xf32>
    %1677 = arith.addf %1673, %1676 : vector<8x8xf32>
    %c6_1090 = arith.constant 6 : index
    %c0_1091 = arith.constant 0 : index
    %1678 = memref.load %arg7[%c6_1090, %c0_1091] : memref<14x1xf32, #tpu.memory_space<smem>>
    %1679 = vector.broadcast %1678 : f32 to vector<8x8xf32>
    %1680 = arith.mulf %1679, %1595 : vector<8x8xf32>
    %1681 = arith.addf %1677, %1680 : vector<8x8xf32>
    %c7_1092 = arith.constant 7 : index
    %c0_1093 = arith.constant 0 : index
    %1682 = memref.load %arg7[%c7_1092, %c0_1093] : memref<14x1xf32, #tpu.memory_space<smem>>
    %1683 = vector.broadcast %1682 : f32 to vector<8x8xf32>
    %1684 = arith.mulf %1683, %1603 : vector<8x8xf32>
    %1685 = arith.addf %1681, %1684 : vector<8x8xf32>
    %c8_1094 = arith.constant 8 : index
    %c0_1095 = arith.constant 0 : index
    %1686 = memref.load %arg7[%c8_1094, %c0_1095] : memref<14x1xf32, #tpu.memory_space<smem>>
    %1687 = vector.broadcast %1686 : f32 to vector<8x8xf32>
    %1688 = arith.mulf %1687, %1611 : vector<8x8xf32>
    %1689 = arith.addf %1685, %1688 : vector<8x8xf32>
    %c9_1096 = arith.constant 9 : index
    %c0_1097 = arith.constant 0 : index
    %1690 = memref.load %arg7[%c9_1096, %c0_1097] : memref<14x1xf32, #tpu.memory_space<smem>>
    %1691 = vector.broadcast %1690 : f32 to vector<8x8xf32>
    %1692 = arith.mulf %1691, %1619 : vector<8x8xf32>
    %1693 = arith.addf %1689, %1692 : vector<8x8xf32>
    %c10_1098 = arith.constant 10 : index
    %c0_1099 = arith.constant 0 : index
    %1694 = memref.load %arg7[%c10_1098, %c0_1099] : memref<14x1xf32, #tpu.memory_space<smem>>
    %1695 = vector.broadcast %1694 : f32 to vector<8x8xf32>
    %1696 = arith.mulf %1695, %1627 : vector<8x8xf32>
    %1697 = arith.addf %1693, %1696 : vector<8x8xf32>
    %c11_1100 = arith.constant 11 : index
    %c0_1101 = arith.constant 0 : index
    %1698 = memref.load %arg7[%c11_1100, %c0_1101] : memref<14x1xf32, #tpu.memory_space<smem>>
    %1699 = vector.broadcast %1698 : f32 to vector<8x8xf32>
    %1700 = arith.mulf %1699, %1635 : vector<8x8xf32>
    %1701 = arith.addf %1697, %1700 : vector<8x8xf32>
    %c12_1102 = arith.constant 12 : index
    %c0_1103 = arith.constant 0 : index
    %1702 = memref.load %arg7[%c12_1102, %c0_1103] : memref<14x1xf32, #tpu.memory_space<smem>>
    %1703 = vector.broadcast %1702 : f32 to vector<8x8xf32>
    %1704 = arith.mulf %1703, %1643 : vector<8x8xf32>
    %1705 = arith.addf %1701, %1704 : vector<8x8xf32>
    %c13_1104 = arith.constant 13 : index
    %c0_1105 = arith.constant 0 : index
    %1706 = memref.load %arg7[%c13_1104, %c0_1105] : memref<14x1xf32, #tpu.memory_space<smem>>
    %1707 = vector.broadcast %1706 : f32 to vector<8x8xf32>
    %1708 = arith.mulf %1707, %1651 : vector<8x8xf32>
    %1709 = arith.addf %1705, %1708 : vector<8x8xf32>
    %c0_1106 = arith.constant 0 : index
    %c0_1107 = arith.constant 0 : index
    %c0_1108 = arith.constant 0 : index
    %c0_1109 = arith.constant 0 : index
    %1710 = vector.load %arg9[%c0_1106, %c0_1107, %c0_1108, %c0_1109] : memref<1x1x8x8xf32, #tpu.memory_space<vmem>>, vector<1x1x8x8xf32>
    %1711 = vector.shape_cast %1710 : vector<1x1x8x8xf32> to vector<8x8xf32>
    %1712 = vector.shape_cast %1709 : vector<8x8xf32> to vector<1x1x8x8xf32>
    tpu.vector_store %arg9[%c0_1106, %c0_1107, %c0_1108, %c0_1109], %1712 {strides = array<i32>} : memref<1x1x8x8xf32, #tpu.memory_space<vmem>>, vector<1x1x8x8xf32>,
    return
  }
  func.func @transform_0(%arg0: i32, %arg1: i32) -> (i32, i32, i32, i32) {
    %c0_i32 = arith.constant 0 : i32
    %c0_i32_0 = arith.constant 0 : i32
    %c0_i32_1 = arith.constant 0 : i32
    return %arg0, %c0_i32, %arg1, %c0_i32_0 : i32, i32, i32, i32
  }
  func.func @transform_1(%arg0: i32, %arg1: i32) -> (i32, i32) {
    %c0_i32 = arith.constant 0 : i32
    %c0_i32_0 = arith.constant 0 : i32
    %c0_i32_1 = arith.constant 0 : i32
    return %c0_i32, %c0_i32_0 : i32, i32
  }
  func.func @transform_2(%arg0: i32, %arg1: i32) -> i32 {
    %c0_i32 = arith.constant 0 : i32
    %c0_i32_0 = arith.constant 0 : i32
    return %c0_i32 : i32
  }
  func.func @transform_3(%arg0: i32, %arg1: i32) -> (i32, i32) {
    %c0_i32 = arith.constant 0 : i32
    %c0_i32_0 = arith.constant 0 : i32
    %c0_i32_1 = arith.constant 0 : i32
    return %c0_i32, %c0_i32_0 : i32, i32
  }
  func.func @transform_4(%arg0: i32, %arg1: i32) -> i32 {
    %c0_i32 = arith.constant 0 : i32
    %c0_i32_0 = arith.constant 0 : i32
    return %c0_i32 : i32
  }
  func.func @transform_5(%arg0: i32, %arg1: i32) -> (i32, i32) {
    %c0_i32 = arith.constant 0 : i32
    %c0_i32_0 = arith.constant 0 : i32
    %c0_i32_1 = arith.constant 0 : i32
    return %c0_i32, %c0_i32_0 : i32, i32
  }
  func.func @transform_6(%arg0: i32, %arg1: i32) -> i32 {
    %c0_i32 = arith.constant 0 : i32
    %c0_i32_0 = arith.constant 0 : i32
    return %c0_i32 : i32
  }
  func.func @transform_7(%arg0: i32, %arg1: i32) -> (i32, i32, i32, i32) {
    %c0_i32 = arith.constant 0 : i32
    %c0_i32_0 = arith.constant 0 : i32
    %c0_i32_1 = arith.constant 0 : i32
    return %arg0, %c0_i32, %arg1, %c0_i32_0 : i32, i32, i32, i32
  }
}

</mosaic_0001>

<llo_original>
// kernel: baseline_network_forward.14
$region0: #{baseline_network_forward.14}
  #allocation0 [shape = 'u32[]', space=smem, size = 0x4, offset = 0x4, fixed_abs, tag = 'smem constant byte address 0x4 - core index']
  #allocation1 [shape = 'u32[144,128]{1,0:T(1,128)}', space=vmem, size = 0x12000, scoped, tag = 'internal scratch']
  %s0 = inlined_call_operand.vmem [shape: f32[2,8,8], index: 0, kind: input, shape index: {}, may-alias: {0,1}]
  %s1 = inlined_call_operand.vmem [shape: f32[2,8,8], index: 1, kind: input, shape index: {}, may-alias: {0,1}]
  %s2 = inlined_call_operand.vmem [shape: f32[2,8,8], index: 2, kind: output, shape index: {}]
  %s3 = sld [smem:[#allocation0]]
  $region41: #{baseline_network_forward.14} parent=0
    _
  %s5 = ssub.s32 1, %s3
  %s6 = scalar_select 0, %s5, %s3
  loop: start=0, step=1, limit=4
  $region2: #{baseline_network_forward.14} parent=0 // loop_pre_header
    _
  $region3: #{baseline_network_forward.14} parent=0 // loop_header
    %s8 = sphi 0, %s12
    %p9 = scmp.ge.s32.totalorder %s8, 4
    %s18 = sphi 0, %s20
    %s21 = sphi 0, %s18
    %s22 = sphi 0, %s21
    %s38 = sphi 0, %s22
    %s44 = sphi 0, %s46
    %s47 = sphi 0, %s44
    %s48 = sphi 0, %s47
    %s64 = sphi 0, %s48
    %s70 = sphi 0, %s72
    %s73 = sphi 0, %s70
    %s74 = sphi 0, %s73
    %s90 = sphi 0, %s74
  $region4: #{baseline_network_forward.14} parent=0 // loop_header_branch
    %11 = sbr.rel (%p9) target = $region8
  $region5: #{baseline_network_forward.14} parent=0 // loop_body
    %s13 = ssub.s32 %s8, 1
    %s14 = ssub.s32 %s8, 2
    %s15 = sadd.s32 %s8, 1
    %s16 = ssub.s32 %s8, %s15
    %p17 = scmp.eq.s32.totalorder %s16, 0
    %s19 = sadd.s32 %s18, 1
    %s20 = scalar_select %p17, %s18, %s19
    %p23 = pneg %p17
    %p24 = scmp.eq.s32.totalorder %s8, 1
    %p25 = por %p23, %p24
    %p26 = scmp.ne.s32.totalorder %s18, %s21
    %p27 = scmp.eq.s32.totalorder %s8, 0
    %p28 = por %p26, %p27
    %p29 = scmp.ne.s32.totalorder %s18, %s21
    %p30 = scmp.eq.s32.totalorder %s13, 1
    %p31 = por %p29, %p30
    %p32 = scmp.ne.s32.totalorder %s21, %s22
    %p33 = scmp.eq.s32.totalorder %s13, 0
    %p34 = por %p32, %p33
    %p35 = scmp.ne.s32.totalorder %s21, %s22
    %p36 = scmp.eq.s32.totalorder %s14, 1
    %p37 = por %p35, %p36
    %p39 = scmp.ne.s32.totalorder %s22, %s38
    %p40 = scmp.eq.s32.totalorder %s14, 0
    %p41 = por %p39, %p40
    %s42 = ssub.s32 %s8, %s15
    %p43 = scmp.eq.s32.totalorder %s42, 0
    %s45 = sadd.s32 %s44, 1
    %s46 = scalar_select %p43, %s44, %s45
    %p49 = pneg %p43
    %p50 = scmp.eq.s32.totalorder %s8, 1
    %p51 = por %p49, %p50
    %p52 = scmp.ne.s32.totalorder %s44, %s47
    %p53 = scmp.eq.s32.totalorder %s8, 0
    %p54 = por %p52, %p53
    %p55 = scmp.ne.s32.totalorder %s44, %s47
    %p56 = scmp.eq.s32.totalorder %s13, 1
    %p57 = por %p55, %p56
    %p58 = scmp.ne.s32.totalorder %s47, %s48
    %p59 = scmp.eq.s32.totalorder %s13, 0
    %p60 = por %p58, %p59
    %p61 = scmp.ne.s32.totalorder %s47, %s48
    %p62 = scmp.eq.s32.totalorder %s14, 1
    %p63 = por %p61, %p62
    %p65 = scmp.ne.s32.totalorder %s48, %s64
    %p66 = scmp.eq.s32.totalorder %s14, 0
    %p67 = por %p65, %p66
    %s68 = ssub.s32 %s8, %s15
    %p69 = scmp.eq.s32.totalorder %s68, 0
    %s71 = sadd.s32 %s70, 1
    %s72 = scalar_select %p69, %s70, %s71
    %p75 = pneg %p69
    %p76 = scmp.eq.s32.totalorder %s8, 1
    %p77 = por %p75, %p76
    %p78 = scmp.ne.s32.totalorder %s70, %s73
    %p79 = scmp.eq.s32.totalorder %s8, 0
    %p80 = por %p78, %p79
    %p81 = scmp.ne.s32.totalorder %s70, %s73
    %p82 = scmp.eq.s32.totalorder %s13, 1
    %p83 = por %p81, %p82
    %p84 = scmp.ne.s32.totalorder %s73, %s74
    %p85 = scmp.eq.s32.totalorder %s13, 0
    %p86 = por %p84, %p85
    %p87 = scmp.ne.s32.totalorder %s73, %s74
    %p88 = scmp.eq.s32.totalorder %s14, 1
    %p89 = por %p87, %p88
    %p91 = scmp.ne.s32.totalorder %s74, %s90
    %p92 = scmp.eq.s32.totalorder %s14, 0
    %p93 = por %p91, %p92
    %p94 = scmp.le.s32.totalorder 1, %s8
    %p95 = scmp.lt.s32.totalorder %s8, 3
    %p96 = pnand %p94, %p95
    %p97 = pneg %p96
    // Predicated region
    $region9: #{baseline_network_forward.14} parent=5 // pred_check
      _
    $region10: #{baseline_network_forward.14} parent=5 // pred_check_branch
      %99 = sbr.rel (%p96) target = $region12
    $region11: #{baseline_network_forward.14} parent=5 // pred_region
      %s100 = ssub.s32 %s8, 1
    $region12: #{baseline_network_forward.14} parent=5 // pred_fallthru
      _
    %p101 = scmp.lt.s32.totalorder %s8, 2
    // Predicated region
    $region13: #{baseline_network_forward.14} parent=5 // pred_check
      %p102 = pneg %p101
    $region14: #{baseline_network_forward.14} parent=5 // pred_check_branch
      %104 = sbr.rel (%p102) target = $region16
    $region15: #{baseline_network_forward.14} parent=5 // pred_region
      // Predicated region
      $region17: #{baseline_network_forward.14} parent=15 // pred_check
        %p105 = pneg %p28
      $region18: #{baseline_network_forward.14} parent=15 // pred_check_branch
        %107 = sbr.rel (%p105) target = $region20
      $region19: #{baseline_network_forward.14} parent=15 // pred_region
        %p108 = scmp.lt.s32.totalorder %s8, 1
        %s109 = scalar_select %p108, %s8, 1
        %s110 = smul.addr %s109, 8
        %s111 = scalar_lea.vmem %s0, %s110
      $region20: #{baseline_network_forward.14} parent=15 // pred_fallthru
        _
      // Predicated region
      $region21: #{baseline_network_forward.14} parent=15 // pred_check
        %p112 = pneg %p54
      $region22: #{baseline_network_forward.14} parent=15 // pred_check_branch
        %114 = sbr.rel (%p112) target = $region24
      $region23: #{baseline_network_forward.14} parent=15 // pred_region
        %p115 = scmp.lt.s32.totalorder %s8, 1
        %s116 = scalar_select %p115, %s8, 1
        %s117 = smul.addr %s116, 8
        %s118 = scalar_lea.vmem %s1, %s117
      $region24: #{baseline_network_forward.14} parent=15 // pred_fallthru
        _
    $region16: #{baseline_network_forward.14} parent=5 // pred_fallthru
      _
    %p119 = scmp.le.s32.totalorder 1, %s8
    %p120 = scmp.lt.s32.totalorder %s8, 3
    %p121 = pnand %p119, %p120
    %p122 = pneg %p121
    // Predicated region
    $region25: #{baseline_network_forward.14} parent=5 // pred_check
      _
    $region26: #{baseline_network_forward.14} parent=5 // pred_check_branch
      %124 = sbr.rel (%p121) target = $region28
    $region27: #{baseline_network_forward.14} parent=5 // pred_region
      %s125 = ssub.s32 %s8, 1
      %p126 = scmp.lt.s32.totalorder %s13, 1
      %s127 = scalar_select %p126, %s13, 1
      %s128 = smul.addr %s127, 8
      %s129 = scalar_lea.vmem %s0, %s128
      %p130 = pneg %p34
      %p131 = pneg %p31
      %p132 = scmp.lt.s32.totalorder %s13, 1
      %s133 = scalar_select %p132, %s13, 1
      %s134 = smul.addr %s133, 8
      %s135 = scalar_lea.vmem %s1, %s134
      %p136 = pneg %p60
      %p137 = pneg %p57
      %p138 = pneg %p86
      %p139 = pneg %p83
      %p140 = scmp.lt.s32.totalorder %s13, 1
      %s141 = scalar_select %p140, %s13, 1
      %s142 = smul.addr %s141, 8
      %s143 = scalar_lea.vmem %s2, %s142
      %p144 = scmp.lt.s32.totalorder %s13, 1
      %s145 = scalar_select %p144, %s13, 1
      %s146 = smul.addr %s145, 8
      %s147 = scalar_lea.vmem %s0, %s146
      %p148 = scmp.lt.s32.totalorder %s13, 1
      %s149 = scalar_select %p148, %s13, 1
      %s150 = smul.addr %s149, 8
      %s151 = scalar_lea.vmem %s1, %s150
      %p152 = scmp.lt.s32.totalorder %s13, 1
      %s153 = scalar_select %p152, %s13, 1
      %s154 = smul.addr %s153, 8
      %s155 = scalar_lea.vmem %s2, %s154
      %v156 = vld [vmem:[%s147] sm:$0xff]
      %v157 = vld [vmem:[%s151] sm:$0xff]
      %vm158 = vcmask 64512
      %v160 = vsel %vm158, %v156, 0
      %162 = vmatprep.subr.mxu0 0.0
      %163 = vmatpush1.msra.mxu0 %v157
      %164 = vmatprep.subr.mxu0 0.0
      %165 = vmatpush1.msra.mxu0 0.0
      %166 = vmatprep.subr.mxu0 0.0
      %167 = vmatpush1.msra.mxu0 0.0
      %168 = vmatprep.subr.mxu0 0.0
      %169 = vmatpush1.msra.mxu0 0.0
      %170 = vmatprep.subr.mxu0 0.0
      %171 = vmatpush1.msra.mxu0 0.0
      %172 = vmatprep.subr.mxu0 0.0
      %173 = vmatpush1.msra.mxu0 0.0
      %174 = vmatprep.subr.mxu0 0.0
      %175 = vmatpush1.msra.mxu0 0.0
      %176 = vmatprep.subr.mxu0 0.0
      %177 = vmatpush1.msra.mxu0 0.0
      %178 = vmatprep.subr.mxu0 0.0
      %179 = vmatpush1.msra.mxu0 0.0
      %180 = vmatprep.subr.mxu0 0.0
      %181 = vmatpush1.msra.mxu0 0.0
      %182 = vmatprep.subr.mxu0 0.0
      %183 = vmatpush1.msra.mxu0 0.0
      %184 = vmatprep.subr.mxu0 0.0
      %185 = vmatpush1.msra.mxu0 0.0
      %186 = vmatprep.subr.mxu0 0.0
      %187 = vmatpush1.msra.mxu0 0.0
      %188 = vmatprep.subr.mxu0 0.0
      %189 = vmatpush1.msra.mxu0 0.0
      %190 = vmatprep.subr.mxu0 0.0
      %191 = vmatpush1.msra.mxu0 0.0
      %192 = vmatprep.subr.mxu0 0.0
      %193 = vmatpush1.msra.mxu0 0.0
      %194 = vmatprep.subr.mxu0 0.0
      %195 = vmatpush1.msra.mxu0 0.0
      %196 = vmatprep.subr.mxu0 0.0
      %197 = vmatpush1.msra.mxu0 0.0
      %198 = vmatprep.subr.mxu0 0.0
      %199 = vmatpush1.msra.mxu0 0.0
      %200 = vmatprep.subr.mxu0 0.0
      %201 = vmatpush1.msra.mxu0 0.0
      %202 = vmatprep.subr.mxu0 0.0
      %203 = vmatpush1.msra.mxu0 0.0
      %204 = vmatprep.subr.mxu0 0.0
      %205 = vmatpush1.msra.mxu0 0.0
      %206 = vmatprep.subr.mxu0 0.0
      %207 = vmatpush1.msra.mxu0 0.0
      %208 = vmatprep.subr.mxu0 0.0
      %209 = vmatpush1.msra.mxu0 0.0
      %210 = vmatprep.subr.mxu0 0.0
      %211 = vmatpush1.msra.mxu0 0.0
      %212 = vmatprep.subr.mxu0 0.0
      %213 = vmatpush1.msra.mxu0 0.0
      %214 = vmatprep.subr.mxu0 0.0
      %215 = vmatpush1.msra.mxu0 0.0
      %216 = vmatprep.subr.mxu0 0.0
      %217 = vmatpush1.msra.mxu0 0.0
      %218 = vmatprep.subr.mxu0 0.0
      %219 = vmatpush1.msra.mxu0 0.0
      %220 = vmatprep.subr.mxu0 0.0
      %221 = vmatpush1.msra.mxu0 0.0
      %222 = vmatprep.subr.mxu0 0.0
      %223 = vmatpush1.msra.mxu0 0.0
      %224 = vmatprep.subr.mxu0 0.0
      %225 = vmatpush1.msra.mxu0 0.0
      %226 = vmatprep.mubr.f32.mxu0 0.0
      %227 = vmatmul.mubr.f32.gmra.mrb[0].mxu0 %v160
      %v228 = vpop.f32.mrb[0].mxu0
      %v229 = vadd.f32 0.0, %v228
      %v230 = vpop.f32.mrb[0].mxu0
      %231 = vdwg.mxu0
      %232 = vst.msk [vmem:[%s155] sm:$0xff] %vm158, %v229
      %p233 = scmp.lt.s32.totalorder %s13, 1
      %s234 = scalar_select %p233, %s13, 1
      %s235 = smul.addr %s234, 8
      %s236 = scalar_lea.vmem %s2, %s235
      // Predicated region
      $region29: #{baseline_network_forward.14} parent=27 // pred_check
        %p237 = pneg %p83
      $region30: #{baseline_network_forward.14} parent=27 // pred_check_branch
        %239 = sbr.rel (%p237) target = $region32
      $region31: #{baseline_network_forward.14} parent=27 // pred_region
        _
      $region32: #{baseline_network_forward.14} parent=27 // pred_fallthru
        _
    $region28: #{baseline_network_forward.14} parent=5 // pred_fallthru
      _
    %p240 = scmp.le.s32.totalorder 2, %s8
    // Predicated region
    $region33: #{baseline_network_forward.14} parent=5 // pred_check
      %p241 = pneg %p240
    $region34: #{baseline_network_forward.14} parent=5 // pred_check_branch
      %243 = sbr.rel (%p241) target = $region36
    $region35: #{baseline_network_forward.14} parent=5 // pred_region
      %s244 = ssub.s32 %s8, 2
      // Predicated region
      $region37: #{baseline_network_forward.14} parent=35 // pred_check
        %p245 = pneg %p89
      $region38: #{baseline_network_forward.14} parent=35 // pred_check_branch
        %247 = sbr.rel (%p245) target = $region40
      $region39: #{baseline_network_forward.14} parent=35 // pred_region
        %p248 = scmp.lt.s32.totalorder %s14, 1
        %s249 = scalar_select %p248, %s14, 1
        %s250 = smul.addr %s249, 8
        %s251 = scalar_lea.vmem %s2, %s250
      $region40: #{baseline_network_forward.14} parent=35 // pred_fallthru
        _
    $region36: #{baseline_network_forward.14} parent=5 // pred_fallthru
      _
  $region6: #{baseline_network_forward.14} parent=0 // loop_footer
    %s12 = sadd.s32 1, %s8
  $region7: #{baseline_network_forward.14} parent=0 // loop_footer_branch
    %7 = sbr.rel target = $region3
  $region8: #{baseline_network_forward.14} parent=0 // loop_exit
    _

// kernel: baseline_network_forward.15
$region0: #{baseline_network_forward.15}
  #allocation0 [shape = 'u32[]', space=smem, size = 0x4, offset = 0x4, fixed_abs, tag = 'smem constant byte address 0x4 - core index']
  #allocation1 [shape = 'u32[144,128]{1,0:T(1,128)}', space=vmem, size = 0x12000, scoped, tag = 'internal scratch']
  %s0 = inlined_call_operand.vmem [shape: f32[16,4], index: 0, kind: input, shape index: {}]
  %s1 = inlined_call_operand.vmem [shape: f32[4,16], index: 1, kind: input, shape index: {}]
  %s2 = inlined_call_operand.vmem [shape: f32[1,16], index: 2, kind: input, shape index: {}]
  %s3 = inlined_call_operand.vmem [shape: f32[16,16], index: 3, kind: output, shape index: {}]
  %s4 = sld [smem:[#allocation0]]
  $region22: #{baseline_network_forward.15} parent=0
    _
  %s6 = ssub.s32 1, %s4
  %s7 = scalar_select 0, %s6, %s4
  // Predicated region
  $region2: #{baseline_network_forward.15} parent=0 // pred_check
    _
  $region3: #{baseline_network_forward.15} parent=0 // pred_check_branch
    %9 = sbr.rel (0) target = $region5
  $region4: #{baseline_network_forward.15} parent=0 // pred_region
    _
  $region5: #{baseline_network_forward.15} parent=0 // pred_fallthru
    _
  // Predicated region
  $region6: #{baseline_network_forward.15} parent=0 // pred_check
    _
  $region7: #{baseline_network_forward.15} parent=0 // pred_check_branch
    %11 = sbr.rel (0) target = $region9
  $region8: #{baseline_network_forward.15} parent=0 // pred_region
    _
  $region9: #{baseline_network_forward.15} parent=0 // pred_fallthru
    _
  // Predicated region
  $region10: #{baseline_network_forward.15} parent=0 // pred_check
    _
  $region11: #{baseline_network_forward.15} parent=0 // pred_check_branch
    %13 = sbr.rel (0) target = $region13
  $region12: #{baseline_network_forward.15} parent=0 // pred_region
    _
  $region13: #{baseline_network_forward.15} parent=0 // pred_fallthru
    _
  %v14 = vld [vmem:[%s0] sm:$0xff]
  %v15 = vld [vmem:[%s0 + $0x8] sm:$0xff]
  %v16 = vld [vmem:[%s1] sm:$0xf]
  %v17 = vld [vmem:[%s2] sm:$0x1]
  %v19 = vlaneseq
  %v20 = vshrl.u32 %v19, 7
  %v21 = vsub.s32 0, %v20
  %v22 = vrot.slane %v17, %v21
  %vm24 = vcmask 31744
  %v26 = vsel %vm24, %v14, 0
  %v29 = vsel %vm24, %v15, 0
  %vm31 = vcmask 1043456
  %v33 = vsel %vm31, %v16, 0
  %35 = vmatprep.subr.mxu0 0.0
  %36 = vmatpush1.msra.mxu0 %v33
  %37 = vmatprep.subr.mxu0 0.0
  %38 = vmatpush1.msra.mxu0 0.0
  %39 = vmatprep.subr.mxu0 0.0
  %40 = vmatpush1.msra.mxu0 0.0
  %41 = vmatprep.subr.mxu0 0.0
  %42 = vmatpush1.msra.mxu0 0.0
  %43 = vmatprep.subr.mxu0 0.0
  %44 = vmatpush1.msra.mxu0 0.0
  %45 = vmatprep.subr.mxu0 0.0
  %46 = vmatpush1.msra.mxu0 0.0
  %47 = vmatprep.subr.mxu0 0.0
  %48 = vmatpush1.msra.mxu0 0.0
  %49 = vmatprep.subr.mxu0 0.0
  %50 = vmatpush1.msra.mxu0 0.0
  %51 = vmatprep.subr.mxu0 0.0
  %52 = vmatpush1.msra.mxu0 0.0
  %53 = vmatprep.subr.mxu0 0.0
  %54 = vmatpush1.msra.mxu0 0.0
  %55 = vmatprep.subr.mxu0 0.0
  %56 = vmatpush1.msra.mxu0 0.0
  %57 = vmatprep.subr.mxu0 0.0
  %58 = vmatpush1.msra.mxu0 0.0
  %59 = vmatprep.subr.mxu0 0.0
  %60 = vmatpush1.msra.mxu0 0.0
  %61 = vmatprep.subr.mxu0 0.0
  %62 = vmatpush1.msra.mxu0 0.0
  %63 = vmatprep.subr.mxu0 0.0
  %64 = vmatpush1.msra.mxu0 0.0
  %65 = vmatprep.subr.mxu0 0.0
  %66 = vmatpush1.msra.mxu0 0.0
  %67 = vmatprep.subr.mxu0 0.0
  %68 = vmatpush1.msra.mxu0 0.0
  %69 = vmatprep.subr.mxu0 0.0
  %70 = vmatpush1.msra.mxu0 0.0
  %71 = vmatprep.subr.mxu0 0.0
  %72 = vmatpush1.msra.mxu0 0.0
  %73 = vmatprep.subr.mxu0 0.0
  %74 = vmatpush1.msra.mxu0 0.0
  %75 = vmatprep.subr.mxu0 0.0
  %76 = vmatpush1.msra.mxu0 0.0
  %77 = vmatprep.subr.mxu0 0.0
  %78 = vmatpush1.msra.mxu0 0.0
  %79 = vmatprep.subr.mxu0 0.0
  %80 = vmatpush1.msra.mxu0 0.0
  %81 = vmatprep.subr.mxu0 0.0
  %82 = vmatpush1.msra.mxu0 0.0
  %83 = vmatprep.subr.mxu0 0.0
  %84 = vmatpush1.msra.mxu0 0.0
  %85 = vmatprep.subr.mxu0 0.0
  %86 = vmatpush1.msra.mxu0 0.0
  %87 = vmatprep.subr.mxu0 0.0
  %88 = vmatpush1.msra.mxu0 0.0
  %89 = vmatprep.subr.mxu0 0.0
  %90 = vmatpush1.msra.mxu0 0.0
  %91 = vmatprep.subr.mxu0 0.0
  %92 = vmatpush1.msra.mxu0 0.0
  %93 = vmatprep.subr.mxu0 0.0
  %94 = vmatpush1.msra.mxu0 0.0
  %95 = vmatprep.subr.mxu0 0.0
  %96 = vmatpush1.msra.mxu0 0.0
  %97 = vmatprep.subr.mxu0 0.0
  %98 = vmatpush1.msra.mxu0 0.0
  %99 = vmatprep.mubr.f32.mxu0 0.0
  %100 = vmatmul.mubr.f32.gmra.mrb[0].mxu0 %v26
  %v101 = vpop.f32.mrb[0].mxu0
  %v102 = vadd.f32 %v22, %v101
  %v103 = vpop.f32.mrb[0].mxu0
  %104 = vmatprep.mubr.f32.mxu0 0.0
  %105 = vmatmul.mubr.f32.gmra.mrb[0].mxu0 %v29
  %v106 = vpop.f32.mrb[0].mxu0
  %v107 = vadd.f32 %v22, %v106
  %v108 = vpop.f32.mrb[0].mxu0
  %109 = vdwg.mxu0
  %vm110 = vcmask 130048
  %111 = vst.msk [vmem:[%s3] sm:$0xff] %vm110, %v102
  %112 = vst.msk [vmem:[%s3 + $0x8] sm:$0xff] %vm110, %v107
  // Predicated region
  $region14: #{baseline_network_forward.15} parent=0 // pred_check
    _
  $region15: #{baseline_network_forward.15} parent=0 // pred_check_branch
    %114 = sbr.rel (0) target = $region17
  $region16: #{baseline_network_forward.15} parent=0 // pred_region
    _
  $region17: #{baseline_network_forward.15} parent=0 // pred_fallthru
    _
  // Predicated region
  $region18: #{baseline_network_forward.15} parent=0 // pred_check
    _
  $region19: #{baseline_network_forward.15} parent=0 // pred_check_branch
    %116 = sbr.rel (0) target = $region21
  $region20: #{baseline_network_forward.15} parent=0 // pred_region
    _
  $region21: #{baseline_network_forward.15} parent=0 // pred_fallthru
    _

// kernel: baseline_network_forward.17
$region0: #{baseline_network_forward.17}
  #allocation0 [shape = 'u32[]', space=smem, size = 0x4, offset = 0x4, fixed_abs, tag = 'smem constant byte address 0x4 - core index']
  #allocation1 [shape = 'u32[144,128]{1,0:T(1,128)}', space=vmem, size = 0x12000, scoped, tag = 'internal scratch']
  %s0 = inlined_call_operand.vmem [shape: f32[16,16], index: 0, kind: input, shape index: {}]
  %s1 = inlined_call_operand.vmem [shape: f32[16,3], index: 1, kind: input, shape index: {}]
  %s2 = inlined_call_operand.vmem [shape: f32[1,3], index: 2, kind: input, shape index: {}]
  %s3 = inlined_call_operand.vmem [shape: f32[16,3], index: 3, kind: output, shape index: {}]
  %s4 = sld [smem:[#allocation0]]
  $region22: #{baseline_network_forward.17} parent=0
    _
  %s6 = ssub.s32 1, %s4
  %s7 = scalar_select 0, %s6, %s4
  // Predicated region
  $region2: #{baseline_network_forward.17} parent=0 // pred_check
    _
  $region3: #{baseline_network_forward.17} parent=0 // pred_check_branch
    %9 = sbr.rel (0) target = $region5
  $region4: #{baseline_network_forward.17} parent=0 // pred_region
    _
  $region5: #{baseline_network_forward.17} parent=0 // pred_fallthru
    _
  // Predicated region
  $region6: #{baseline_network_forward.17} parent=0 // pred_check
    _
  $region7: #{baseline_network_forward.17} parent=0 // pred_check_branch
    %11 = sbr.rel (0) target = $region9
  $region8: #{baseline_network_forward.17} parent=0 // pred_region
    _
  $region9: #{baseline_network_forward.17} parent=0 // pred_fallthru
    _
  // Predicated region
  $region10: #{baseline_network_forward.17} parent=0 // pred_check
    _
  $region11: #{baseline_network_forward.17} parent=0 // pred_check_branch
    %13 = sbr.rel (0) target = $region13
  $region12: #{baseline_network_forward.17} parent=0 // pred_region
    _
  $region13: #{baseline_network_forward.17} parent=0 // pred_fallthru
    _
  %v14 = vld [vmem:[%s0] sm:$0xff]
  %v15 = vld [vmem:[%s0 + $0x8] sm:$0xff]
  %v16 = vld [vmem:[%s1] sm:$0xff]
  %v17 = vld [vmem:[%s1 + $0x8] sm:$0xff]
  %v18 = vld [vmem:[%s2] sm:$0x1]
  %v20 = vlaneseq
  %v21 = vshrl.u32 %v20, 7
  %v22 = vsub.s32 0, %v21
  %v23 = vrot.slane %v18, %v22
  %vm25 = vcmask 130048
  %v27 = vsel %vm25, %v14, 0
  %v30 = vsel %vm25, %v15, 0
  %32 = vmatprep.subr.mxu0 0.0
  %33 = vmatpush1.msra.mxu0 %v16
  %34 = vmatprep.subr.mxu0 0.0
  %35 = vmatpush1.msra.mxu0 %v17
  %36 = vmatprep.subr.mxu0 0.0
  %37 = vmatpush1.msra.mxu0 0.0
  %38 = vmatprep.subr.mxu0 0.0
  %39 = vmatpush1.msra.mxu0 0.0
  %40 = vmatprep.subr.mxu0 0.0
  %41 = vmatpush1.msra.mxu0 0.0
  %42 = vmatprep.subr.mxu0 0.0
  %43 = vmatpush1.msra.mxu0 0.0
  %44 = vmatprep.subr.mxu0 0.0
  %45 = vmatpush1.msra.mxu0 0.0
  %46 = vmatprep.subr.mxu0 0.0
  %47 = vmatpush1.msra.mxu0 0.0
  %48 = vmatprep.subr.mxu0 0.0
  %49 = vmatpush1.msra.mxu0 0.0
  %50 = vmatprep.subr.mxu0 0.0
  %51 = vmatpush1.msra.mxu0 0.0
  %52 = vmatprep.subr.mxu0 0.0
  %53 = vmatpush1.msra.mxu0 0.0
  %54 = vmatprep.subr.mxu0 0.0
  %55 = vmatpush1.msra.mxu0 0.0
  %56 = vmatprep.subr.mxu0 0.0
  %57 = vmatpush1.msra.mxu0 0.0
  %58 = vmatprep.subr.mxu0 0.0
  %59 = vmatpush1.msra.mxu0 0.0
  %60 = vmatprep.subr.mxu0 0.0
  %61 = vmatpush1.msra.mxu0 0.0
  %62 = vmatprep.subr.mxu0 0.0
  %63 = vmatpush1.msra.mxu0 0.0
  %64 = vmatprep.subr.mxu0 0.0
  %65 = vmatpush1.msra.mxu0 0.0
  %66 = vmatprep.subr.mxu0 0.0
  %67 = vmatpush1.msra.mxu0 0.0
  %68 = vmatprep.subr.mxu0 0.0
  %69 = vmatpush1.msra.mxu0 0.0
  %70 = vmatprep.subr.mxu0 0.0
  %71 = vmatpush1.msra.mxu0 0.0
  %72 = vmatprep.subr.mxu0 0.0
  %73 = vmatpush1.msra.mxu0 0.0
  %74 = vmatprep.subr.mxu0 0.0
  %75 = vmatpush1.msra.mxu0 0.0
  %76 = vmatprep.subr.mxu0 0.0
  %77 = vmatpush1.msra.mxu0 0.0
  %78 = vmatprep.subr.mxu0 0.0
  %79 = vmatpush1.msra.mxu0 0.0
  %80 = vmatprep.subr.mxu0 0.0
  %81 = vmatpush1.msra.mxu0 0.0
  %82 = vmatprep.subr.mxu0 0.0
  %83 = vmatpush1.msra.mxu0 0.0
  %84 = vmatprep.subr.mxu0 0.0
  %85 = vmatpush1.msra.mxu0 0.0
  %86 = vmatprep.subr.mxu0 0.0
  %87 = vmatpush1.msra.mxu0 0.0
  %88 = vmatprep.subr.mxu0 0.0
  %89 = vmatpush1.msra.mxu0 0.0
  %90 = vmatprep.subr.mxu0 0.0
  %91 = vmatpush1.msra.mxu0 0.0
  %92 = vmatprep.subr.mxu0 0.0
  %93 = vmatpush1.msra.mxu0 0.0
  %94 = vmatprep.subr.mxu0 0.0
  %95 = vmatpush1.msra.mxu0 0.0
  %96 = vmatprep.mubr.f32.mxu0 0.0
  %97 = vmatmul.mubr.f32.gmra.mrb[0].mxu0 %v27
  %v98 = vpop.f32.mrb[0].mxu0
  %v99 = vadd.f32 %v23, %v98
  %v100 = vpop.f32.mrb[0].mxu0
  %101 = vmatprep.mubr.f32.mxu0 0.0
  %102 = vmatmul.mubr.f32.gmra.mrb[0].mxu0 %v30
  %v103 = vpop.f32.mrb[0].mxu0
  %v104 = vadd.f32 %v23, %v103
  %v105 = vpop.f32.mrb[0].mxu0
  %106 = vdwg.mxu0
  %vm107 = vcmp.gt.f32.partialorder %v99, 0.0
  %vm108 = vcmp.gt.f32.partialorder %v104, 0.0
  %v109 = vmin.f32 %v99, 0.0
  %v110 = vmin.f32 %v104, 0.0
  %v111 = vmul.f32 %v109, 1.442695
  %v112 = vpow.pop %v111
  %v113 = vmul.f32 %v110, 1.442695
  %v114 = vpow.pop %v113
  %v115 = vsub.f32 %v112, 1.0
  %v116 = vsub.f32 %v114, 1.0
  %v117 = vsel %vm107, %v99, %v115
  %v118 = vsel %vm108, %v104, %v116
  %vm119 = vcmask 23552
  %120 = vst.msk [vmem:[%s3] sm:$0xff] %vm119, %v117
  %121 = vst.msk [vmem:[%s3 + $0x8] sm:$0xff] %vm119, %v118
  // Predicated region
  $region14: #{baseline_network_forward.17} parent=0 // pred_check
    _
  $region15: #{baseline_network_forward.17} parent=0 // pred_check_branch
    %123 = sbr.rel (0) target = $region17
  $region16: #{baseline_network_forward.17} parent=0 // pred_region
    _
  $region17: #{baseline_network_forward.17} parent=0 // pred_fallthru
    _
  // Predicated region
  $region18: #{baseline_network_forward.17} parent=0 // pred_check
    _
  $region19: #{baseline_network_forward.17} parent=0 // pred_check_branch
    %125 = sbr.rel (0) target = $region21
  $region20: #{baseline_network_forward.17} parent=0 // pred_region
    _
  $region21: #{baseline_network_forward.17} parent=0 // pred_fallthru
    _

// kernel: baseline_network_forward.16
$region0: #{baseline_network_forward.16}
  #allocation0 [shape = 'u32[]', space=smem, size = 0x4, offset = 0x4, fixed_abs, tag = 'smem constant byte address 0x4 - core index']
  #allocation1 [shape = 'u32[144,128]{1,0:T(1,128)}', space=vmem, size = 0x12000, scoped, tag = 'internal scratch']
  %s0 = inlined_call_operand.vmem [shape: f32[2,8,16], index: 0, kind: input, shape index: {}]
  %s1 = inlined_call_operand.vmem [shape: f32[2,2,8,8], index: 1, kind: input, shape index: {}]
  %s2 = inlined_call_operand.vmem [shape: f32[1,16], index: 2, kind: input, shape index: {}]
  %s3 = inlined_call_operand.vmem [shape: f32[2,8,16], index: 3, kind: output, shape index: {}]
  %s4 = sld [smem:[#allocation0]]
  $region45: #{baseline_network_forward.16} parent=0
    _
  %s6 = ssub.s32 1, %s4
  %s7 = scalar_select 0, %s6, %s4
  loop: start=0, step=1, limit=4
  $region2: #{baseline_network_forward.16} parent=0 // loop_pre_header
    _
  $region3: #{baseline_network_forward.16} parent=0 // loop_header
    %s9 = sphi 0, %s13
    %p10 = scmp.ge.s32.totalorder %s9, 4
    %s19 = sphi 0, %s21
    %s22 = sphi 0, %s19
    %s23 = sphi 0, %s22
    %s39 = sphi 0, %s23
    %s45 = sphi 0, %s47
    %s48 = sphi 0, %s45
    %s49 = sphi 0, %s48
    %s65 = sphi 0, %s49
    %s69 = sphi 0, %s69
    %s71 = sphi 0, %s69
    %s72 = sphi 0, %s71
    %s86 = sphi 0, %s72
    %s92 = sphi 0, %s94
    %s95 = sphi 0, %s92
    %s96 = sphi 0, %s95
    %s112 = sphi 0, %s96
  $region4: #{baseline_network_forward.16} parent=0 // loop_header_branch
    %12 = sbr.rel (%p10) target = $region8
  $region5: #{baseline_network_forward.16} parent=0 // loop_body
    %s14 = ssub.s32 %s9, 1
    %s15 = ssub.s32 %s9, 2
    %s16 = sadd.s32 %s9, 1
    %s17 = ssub.s32 %s9, %s16
    %p18 = scmp.eq.s32.totalorder %s17, 0
    %s20 = sadd.s32 %s19, 1
    %s21 = scalar_select %p18, %s19, %s20
    %p24 = pneg %p18
    %p25 = scmp.eq.s32.totalorder %s9, 1
    %p26 = por %p24, %p25
    %p27 = scmp.ne.s32.totalorder %s19, %s22
    %p28 = scmp.eq.s32.totalorder %s9, 0
    %p29 = por %p27, %p28
    %p30 = scmp.ne.s32.totalorder %s19, %s22
    %p31 = scmp.eq.s32.totalorder %s14, 1
    %p32 = por %p30, %p31
    %p33 = scmp.ne.s32.totalorder %s22, %s23
    %p34 = scmp.eq.s32.totalorder %s14, 0
    %p35 = por %p33, %p34
    %p36 = scmp.ne.s32.totalorder %s22, %s23
    %p37 = scmp.eq.s32.totalorder %s15, 1
    %p38 = por %p36, %p37
    %p40 = scmp.ne.s32.totalorder %s23, %s39
    %p41 = scmp.eq.s32.totalorder %s15, 0
    %p42 = por %p40, %p41
    %s43 = ssub.s32 %s9, %s16
    %p44 = scmp.eq.s32.totalorder %s43, 0
    %s46 = sadd.s32 %s45, 1
    %s47 = scalar_select %p44, %s45, %s46
    %p50 = pneg %p44
    %p51 = scmp.eq.s32.totalorder %s9, 1
    %p52 = por %p50, %p51
    %p53 = scmp.ne.s32.totalorder %s45, %s48
    %p54 = scmp.eq.s32.totalorder %s9, 0
    %p55 = por %p53, %p54
    %p56 = scmp.ne.s32.totalorder %s45, %s48
    %p57 = scmp.eq.s32.totalorder %s14, 1
    %p58 = por %p56, %p57
    %p59 = scmp.ne.s32.totalorder %s48, %s49
    %p60 = scmp.eq.s32.totalorder %s14, 0
    %p61 = por %p59, %p60
    %p62 = scmp.ne.s32.totalorder %s48, %s49
    %p63 = scmp.eq.s32.totalorder %s15, 1
    %p64 = por %p62, %p63
    %p66 = scmp.ne.s32.totalorder %s49, %s65
    %p67 = scmp.eq.s32.totalorder %s15, 0
    %p68 = por %p66, %p67
    %s70 = sadd.s32 %s69, 1
    %p73 = scmp.eq.s32.totalorder %s9, 1
    %p74 = scmp.ne.s32.totalorder %s69, %s71
    %p75 = scmp.eq.s32.totalorder %s9, 0
    %p76 = por %p74, %p75
    %p77 = scmp.ne.s32.totalorder %s69, %s71
    %p78 = scmp.eq.s32.totalorder %s14, 1
    %p79 = por %p77, %p78
    %p80 = scmp.ne.s32.totalorder %s71, %s72
    %p81 = scmp.eq.s32.totalorder %s14, 0
    %p82 = por %p80, %p81
    %p83 = scmp.ne.s32.totalorder %s71, %s72
    %p84 = scmp.eq.s32.totalorder %s15, 1
    %p85 = por %p83, %p84
    %p87 = scmp.ne.s32.totalorder %s72, %s86
    %p88 = scmp.eq.s32.totalorder %s15, 0
    %p89 = por %p87, %p88
    %s90 = ssub.s32 %s9, %s16
    %p91 = scmp.eq.s32.totalorder %s90, 0
    %s93 = sadd.s32 %s92, 1
    %s94 = scalar_select %p91, %s92, %s93
    %p97 = pneg %p91
    %p98 = scmp.eq.s32.totalorder %s9, 1
    %p99 = por %p97, %p98
    %p100 = scmp.ne.s32.totalorder %s92, %s95
    %p101 = scmp.eq.s32.totalorder %s9, 0
    %p102 = por %p100, %p101
    %p103 = scmp.ne.s32.totalorder %s92, %s95
    %p104 = scmp.eq.s32.totalorder %s14, 1
    %p105 = por %p103, %p104
    %p106 = scmp.ne.s32.totalorder %s95, %s96
    %p107 = scmp.eq.s32.totalorder %s14, 0
    %p108 = por %p106, %p107
    %p109 = scmp.ne.s32.totalorder %s95, %s96
    %p110 = scmp.eq.s32.totalorder %s15, 1
    %p111 = por %p109, %p110
    %p113 = scmp.ne.s32.totalorder %s96, %s112
    %p114 = scmp.eq.s32.totalorder %s15, 0
    %p115 = por %p113, %p114
    %p116 = scmp.le.s32.totalorder 1, %s9
    %p117 = scmp.lt.s32.totalorder %s9, 3
    %p118 = pnand %p116, %p117
    %p119 = pneg %p118
    // Predicated region
    $region9: #{baseline_network_forward.16} parent=5 // pred_check
      _
    $region10: #{baseline_network_forward.16} parent=5 // pred_check_branch
      %121 = sbr.rel (%p118) target = $region12
    $region11: #{baseline_network_forward.16} parent=5 // pred_region
      %s122 = ssub.s32 %s9, 1
      // Predicated region
      $region13: #{baseline_network_forward.16} parent=11 // pred_check
        %p123 = pneg %p82
      $region14: #{baseline_network_forward.16} parent=11 // pred_check_branch
        %125 = sbr.rel (%p123) target = $region16
      $region15: #{baseline_network_forward.16} parent=11 // pred_region
        _
      $region16: #{baseline_network_forward.16} parent=11 // pred_fallthru
        _
    $region12: #{baseline_network_forward.16} parent=5 // pred_fallthru
      _
    %p126 = scmp.lt.s32.totalorder %s9, 2
    // Predicated region
    $region17: #{baseline_network_forward.16} parent=5 // pred_check
      %p127 = pneg %p126
    $region18: #{baseline_network_forward.16} parent=5 // pred_check_branch
      %129 = sbr.rel (%p127) target = $region20
    $region19: #{baseline_network_forward.16} parent=5 // pred_region
      // Predicated region
      $region21: #{baseline_network_forward.16} parent=19 // pred_check
        %p130 = pneg %p29
      $region22: #{baseline_network_forward.16} parent=19 // pred_check_branch
        %132 = sbr.rel (%p130) target = $region24
      $region23: #{baseline_network_forward.16} parent=19 // pred_region
        %p133 = scmp.lt.s32.totalorder %s9, 1
        %s134 = scalar_select %p133, %s9, 1
        %s135 = smul.addr %s134, 8
        %s136 = scalar_lea.vmem %s0, %s135
      $region24: #{baseline_network_forward.16} parent=19 // pred_fallthru
        _
      // Predicated region
      $region25: #{baseline_network_forward.16} parent=19 // pred_check
        %p137 = pneg %p55
      $region26: #{baseline_network_forward.16} parent=19 // pred_check_branch
        %139 = sbr.rel (%p137) target = $region28
      $region27: #{baseline_network_forward.16} parent=19 // pred_region
        %p140 = scmp.lt.s32.totalorder %s9, 1
        %s141 = scalar_select %p140, %s9, 1
        %s142 = smul.addr %s141, 2
        %s143 = smul.addr %s142, 8
        %s144 = scalar_lea.vmem %s1, %s143
      $region28: #{baseline_network_forward.16} parent=19 // pred_fallthru
        _
    $region20: #{baseline_network_forward.16} parent=5 // pred_fallthru
      _
    %p145 = scmp.le.s32.totalorder 1, %s9
    %p146 = scmp.lt.s32.totalorder %s9, 3
    %p147 = pnand %p145, %p146
    %p148 = pneg %p147
    // Predicated region
    $region29: #{baseline_network_forward.16} parent=5 // pred_check
      _
    $region30: #{baseline_network_forward.16} parent=5 // pred_check_branch
      %150 = sbr.rel (%p147) target = $region32
    $region31: #{baseline_network_forward.16} parent=5 // pred_region
      %s151 = ssub.s32 %s9, 1
      %p152 = scmp.lt.s32.totalorder %s14, 1
      %s153 = scalar_select %p152, %s14, 1
      %s154 = smul.addr %s153, 8
      %s155 = scalar_lea.vmem %s0, %s154
      %p156 = pneg %p35
      %p157 = pneg %p32
      %p158 = scmp.lt.s32.totalorder %s14, 1
      %s159 = scalar_select %p158, %s14, 1
      %s160 = smul.addr %s159, 2
      %s161 = smul.addr %s160, 8
      %s162 = scalar_lea.vmem %s1, %s161
      %p163 = pneg %p61
      %p164 = pneg %p58
      %p165 = pneg %p82
      %p166 = pneg %p79
      %p167 = pneg %p108
      %p168 = pneg %p105
      %p169 = scmp.lt.s32.totalorder %s14, 1
      %s170 = scalar_select %p169, %s14, 1
      %s171 = smul.addr %s170, 8
      %s172 = scalar_lea.vmem %s3, %s171
      %p173 = scmp.lt.s32.totalorder %s14, 1
      %s174 = scalar_select %p173, %s14, 1
      %s175 = smul.addr %s174, 8
      %s176 = scalar_lea.vmem %s0, %s175
      %p177 = scmp.lt.s32.totalorder %s14, 1
      %s178 = scalar_select %p177, %s14, 1
      %s179 = smul.addr %s178, 2
      %s180 = smul.addr %s179, 8
      %s181 = scalar_lea.vmem %s1, %s180
      %p182 = scmp.lt.s32.totalorder %s14, 1
      %s183 = scalar_select %p182, %s14, 1
      %s184 = smul.addr %s183, 8
      %s185 = scalar_lea.vmem %s3, %s184
      %v186 = vld [vmem:[%s176] sm:$0xff]
      %v187 = vlaneseq
      %v188 = vshrl.u32 %v187, 7
      %v189 = vlaneseq
      %v190 = vand.u32 %v189, 127
      %vm191 = vcmp.eq.s32.totalorder %v188, %v190
      %v192 = vsel %vm191, 1, 0
      %v193 = vcvt.s32.f32 %v192
      %v194 = vld [vmem:[%s181] sm:$0xff]
      %v195 = vsub.f32 1.0, %v193
      %v196 = vmul.f32 %v194, %v195
      %v197 = vadd.f32 %v196, %v193
      %vm198 = vcmask 64512
      %v199 = vsel %vm198, %v197, 0.0
      %200 = vadd.xlane.f32.xlu0 %v199
      %v201 = vpop.xlane.xlu0 %200
      %v202 = vmax.f32 %v201, 1.0
      %v203 = vrsqrt.pop %v202
      %v204 = vmul.f32 %v203, %v186
      %v206 = vsel %vm198, %v197, 0
      %208 = vmatprep.subr.mxu0 0.0
      %209 = vmatpush1.msra.mxu0 %v204
      %210 = vmatprep.subr.mxu0 0.0
      %211 = vmatpush1.msra.mxu0 0.0
      %212 = vmatprep.subr.mxu0 0.0
      %213 = vmatpush1.msra.mxu0 0.0
      %214 = vmatprep.subr.mxu0 0.0
      %215 = vmatpush1.msra.mxu0 0.0
      %216 = vmatprep.subr.mxu0 0.0
      %217 = vmatpush1.msra.mxu0 0.0
      %218 = vmatprep.subr.mxu0 0.0
      %219 = vmatpush1.msra.mxu0 0.0
      %220 = vmatprep.subr.mxu0 0.0
      %221 = vmatpush1.msra.mxu0 0.0
      %222 = vmatprep.subr.mxu0 0.0
      %223 = vmatpush1.msra.mxu0 0.0
      %224 = vmatprep.subr.mxu0 0.0
      %225 = vmatpush1.msra.mxu0 0.0
      %226 = vmatprep.subr.mxu0 0.0
      %227 = vmatpush1.msra.mxu0 0.0
      %228 = vmatprep.subr.mxu0 0.0
      %229 = vmatpush1.msra.mxu0 0.0
      %230 = vmatprep.subr.mxu0 0.0
      %231 = vmatpush1.msra.mxu0 0.0
      %232 = vmatprep.subr.mxu0 0.0
      %233 = vmatpush1.msra.mxu0 0.0
      %234 = vmatprep.subr.mxu0 0.0
      %235 = vmatpush1.msra.mxu0 0.0
      %236 = vmatprep.subr.mxu0 0.0
      %237 = vmatpush1.msra.mxu0 0.0
      %238 = vmatprep.subr.mxu0 0.0
      %239 = vmatpush1.msra.mxu0 0.0
      %240 = vmatprep.subr.mxu0 0.0
      %241 = vmatpush1.msra.mxu0 0.0
      %242 = vmatprep.subr.mxu0 0.0
      %243 = vmatpush1.msra.mxu0 0.0
      %244 = vmatprep.subr.mxu0 0.0
      %245 = vmatpush1.msra.mxu0 0.0
      %246 = vmatprep.subr.mxu0 0.0
      %247 = vmatpush1.msra.mxu0 0.0
      %248 = vmatprep.subr.mxu0 0.0
      %249 = vmatpush1.msra.mxu0 0.0
      %250 = vmatprep.subr.mxu0 0.0
      %251 = vmatpush1.msra.mxu0 0.0
      %252 = vmatprep.subr.mxu0 0.0
      %253 = vmatpush1.msra.mxu0 0.0
      %254 = vmatprep.subr.mxu0 0.0
      %255 = vmatpush1.msra.mxu0 0.0
      %256 = vmatprep.subr.mxu0 0.0
      %257 = vmatpush1.msra.mxu0 0.0
      %258 = vmatprep.subr.mxu0 0.0
      %259 = vmatpush1.msra.mxu0 0.0
      %260 = vmatprep.subr.mxu0 0.0
      %261 = vmatpush1.msra.mxu0 0.0
      %262 = vmatprep.subr.mxu0 0.0
      %263 = vmatpush1.msra.mxu0 0.0
      %264 = vmatprep.subr.mxu0 0.0
      %265 = vmatpush1.msra.mxu0 0.0
      %266 = vmatprep.subr.mxu0 0.0
      %267 = vmatpush1.msra.mxu0 0.0
      %268 = vmatprep.subr.mxu0 0.0
      %269 = vmatpush1.msra.mxu0 0.0
      %270 = vmatprep.subr.mxu0 0.0
      %271 = vmatpush1.msra.mxu0 0.0
      %272 = vmatprep.mubr.f32.mxu0 0.0
      %273 = vmatmul.mubr.f32.gmra.mrb[0].mxu0 %v206
      %v274 = vpop.f32.mrb[0].mxu0
      %v275 = vadd.f32 0.0, %v274
      %v276 = vpop.f32.mrb[0].mxu0
      %277 = vdwg.mxu0
      %v278 = vmul.f32 %v203, %v275
      %s279 = scalar_lea.vmem %s181, 8
      %v280 = vld [vmem:[%s279] sm:$0xff]
      %v281 = vmul.f32 %v280, %v195
      %v282 = vadd.f32 %v281, %v193
      %v283 = vsel %vm198, %v282, 0.0
      %284 = vadd.xlane.f32.xlu0 %v283
      %v285 = vpop.xlane.xlu0 %284
      %v286 = vmax.f32 %v285, 1.0
      %v287 = vrsqrt.pop %v286
      %v288 = vmul.f32 %v287, %v186
      %290 = vrot.lane.b32.xlu0 %v288, 120
      %v291 = vpop.permute.xlu0 %290
      %v294 = vsel %vm198, %v282, 0
      %296 = vmatprep.subr.mxu0 0.0
      %297 = vmatpush1.msra.mxu0 %v291
      %298 = vmatprep.subr.mxu0 0.0
      %299 = vmatpush1.msra.mxu0 0.0
      %300 = vmatprep.subr.mxu0 0.0
      %301 = vmatpush1.msra.mxu0 0.0
      %302 = vmatprep.subr.mxu0 0.0
      %303 = vmatpush1.msra.mxu0 0.0
      %304 = vmatprep.subr.mxu0 0.0
      %305 = vmatpush1.msra.mxu0 0.0
      %306 = vmatprep.subr.mxu0 0.0
      %307 = vmatpush1.msra.mxu0 0.0
      %308 = vmatprep.subr.mxu0 0.0
      %309 = vmatpush1.msra.mxu0 0.0
      %310 = vmatprep.subr.mxu0 0.0
      %311 = vmatpush1.msra.mxu0 0.0
      %312 = vmatprep.subr.mxu0 0.0
      %313 = vmatpush1.msra.mxu0 0.0
      %314 = vmatprep.subr.mxu0 0.0
      %315 = vmatpush1.msra.mxu0 0.0
      %316 = vmatprep.subr.mxu0 0.0
      %317 = vmatpush1.msra.mxu0 0.0
      %318 = vmatprep.subr.mxu0 0.0
      %319 = vmatpush1.msra.mxu0 0.0
      %320 = vmatprep.subr.mxu0 0.0
      %321 = vmatpush1.msra.mxu0 0.0
      %322 = vmatprep.subr.mxu0 0.0
      %323 = vmatpush1.msra.mxu0 0.0
      %324 = vmatprep.subr.mxu0 0.0
      %325 = vmatpush1.msra.mxu0 0.0
      %326 = vmatprep.subr.mxu0 0.0
      %327 = vmatpush1.msra.mxu0 0.0
      %328 = vmatprep.subr.mxu0 0.0
      %329 = vmatpush1.msra.mxu0 0.0
      %330 = vmatprep.subr.mxu0 0.0
      %331 = vmatpush1.msra.mxu0 0.0
      %332 = vmatprep.subr.mxu0 0.0
      %333 = vmatpush1.msra.mxu0 0.0
      %334 = vmatprep.subr.mxu0 0.0
      %335 = vmatpush1.msra.mxu0 0.0
      %336 = vmatprep.subr.mxu0 0.0
      %337 = vmatpush1.msra.mxu0 0.0
      %338 = vmatprep.subr.mxu0 0.0
      %339 = vmatpush1.msra.mxu0 0.0
      %340 = vmatprep.subr.mxu0 0.0
      %341 = vmatpush1.msra.mxu0 0.0
      %342 = vmatprep.subr.mxu0 0.0
      %343 = vmatpush1.msra.mxu0 0.0
      %344 = vmatprep.subr.mxu0 0.0
      %345 = vmatpush1.msra.mxu0 0.0
      %346 = vmatprep.subr.mxu0 0.0
      %347 = vmatpush1.msra.mxu0 0.0
      %348 = vmatprep.subr.mxu0 0.0
      %349 = vmatpush1.msra.mxu0 0.0
      %350 = vmatprep.subr.mxu0 0.0
      %351 = vmatpush1.msra.mxu0 0.0
      %352 = vmatprep.subr.mxu0 0.0
      %353 = vmatpush1.msra.mxu0 0.0
      %354 = vmatprep.subr.mxu0 0.0
      %355 = vmatpush1.msra.mxu0 0.0
      %356 = vmatprep.subr.mxu0 0.0
      %357 = vmatpush1.msra.mxu0 0.0
      %358 = vmatprep.subr.mxu0 0.0
      %359 = vmatpush1.msra.mxu0 0.0
      %360 = vmatprep.mubr.f32.mxu0 0.0
      %361 = vmatmul.mubr.f32.gmra.mrb[0].mxu0 %v294
      %v362 = vpop.f32.mrb[0].mxu0
      %v363 = vadd.f32 0.0, %v362
      %v364 = vpop.f32.mrb[0].mxu0
      %365 = vdwg.mxu0
      %v366 = vmul.f32 %v287, %v363
      %368 = vrot.lane.b32.xlu0 %v366, 8
      %v369 = vpop.permute.xlu0 %368
      %v371 = vsel %vm198, %v278, %v369
      %v372 = vld [vmem:[%s2] sm:$0x1]
      %v374 = vlaneseq
      %v375 = vshrl.u32 %v374, 7
      %v376 = vsub.s32 0, %v375
      %v377 = vrot.slane %v372, %v376
      %v379 = vadd.f32 %v371, %v377
      %vm380 = vcmask 130048
      %381 = vst.msk [vmem:[%s185] sm:$0xff] %vm380, %v379
      %p382 = scmp.lt.s32.totalorder %s14, 1
      %s383 = scalar_select %p382, %s14, 1
      %s384 = smul.addr %s383, 8
      %s385 = scalar_lea.vmem %s3, %s384
      // Predicated region
      $region33: #{baseline_network_forward.16} parent=31 // pred_check
        %p386 = pneg %p105
      $region34: #{baseline_network_forward.16} parent=31 // pred_check_branch
        %388 = sbr.rel (%p386) target = $region36
      $region35: #{baseline_network_forward.16} parent=31 // pred_region
        _
      $region36: #{baseline_network_forward.16} parent=31 // pred_fallthru
        _
    $region32: #{baseline_network_forward.16} parent=5 // pred_fallthru
      _
    %p389 = scmp.le.s32.totalorder 2, %s9
    // Predicated region
    $region37: #{baseline_network_forward.16} parent=5 // pred_check
      %p390 = pneg %p389
    $region38: #{baseline_network_forward.16} parent=5 // pred_check_branch
      %392 = sbr.rel (%p390) target = $region40
    $region39: #{baseline_network_forward.16} parent=5 // pred_region
      %s393 = ssub.s32 %s9, 2
      // Predicated region
      $region41: #{baseline_network_forward.16} parent=39 // pred_check
        %p394 = pneg %p111
      $region42: #{baseline_network_forward.16} parent=39 // pred_check_branch
        %396 = sbr.rel (%p394) target = $region44
      $region43: #{baseline_network_forward.16} parent=39 // pred_region
        %p397 = scmp.lt.s32.totalorder %s15, 1
        %s398 = scalar_select %p397, %s15, 1
        %s399 = smul.addr %s398, 8
        %s400 = scalar_lea.vmem %s3, %s399
      $region44: #{baseline_network_forward.16} parent=39 // pred_fallthru
        _
    $region40: #{baseline_network_forward.16} parent=5 // pred_fallthru
      _
  $region6: #{baseline_network_forward.16} parent=0 // loop_footer
    %s13 = sadd.s32 1, %s9
  $region7: #{baseline_network_forward.16} parent=0 // loop_footer_branch
    %8 = sbr.rel target = $region3
  $region8: #{baseline_network_forward.16} parent=0 // loop_exit
    _

// kernel: baseline_network_forward.18
$region0: #{baseline_network_forward.18}
  #allocation0 [shape = 'u32[]', space=smem, size = 0x4, offset = 0x4, fixed_abs, tag = 'smem constant byte address 0x4 - core index']
  #allocation1 [shape = 'u32[144,128]{1,0:T(1,128)}', space=vmem, size = 0x12000, scoped, tag = 'internal scratch']
  %s0 = inlined_call_operand.vmem [shape: f32[16,3], index: 0, kind: input, shape index: {}]
  %s1 = inlined_call_operand.vmem [shape: f32[3,8], index: 1, kind: input, shape index: {}]
  %s2 = inlined_call_operand.vmem [shape: f32[1,8], index: 2, kind: input, shape index: {}]
  %s3 = inlined_call_operand.vmem [shape: f32[16,8], index: 3, kind: output, shape index: {}]
  %s4 = sld [smem:[#allocation0]]
  $region22: #{baseline_network_forward.18} parent=0
    _
  %s6 = ssub.s32 1, %s4
  %s7 = scalar_select 0, %s6, %s4
  // Predicated region
  $region2: #{baseline_network_forward.18} parent=0 // pred_check
    _
  $region3: #{baseline_network_forward.18} parent=0 // pred_check_branch
    %9 = sbr.rel (0) target = $region5
  $region4: #{baseline_network_forward.18} parent=0 // pred_region
    _
  $region5: #{baseline_network_forward.18} parent=0 // pred_fallthru
    _
  // Predicated region
  $region6: #{baseline_network_forward.18} parent=0 // pred_check
    _
  $region7: #{baseline_network_forward.18} parent=0 // pred_check_branch
    %11 = sbr.rel (0) target = $region9
  $region8: #{baseline_network_forward.18} parent=0 // pred_region
    _
  $region9: #{baseline_network_forward.18} parent=0 // pred_fallthru
    _
  // Predicated region
  $region10: #{baseline_network_forward.18} parent=0 // pred_check
    _
  $region11: #{baseline_network_forward.18} parent=0 // pred_check_branch
    %13 = sbr.rel (0) target = $region13
  $region12: #{baseline_network_forward.18} parent=0 // pred_region
    _
  $region13: #{baseline_network_forward.18} parent=0 // pred_fallthru
    _
  %v14 = vld [vmem:[%s0] sm:$0xff]
  %v15 = vld [vmem:[%s0 + $0x8] sm:$0xff]
  %v16 = vld [vmem:[%s1] sm:$0x7]
  %v17 = vld [vmem:[%s2] sm:$0x1]
  %v19 = vlaneseq
  %v20 = vshrl.u32 %v19, 7
  %v21 = vsub.s32 0, %v20
  %v22 = vrot.slane %v17, %v21
  %vm24 = vcmask 23552
  %v26 = vsel %vm24, %v14, 0
  %v29 = vsel %vm24, %v15, 0
  %vm31 = vcmask 1042432
  %v33 = vsel %vm31, %v16, 0
  %35 = vmatprep.subr.mxu0 0.0
  %36 = vmatpush1.msra.mxu0 %v33
  %37 = vmatprep.subr.mxu0 0.0
  %38 = vmatpush1.msra.mxu0 0.0
  %39 = vmatprep.subr.mxu0 0.0
  %40 = vmatpush1.msra.mxu0 0.0
  %41 = vmatprep.subr.mxu0 0.0
  %42 = vmatpush1.msra.mxu0 0.0
  %43 = vmatprep.subr.mxu0 0.0
  %44 = vmatpush1.msra.mxu0 0.0
  %45 = vmatprep.subr.mxu0 0.0
  %46 = vmatpush1.msra.mxu0 0.0
  %47 = vmatprep.subr.mxu0 0.0
  %48 = vmatpush1.msra.mxu0 0.0
  %49 = vmatprep.subr.mxu0 0.0
  %50 = vmatpush1.msra.mxu0 0.0
  %51 = vmatprep.subr.mxu0 0.0
  %52 = vmatpush1.msra.mxu0 0.0
  %53 = vmatprep.subr.mxu0 0.0
  %54 = vmatpush1.msra.mxu0 0.0
  %55 = vmatprep.subr.mxu0 0.0
  %56 = vmatpush1.msra.mxu0 0.0
  %57 = vmatprep.subr.mxu0 0.0
  %58 = vmatpush1.msra.mxu0 0.0
  %59 = vmatprep.subr.mxu0 0.0
  %60 = vmatpush1.msra.mxu0 0.0
  %61 = vmatprep.subr.mxu0 0.0
  %62 = vmatpush1.msra.mxu0 0.0
  %63 = vmatprep.subr.mxu0 0.0
  %64 = vmatpush1.msra.mxu0 0.0
  %65 = vmatprep.subr.mxu0 0.0
  %66 = vmatpush1.msra.mxu0 0.0
  %67 = vmatprep.subr.mxu0 0.0
  %68 = vmatpush1.msra.mxu0 0.0
  %69 = vmatprep.subr.mxu0 0.0
  %70 = vmatpush1.msra.mxu0 0.0
  %71 = vmatprep.subr.mxu0 0.0
  %72 = vmatpush1.msra.mxu0 0.0
  %73 = vmatprep.subr.mxu0 0.0
  %74 = vmatpush1.msra.mxu0 0.0
  %75 = vmatprep.subr.mxu0 0.0
  %76 = vmatpush1.msra.mxu0 0.0
  %77 = vmatprep.subr.mxu0 0.0
  %78 = vmatpush1.msra.mxu0 0.0
  %79 = vmatprep.subr.mxu0 0.0
  %80 = vmatpush1.msra.mxu0 0.0
  %81 = vmatprep.subr.mxu0 0.0
  %82 = vmatpush1.msra.mxu0 0.0
  %83 = vmatprep.subr.mxu0 0.0
  %84 = vmatpush1.msra.mxu0 0.0
  %85 = vmatprep.subr.mxu0 0.0
  %86 = vmatpush1.msra.mxu0 0.0
  %87 = vmatprep.subr.mxu0 0.0
  %88 = vmatpush1.msra.mxu0 0.0
  %89 = vmatprep.subr.mxu0 0.0
  %90 = vmatpush1.msra.mxu0 0.0
  %91 = vmatprep.subr.mxu0 0.0
  %92 = vmatpush1.msra.mxu0 0.0
  %93 = vmatprep.subr.mxu0 0.0
  %94 = vmatpush1.msra.mxu0 0.0
  %95 = vmatprep.subr.mxu0 0.0
  %96 = vmatpush1.msra.mxu0 0.0
  %97 = vmatprep.subr.mxu0 0.0
  %98 = vmatpush1.msra.mxu0 0.0
  %99 = vmatprep.mubr.f32.mxu0 0.0
  %100 = vmatmul.mubr.f32.gmra.mrb[0].mxu0 %v26
  %v101 = vpop.f32.mrb[0].mxu0
  %v102 = vadd.f32 %v22, %v101
  %v103 = vpop.f32.mrb[0].mxu0
  %104 = vmatprep.mubr.f32.mxu0 0.0
  %105 = vmatmul.mubr.f32.gmra.mrb[0].mxu0 %v29
  %v106 = vpop.f32.mrb[0].mxu0
  %v107 = vadd.f32 %v22, %v106
  %v108 = vpop.f32.mrb[0].mxu0
  %109 = vdwg.mxu0
  %v110 = vtanh.pop %v102
  %v111 = vtanh.pop %v107
  %vm112 = vcmask 64512
  %113 = vst.msk [vmem:[%s3] sm:$0xff] %vm112, %v110
  %114 = vst.msk [vmem:[%s3 + $0x8] sm:$0xff] %vm112, %v111
  // Predicated region
  $region14: #{baseline_network_forward.18} parent=0 // pred_check
    _
  $region15: #{baseline_network_forward.18} parent=0 // pred_check_branch
    %116 = sbr.rel (0) target = $region17
  $region16: #{baseline_network_forward.18} parent=0 // pred_region
    _
  $region17: #{baseline_network_forward.18} parent=0 // pred_fallthru
    _
  // Predicated region
  $region18: #{baseline_network_forward.18} parent=0 // pred_check
    _
  $region19: #{baseline_network_forward.18} parent=0 // pred_check_branch
    %118 = sbr.rel (0) target = $region21
  $region20: #{baseline_network_forward.18} parent=0 // pred_region
    _
  $region21: #{baseline_network_forward.18} parent=0 // pred_fallthru
    _

// kernel: baseline_network_forward.19
$region0: #{baseline_network_forward.19}
  #allocation0 [shape = 'u32[]', space=smem, size = 0x4, offset = 0x4, fixed_abs, tag = 'smem constant byte address 0x4 - core index']
  #allocation1 [shape = 'u32[144,128]{1,0:T(1,128)}', space=vmem, size = 0x12000, scoped, tag = 'internal scratch']
  %s0 = inlined_call_operand.vmem [shape: f32[16,8], index: 0, kind: input, shape index: {}]
  %s1 = inlined_call_operand.vmem [shape: f32[8,6], index: 1, kind: input, shape index: {}]
  %s2 = inlined_call_operand.vmem [shape: f32[1,6], index: 2, kind: input, shape index: {}]
  %s3 = inlined_call_operand.vmem [shape: f32[16,6], index: 3, kind: output, shape index: {}]
  %s4 = sld [smem:[#allocation0]]
  $region22: #{baseline_network_forward.19} parent=0
    _
  %s6 = ssub.s32 1, %s4
  %s7 = scalar_select 0, %s6, %s4
  // Predicated region
  $region2: #{baseline_network_forward.19} parent=0 // pred_check
    _
  $region3: #{baseline_network_forward.19} parent=0 // pred_check_branch
    %9 = sbr.rel (0) target = $region5
  $region4: #{baseline_network_forward.19} parent=0 // pred_region
    _
  $region5: #{baseline_network_forward.19} parent=0 // pred_fallthru
    _
  // Predicated region
  $region6: #{baseline_network_forward.19} parent=0 // pred_check
    _
  $region7: #{baseline_network_forward.19} parent=0 // pred_check_branch
    %11 = sbr.rel (0) target = $region9
  $region8: #{baseline_network_forward.19} parent=0 // pred_region
    _
  $region9: #{baseline_network_forward.19} parent=0 // pred_fallthru
    _
  // Predicated region
  $region10: #{baseline_network_forward.19} parent=0 // pred_check
    _
  $region11: #{baseline_network_forward.19} parent=0 // pred_check_branch
    %13 = sbr.rel (0) target = $region13
  $region12: #{baseline_network_forward.19} parent=0 // pred_region
    _
  $region13: #{baseline_network_forward.19} parent=0 // pred_fallthru
    _
  %v14 = vld [vmem:[%s0] sm:$0xff]
  %v15 = vld [vmem:[%s0 + $0x8] sm:$0xff]
  %v16 = vld [vmem:[%s1] sm:$0xff]
  %v17 = vld [vmem:[%s2] sm:$0x1]
  %v19 = vlaneseq
  %v20 = vshrl.u32 %v19, 7
  %v21 = vsub.s32 0, %v20
  %v22 = vrot.slane %v17, %v21
  %vm24 = vcmask 64512
  %v26 = vsel %vm24, %v14, 0
  %v29 = vsel %vm24, %v15, 0
  %31 = vmatprep.subr.mxu0 0.0
  %32 = vmatpush1.msra.mxu0 %v16
  %33 = vmatprep.subr.mxu0 0.0
  %34 = vmatpush1.msra.mxu0 0.0
  %35 = vmatprep.subr.mxu0 0.0
  %36 = vmatpush1.msra.mxu0 0.0
  %37 = vmatprep.subr.mxu0 0.0
  %38 = vmatpush1.msra.mxu0 0.0
  %39 = vmatprep.subr.mxu0 0.0
  %40 = vmatpush1.msra.mxu0 0.0
  %41 = vmatprep.subr.mxu0 0.0
  %42 = vmatpush1.msra.mxu0 0.0
  %43 = vmatprep.subr.mxu0 0.0
  %44 = vmatpush1.msra.mxu0 0.0
  %45 = vmatprep.subr.mxu0 0.0
  %46 = vmatpush1.msra.mxu0 0.0
  %47 = vmatprep.subr.mxu0 0.0
  %48 = vmatpush1.msra.mxu0 0.0
  %49 = vmatprep.subr.mxu0 0.0
  %50 = vmatpush1.msra.mxu0 0.0
  %51 = vmatprep.subr.mxu0 0.0
  %52 = vmatpush1.msra.mxu0 0.0
  %53 = vmatprep.subr.mxu0 0.0
  %54 = vmatpush1.msra.mxu0 0.0
  %55 = vmatprep.subr.mxu0 0.0
  %56 = vmatpush1.msra.mxu0 0.0
  %57 = vmatprep.subr.mxu0 0.0
  %58 = vmatpush1.msra.mxu0 0.0
  %59 = vmatprep.subr.mxu0 0.0
  %60 = vmatpush1.msra.mxu0 0.0
  %61 = vmatprep.subr.mxu0 0.0
  %62 = vmatpush1.msra.mxu0 0.0
  %63 = vmatprep.subr.mxu0 0.0
  %64 = vmatpush1.msra.mxu0 0.0
  %65 = vmatprep.subr.mxu0 0.0
  %66 = vmatpush1.msra.mxu0 0.0
  %67 = vmatprep.subr.mxu0 0.0
  %68 = vmatpush1.msra.mxu0 0.0
  %69 = vmatprep.subr.mxu0 0.0
  %70 = vmatpush1.msra.mxu0 0.0
  %71 = vmatprep.subr.mxu0 0.0
  %72 = vmatpush1.msra.mxu0 0.0
  %73 = vmatprep.subr.mxu0 0.0
  %74 = vmatpush1.msra.mxu0 0.0
  %75 = vmatprep.subr.mxu0 0.0
  %76 = vmatpush1.msra.mxu0 0.0
  %77 = vmatprep.subr.mxu0 0.0
  %78 = vmatpush1.msra.mxu0 0.0
  %79 = vmatprep.subr.mxu0 0.0
  %80 = vmatpush1.msra.mxu0 0.0
  %81 = vmatprep.subr.mxu0 0.0
  %82 = vmatpush1.msra.mxu0 0.0
  %83 = vmatprep.subr.mxu0 0.0
  %84 = vmatpush1.msra.mxu0 0.0
  %85 = vmatprep.subr.mxu0 0.0
  %86 = vmatpush1.msra.mxu0 0.0
  %87 = vmatprep.subr.mxu0 0.0
  %88 = vmatpush1.msra.mxu0 0.0
  %89 = vmatprep.subr.mxu0 0.0
  %90 = vmatpush1.msra.mxu0 0.0
  %91 = vmatprep.subr.mxu0 0.0
  %92 = vmatpush1.msra.mxu0 0.0
  %93 = vmatprep.subr.mxu0 0.0
  %94 = vmatpush1.msra.mxu0 0.0
  %95 = vmatprep.mubr.f32.mxu0 0.0
  %96 = vmatmul.mubr.f32.gmra.mrb[0].mxu0 %v26
  %v97 = vpop.f32.mrb[0].mxu0
  %v98 = vadd.f32 %v22, %v97
  %v99 = vpop.f32.mrb[0].mxu0
  %100 = vmatprep.mubr.f32.mxu0 0.0
  %101 = vmatmul.mubr.f32.gmra.mrb[0].mxu0 %v29
  %v102 = vpop.f32.mrb[0].mxu0
  %v103 = vadd.f32 %v22, %v102
  %v104 = vpop.f32.mrb[0].mxu0
  %105 = vdwg.mxu0
  %vm106 = vcmask 48128
  %107 = vst.msk [vmem:[%s3] sm:$0xff] %vm106, %v98
  %108 = vst.msk [vmem:[%s3 + $0x8] sm:$0xff] %vm106, %v103
  // Predicated region
  $region14: #{baseline_network_forward.19} parent=0 // pred_check
    _
  $region15: #{baseline_network_forward.19} parent=0 // pred_check_branch
    %110 = sbr.rel (0) target = $region17
  $region16: #{baseline_network_forward.19} parent=0 // pred_region
    _
  $region17: #{baseline_network_forward.19} parent=0 // pred_fallthru
    _
  // Predicated region
  $region18: #{baseline_network_forward.19} parent=0 // pred_check
    _
  $region19: #{baseline_network_forward.19} parent=0 // pred_check_branch
    %112 = sbr.rel (0) target = $region21
  $region20: #{baseline_network_forward.19} parent=0 // pred_region
    _
  $region21: #{baseline_network_forward.19} parent=0 // pred_fallthru
    _

// kernel: baseline_network_forward.20
$region0: #{baseline_network_forward.20}
  #allocation0 [shape = 'u32[]', space=smem, size = 0x4, offset = 0x4, fixed_abs, tag = 'smem constant byte address 0x4 - core index']
  #allocation1 [shape = 'u32[144,128]{1,0:T(1,128)}', space=vmem, size = 0x12000, scoped, tag = 'internal scratch']
  %s0 = inlined_call_operand.vmem [shape: f32[2,8,3], index: 0, kind: input, shape index: {}]
  %s1 = inlined_call_operand.vmem [shape: f32[2,3,8], index: 1, kind: input, shape index: {}]
  %s2 = inlined_call_operand.vmem [shape: f32[2,2,8,8], index: 2, kind: input, shape index: {}]
  %s3 = inlined_call_operand.vmem [shape: f32[2,3], index: 3, kind: input, shape index: {}]
  %s4 = inlined_call_operand.vmem [shape: f32[3], index: 4, kind: input, shape index: {}]
  %s5 = inlined_call_operand.vmem [shape: f32[3,3], index: 5, kind: input, shape index: {}]
  %s6 = inlined_call_operand.vmem [shape: f32[3], index: 6, kind: input, shape index: {}]
  %s7 = inlined_call_operand.vmem [shape: f32[2,3,8,8], index: 7, kind: output, shape index: {}]
  %s8 = sld [smem:[#allocation0]]
  $region77: #{baseline_network_forward.20} parent=0
    _
  %s10 = ssub.s32 1, %s8
  %s11 = scalar_select 0, %s10, %s8
  $region1: #{baseline_network_forward.20} parent=0
    #allocation2 [shape = 'u8[1024]{0}', space=smem, size = 0x400, scoped, tag = 'input window, operand 3, single buffered']
    #allocation3 [shape = 's32[2]{0}', space=sflag, size = 0x8, scoped, tag = 'scoped memory for baseline_network_forward.20']
    #allocation4 [shape = 'u8[512]{0}', space=smem, size = 0x200, scoped, tag = 'input window, operand 4, single buffered']
    #allocation5 [shape = 's32[1]{0}', space=sflag, size = 0x4, scoped, tag = 'scoped memory for baseline_network_forward.20']
    #allocation6 [shape = 'u8[2048]{0}', space=smem, size = 0x800, scoped, tag = 'input window, operand 5, single buffered']
    #allocation7 [shape = 'u8[512]{0}', space=smem, size = 0x200, scoped, tag = 'input window, operand 6, single buffered']
    #allocation8 [shape = 's32[1]{0}', space=sflag, size = 0x4, scoped, tag = 'scoped memory for baseline_network_forward.20']
    %12 = vsyncpa [#allocation3], 0
    %13 = vsyncpa [#allocation5], 0
    %14 = vsyncpa [#allocation8], 0
    loop: start=0, step=1, limit=4
    $region2: #{baseline_network_forward.20} parent=1 // loop_pre_header
      _
    $region3: #{baseline_network_forward.20} parent=1 // loop_header
      %s16 = sphi 0, %s20
      %p17 = scmp.ge.s32.totalorder %s16, 4
      %s23 = sphi 0, %s35
      %s24 = sphi 0, %s31
      %s25 = sphi 0, %s23
      %s26 = sphi 0, %s24
      %s27 = sphi 0, %s25
      %s28 = sphi 0, %s26
      %s40 = sphi 0, %s42
      %s43 = sphi 0, %s40
      %s44 = sphi 0, %s43
      %s60 = sphi 0, %s44
      %s66 = sphi 0, %s68
      %s69 = sphi 0, %s66
      %s70 = sphi 0, %s69
      %s86 = sphi 0, %s70
      %s94 = sphi 0, %s96
      %s97 = sphi 0, %s94
      %s98 = sphi 0, %s97
      %s114 = sphi 0, %s98
      %s118 = sphi 0, %s118
      %s120 = sphi 0, %s118
      %s121 = sphi 0, %s120
      %s135 = sphi 0, %s121
      %s139 = sphi 0, %s139
      %s141 = sphi 0, %s139
      %s142 = sphi 0, %s141
      %s156 = sphi 0, %s142
      %s160 = sphi 0, %s160
      %s162 = sphi 0, %s160
      %s163 = sphi 0, %s162
      %s177 = sphi 0, %s163
      %s181 = sphi 0, %s181
      %s183 = sphi 0, %s181
      %s184 = sphi 0, %s183
      %s198 = sphi 0, %s184
      %s206 = sphi 0, %s208
      %s209 = sphi 0, %s206
      %s210 = sphi 0, %s209
      %s226 = sphi 0, %s210
    $region4: #{baseline_network_forward.20} parent=1 // loop_header_branch
      %19 = sbr.rel (%p17) target = $region8
    $region5: #{baseline_network_forward.20} parent=1 // loop_body
      %s21 = ssub.s32 %s16, 1
      %s22 = ssub.s32 %s16, 2
      %s29 = sadd.s32 1, %s24
      %p30 = scmp.ge.s32.totalorder %s29, 1
      %s31 = scalar_select %p30, 0, %s29
      %s32 = sadd.s32 1, %s23
      %s33 = scalar_select %p30, %s32, %s23
      %p34 = scmp.ge.s32.totalorder %s33, 2
      %s35 = scalar_select %p34, 0, %s33
      %s36 = ssub.s32 %s23, %s35
      %s37 = ssub.s32 %s24, %s31
      %s38 = sor.u32 %s36, %s37
      %p39 = scmp.eq.s32.totalorder %s38, 0
      %s41 = sadd.s32 %s40, 1
      %s42 = scalar_select %p39, %s40, %s41
      %p45 = pneg %p39
      %p46 = scmp.eq.s32.totalorder %s16, 1
      %p47 = por %p45, %p46
      %p48 = scmp.ne.s32.totalorder %s40, %s43
      %p49 = scmp.eq.s32.totalorder %s16, 0
      %p50 = por %p48, %p49
      %p51 = scmp.ne.s32.totalorder %s40, %s43
      %p52 = scmp.eq.s32.totalorder %s21, 1
      %p53 = por %p51, %p52
      %p54 = scmp.ne.s32.totalorder %s43, %s44
      %p55 = scmp.eq.s32.totalorder %s21, 0
      %p56 = por %p54, %p55
      %p57 = scmp.ne.s32.totalorder %s43, %s44
      %p58 = scmp.eq.s32.totalorder %s22, 1
      %p59 = por %p57, %p58
      %p61 = scmp.ne.s32.totalorder %s44, %s60
      %p62 = scmp.eq.s32.totalorder %s22, 0
      %p63 = por %p61, %p62
      %s64 = ssub.s32 %s23, %s35
      %p65 = scmp.eq.s32.totalorder %s64, 0
      %s67 = sadd.s32 %s66, 1
      %s68 = scalar_select %p65, %s66, %s67
      %p71 = pneg %p65
      %p72 = scmp.eq.s32.totalorder %s16, 1
      %p73 = por %p71, %p72
      %p74 = scmp.ne.s32.totalorder %s66, %s69
      %p75 = scmp.eq.s32.totalorder %s16, 0
      %p76 = por %p74, %p75
      %p77 = scmp.ne.s32.totalorder %s66, %s69
      %p78 = scmp.eq.s32.totalorder %s21, 1
      %p79 = por %p77, %p78
      %p80 = scmp.ne.s32.totalorder %s69, %s70
      %p81 = scmp.eq.s32.totalorder %s21, 0
      %p82 = por %p80, %p81
      %p83 = scmp.ne.s32.totalorder %s69, %s70
      %p84 = scmp.eq.s32.totalorder %s22, 1
      %p85 = por %p83, %p84
      %p87 = scmp.ne.s32.totalorder %s70, %s86
      %p88 = scmp.eq.s32.totalorder %s22, 0
      %p89 = por %p87, %p88
      %s90 = ssub.s32 %s23, %s35
      %s91 = ssub.s32 %s24, %s31
      %s92 = sor.u32 %s90, %s91
      %p93 = scmp.eq.s32.totalorder %s92, 0
      %s95 = sadd.s32 %s94, 1
      %s96 = scalar_select %p93, %s94, %s95
      %p99 = pneg %p93
      %p100 = scmp.eq.s32.totalorder %s16, 1
      %p101 = por %p99, %p100
      %p102 = scmp.ne.s32.totalorder %s94, %s97
      %p103 = scmp.eq.s32.totalorder %s16, 0
      %p104 = por %p102, %p103
      %p105 = scmp.ne.s32.totalorder %s94, %s97
      %p106 = scmp.eq.s32.totalorder %s21, 1
      %p107 = por %p105, %p106
      %p108 = scmp.ne.s32.totalorder %s97, %s98
      %p109 = scmp.eq.s32.totalorder %s21, 0
      %p110 = por %p108, %p109
      %p111 = scmp.ne.s32.totalorder %s97, %s98
      %p112 = scmp.eq.s32.totalorder %s22, 1
      %p113 = por %p111, %p112
      %p115 = scmp.ne.s32.totalorder %s98, %s114
      %p116 = scmp.eq.s32.totalorder %s22, 0
      %p117 = por %p115, %p116
      %s119 = sadd.s32 %s118, 1
      %p122 = scmp.eq.s32.totalorder %s16, 1
      %p123 = scmp.ne.s32.totalorder %s118, %s120
      %p124 = scmp.eq.s32.totalorder %s16, 0
      %p125 = por %p123, %p124
      %p126 = scmp.ne.s32.totalorder %s118, %s120
      %p127 = scmp.eq.s32.totalorder %s21, 1
      %p128 = por %p126, %p127
      %p129 = scmp.ne.s32.totalorder %s120, %s121
      %p130 = scmp.eq.s32.totalorder %s21, 0
      %p131 = por %p129, %p130
      %p132 = scmp.ne.s32.totalorder %s120, %s121
      %p133 = scmp.eq.s32.totalorder %s22, 1
      %p134 = por %p132, %p133
      %p136 = scmp.ne.s32.totalorder %s121, %s135
      %p137 = scmp.eq.s32.totalorder %s22, 0
      %p138 = por %p136, %p137
      %s140 = sadd.s32 %s139, 1
      %p143 = scmp.eq.s32.totalorder %s16, 1
      %p144 = scmp.ne.s32.totalorder %s139, %s141
      %p145 = scmp.eq.s32.totalorder %s16, 0
      %p146 = por %p144, %p145
      %p147 = scmp.ne.s32.totalorder %s139, %s141
      %p148 = scmp.eq.s32.totalorder %s21, 1
      %p149 = por %p147, %p148
      %p150 = scmp.ne.s32.totalorder %s141, %s142
      %p151 = scmp.eq.s32.totalorder %s21, 0
      %p152 = por %p150, %p151
      %p153 = scmp.ne.s32.totalorder %s141, %s142
      %p154 = scmp.eq.s32.totalorder %s22, 1
      %p155 = por %p153, %p154
      %p157 = scmp.ne.s32.totalorder %s142, %s156
      %p158 = scmp.eq.s32.totalorder %s22, 0
      %p159 = por %p157, %p158
      %s161 = sadd.s32 %s160, 1
      %p164 = scmp.eq.s32.totalorder %s16, 1
      %p165 = scmp.ne.s32.totalorder %s160, %s162
      %p166 = scmp.eq.s32.totalorder %s16, 0
      %p167 = por %p165, %p166
      %p168 = scmp.ne.s32.totalorder %s160, %s162
      %p169 = scmp.eq.s32.totalorder %s21, 1
      %p170 = por %p168, %p169
      %p171 = scmp.ne.s32.totalorder %s162, %s163
      %p172 = scmp.eq.s32.totalorder %s21, 0
      %p173 = por %p171, %p172
      %p174 = scmp.ne.s32.totalorder %s162, %s163
      %p175 = scmp.eq.s32.totalorder %s22, 1
      %p176 = por %p174, %p175
      %p178 = scmp.ne.s32.totalorder %s163, %s177
      %p179 = scmp.eq.s32.totalorder %s22, 0
      %p180 = por %p178, %p179
      %s182 = sadd.s32 %s181, 1
      %p185 = scmp.eq.s32.totalorder %s16, 1
      %p186 = scmp.ne.s32.totalorder %s181, %s183
      %p187 = scmp.eq.s32.totalorder %s16, 0
      %p188 = por %p186, %p187
      %p189 = scmp.ne.s32.totalorder %s181, %s183
      %p190 = scmp.eq.s32.totalorder %s21, 1
      %p191 = por %p189, %p190
      %p192 = scmp.ne.s32.totalorder %s183, %s184
      %p193 = scmp.eq.s32.totalorder %s21, 0
      %p194 = por %p192, %p193
      %p195 = scmp.ne.s32.totalorder %s183, %s184
      %p196 = scmp.eq.s32.totalorder %s22, 1
      %p197 = por %p195, %p196
      %p199 = scmp.ne.s32.totalorder %s184, %s198
      %p200 = scmp.eq.s32.totalorder %s22, 0
      %p201 = por %p199, %p200
      %s202 = ssub.s32 %s23, %s35
      %s203 = ssub.s32 %s24, %s31
      %s204 = sor.u32 %s202, %s203
      %p205 = scmp.eq.s32.totalorder %s204, 0
      %s207 = sadd.s32 %s206, 1
      %s208 = scalar_select %p205, %s206, %s207
      %p211 = pneg %p205
      %p212 = scmp.eq.s32.totalorder %s16, 1
      %p213 = por %p211, %p212
      %p214 = scmp.ne.s32.totalorder %s206, %s209
      %p215 = scmp.eq.s32.totalorder %s16, 0
      %p216 = por %p214, %p215
      %p217 = scmp.ne.s32.totalorder %s206, %s209
      %p218 = scmp.eq.s32.totalorder %s21, 1
      %p219 = por %p217, %p218
      %p220 = scmp.ne.s32.totalorder %s209, %s210
      %p221 = scmp.eq.s32.totalorder %s21, 0
      %p222 = por %p220, %p221
      %p223 = scmp.ne.s32.totalorder %s209, %s210
      %p224 = scmp.eq.s32.totalorder %s22, 1
      %p225 = por %p223, %p224
      %p227 = scmp.ne.s32.totalorder %s210, %s226
      %p228 = scmp.eq.s32.totalorder %s22, 0
      %p229 = por %p227, %p228
      %p230 = scmp.le.s32.totalorder 1, %s16
      %p231 = scmp.lt.s32.totalorder %s16, 3
      %p232 = pnand %p230, %p231
      %p233 = pneg %p232
      // Predicated region
      $region9: #{baseline_network_forward.20} parent=5 // pred_check
        _
      $region10: #{baseline_network_forward.20} parent=5 // pred_check_branch
        %235 = sbr.rel (%p232) target = $region12
      $region11: #{baseline_network_forward.20} parent=5 // pred_region
        %s236 = ssub.s32 %s16, 1
        // Predicated region
        $region13: #{baseline_network_forward.20} parent=11 // pred_check
          %p237 = pneg %p131
        $region14: #{baseline_network_forward.20} parent=11 // pred_check_branch
          %239 = sbr.rel (%p237) target = $region16
        $region15: #{baseline_network_forward.20} parent=11 // pred_region
          %s241 = ssub.s32 32, 32
          %242 = vsyncadd [#allocation3], %s241
          %s244 = sshll.u32 %s3, 4
          %s245 = int_to_ptr.vmem [resolvable:$true] %s244
          %247 = dma.vmem_to_smem %s245, 32, [#allocation2], [#allocation3]
        $region16: #{baseline_network_forward.20} parent=11 // pred_fallthru
          _
        // Predicated region
        $region17: #{baseline_network_forward.20} parent=11 // pred_check
          %p248 = pneg %p152
        $region18: #{baseline_network_forward.20} parent=11 // pred_check_branch
          %250 = sbr.rel (%p248) target = $region20
        $region19: #{baseline_network_forward.20} parent=11 // pred_region
          %s252 = ssub.s32 16, 16
          %253 = vsyncadd [#allocation5], %s252
          %s255 = sshll.u32 %s4, 4
          %s256 = int_to_ptr.vmem [resolvable:$true] %s255
          %258 = dma.vmem_to_smem %s256, 16, [#allocation4], [#allocation5]
        $region20: #{baseline_network_forward.20} parent=11 // pred_fallthru
          _
        // Predicated region
        $region21: #{baseline_network_forward.20} parent=11 // pred_check
          %p259 = pneg %p173
        $region22: #{baseline_network_forward.20} parent=11 // pred_check_branch
          %261 = sbr.rel (%p259) target = $region24
        $region23: #{baseline_network_forward.20} parent=11 // pred_region
          %s263 = ssub.s32 64, 64
          %264 = vsyncadd [#allocation5], %s263
          %s266 = sshll.u32 %s5, 4
          %s267 = int_to_ptr.vmem [resolvable:$true] %s266
          %269 = dma.vmem_to_smem %s267, 64, [#allocation6], [#allocation5]
        $region24: #{baseline_network_forward.20} parent=11 // pred_fallthru
          _
        // Predicated region
        $region25: #{baseline_network_forward.20} parent=11 // pred_check
          %p270 = pneg %p194
        $region26: #{baseline_network_forward.20} parent=11 // pred_check_branch
          %272 = sbr.rel (%p270) target = $region28
        $region27: #{baseline_network_forward.20} parent=11 // pred_region
          %s274 = ssub.s32 16, 16
          %275 = vsyncadd [#allocation8], %s274
          %s277 = sshll.u32 %s6, 4
          %s278 = int_to_ptr.vmem [resolvable:$true] %s277
          %280 = dma.vmem_to_smem %s278, 16, [#allocation7], [#allocation8]
        $region28: #{baseline_network_forward.20} parent=11 // pred_fallthru
          _
      $region12: #{baseline_network_forward.20} parent=5 // pred_fallthru
        _
      %p281 = scmp.lt.s32.totalorder %s16, 2
      // Predicated region
      $region29: #{baseline_network_forward.20} parent=5 // pred_check
        %p282 = pneg %p281
      $region30: #{baseline_network_forward.20} parent=5 // pred_check_branch
        %284 = sbr.rel (%p282) target = $region32
      $region31: #{baseline_network_forward.20} parent=5 // pred_region
        // Predicated region
        $region33: #{baseline_network_forward.20} parent=31 // pred_check
          %p285 = pneg %p50
        $region34: #{baseline_network_forward.20} parent=31 // pred_check_branch
          %287 = sbr.rel (%p285) target = $region36
        $region35: #{baseline_network_forward.20} parent=31 // pred_region
          %p288 = scmp.lt.s32.totalorder %s23, 1
          %s289 = scalar_select %p288, %s23, 1
          %p290 = scmp.lt.s32.totalorder %s24, 0
          %s291 = scalar_select %p290, %s24, 0
          %s292 = sadd.s32 %s291, %s289
          %s293 = smul.addr %s292, 8
          %s294 = scalar_lea.vmem %s0, %s293
        $region36: #{baseline_network_forward.20} parent=31 // pred_fallthru
          _
        // Predicated region
        $region37: #{baseline_network_forward.20} parent=31 // pred_check
          %p295 = pneg %p76
        $region38: #{baseline_network_forward.20} parent=31 // pred_check_branch
          %297 = sbr.rel (%p295) target = $region40
        $region39: #{baseline_network_forward.20} parent=31 // pred_region
          %p298 = scmp.lt.s32.totalorder %s23, 1
          %s299 = scalar_select %p298, %s23, 1
          %s300 = smul.addr %s299, 4
          %s301 = scalar_lea.vmem %s1, %s300
        $region40: #{baseline_network_forward.20} parent=31 // pred_fallthru
          _
        // Predicated region
        $region41: #{baseline_network_forward.20} parent=31 // pred_check
          %p302 = pneg %p104
        $region42: #{baseline_network_forward.20} parent=31 // pred_check_branch
          %304 = sbr.rel (%p302) target = $region44
        $region43: #{baseline_network_forward.20} parent=31 // pred_region
          %p305 = scmp.lt.s32.totalorder %s23, 1
          %s306 = scalar_select %p305, %s23, 1
          %p307 = scmp.lt.s32.totalorder %s24, 0
          %s308 = scalar_select %p307, %s24, 0
          %s309 = smul.addr %s306, 2
          %s310 = sadd.s32 %s308, %s309
          %s311 = smul.addr %s310, 8
          %s312 = scalar_lea.vmem %s2, %s311
        $region44: #{baseline_network_forward.20} parent=31 // pred_fallthru
          _
      $region32: #{baseline_network_forward.20} parent=5 // pred_fallthru
        _
      %p313 = scmp.le.s32.totalorder 1, %s16
      %p314 = scmp.lt.s32.totalorder %s16, 3
      %p315 = pnand %p313, %p314
      %p316 = pneg %p315
      // Predicated region
      $region45: #{baseline_network_forward.20} parent=5 // pred_check
        _
      $region46: #{baseline_network_forward.20} parent=5 // pred_check_branch
        %318 = sbr.rel (%p315) target = $region48
      $region47: #{baseline_network_forward.20} parent=5 // pred_region
        %s319 = ssub.s32 %s16, 1
        // Predicated region
        $region49: #{baseline_network_forward.20} parent=47 // pred_check
          %p320 = pneg %p131
        $region50: #{baseline_network_forward.20} parent=47 // pred_check_branch
          %322 = sbr.rel (%p320) target = $region52
        $region51: #{baseline_network_forward.20} parent=47 // pred_region
          %323 = dma.done [#allocation3], 32
        $region52: #{baseline_network_forward.20} parent=47 // pred_fallthru
          _
        // Predicated region
        $region53: #{baseline_network_forward.20} parent=47 // pred_check
          %p324 = pneg %p152
        $region54: #{baseline_network_forward.20} parent=47 // pred_check_branch
          %326 = sbr.rel (%p324) target = $region56
        $region55: #{baseline_network_forward.20} parent=47 // pred_region
          %327 = dma.done [#allocation5], 16
        $region56: #{baseline_network_forward.20} parent=47 // pred_fallthru
          _
        // Predicated region
        $region57: #{baseline_network_forward.20} parent=47 // pred_check
          %p328 = pneg %p173
        $region58: #{baseline_network_forward.20} parent=47 // pred_check_branch
          %330 = sbr.rel (%p328) target = $region60
        $region59: #{baseline_network_forward.20} parent=47 // pred_region
          %331 = dma.done [#allocation5], 64
        $region60: #{baseline_network_forward.20} parent=47 // pred_fallthru
          _
        // Predicated region
        $region61: #{baseline_network_forward.20} parent=47 // pred_check
          %p332 = pneg %p194
        $region62: #{baseline_network_forward.20} parent=47 // pred_check_branch
          %334 = sbr.rel (%p332) target = $region64
        $region63: #{baseline_network_forward.20} parent=47 // pred_region
          %335 = dma.done [#allocation8], 16
        $region64: #{baseline_network_forward.20} parent=47 // pred_fallthru
          _
        %336 = sfence
        %p337 = scmp.lt.s32.totalorder %s25, 1
        %s338 = scalar_select %p337, %s25, 1
        %p339 = scmp.lt.s32.totalorder %s26, 0
        %s340 = scalar_select %p339, %s26, 0
        %s341 = sadd.s32 %s340, %s338
        %s342 = smul.addr %s341, 8
        %s343 = scalar_lea.vmem %s0, %s342
        %p344 = pneg %p56
        %p345 = pneg %p53
        %p346 = scmp.lt.s32.totalorder %s25, 1
        %s347 = scalar_select %p346, %s25, 1
        %s348 = smul.addr %s347, 4
        %s349 = scalar_lea.vmem %s1, %s348
        %p350 = pneg %p82
        %p351 = pneg %p79
        %p352 = scmp.lt.s32.totalorder %s25, 1
        %s353 = scalar_select %p352, %s25, 1
        %p354 = scmp.lt.s32.totalorder %s26, 0
        %s355 = scalar_select %p354, %s26, 0
        %s356 = smul.addr %s353, 2
        %s357 = sadd.s32 %s355, %s356
        %s358 = smul.addr %s357, 8
        %s359 = scalar_lea.vmem %s2, %s358
        %p360 = pneg %p110
        %p361 = pneg %p107
        %p362 = pneg %p131
        %p363 = pneg %p128
        %p364 = pneg %p152
        %p365 = pneg %p149
        %p366 = pneg %p173
        %p367 = pneg %p170
        %p368 = pneg %p194
        %p369 = pneg %p191
        %p370 = pneg %p222
        %p371 = pneg %p219
        %p372 = scmp.lt.s32.totalorder %s25, 1
        %s373 = scalar_select %p372, %s25, 1
        %p374 = scmp.lt.s32.totalorder %s26, 0
        %s375 = scalar_select %p374, %s26, 0
        %s376 = smul.addr %s373, 3
        %s377 = sadd.s32 %s375, %s376
        %s378 = smul.addr %s377, 8
        %s379 = scalar_lea.vmem %s7, %s378
        %p380 = scmp.lt.s32.totalorder %s25, 1
        %s381 = scalar_select %p380, %s25, 1
        %p382 = scmp.lt.s32.totalorder %s26, 0
        %s383 = scalar_select %p382, %s26, 0
        %s384 = sadd.s32 %s383, %s381
        %s385 = smul.addr %s384, 8
        %s386 = scalar_lea.vmem %s0, %s385
        %p387 = scmp.lt.s32.totalorder %s25, 1
        %s388 = scalar_select %p387, %s25, 1
        %s389 = smul.addr %s388, 4
        %s390 = scalar_lea.vmem %s1, %s389
        %p391 = scmp.lt.s32.totalorder %s25, 1
        %s392 = scalar_select %p391, %s25, 1
        %p393 = scmp.lt.s32.totalorder %s26, 0
        %s394 = scalar_select %p393, %s26, 0
        %s395 = smul.addr %s392, 2
        %s396 = sadd.s32 %s394, %s395
        %s397 = smul.addr %s396, 8
        %s398 = scalar_lea.vmem %s2, %s397
        %p399 = scmp.lt.s32.totalorder %s25, 1
        %s400 = scalar_select %p399, %s25, 1
        %p401 = scmp.lt.s32.totalorder %s26, 0
        %s402 = scalar_select %p401, %s26, 0
        %s403 = smul.addr %s400, 3
        %s404 = sadd.s32 %s402, %s403
        %s405 = smul.addr %s404, 8
        %s406 = scalar_lea.vmem %s7, %s405
        %v407 = vld [vmem:[%s386] sm:$0xff]
        %v408 = vld [vmem:[%s390] sm:$0x1]
        %410 = vset.pattern.permute.xlu0 0
        %411 = vperm.xlu0 %410, %v407
        %v412 = vpop.permute.xlu0 %411
        %v414 = vlaneseq
        %v415 = vshrl.u32 %v414, 7
        %v416 = vsub.s32 0, %v415
        %v417 = vrot.slane %v408, %v416
        %v418 = vadd.f32 %v412, %v417
        %s419 = sld [smem:[#allocation4]]
        %v420 = vstv %s419
        %v421 = vadd.f32 %v418, %v420
        %s422 = sld [smem:[#allocation2]]
        %v423 = vld [vmem:[%s398] sm:$0xff]
        %v424 = vstv %s422
        %v425 = vmul.f32 %v424, %v423
        %v426 = vadd.f32 %v421, %v425
        %s427 = sld [smem:[#allocation2 + $0x80]]
        %s428 = scalar_lea.vmem %s398, 8
        %v429 = vld [vmem:[%s428] sm:$0xff]
        %v430 = vstv %s427
        %v431 = vmul.f32 %v430, %v429
        %v432 = vadd.f32 %v426, %v431
        %v433 = vld [vmem:[%s390 + $0x1] sm:$0x1]
        %434 = vset.pattern.permute.xlu0 1
        %435 = vperm.xlu0 %434, %v407
        %v436 = vpop.permute.xlu0 %435
        %v438 = vlaneseq
        %v439 = vshrl.u32 %v438, 7
        %v440 = vsub.s32 0, %v439
        %v441 = vrot.slane %v433, %v440
        %v442 = vadd.f32 %v436, %v441
        %s443 = sld [smem:[#allocation4 + $0x1]]
        %v444 = vstv %s443
        %v445 = vadd.f32 %v442, %v444
        %s446 = sld [smem:[#allocation2 + $0x1]]
        %v447 = vstv %s446
        %v448 = vmul.f32 %v447, %v423
        %v449 = vadd.f32 %v445, %v448
        %s450 = sld [smem:[#allocation2 + $0x81]]
        %v451 = vstv %s450
        %v452 = vmul.f32 %v451, %v429
        %v453 = vadd.f32 %v449, %v452
        %v454 = vld [vmem:[%s390 + $0x2] sm:$0x1]
        %455 = vset.pattern.permute.xlu0 2
        %456 = vperm.xlu0 %455, %v407
        %v457 = vpop.permute.xlu0 %456
        %v459 = vlaneseq
        %v460 = vshrl.u32 %v459, 7
        %v461 = vsub.s32 0, %v460
        %v462 = vrot.slane %v454, %v461
        %v463 = vadd.f32 %v457, %v462
        %s464 = sld [smem:[#allocation4 + $0x2]]
        %v465 = vstv %s464
        %v466 = vadd.f32 %v463, %v465
        %s467 = sld [smem:[#allocation2 + $0x2]]
        %v468 = vstv %s467
        %v469 = vmul.f32 %v468, %v423
        %v470 = vadd.f32 %v466, %v469
        %s471 = sld [smem:[#allocation2 + $0x82]]
        %v472 = vstv %s471
        %v473 = vmul.f32 %v472, %v429
        %v474 = vadd.f32 %v470, %v473
        %vm475 = vcmp.gt.f32.partialorder %v432, 0.0
        %v476 = vmin.f32 %v432, 0.0
        %v477 = vmul.f32 %v476, 1.442695
        %v478 = vpow.pop %v477
        %v479 = vsub.f32 %v478, 1.0
        %v480 = vsel %vm475, %v432, %v479
        %vm481 = vcmp.gt.f32.partialorder %v453, 0.0
        %v482 = vmin.f32 %v453, 0.0
        %v483 = vmul.f32 %v482, 1.442695
        %v484 = vpow.pop %v483
        %v485 = vsub.f32 %v484, 1.0
        %v486 = vsel %vm481, %v453, %v485
        %vm487 = vcmp.gt.f32.partialorder %v474, 0.0
        %v488 = vmin.f32 %v474, 0.0
        %v489 = vmul.f32 %v488, 1.442695
        %v490 = vpow.pop %v489
        %v491 = vsub.f32 %v490, 1.0
        %v492 = vsel %vm487, %v474, %v491
        %s493 = sld [smem:[#allocation7]]
        %s494 = sld [smem:[#allocation6]]
        %v495 = vstv %s494
        %v496 = vmul.f32 %v495, %v480
        %v497 = vstv %s493
        %v498 = vadd.f32 %v497, %v496
        %s499 = sld [smem:[#allocation6 + $0x80]]
        %v500 = vstv %s499
        %v501 = vmul.f32 %v500, %v486
        %v502 = vadd.f32 %v498, %v501
        %s503 = sld [smem:[#allocation6 + $0x100]]
        %v504 = vstv %s503
        %v505 = vmul.f32 %v504, %v492
        %v506 = vadd.f32 %v502, %v505
        %s507 = sld [smem:[#allocation7 + $0x1]]
        %s508 = sld [smem:[#allocation6 + $0x1]]
        %v509 = vstv %s508
        %v510 = vmul.f32 %v509, %v480
        %v511 = vstv %s507
        %v512 = vadd.f32 %v511, %v510
        %s513 = sld [smem:[#allocation6 + $0x81]]
        %v514 = vstv %s513
        %v515 = vmul.f32 %v514, %v486
        %v516 = vadd.f32 %v512, %v515
        %s517 = sld [smem:[#allocation6 + $0x101]]
        %v518 = vstv %s517
        %v519 = vmul.f32 %v518, %v492
        %v520 = vadd.f32 %v516, %v519
        %s521 = sld [smem:[#allocation7 + $0x2]]
        %s522 = sld [smem:[#allocation6 + $0x2]]
        %v523 = vstv %s522
        %v524 = vmul.f32 %v523, %v480
        %v525 = vstv %s521
        %v526 = vadd.f32 %v525, %v524
        %s527 = sld [smem:[#allocation6 + $0x82]]
        %v528 = vstv %s527
        %v529 = vmul.f32 %v528, %v486
        %v530 = vadd.f32 %v526, %v529
        %s531 = sld [smem:[#allocation6 + $0x102]]
        %v532 = vstv %s531
        %v533 = vmul.f32 %v532, %v492
        %v534 = vadd.f32 %v530, %v533
        %vm535 = vcmask 64512
        %536 = vst.msk [vmem:[%s406] sm:$0xff] %vm535, %v506
        %s537 = scalar_lea.vmem %s406, 8
        %538 = vst.msk [vmem:[%s537] sm:$0xff] %vm535, %v520
        %s539 = scalar_lea.vmem %s406, 16
        %540 = vst.msk [vmem:[%s539] sm:$0xff] %vm535, %v534
        %p541 = scmp.lt.s32.totalorder %s25, 1
        %s542 = scalar_select %p541, %s25, 1
        %p543 = scmp.lt.s32.totalorder %s26, 0
        %s544 = scalar_select %p543, %s26, 0
        %s545 = smul.addr %s542, 3
        %s546 = sadd.s32 %s544, %s545
        %s547 = smul.addr %s546, 8
        %s548 = scalar_lea.vmem %s7, %s547
        // Predicated region
        $region65: #{baseline_network_forward.20} parent=47 // pred_check
          %p549 = pneg %p219
        $region66: #{baseline_network_forward.20} parent=47 // pred_check_branch
          %551 = sbr.rel (%p549) target = $region68
        $region67: #{baseline_network_forward.20} parent=47 // pred_region
          _
        $region68: #{baseline_network_forward.20} parent=47 // pred_fallthru
          _
      $region48: #{baseline_network_forward.20} parent=5 // pred_fallthru
        _
      %p552 = scmp.le.s32.totalorder 2, %s16
      // Predicated region
      $region69: #{baseline_network_forward.20} parent=5 // pred_check
        %p553 = pneg %p552
      $region70: #{baseline_network_forward.20} parent=5 // pred_check_branch
        %555 = sbr.rel (%p553) target = $region72
      $region71: #{baseline_network_forward.20} parent=5 // pred_region
        %s556 = ssub.s32 %s16, 2
        // Predicated region
        $region73: #{baseline_network_forward.20} parent=71 // pred_check
          %p557 = pneg %p225
        $region74: #{baseline_network_forward.20} parent=71 // pred_check_branch
          %559 = sbr.rel (%p557) target = $region76
        $region75: #{baseline_network_forward.20} parent=71 // pred_region
          %p560 = scmp.lt.s32.totalorder %s27, 1
          %s561 = scalar_select %p560, %s27, 1
          %p562 = scmp.lt.s32.totalorder %s28, 0
          %s563 = scalar_select %p562, %s28, 0
          %s564 = smul.addr %s561, 3
          %s565 = sadd.s32 %s563, %s564
          %s566 = smul.addr %s565, 8
          %s567 = scalar_lea.vmem %s7, %s566
        $region76: #{baseline_network_forward.20} parent=71 // pred_fallthru
          _
      $region72: #{baseline_network_forward.20} parent=5 // pred_fallthru
        _
    $region6: #{baseline_network_forward.20} parent=1 // loop_footer
      %s20 = sadd.s32 1, %s16
    $region7: #{baseline_network_forward.20} parent=1 // loop_footer_branch
      %15 = sbr.rel target = $region3
    $region8: #{baseline_network_forward.20} parent=1 // loop_exit
      _
    %568 = vsyncpa [#allocation3], 1
    %s569 = scalar_lea.sflag [#allocation3], 1
    %570 = vsyncpa %s569, 1
    %571 = vsyncpa [#allocation5], 1
    %572 = vsyncpa [#allocation8], 1

// kernel: baseline_network_forward.21
$region0: #{baseline_network_forward.21}
  #allocation0 [shape = 'u32[]', space=smem, size = 0x4, offset = 0x4, fixed_abs, tag = 'smem constant byte address 0x4 - core index']
  #allocation1 [shape = 'u32[144,128]{1,0:T(1,128)}', space=vmem, size = 0x12000, scoped, tag = 'internal scratch']
  %s0 = inlined_call_operand.vmem [shape: f32[16,8], index: 0, kind: input, shape index: {}]
  %s1 = inlined_call_operand.vmem [shape: f32[8,24], index: 1, kind: input, shape index: {}]
  %s2 = inlined_call_operand.vmem [shape: f32[1,24], index: 2, kind: input, shape index: {}]
  %s3 = inlined_call_operand.vmem [shape: f32[16,24], index: 3, kind: output, shape index: {}]
  %s4 = sld [smem:[#allocation0]]
  $region22: #{baseline_network_forward.21} parent=0
    _
  %s6 = ssub.s32 1, %s4
  %s7 = scalar_select 0, %s6, %s4
  // Predicated region
  $region2: #{baseline_network_forward.21} parent=0 // pred_check
    _
  $region3: #{baseline_network_forward.21} parent=0 // pred_check_branch
    %9 = sbr.rel (0) target = $region5
  $region4: #{baseline_network_forward.21} parent=0 // pred_region
    _
  $region5: #{baseline_network_forward.21} parent=0 // pred_fallthru
    _
  // Predicated region
  $region6: #{baseline_network_forward.21} parent=0 // pred_check
    _
  $region7: #{baseline_network_forward.21} parent=0 // pred_check_branch
    %11 = sbr.rel (0) target = $region9
  $region8: #{baseline_network_forward.21} parent=0 // pred_region
    _
  $region9: #{baseline_network_forward.21} parent=0 // pred_fallthru
    _
  // Predicated region
  $region10: #{baseline_network_forward.21} parent=0 // pred_check
    _
  $region11: #{baseline_network_forward.21} parent=0 // pred_check_branch
    %13 = sbr.rel (0) target = $region13
  $region12: #{baseline_network_forward.21} parent=0 // pred_region
    _
  $region13: #{baseline_network_forward.21} parent=0 // pred_fallthru
    _
  %v14 = vld [vmem:[%s0] sm:$0xff]
  %v15 = vld [vmem:[%s0 + $0x8] sm:$0xff]
  %v16 = vld [vmem:[%s1] sm:$0xff]
  %v17 = vld [vmem:[%s2] sm:$0x1]
  %v19 = vlaneseq
  %v20 = vshrl.u32 %v19, 7
  %v21 = vsub.s32 0, %v20
  %v22 = vrot.slane %v17, %v21
  %vm24 = vcmask 64512
  %v26 = vsel %vm24, %v14, 0
  %v29 = vsel %vm24, %v15, 0
  %31 = vmatprep.subr.mxu0 0.0
  %32 = vmatpush1.msra.mxu0 %v16
  %33 = vmatprep.subr.mxu0 0.0
  %34 = vmatpush1.msra.mxu0 0.0
  %35 = vmatprep.subr.mxu0 0.0
  %36 = vmatpush1.msra.mxu0 0.0
  %37 = vmatprep.subr.mxu0 0.0
  %38 = vmatpush1.msra.mxu0 0.0
  %39 = vmatprep.subr.mxu0 0.0
  %40 = vmatpush1.msra.mxu0 0.0
  %41 = vmatprep.subr.mxu0 0.0
  %42 = vmatpush1.msra.mxu0 0.0
  %43 = vmatprep.subr.mxu0 0.0
  %44 = vmatpush1.msra.mxu0 0.0
  %45 = vmatprep.subr.mxu0 0.0
  %46 = vmatpush1.msra.mxu0 0.0
  %47 = vmatprep.subr.mxu0 0.0
  %48 = vmatpush1.msra.mxu0 0.0
  %49 = vmatprep.subr.mxu0 0.0
  %50 = vmatpush1.msra.mxu0 0.0
  %51 = vmatprep.subr.mxu0 0.0
  %52 = vmatpush1.msra.mxu0 0.0
  %53 = vmatprep.subr.mxu0 0.0
  %54 = vmatpush1.msra.mxu0 0.0
  %55 = vmatprep.subr.mxu0 0.0
  %56 = vmatpush1.msra.mxu0 0.0
  %57 = vmatprep.subr.mxu0 0.0
  %58 = vmatpush1.msra.mxu0 0.0
  %59 = vmatprep.subr.mxu0 0.0
  %60 = vmatpush1.msra.mxu0 0.0
  %61 = vmatprep.subr.mxu0 0.0
  %62 = vmatpush1.msra.mxu0 0.0
  %63 = vmatprep.subr.mxu0 0.0
  %64 = vmatpush1.msra.mxu0 0.0
  %65 = vmatprep.subr.mxu0 0.0
  %66 = vmatpush1.msra.mxu0 0.0
  %67 = vmatprep.subr.mxu0 0.0
  %68 = vmatpush1.msra.mxu0 0.0
  %69 = vmatprep.subr.mxu0 0.0
  %70 = vmatpush1.msra.mxu0 0.0
  %71 = vmatprep.subr.mxu0 0.0
  %72 = vmatpush1.msra.mxu0 0.0
  %73 = vmatprep.subr.mxu0 0.0
  %74 = vmatpush1.msra.mxu0 0.0
  %75 = vmatprep.subr.mxu0 0.0
  %76 = vmatpush1.msra.mxu0 0.0
  %77 = vmatprep.subr.mxu0 0.0
  %78 = vmatpush1.msra.mxu0 0.0
  %79 = vmatprep.subr.mxu0 0.0
  %80 = vmatpush1.msra.mxu0 0.0
  %81 = vmatprep.subr.mxu0 0.0
  %82 = vmatpush1.msra.mxu0 0.0
  %83 = vmatprep.subr.mxu0 0.0
  %84 = vmatpush1.msra.mxu0 0.0
  %85 = vmatprep.subr.mxu0 0.0
  %86 = vmatpush1.msra.mxu0 0.0
  %87 = vmatprep.subr.mxu0 0.0
  %88 = vmatpush1.msra.mxu0 0.0
  %89 = vmatprep.subr.mxu0 0.0
  %90 = vmatpush1.msra.mxu0 0.0
  %91 = vmatprep.subr.mxu0 0.0
  %92 = vmatpush1.msra.mxu0 0.0
  %93 = vmatprep.subr.mxu0 0.0
  %94 = vmatpush1.msra.mxu0 0.0
  %95 = vmatprep.mubr.f32.mxu0 0.0
  %96 = vmatmul.mubr.f32.gmra.mrb[0].mxu0 %v26
  %v97 = vpop.f32.mrb[0].mxu0
  %v98 = vadd.f32 %v22, %v97
  %v99 = vpop.f32.mrb[0].mxu0
  %100 = vmatprep.mubr.f32.mxu0 0.0
  %101 = vmatmul.mubr.f32.gmra.mrb[0].mxu0 %v29
  %v102 = vpop.f32.mrb[0].mxu0
  %v103 = vadd.f32 %v22, %v102
  %v104 = vpop.f32.mrb[0].mxu0
  %105 = vdwg.mxu0
  %vm106 = vcmask 195584
  %107 = vst.msk [vmem:[%s3] sm:$0xff] %vm106, %v98
  %108 = vst.msk [vmem:[%s3 + $0x8] sm:$0xff] %vm106, %v103
  // Predicated region
  $region14: #{baseline_network_forward.21} parent=0 // pred_check
    _
  $region15: #{baseline_network_forward.21} parent=0 // pred_check_branch
    %110 = sbr.rel (0) target = $region17
  $region16: #{baseline_network_forward.21} parent=0 // pred_region
    _
  $region17: #{baseline_network_forward.21} parent=0 // pred_fallthru
    _
  // Predicated region
  $region18: #{baseline_network_forward.21} parent=0 // pred_check
    _
  $region19: #{baseline_network_forward.21} parent=0 // pred_check_branch
    %112 = sbr.rel (0) target = $region21
  $region20: #{baseline_network_forward.21} parent=0 // pred_region
    _
  $region21: #{baseline_network_forward.21} parent=0 // pred_fallthru
    _

// kernel: baseline_network_forward.22
$region0: #{baseline_network_forward.22}
  #allocation0 [shape = 'u32[]', space=smem, size = 0x4, offset = 0x4, fixed_abs, tag = 'smem constant byte address 0x4 - core index']
  #allocation1 [shape = 'u32[144,128]{1,0:T(1,128)}', space=vmem, size = 0x12000, scoped, tag = 'internal scratch']
  %s0 = inlined_call_operand.vmem [shape: f32[2,8,24], index: 0, kind: input, shape index: {}]
  %s1 = inlined_call_operand.vmem [shape: f32[2,3,8,8], index: 1, kind: input, shape index: {}]
  %s2 = inlined_call_operand.vmem [shape: f32[1,24], index: 2, kind: input, shape index: {}]
  %s3 = inlined_call_operand.vmem [shape: f32[2,8,24], index: 3, kind: output, shape index: {}]
  %s4 = sld [smem:[#allocation0]]
  $region45: #{baseline_network_forward.22} parent=0
    _
  %s6 = ssub.s32 1, %s4
  %s7 = scalar_select 0, %s6, %s4
  loop: start=0, step=1, limit=4
  $region2: #{baseline_network_forward.22} parent=0 // loop_pre_header
    _
  $region3: #{baseline_network_forward.22} parent=0 // loop_header
    %s9 = sphi 0, %s13
    %p10 = scmp.ge.s32.totalorder %s9, 4
    %s19 = sphi 0, %s21
    %s22 = sphi 0, %s19
    %s23 = sphi 0, %s22
    %s39 = sphi 0, %s23
    %s45 = sphi 0, %s47
    %s48 = sphi 0, %s45
    %s49 = sphi 0, %s48
    %s65 = sphi 0, %s49
    %s69 = sphi 0, %s69
    %s71 = sphi 0, %s69
    %s72 = sphi 0, %s71
    %s86 = sphi 0, %s72
    %s92 = sphi 0, %s94
    %s95 = sphi 0, %s92
    %s96 = sphi 0, %s95
    %s112 = sphi 0, %s96
  $region4: #{baseline_network_forward.22} parent=0 // loop_header_branch
    %12 = sbr.rel (%p10) target = $region8
  $region5: #{baseline_network_forward.22} parent=0 // loop_body
    %s14 = ssub.s32 %s9, 1
    %s15 = ssub.s32 %s9, 2
    %s16 = sadd.s32 %s9, 1
    %s17 = ssub.s32 %s9, %s16
    %p18 = scmp.eq.s32.totalorder %s17, 0
    %s20 = sadd.s32 %s19, 1
    %s21 = scalar_select %p18, %s19, %s20
    %p24 = pneg %p18
    %p25 = scmp.eq.s32.totalorder %s9, 1
    %p26 = por %p24, %p25
    %p27 = scmp.ne.s32.totalorder %s19, %s22
    %p28 = scmp.eq.s32.totalorder %s9, 0
    %p29 = por %p27, %p28
    %p30 = scmp.ne.s32.totalorder %s19, %s22
    %p31 = scmp.eq.s32.totalorder %s14, 1
    %p32 = por %p30, %p31
    %p33 = scmp.ne.s32.totalorder %s22, %s23
    %p34 = scmp.eq.s32.totalorder %s14, 0
    %p35 = por %p33, %p34
    %p36 = scmp.ne.s32.totalorder %s22, %s23
    %p37 = scmp.eq.s32.totalorder %s15, 1
    %p38 = por %p36, %p37
    %p40 = scmp.ne.s32.totalorder %s23, %s39
    %p41 = scmp.eq.s32.totalorder %s15, 0
    %p42 = por %p40, %p41
    %s43 = ssub.s32 %s9, %s16
    %p44 = scmp.eq.s32.totalorder %s43, 0
    %s46 = sadd.s32 %s45, 1
    %s47 = scalar_select %p44, %s45, %s46
    %p50 = pneg %p44
    %p51 = scmp.eq.s32.totalorder %s9, 1
    %p52 = por %p50, %p51
    %p53 = scmp.ne.s32.totalorder %s45, %s48
    %p54 = scmp.eq.s32.totalorder %s9, 0
    %p55 = por %p53, %p54
    %p56 = scmp.ne.s32.totalorder %s45, %s48
    %p57 = scmp.eq.s32.totalorder %s14, 1
    %p58 = por %p56, %p57
    %p59 = scmp.ne.s32.totalorder %s48, %s49
    %p60 = scmp.eq.s32.totalorder %s14, 0
    %p61 = por %p59, %p60
    %p62 = scmp.ne.s32.totalorder %s48, %s49
    %p63 = scmp.eq.s32.totalorder %s15, 1
    %p64 = por %p62, %p63
    %p66 = scmp.ne.s32.totalorder %s49, %s65
    %p67 = scmp.eq.s32.totalorder %s15, 0
    %p68 = por %p66, %p67
    %s70 = sadd.s32 %s69, 1
    %p73 = scmp.eq.s32.totalorder %s9, 1
    %p74 = scmp.ne.s32.totalorder %s69, %s71
    %p75 = scmp.eq.s32.totalorder %s9, 0
    %p76 = por %p74, %p75
    %p77 = scmp.ne.s32.totalorder %s69, %s71
    %p78 = scmp.eq.s32.totalorder %s14, 1
    %p79 = por %p77, %p78
    %p80 = scmp.ne.s32.totalorder %s71, %s72
    %p81 = scmp.eq.s32.totalorder %s14, 0
    %p82 = por %p80, %p81
    %p83 = scmp.ne.s32.totalorder %s71, %s72
    %p84 = scmp.eq.s32.totalorder %s15, 1
    %p85 = por %p83, %p84
    %p87 = scmp.ne.s32.totalorder %s72, %s86
    %p88 = scmp.eq.s32.totalorder %s15, 0
    %p89 = por %p87, %p88
    %s90 = ssub.s32 %s9, %s16
    %p91 = scmp.eq.s32.totalorder %s90, 0
    %s93 = sadd.s32 %s92, 1
    %s94 = scalar_select %p91, %s92, %s93
    %p97 = pneg %p91
    %p98 = scmp.eq.s32.totalorder %s9, 1
    %p99 = por %p97, %p98
    %p100 = scmp.ne.s32.totalorder %s92, %s95
    %p101 = scmp.eq.s32.totalorder %s9, 0
    %p102 = por %p100, %p101
    %p103 = scmp.ne.s32.totalorder %s92, %s95
    %p104 = scmp.eq.s32.totalorder %s14, 1
    %p105 = por %p103, %p104
    %p106 = scmp.ne.s32.totalorder %s95, %s96
    %p107 = scmp.eq.s32.totalorder %s14, 0
    %p108 = por %p106, %p107
    %p109 = scmp.ne.s32.totalorder %s95, %s96
    %p110 = scmp.eq.s32.totalorder %s15, 1
    %p111 = por %p109, %p110
    %p113 = scmp.ne.s32.totalorder %s96, %s112
    %p114 = scmp.eq.s32.totalorder %s15, 0
    %p115 = por %p113, %p114
    %p116 = scmp.le.s32.totalorder 1, %s9
    %p117 = scmp.lt.s32.totalorder %s9, 3
    %p118 = pnand %p116, %p117
    %p119 = pneg %p118
    // Predicated region
    $region9: #{baseline_network_forward.22} parent=5 // pred_check
      _
    $region10: #{baseline_network_forward.22} parent=5 // pred_check_branch
      %121 = sbr.rel (%p118) target = $region12
    $region11: #{baseline_network_forward.22} parent=5 // pred_region
      %s122 = ssub.s32 %s9, 1
      // Predicated region
      $region13: #{baseline_network_forward.22} parent=11 // pred_check
        %p123 = pneg %p82
      $region14: #{baseline_network_forward.22} parent=11 // pred_check_branch
        %125 = sbr.rel (%p123) target = $region16
      $region15: #{baseline_network_forward.22} parent=11 // pred_region
        _
      $region16: #{baseline_network_forward.22} parent=11 // pred_fallthru
        _
    $region12: #{baseline_network_forward.22} parent=5 // pred_fallthru
      _
    %p126 = scmp.lt.s32.totalorder %s9, 2
    // Predicated region
    $region17: #{baseline_network_forward.22} parent=5 // pred_check
      %p127 = pneg %p126
    $region18: #{baseline_network_forward.22} parent=5 // pred_check_branch
      %129 = sbr.rel (%p127) target = $region20
    $region19: #{baseline_network_forward.22} parent=5 // pred_region
      // Predicated region
      $region21: #{baseline_network_forward.22} parent=19 // pred_check
        %p130 = pneg %p29
      $region22: #{baseline_network_forward.22} parent=19 // pred_check_branch
        %132 = sbr.rel (%p130) target = $region24
      $region23: #{baseline_network_forward.22} parent=19 // pred_region
        %p133 = scmp.lt.s32.totalorder %s9, 1
        %s134 = scalar_select %p133, %s9, 1
        %s135 = smul.addr %s134, 8
        %s136 = scalar_lea.vmem %s0, %s135
      $region24: #{baseline_network_forward.22} parent=19 // pred_fallthru
        _
      // Predicated region
      $region25: #{baseline_network_forward.22} parent=19 // pred_check
        %p137 = pneg %p55
      $region26: #{baseline_network_forward.22} parent=19 // pred_check_branch
        %139 = sbr.rel (%p137) target = $region28
      $region27: #{baseline_network_forward.22} parent=19 // pred_region
        %p140 = scmp.lt.s32.totalorder %s9, 1
        %s141 = scalar_select %p140, %s9, 1
        %s142 = smul.addr %s141, 3
        %s143 = smul.addr %s142, 8
        %s144 = scalar_lea.vmem %s1, %s143
      $region28: #{baseline_network_forward.22} parent=19 // pred_fallthru
        _
    $region20: #{baseline_network_forward.22} parent=5 // pred_fallthru
      _
    %p145 = scmp.le.s32.totalorder 1, %s9
    %p146 = scmp.lt.s32.totalorder %s9, 3
    %p147 = pnand %p145, %p146
    %p148 = pneg %p147
    // Predicated region
    $region29: #{baseline_network_forward.22} parent=5 // pred_check
      _
    $region30: #{baseline_network_forward.22} parent=5 // pred_check_branch
      %150 = sbr.rel (%p147) target = $region32
    $region31: #{baseline_network_forward.22} parent=5 // pred_region
      %s151 = ssub.s32 %s9, 1
      %p152 = scmp.lt.s32.totalorder %s14, 1
      %s153 = scalar_select %p152, %s14, 1
      %s154 = smul.addr %s153, 8
      %s155 = scalar_lea.vmem %s0, %s154
      %p156 = pneg %p35
      %p157 = pneg %p32
      %p158 = scmp.lt.s32.totalorder %s14, 1
      %s159 = scalar_select %p158, %s14, 1
      %s160 = smul.addr %s159, 3
      %s161 = smul.addr %s160, 8
      %s162 = scalar_lea.vmem %s1, %s161
      %p163 = pneg %p61
      %p164 = pneg %p58
      %p165 = pneg %p82
      %p166 = pneg %p79
      %p167 = pneg %p108
      %p168 = pneg %p105
      %p169 = scmp.lt.s32.totalorder %s14, 1
      %s170 = scalar_select %p169, %s14, 1
      %s171 = smul.addr %s170, 8
      %s172 = scalar_lea.vmem %s3, %s171
      %p173 = scmp.lt.s32.totalorder %s14, 1
      %s174 = scalar_select %p173, %s14, 1
      %s175 = smul.addr %s174, 8
      %s176 = scalar_lea.vmem %s0, %s175
      %p177 = scmp.lt.s32.totalorder %s14, 1
      %s178 = scalar_select %p177, %s14, 1
      %s179 = smul.addr %s178, 3
      %s180 = smul.addr %s179, 8
      %s181 = scalar_lea.vmem %s1, %s180
      %p182 = scmp.lt.s32.totalorder %s14, 1
      %s183 = scalar_select %p182, %s14, 1
      %s184 = smul.addr %s183, 8
      %s185 = scalar_lea.vmem %s3, %s184
      %v186 = vld [vmem:[%s176] sm:$0xff]
      %v187 = vlaneseq
      %v188 = vshrl.u32 %v187, 7
      %v189 = vlaneseq
      %v190 = vand.u32 %v189, 127
      %vm191 = vcmp.eq.s32.totalorder %v188, %v190
      %v192 = vsel %vm191, 1, 0
      %v193 = vcvt.s32.f32 %v192
      %v194 = vld [vmem:[%s181] sm:$0xff]
      %v195 = vsub.f32 1.0, %v193
      %v196 = vmul.f32 %v194, %v195
      %v197 = vadd.f32 %v196, %v193
      %vm198 = vcmask 64512
      %v199 = vsel %vm198, %v197, 0.0
      %200 = vadd.xlane.f32.xlu0 %v199
      %v201 = vpop.xlane.xlu0 %200
      %v202 = vmax.f32 %v201, 1.0
      %v203 = vrsqrt.pop %v202
      %v204 = vmul.f32 %v203, %v186
      %v206 = vsel %vm198, %v197, 0
      %208 = vmatprep.subr.mxu0 0.0
      %209 = vmatpush1.msra.mxu0 %v204
      %210 = vmatprep.subr.mxu0 0.0
      %211 = vmatpush1.msra.mxu0 0.0
      %212 = vmatprep.subr.mxu0 0.0
      %213 = vmatpush1.msra.mxu0 0.0
      %214 = vmatprep.subr.mxu0 0.0
      %215 = vmatpush1.msra.mxu0 0.0
      %216 = vmatprep.subr.mxu0 0.0
      %217 = vmatpush1.msra.mxu0 0.0
      %218 = vmatprep.subr.mxu0 0.0
      %219 = vmatpush1.msra.mxu0 0.0
      %220 = vmatprep.subr.mxu0 0.0
      %221 = vmatpush1.msra.mxu0 0.0
      %222 = vmatprep.subr.mxu0 0.0
      %223 = vmatpush1.msra.mxu0 0.0
      %224 = vmatprep.subr.mxu0 0.0
      %225 = vmatpush1.msra.mxu0 0.0
      %226 = vmatprep.subr.mxu0 0.0
      %227 = vmatpush1.msra.mxu0 0.0
      %228 = vmatprep.subr.mxu0 0.0
      %229 = vmatpush1.msra.mxu0 0.0
      %230 = vmatprep.subr.mxu0 0.0
      %231 = vmatpush1.msra.mxu0 0.0
      %232 = vmatprep.subr.mxu0 0.0
      %233 = vmatpush1.msra.mxu0 0.0
      %234 = vmatprep.subr.mxu0 0.0
      %235 = vmatpush1.msra.mxu0 0.0
      %236 = vmatprep.subr.mxu0 0.0
      %237 = vmatpush1.msra.mxu0 0.0
      %238 = vmatprep.subr.mxu0 0.0
      %239 = vmatpush1.msra.mxu0 0.0
      %240 = vmatprep.subr.mxu0 0.0
      %241 = vmatpush1.msra.mxu0 0.0
      %242 = vmatprep.subr.mxu0 0.0
      %243 = vmatpush1.msra.mxu0 0.0
      %244 = vmatprep.subr.mxu0 0.0
      %245 = vmatpush1.msra.mxu0 0.0
      %246 = vmatprep.subr.mxu0 0.0
      %247 = vmatpush1.msra.mxu0 0.0
      %248 = vmatprep.subr.mxu0 0.0
      %249 = vmatpush1.msra.mxu0 0.0
      %250 = vmatprep.subr.mxu0 0.0
      %251 = vmatpush1.msra.mxu0 0.0
      %252 = vmatprep.subr.mxu0 0.0
      %253 = vmatpush1.msra.mxu0 0.0
      %254 = vmatprep.subr.mxu0 0.0
      %255 = vmatpush1.msra.mxu0 0.0
      %256 = vmatprep.subr.mxu0 0.0
      %257 = vmatpush1.msra.mxu0 0.0
      %258 = vmatprep.subr.mxu0 0.0
      %259 = vmatpush1.msra.mxu0 0.0
      %260 = vmatprep.subr.mxu0 0.0
      %261 = vmatpush1.msra.mxu0 0.0
      %262 = vmatprep.subr.mxu0 0.0
      %263 = vmatpush1.msra.mxu0 0.0
      %264 = vmatprep.subr.mxu0 0.0
      %265 = vmatpush1.msra.mxu0 0.0
      %266 = vmatprep.subr.mxu0 0.0
      %267 = vmatpush1.msra.mxu0 0.0
      %268 = vmatprep.subr.mxu0 0.0
      %269 = vmatpush1.msra.mxu0 0.0
      %270 = vmatprep.subr.mxu0 0.0
      %271 = vmatpush1.msra.mxu0 0.0
      %272 = vmatprep.mubr.f32.mxu0 0.0
      %273 = vmatmul.mubr.f32.gmra.mrb[0].mxu0 %v206
      %v274 = vpop.f32.mrb[0].mxu0
      %v275 = vadd.f32 0.0, %v274
      %v276 = vpop.f32.mrb[0].mxu0
      %277 = vdwg.mxu0
      %v278 = vmul.f32 %v203, %v275
      %s279 = scalar_lea.vmem %s181, 8
      %v280 = vld [vmem:[%s279] sm:$0xff]
      %v281 = vmul.f32 %v280, %v195
      %v282 = vadd.f32 %v281, %v193
      %v283 = vsel %vm198, %v282, 0.0
      %284 = vadd.xlane.f32.xlu0 %v283
      %v285 = vpop.xlane.xlu0 %284
      %v286 = vmax.f32 %v285, 1.0
      %v287 = vrsqrt.pop %v286
      %v288 = vmul.f32 %v287, %v186
      %290 = vrot.lane.b32.xlu0 %v288, 120
      %v291 = vpop.permute.xlu0 %290
      %v294 = vsel %vm198, %v282, 0
      %296 = vmatprep.subr.mxu0 0.0
      %297 = vmatpush1.msra.mxu0 %v291
      %298 = vmatprep.subr.mxu0 0.0
      %299 = vmatpush1.msra.mxu0 0.0
      %300 = vmatprep.subr.mxu0 0.0
      %301 = vmatpush1.msra.mxu0 0.0
      %302 = vmatprep.subr.mxu0 0.0
      %303 = vmatpush1.msra.mxu0 0.0
      %304 = vmatprep.subr.mxu0 0.0
      %305 = vmatpush1.msra.mxu0 0.0
      %306 = vmatprep.subr.mxu0 0.0
      %307 = vmatpush1.msra.mxu0 0.0
      %308 = vmatprep.subr.mxu0 0.0
      %309 = vmatpush1.msra.mxu0 0.0
      %310 = vmatprep.subr.mxu0 0.0
      %311 = vmatpush1.msra.mxu0 0.0
      %312 = vmatprep.subr.mxu0 0.0
      %313 = vmatpush1.msra.mxu0 0.0
      %314 = vmatprep.subr.mxu0 0.0
      %315 = vmatpush1.msra.mxu0 0.0
      %316 = vmatprep.subr.mxu0 0.0
      %317 = vmatpush1.msra.mxu0 0.0
      %318 = vmatprep.subr.mxu0 0.0
      %319 = vmatpush1.msra.mxu0 0.0
      %320 = vmatprep.subr.mxu0 0.0
      %321 = vmatpush1.msra.mxu0 0.0
      %322 = vmatprep.subr.mxu0 0.0
      %323 = vmatpush1.msra.mxu0 0.0
      %324 = vmatprep.subr.mxu0 0.0
      %325 = vmatpush1.msra.mxu0 0.0
      %326 = vmatprep.subr.mxu0 0.0
      %327 = vmatpush1.msra.mxu0 0.0
      %328 = vmatprep.subr.mxu0 0.0
      %329 = vmatpush1.msra.mxu0 0.0
      %330 = vmatprep.subr.mxu0 0.0
      %331 = vmatpush1.msra.mxu0 0.0
      %332 = vmatprep.subr.mxu0 0.0
      %333 = vmatpush1.msra.mxu0 0.0
      %334 = vmatprep.subr.mxu0 0.0
      %335 = vmatpush1.msra.mxu0 0.0
      %336 = vmatprep.subr.mxu0 0.0
      %337 = vmatpush1.msra.mxu0 0.0
      %338 = vmatprep.subr.mxu0 0.0
      %339 = vmatpush1.msra.mxu0 0.0
      %340 = vmatprep.subr.mxu0 0.0
      %341 = vmatpush1.msra.mxu0 0.0
      %342 = vmatprep.subr.mxu0 0.0
      %343 = vmatpush1.msra.mxu0 0.0
      %344 = vmatprep.subr.mxu0 0.0
      %345 = vmatpush1.msra.mxu0 0.0
      %346 = vmatprep.subr.mxu0 0.0
      %347 = vmatpush1.msra.mxu0 0.0
      %348 = vmatprep.subr.mxu0 0.0
      %349 = vmatpush1.msra.mxu0 0.0
      %350 = vmatprep.subr.mxu0 0.0
      %351 = vmatpush1.msra.mxu0 0.0
      %352 = vmatprep.subr.mxu0 0.0
      %353 = vmatpush1.msra.mxu0 0.0
      %354 = vmatprep.subr.mxu0 0.0
      %355 = vmatpush1.msra.mxu0 0.0
      %356 = vmatprep.subr.mxu0 0.0
      %357 = vmatpush1.msra.mxu0 0.0
      %358 = vmatprep.subr.mxu0 0.0
      %359 = vmatpush1.msra.mxu0 0.0
      %360 = vmatprep.mubr.f32.mxu0 0.0
      %361 = vmatmul.mubr.f32.gmra.mrb[0].mxu0 %v294
      %v362 = vpop.f32.mrb[0].mxu0
      %v363 = vadd.f32 0.0, %v362
      %v364 = vpop.f32.mrb[0].mxu0
      %365 = vdwg.mxu0
      %v366 = vmul.f32 %v287, %v363
      %s367 = scalar_lea.vmem %s181, 16
      %v368 = vld [vmem:[%s367] sm:$0xff]
      %v369 = vmul.f32 %v368, %v195
      %v370 = vadd.f32 %v369, %v193
      %v371 = vsel %vm198, %v370, 0.0
      %372 = vadd.xlane.f32.xlu0 %v371
      %v373 = vpop.xlane.xlu0 %372
      %v374 = vmax.f32 %v373, 1.0
      %v375 = vrsqrt.pop %v374
      %v376 = vmul.f32 %v375, %v186
      %378 = vrot.lane.b32.xlu0 %v376, 112
      %v379 = vpop.permute.xlu0 %378
      %v382 = vsel %vm198, %v370, 0
      %384 = vmatprep.subr.mxu0 0.0
      %385 = vmatpush1.msra.mxu0 %v379
      %386 = vmatprep.subr.mxu0 0.0
      %387 = vmatpush1.msra.mxu0 0.0
      %388 = vmatprep.subr.mxu0 0.0
      %389 = vmatpush1.msra.mxu0 0.0
      %390 = vmatprep.subr.mxu0 0.0
      %391 = vmatpush1.msra.mxu0 0.0
      %392 = vmatprep.subr.mxu0 0.0
      %393 = vmatpush1.msra.mxu0 0.0
      %394 = vmatprep.subr.mxu0 0.0
      %395 = vmatpush1.msra.mxu0 0.0
      %396 = vmatprep.subr.mxu0 0.0
      %397 = vmatpush1.msra.mxu0 0.0
      %398 = vmatprep.subr.mxu0 0.0
      %399 = vmatpush1.msra.mxu0 0.0
      %400 = vmatprep.subr.mxu0 0.0
      %401 = vmatpush1.msra.mxu0 0.0
      %402 = vmatprep.subr.mxu0 0.0
      %403 = vmatpush1.msra.mxu0 0.0
      %404 = vmatprep.subr.mxu0 0.0
      %405 = vmatpush1.msra.mxu0 0.0
      %406 = vmatprep.subr.mxu0 0.0
      %407 = vmatpush1.msra.mxu0 0.0
      %408 = vmatprep.subr.mxu0 0.0
      %409 = vmatpush1.msra.mxu0 0.0
      %410 = vmatprep.subr.mxu0 0.0
      %411 = vmatpush1.msra.mxu0 0.0
      %412 = vmatprep.subr.mxu0 0.0
      %413 = vmatpush1.msra.mxu0 0.0
      %414 = vmatprep.subr.mxu0 0.0
      %415 = vmatpush1.msra.mxu0 0.0
      %416 = vmatprep.subr.mxu0 0.0
      %417 = vmatpush1.msra.mxu0 0.0
      %418 = vmatprep.subr.mxu0 0.0
      %419 = vmatpush1.msra.mxu0 0.0
      %420 = vmatprep.subr.mxu0 0.0
      %421 = vmatpush1.msra.mxu0 0.0
      %422 = vmatprep.subr.mxu0 0.0
      %423 = vmatpush1.msra.mxu0 0.0
      %424 = vmatprep.subr.mxu0 0.0
      %425 = vmatpush1.msra.mxu0 0.0
      %426 = vmatprep.subr.mxu0 0.0
      %427 = vmatpush1.msra.mxu0 0.0
      %428 = vmatprep.subr.mxu0 0.0
      %429 = vmatpush1.msra.mxu0 0.0
      %430 = vmatprep.subr.mxu0 0.0
      %431 = vmatpush1.msra.mxu0 0.0
      %432 = vmatprep.subr.mxu0 0.0
      %433 = vmatpush1.msra.mxu0 0.0
      %434 = vmatprep.subr.mxu0 0.0
      %435 = vmatpush1.msra.mxu0 0.0
      %436 = vmatprep.subr.mxu0 0.0
      %437 = vmatpush1.msra.mxu0 0.0
      %438 = vmatprep.subr.mxu0 0.0
      %439 = vmatpush1.msra.mxu0 0.0
      %440 = vmatprep.subr.mxu0 0.0
      %441 = vmatpush1.msra.mxu0 0.0
      %442 = vmatprep.subr.mxu0 0.0
      %443 = vmatpush1.msra.mxu0 0.0
      %444 = vmatprep.subr.mxu0 0.0
      %445 = vmatpush1.msra.mxu0 0.0
      %446 = vmatprep.subr.mxu0 0.0
      %447 = vmatpush1.msra.mxu0 0.0
      %448 = vmatprep.mubr.f32.mxu0 0.0
      %449 = vmatmul.mubr.f32.gmra.mrb[0].mxu0 %v382
      %v450 = vpop.f32.mrb[0].mxu0
      %v451 = vadd.f32 0.0, %v450
      %v452 = vpop.f32.mrb[0].mxu0
      %453 = vdwg.mxu0
      %v454 = vmul.f32 %v375, %v451
      %456 = vrot.lane.b32.xlu0 %v366, 8
      %v457 = vpop.permute.xlu0 %456
      %460 = vrot.lane.b32.xlu0 %v454, 16
      %v461 = vpop.permute.xlu0 %460
      %v463 = vsel %vm198, %v278, %v457
      %vm464 = vcmask 130048
      %v465 = vsel %vm464, %v463, %v461
      %v466 = vld [vmem:[%s2] sm:$0x1]
      %v468 = vlaneseq
      %v469 = vshrl.u32 %v468, 7
      %v470 = vsub.s32 0, %v469
      %v471 = vrot.slane %v466, %v470
      %v473 = vadd.f32 %v465, %v471
      %vm474 = vcmask 195584
      %475 = vst.msk [vmem:[%s185] sm:$0xff] %vm474, %v473
      %p476 = scmp.lt.s32.totalorder %s14, 1
      %s477 = scalar_select %p476, %s14, 1
      %s478 = smul.addr %s477, 8
      %s479 = scalar_lea.vmem %s3, %s478
      // Predicated region
      $region33: #{baseline_network_forward.22} parent=31 // pred_check
        %p480 = pneg %p105
      $region34: #{baseline_network_forward.22} parent=31 // pred_check_branch
        %482 = sbr.rel (%p480) target = $region36
      $region35: #{baseline_network_forward.22} parent=31 // pred_region
        _
      $region36: #{baseline_network_forward.22} parent=31 // pred_fallthru
        _
    $region32: #{baseline_network_forward.22} parent=5 // pred_fallthru
      _
    %p483 = scmp.le.s32.totalorder 2, %s9
    // Predicated region
    $region37: #{baseline_network_forward.22} parent=5 // pred_check
      %p484 = pneg %p483
    $region38: #{baseline_network_forward.22} parent=5 // pred_check_branch
      %486 = sbr.rel (%p484) target = $region40
    $region39: #{baseline_network_forward.22} parent=5 // pred_region
      %s487 = ssub.s32 %s9, 2
      // Predicated region
      $region41: #{baseline_network_forward.22} parent=39 // pred_check
        %p488 = pneg %p111
      $region42: #{baseline_network_forward.22} parent=39 // pred_check_branch
        %490 = sbr.rel (%p488) target = $region44
      $region43: #{baseline_network_forward.22} parent=39 // pred_region
        %p491 = scmp.lt.s32.totalorder %s15, 1
        %s492 = scalar_select %p491, %s15, 1
        %s493 = smul.addr %s492, 8
        %s494 = scalar_lea.vmem %s3, %s493
      $region44: #{baseline_network_forward.22} parent=39 // pred_fallthru
        _
    $region40: #{baseline_network_forward.22} parent=5 // pred_fallthru
      _
  $region6: #{baseline_network_forward.22} parent=0 // loop_footer
    %s13 = sadd.s32 1, %s9
  $region7: #{baseline_network_forward.22} parent=0 // loop_footer_branch
    %8 = sbr.rel target = $region3
  $region8: #{baseline_network_forward.22} parent=0 // loop_exit
    _

// kernel: baseline_network_forward.23
$region0: #{baseline_network_forward.23}
  #allocation0 [shape = 'u32[]', space=smem, size = 0x4, offset = 0x4, fixed_abs, tag = 'smem constant byte address 0x4 - core index']
  #allocation1 [shape = 'u32[144,128]{1,0:T(1,128)}', space=vmem, size = 0x12000, scoped, tag = 'internal scratch']
  %s0 = inlined_call_operand.vmem [shape: f32[16,24], index: 0, kind: input, shape index: {}]
  %s1 = inlined_call_operand.vmem [shape: f32[24,3], index: 1, kind: input, shape index: {}]
  %s2 = inlined_call_operand.vmem [shape: f32[1,3], index: 2, kind: input, shape index: {}]
  %s3 = inlined_call_operand.vmem [shape: f32[16,3], index: 3, kind: output, shape index: {}]
  %s4 = sld [smem:[#allocation0]]
  $region22: #{baseline_network_forward.23} parent=0
    _
  %s6 = ssub.s32 1, %s4
  %s7 = scalar_select 0, %s6, %s4
  // Predicated region
  $region2: #{baseline_network_forward.23} parent=0 // pred_check
    _
  $region3: #{baseline_network_forward.23} parent=0 // pred_check_branch
    %9 = sbr.rel (0) target = $region5
  $region4: #{baseline_network_forward.23} parent=0 // pred_region
    _
  $region5: #{baseline_network_forward.23} parent=0 // pred_fallthru
    _
  // Predicated region
  $region6: #{baseline_network_forward.23} parent=0 // pred_check
    _
  $region7: #{baseline_network_forward.23} parent=0 // pred_check_branch
    %11 = sbr.rel (0) target = $region9
  $region8: #{baseline_network_forward.23} parent=0 // pred_region
    _
  $region9: #{baseline_network_forward.23} parent=0 // pred_fallthru
    _
  // Predicated region
  $region10: #{baseline_network_forward.23} parent=0 // pred_check
    _
  $region11: #{baseline_network_forward.23} parent=0 // pred_check_branch
    %13 = sbr.rel (0) target = $region13
  $region12: #{baseline_network_forward.23} parent=0 // pred_region
    _
  $region13: #{baseline_network_forward.23} parent=0 // pred_fallthru
    _
  %v14 = vld [vmem:[%s0] sm:$0xff]
  %v15 = vld [vmem:[%s0 + $0x8] sm:$0xff]
  %v16 = vld [vmem:[%s1] sm:$0xff]
  %v17 = vld [vmem:[%s1 + $0x8] sm:$0xff]
  %v18 = vld [vmem:[%s1 + $0x10] sm:$0xff]
  %v19 = vld [vmem:[%s2] sm:$0x1]
  %v21 = vlaneseq
  %v22 = vshrl.u32 %v21, 7
  %v23 = vsub.s32 0, %v22
  %v24 = vrot.slane %v19, %v23
  %vm26 = vcmask 195584
  %v28 = vsel %vm26, %v14, 0
  %v31 = vsel %vm26, %v15, 0
  %33 = vmatprep.subr.mxu0 0.0
  %34 = vmatpush1.msra.mxu0 %v16
  %35 = vmatprep.subr.mxu0 0.0
  %36 = vmatpush1.msra.mxu0 %v17
  %37 = vmatprep.subr.mxu0 0.0
  %38 = vmatpush1.msra.mxu0 %v18
  %39 = vmatprep.subr.mxu0 0.0
  %40 = vmatpush1.msra.mxu0 0.0
  %41 = vmatprep.subr.mxu0 0.0
  %42 = vmatpush1.msra.mxu0 0.0
  %43 = vmatprep.subr.mxu0 0.0
  %44 = vmatpush1.msra.mxu0 0.0
  %45 = vmatprep.subr.mxu0 0.0
  %46 = vmatpush1.msra.mxu0 0.0
  %47 = vmatprep.subr.mxu0 0.0
  %48 = vmatpush1.msra.mxu0 0.0
  %49 = vmatprep.subr.mxu0 0.0
  %50 = vmatpush1.msra.mxu0 0.0
  %51 = vmatprep.subr.mxu0 0.0
  %52 = vmatpush1.msra.mxu0 0.0
  %53 = vmatprep.subr.mxu0 0.0
  %54 = vmatpush1.msra.mxu0 0.0
  %55 = vmatprep.subr.mxu0 0.0
  %56 = vmatpush1.msra.mxu0 0.0
  %57 = vmatprep.subr.mxu0 0.0
  %58 = vmatpush1.msra.mxu0 0.0
  %59 = vmatprep.subr.mxu0 0.0
  %60 = vmatpush1.msra.mxu0 0.0
  %61 = vmatprep.subr.mxu0 0.0
  %62 = vmatpush1.msra.mxu0 0.0
  %63 = vmatprep.subr.mxu0 0.0
  %64 = vmatpush1.msra.mxu0 0.0
  %65 = vmatprep.subr.mxu0 0.0
  %66 = vmatpush1.msra.mxu0 0.0
  %67 = vmatprep.subr.mxu0 0.0
  %68 = vmatpush1.msra.mxu0 0.0
  %69 = vmatprep.subr.mxu0 0.0
  %70 = vmatpush1.msra.mxu0 0.0
  %71 = vmatprep.subr.mxu0 0.0
  %72 = vmatpush1.msra.mxu0 0.0
  %73 = vmatprep.subr.mxu0 0.0
  %74 = vmatpush1.msra.mxu0 0.0
  %75 = vmatprep.subr.mxu0 0.0
  %76 = vmatpush1.msra.mxu0 0.0
  %77 = vmatprep.subr.mxu0 0.0
  %78 = vmatpush1.msra.mxu0 0.0
  %79 = vmatprep.subr.mxu0 0.0
  %80 = vmatpush1.msra.mxu0 0.0
  %81 = vmatprep.subr.mxu0 0.0
  %82 = vmatpush1.msra.mxu0 0.0
  %83 = vmatprep.subr.mxu0 0.0
  %84 = vmatpush1.msra.mxu0 0.0
  %85 = vmatprep.subr.mxu0 0.0
  %86 = vmatpush1.msra.mxu0 0.0
  %87 = vmatprep.subr.mxu0 0.0
  %88 = vmatpush1.msra.mxu0 0.0
  %89 = vmatprep.subr.mxu0 0.0
  %90 = vmatpush1.msra.mxu0 0.0
  %91 = vmatprep.subr.mxu0 0.0
  %92 = vmatpush1.msra.mxu0 0.0
  %93 = vmatprep.subr.mxu0 0.0
  %94 = vmatpush1.msra.mxu0 0.0
  %95 = vmatprep.subr.mxu0 0.0
  %96 = vmatpush1.msra.mxu0 0.0
  %97 = vmatprep.mubr.f32.mxu0 0.0
  %98 = vmatmul.mubr.f32.gmra.mrb[0].mxu0 %v28
  %v99 = vpop.f32.mrb[0].mxu0
  %v100 = vadd.f32 %v24, %v99
  %v101 = vpop.f32.mrb[0].mxu0
  %102 = vmatprep.mubr.f32.mxu0 0.0
  %103 = vmatmul.mubr.f32.gmra.mrb[0].mxu0 %v31
  %v104 = vpop.f32.mrb[0].mxu0
  %v105 = vadd.f32 %v24, %v104
  %v106 = vpop.f32.mrb[0].mxu0
  %107 = vdwg.mxu0
  %vm108 = vcmp.gt.f32.partialorder %v100, 0.0
  %vm109 = vcmp.gt.f32.partialorder %v105, 0.0
  %v110 = vmin.f32 %v100, 0.0
  %v111 = vmin.f32 %v105, 0.0
  %v112 = vmul.f32 %v110, 1.442695
  %v113 = vpow.pop %v112
  %v114 = vmul.f32 %v111, 1.442695
  %v115 = vpow.pop %v114
  %v116 = vsub.f32 %v113, 1.0
  %v117 = vsub.f32 %v115, 1.0
  %v118 = vsel %vm108, %v100, %v116
  %v119 = vsel %vm109, %v105, %v117
  %vm120 = vcmask 23552
  %121 = vst.msk [vmem:[%s3] sm:$0xff] %vm120, %v118
  %122 = vst.msk [vmem:[%s3 + $0x8] sm:$0xff] %vm120, %v119
  // Predicated region
  $region14: #{baseline_network_forward.23} parent=0 // pred_check
    _
  $region15: #{baseline_network_forward.23} parent=0 // pred_check_branch
    %124 = sbr.rel (0) target = $region17
  $region16: #{baseline_network_forward.23} parent=0 // pred_region
    _
  $region17: #{baseline_network_forward.23} parent=0 // pred_fallthru
    _
  // Predicated region
  $region18: #{baseline_network_forward.23} parent=0 // pred_check
    _
  $region19: #{baseline_network_forward.23} parent=0 // pred_check_branch
    %126 = sbr.rel (0) target = $region21
  $region20: #{baseline_network_forward.23} parent=0 // pred_region
    _
  $region21: #{baseline_network_forward.23} parent=0 // pred_fallthru
    _

// kernel: baseline_network_forward.26
$region0: #{baseline_network_forward.26}
  #allocation0 [shape = 'u32[]', space=smem, size = 0x4, offset = 0x4, fixed_abs, tag = 'smem constant byte address 0x4 - core index']
  #allocation1 [shape = 'u32[144,128]{1,0:T(1,128)}', space=vmem, size = 0x12000, scoped, tag = 'internal scratch']
  %s0 = inlined_call_operand.vmem [shape: f32[2,8,3], index: 0, kind: input, shape index: {}]
  %s1 = inlined_call_operand.vmem [shape: f32[2,3,8], index: 1, kind: input, shape index: {}]
  %s2 = inlined_call_operand.vmem [shape: f32[2,3,8,8], index: 2, kind: input, shape index: {}]
  %s3 = inlined_call_operand.vmem [shape: f32[3,3], index: 3, kind: input, shape index: {}]
  %s4 = inlined_call_operand.vmem [shape: f32[3], index: 4, kind: input, shape index: {}]
  %s5 = inlined_call_operand.vmem [shape: f32[3,2], index: 5, kind: input, shape index: {}]
  %s6 = inlined_call_operand.vmem [shape: f32[2], index: 6, kind: input, shape index: {}]
  %s7 = inlined_call_operand.vmem [shape: f32[2,2,8,8], index: 7, kind: output, shape index: {}]
  %s8 = sld [smem:[#allocation0]]
  $region77: #{baseline_network_forward.26} parent=0
    _
  %s10 = ssub.s32 1, %s8
  %s11 = scalar_select 0, %s10, %s8
  $region1: #{baseline_network_forward.26} parent=0
    #allocation2 [shape = 'u8[2048]{0}', space=smem, size = 0x800, scoped, tag = 'input window, operand 3, single buffered']
    #allocation3 [shape = 's32[2]{0}', space=sflag, size = 0x8, scoped, tag = 'scoped memory for baseline_network_forward.26']
    #allocation4 [shape = 'u8[512]{0}', space=smem, size = 0x200, scoped, tag = 'input window, operand 4, single buffered']
    #allocation5 [shape = 's32[1]{0}', space=sflag, size = 0x4, scoped, tag = 'scoped memory for baseline_network_forward.26']
    #allocation6 [shape = 'u8[2048]{0}', space=smem, size = 0x800, scoped, tag = 'input window, operand 5, single buffered']
    #allocation7 [shape = 'u8[512]{0}', space=smem, size = 0x200, scoped, tag = 'input window, operand 6, single buffered']
    #allocation8 [shape = 's32[1]{0}', space=sflag, size = 0x4, scoped, tag = 'scoped memory for baseline_network_forward.26']
    %12 = vsyncpa [#allocation3], 0
    %13 = vsyncpa [#allocation5], 0
    %14 = vsyncpa [#allocation8], 0
    loop: start=0, step=1, limit=4
    $region2: #{baseline_network_forward.26} parent=1 // loop_pre_header
      _
    $region3: #{baseline_network_forward.26} parent=1 // loop_header
      %s16 = sphi 0, %s20
      %p17 = scmp.ge.s32.totalorder %s16, 4
      %s23 = sphi 0, %s35
      %s24 = sphi 0, %s31
      %s25 = sphi 0, %s23
      %s26 = sphi 0, %s24
      %s27 = sphi 0, %s25
      %s28 = sphi 0, %s26
      %s40 = sphi 0, %s42
      %s43 = sphi 0, %s40
      %s44 = sphi 0, %s43
      %s60 = sphi 0, %s44
      %s66 = sphi 0, %s68
      %s69 = sphi 0, %s66
      %s70 = sphi 0, %s69
      %s86 = sphi 0, %s70
      %s94 = sphi 0, %s96
      %s97 = sphi 0, %s94
      %s98 = sphi 0, %s97
      %s114 = sphi 0, %s98
      %s118 = sphi 0, %s118
      %s120 = sphi 0, %s118
      %s121 = sphi 0, %s120
      %s135 = sphi 0, %s121
      %s139 = sphi 0, %s139
      %s141 = sphi 0, %s139
      %s142 = sphi 0, %s141
      %s156 = sphi 0, %s142
      %s160 = sphi 0, %s160
      %s162 = sphi 0, %s160
      %s163 = sphi 0, %s162
      %s177 = sphi 0, %s163
      %s181 = sphi 0, %s181
      %s183 = sphi 0, %s181
      %s184 = sphi 0, %s183
      %s198 = sphi 0, %s184
      %s206 = sphi 0, %s208
      %s209 = sphi 0, %s206
      %s210 = sphi 0, %s209
      %s226 = sphi 0, %s210
    $region4: #{baseline_network_forward.26} parent=1 // loop_header_branch
      %19 = sbr.rel (%p17) target = $region8
    $region5: #{baseline_network_forward.26} parent=1 // loop_body
      %s21 = ssub.s32 %s16, 1
      %s22 = ssub.s32 %s16, 2
      %s29 = sadd.s32 1, %s24
      %p30 = scmp.ge.s32.totalorder %s29, 1
      %s31 = scalar_select %p30, 0, %s29
      %s32 = sadd.s32 1, %s23
      %s33 = scalar_select %p30, %s32, %s23
      %p34 = scmp.ge.s32.totalorder %s33, 2
      %s35 = scalar_select %p34, 0, %s33
      %s36 = ssub.s32 %s23, %s35
      %s37 = ssub.s32 %s24, %s31
      %s38 = sor.u32 %s36, %s37
      %p39 = scmp.eq.s32.totalorder %s38, 0
      %s41 = sadd.s32 %s40, 1
      %s42 = scalar_select %p39, %s40, %s41
      %p45 = pneg %p39
      %p46 = scmp.eq.s32.totalorder %s16, 1
      %p47 = por %p45, %p46
      %p48 = scmp.ne.s32.totalorder %s40, %s43
      %p49 = scmp.eq.s32.totalorder %s16, 0
      %p50 = por %p48, %p49
      %p51 = scmp.ne.s32.totalorder %s40, %s43
      %p52 = scmp.eq.s32.totalorder %s21, 1
      %p53 = por %p51, %p52
      %p54 = scmp.ne.s32.totalorder %s43, %s44
      %p55 = scmp.eq.s32.totalorder %s21, 0
      %p56 = por %p54, %p55
      %p57 = scmp.ne.s32.totalorder %s43, %s44
      %p58 = scmp.eq.s32.totalorder %s22, 1
      %p59 = por %p57, %p58
      %p61 = scmp.ne.s32.totalorder %s44, %s60
      %p62 = scmp.eq.s32.totalorder %s22, 0
      %p63 = por %p61, %p62
      %s64 = ssub.s32 %s23, %s35
      %p65 = scmp.eq.s32.totalorder %s64, 0
      %s67 = sadd.s32 %s66, 1
      %s68 = scalar_select %p65, %s66, %s67
      %p71 = pneg %p65
      %p72 = scmp.eq.s32.totalorder %s16, 1
      %p73 = por %p71, %p72
      %p74 = scmp.ne.s32.totalorder %s66, %s69
      %p75 = scmp.eq.s32.totalorder %s16, 0
      %p76 = por %p74, %p75
      %p77 = scmp.ne.s32.totalorder %s66, %s69
      %p78 = scmp.eq.s32.totalorder %s21, 1
      %p79 = por %p77, %p78
      %p80 = scmp.ne.s32.totalorder %s69, %s70
      %p81 = scmp.eq.s32.totalorder %s21, 0
      %p82 = por %p80, %p81
      %p83 = scmp.ne.s32.totalorder %s69, %s70
      %p84 = scmp.eq.s32.totalorder %s22, 1
      %p85 = por %p83, %p84
      %p87 = scmp.ne.s32.totalorder %s70, %s86
      %p88 = scmp.eq.s32.totalorder %s22, 0
      %p89 = por %p87, %p88
      %s90 = ssub.s32 %s23, %s35
      %s91 = ssub.s32 %s24, %s31
      %s92 = sor.u32 %s90, %s91
      %p93 = scmp.eq.s32.totalorder %s92, 0
      %s95 = sadd.s32 %s94, 1
      %s96 = scalar_select %p93, %s94, %s95
      %p99 = pneg %p93
      %p100 = scmp.eq.s32.totalorder %s16, 1
      %p101 = por %p99, %p100
      %p102 = scmp.ne.s32.totalorder %s94, %s97
      %p103 = scmp.eq.s32.totalorder %s16, 0
      %p104 = por %p102, %p103
      %p105 = scmp.ne.s32.totalorder %s94, %s97
      %p106 = scmp.eq.s32.totalorder %s21, 1
      %p107 = por %p105, %p106
      %p108 = scmp.ne.s32.totalorder %s97, %s98
      %p109 = scmp.eq.s32.totalorder %s21, 0
      %p110 = por %p108, %p109
      %p111 = scmp.ne.s32.totalorder %s97, %s98
      %p112 = scmp.eq.s32.totalorder %s22, 1
      %p113 = por %p111, %p112
      %p115 = scmp.ne.s32.totalorder %s98, %s114
      %p116 = scmp.eq.s32.totalorder %s22, 0
      %p117 = por %p115, %p116
      %s119 = sadd.s32 %s118, 1
      %p122 = scmp.eq.s32.totalorder %s16, 1
      %p123 = scmp.ne.s32.totalorder %s118, %s120
      %p124 = scmp.eq.s32.totalorder %s16, 0
      %p125 = por %p123, %p124
      %p126 = scmp.ne.s32.totalorder %s118, %s120
      %p127 = scmp.eq.s32.totalorder %s21, 1
      %p128 = por %p126, %p127
      %p129 = scmp.ne.s32.totalorder %s120, %s121
      %p130 = scmp.eq.s32.totalorder %s21, 0
      %p131 = por %p129, %p130
      %p132 = scmp.ne.s32.totalorder %s120, %s121
      %p133 = scmp.eq.s32.totalorder %s22, 1
      %p134 = por %p132, %p133
      %p136 = scmp.ne.s32.totalorder %s121, %s135
      %p137 = scmp.eq.s32.totalorder %s22, 0
      %p138 = por %p136, %p137
      %s140 = sadd.s32 %s139, 1
      %p143 = scmp.eq.s32.totalorder %s16, 1
      %p144 = scmp.ne.s32.totalorder %s139, %s141
      %p145 = scmp.eq.s32.totalorder %s16, 0
      %p146 = por %p144, %p145
      %p147 = scmp.ne.s32.totalorder %s139, %s141
      %p148 = scmp.eq.s32.totalorder %s21, 1
      %p149 = por %p147, %p148
      %p150 = scmp.ne.s32.totalorder %s141, %s142
      %p151 = scmp.eq.s32.totalorder %s21, 0
      %p152 = por %p150, %p151
      %p153 = scmp.ne.s32.totalorder %s141, %s142
      %p154 = scmp.eq.s32.totalorder %s22, 1
      %p155 = por %p153, %p154
      %p157 = scmp.ne.s32.totalorder %s142, %s156
      %p158 = scmp.eq.s32.totalorder %s22, 0
      %p159 = por %p157, %p158
      %s161 = sadd.s32 %s160, 1
      %p164 = scmp.eq.s32.totalorder %s16, 1
      %p165 = scmp.ne.s32.totalorder %s160, %s162
      %p166 = scmp.eq.s32.totalorder %s16, 0
      %p167 = por %p165, %p166
      %p168 = scmp.ne.s32.totalorder %s160, %s162
      %p169 = scmp.eq.s32.totalorder %s21, 1
      %p170 = por %p168, %p169
      %p171 = scmp.ne.s32.totalorder %s162, %s163
      %p172 = scmp.eq.s32.totalorder %s21, 0
      %p173 = por %p171, %p172
      %p174 = scmp.ne.s32.totalorder %s162, %s163
      %p175 = scmp.eq.s32.totalorder %s22, 1
      %p176 = por %p174, %p175
      %p178 = scmp.ne.s32.totalorder %s163, %s177
      %p179 = scmp.eq.s32.totalorder %s22, 0
      %p180 = por %p178, %p179
      %s182 = sadd.s32 %s181, 1
      %p185 = scmp.eq.s32.totalorder %s16, 1
      %p186 = scmp.ne.s32.totalorder %s181, %s183
      %p187 = scmp.eq.s32.totalorder %s16, 0
      %p188 = por %p186, %p187
      %p189 = scmp.ne.s32.totalorder %s181, %s183
      %p190 = scmp.eq.s32.totalorder %s21, 1
      %p191 = por %p189, %p190
      %p192 = scmp.ne.s32.totalorder %s183, %s184
      %p193 = scmp.eq.s32.totalorder %s21, 0
      %p194 = por %p192, %p193
      %p195 = scmp.ne.s32.totalorder %s183, %s184
      %p196 = scmp.eq.s32.totalorder %s22, 1
      %p197 = por %p195, %p196
      %p199 = scmp.ne.s32.totalorder %s184, %s198
      %p200 = scmp.eq.s32.totalorder %s22, 0
      %p201 = por %p199, %p200
      %s202 = ssub.s32 %s23, %s35
      %s203 = ssub.s32 %s24, %s31
      %s204 = sor.u32 %s202, %s203
      %p205 = scmp.eq.s32.totalorder %s204, 0
      %s207 = sadd.s32 %s206, 1
      %s208 = scalar_select %p205, %s206, %s207
      %p211 = pneg %p205
      %p212 = scmp.eq.s32.totalorder %s16, 1
      %p213 = por %p211, %p212
      %p214 = scmp.ne.s32.totalorder %s206, %s209
      %p215 = scmp.eq.s32.totalorder %s16, 0
      %p216 = por %p214, %p215
      %p217 = scmp.ne.s32.totalorder %s206, %s209
      %p218 = scmp.eq.s32.totalorder %s21, 1
      %p219 = por %p217, %p218
      %p220 = scmp.ne.s32.totalorder %s209, %s210
      %p221 = scmp.eq.s32.totalorder %s21, 0
      %p222 = por %p220, %p221
      %p223 = scmp.ne.s32.totalorder %s209, %s210
      %p224 = scmp.eq.s32.totalorder %s22, 1
      %p225 = por %p223, %p224
      %p227 = scmp.ne.s32.totalorder %s210, %s226
      %p228 = scmp.eq.s32.totalorder %s22, 0
      %p229 = por %p227, %p228
      %p230 = scmp.le.s32.totalorder 1, %s16
      %p231 = scmp.lt.s32.totalorder %s16, 3
      %p232 = pnand %p230, %p231
      %p233 = pneg %p232
      // Predicated region
      $region9: #{baseline_network_forward.26} parent=5 // pred_check
        _
      $region10: #{baseline_network_forward.26} parent=5 // pred_check_branch
        %235 = sbr.rel (%p232) target = $region12
      $region11: #{baseline_network_forward.26} parent=5 // pred_region
        %s236 = ssub.s32 %s16, 1
        // Predicated region
        $region13: #{baseline_network_forward.26} parent=11 // pred_check
          %p237 = pneg %p131
        $region14: #{baseline_network_forward.26} parent=11 // pred_check_branch
          %239 = sbr.rel (%p237) target = $region16
        $region15: #{baseline_network_forward.26} parent=11 // pred_region
          %s241 = ssub.s32 64, 64
          %242 = vsyncadd [#allocation3], %s241
          %s244 = sshll.u32 %s3, 4
          %s245 = int_to_ptr.vmem [resolvable:$true] %s244
          %247 = dma.vmem_to_smem %s245, 64, [#allocation2], [#allocation3]
        $region16: #{baseline_network_forward.26} parent=11 // pred_fallthru
          _
        // Predicated region
        $region17: #{baseline_network_forward.26} parent=11 // pred_check
          %p248 = pneg %p152
        $region18: #{baseline_network_forward.26} parent=11 // pred_check_branch
          %250 = sbr.rel (%p248) target = $region20
        $region19: #{baseline_network_forward.26} parent=11 // pred_region
          %s252 = ssub.s32 16, 16
          %253 = vsyncadd [#allocation5], %s252
          %s255 = sshll.u32 %s4, 4
          %s256 = int_to_ptr.vmem [resolvable:$true] %s255
          %258 = dma.vmem_to_smem %s256, 16, [#allocation4], [#allocation5]
        $region20: #{baseline_network_forward.26} parent=11 // pred_fallthru
          _
        // Predicated region
        $region21: #{baseline_network_forward.26} parent=11 // pred_check
          %p259 = pneg %p173
        $region22: #{baseline_network_forward.26} parent=11 // pred_check_branch
          %261 = sbr.rel (%p259) target = $region24
        $region23: #{baseline_network_forward.26} parent=11 // pred_region
          %s263 = ssub.s32 64, 64
          %264 = vsyncadd [#allocation5], %s263
          %s266 = sshll.u32 %s5, 4
          %s267 = int_to_ptr.vmem [resolvable:$true] %s266
          %269 = dma.vmem_to_smem %s267, 64, [#allocation6], [#allocation5]
        $region24: #{baseline_network_forward.26} parent=11 // pred_fallthru
          _
        // Predicated region
        $region25: #{baseline_network_forward.26} parent=11 // pred_check
          %p270 = pneg %p194
        $region26: #{baseline_network_forward.26} parent=11 // pred_check_branch
          %272 = sbr.rel (%p270) target = $region28
        $region27: #{baseline_network_forward.26} parent=11 // pred_region
          %s274 = ssub.s32 16, 16
          %275 = vsyncadd [#allocation8], %s274
          %s277 = sshll.u32 %s6, 4
          %s278 = int_to_ptr.vmem [resolvable:$true] %s277
          %280 = dma.vmem_to_smem %s278, 16, [#allocation7], [#allocation8]
        $region28: #{baseline_network_forward.26} parent=11 // pred_fallthru
          _
      $region12: #{baseline_network_forward.26} parent=5 // pred_fallthru
        _
      %p281 = scmp.lt.s32.totalorder %s16, 2
      // Predicated region
      $region29: #{baseline_network_forward.26} parent=5 // pred_check
        %p282 = pneg %p281
      $region30: #{baseline_network_forward.26} parent=5 // pred_check_branch
        %284 = sbr.rel (%p282) target = $region32
      $region31: #{baseline_network_forward.26} parent=5 // pred_region
        // Predicated region
        $region33: #{baseline_network_forward.26} parent=31 // pred_check
          %p285 = pneg %p50
        $region34: #{baseline_network_forward.26} parent=31 // pred_check_branch
          %287 = sbr.rel (%p285) target = $region36
        $region35: #{baseline_network_forward.26} parent=31 // pred_region
          %p288 = scmp.lt.s32.totalorder %s23, 1
          %s289 = scalar_select %p288, %s23, 1
          %p290 = scmp.lt.s32.totalorder %s24, 0
          %s291 = scalar_select %p290, %s24, 0
          %s292 = sadd.s32 %s291, %s289
          %s293 = smul.addr %s292, 8
          %s294 = scalar_lea.vmem %s0, %s293
        $region36: #{baseline_network_forward.26} parent=31 // pred_fallthru
          _
        // Predicated region
        $region37: #{baseline_network_forward.26} parent=31 // pred_check
          %p295 = pneg %p76
        $region38: #{baseline_network_forward.26} parent=31 // pred_check_branch
          %297 = sbr.rel (%p295) target = $region40
        $region39: #{baseline_network_forward.26} parent=31 // pred_region
          %p298 = scmp.lt.s32.totalorder %s23, 1
          %s299 = scalar_select %p298, %s23, 1
          %s300 = smul.addr %s299, 4
          %s301 = scalar_lea.vmem %s1, %s300
        $region40: #{baseline_network_forward.26} parent=31 // pred_fallthru
          _
        // Predicated region
        $region41: #{baseline_network_forward.26} parent=31 // pred_check
          %p302 = pneg %p104
        $region42: #{baseline_network_forward.26} parent=31 // pred_check_branch
          %304 = sbr.rel (%p302) target = $region44
        $region43: #{baseline_network_forward.26} parent=31 // pred_region
          %p305 = scmp.lt.s32.totalorder %s23, 1
          %s306 = scalar_select %p305, %s23, 1
          %p307 = scmp.lt.s32.totalorder %s24, 0
          %s308 = scalar_select %p307, %s24, 0
          %s309 = smul.addr %s306, 3
          %s310 = sadd.s32 %s308, %s309
          %s311 = smul.addr %s310, 8
          %s312 = scalar_lea.vmem %s2, %s311
        $region44: #{baseline_network_forward.26} parent=31 // pred_fallthru
          _
      $region32: #{baseline_network_forward.26} parent=5 // pred_fallthru
        _
      %p313 = scmp.le.s32.totalorder 1, %s16
      %p314 = scmp.lt.s32.totalorder %s16, 3
      %p315 = pnand %p313, %p314
      %p316 = pneg %p315
      // Predicated region
      $region45: #{baseline_network_forward.26} parent=5 // pred_check
        _
      $region46: #{baseline_network_forward.26} parent=5 // pred_check_branch
        %318 = sbr.rel (%p315) target = $region48
      $region47: #{baseline_network_forward.26} parent=5 // pred_region
        %s319 = ssub.s32 %s16, 1
        // Predicated region
        $region49: #{baseline_network_forward.26} parent=47 // pred_check
          %p320 = pneg %p131
        $region50: #{baseline_network_forward.26} parent=47 // pred_check_branch
          %322 = sbr.rel (%p320) target = $region52
        $region51: #{baseline_network_forward.26} parent=47 // pred_region
          %323 = dma.done [#allocation3], 64
        $region52: #{baseline_network_forward.26} parent=47 // pred_fallthru
          _
        // Predicated region
        $region53: #{baseline_network_forward.26} parent=47 // pred_check
          %p324 = pneg %p152
        $region54: #{baseline_network_forward.26} parent=47 // pred_check_branch
          %326 = sbr.rel (%p324) target = $region56
        $region55: #{baseline_network_forward.26} parent=47 // pred_region
          %327 = dma.done [#allocation5], 16
        $region56: #{baseline_network_forward.26} parent=47 // pred_fallthru
          _
        // Predicated region
        $region57: #{baseline_network_forward.26} parent=47 // pred_check
          %p328 = pneg %p173
        $region58: #{baseline_network_forward.26} parent=47 // pred_check_branch
          %330 = sbr.rel (%p328) target = $region60
        $region59: #{baseline_network_forward.26} parent=47 // pred_region
          %331 = dma.done [#allocation5], 64
        $region60: #{baseline_network_forward.26} parent=47 // pred_fallthru
          _
        // Predicated region
        $region61: #{baseline_network_forward.26} parent=47 // pred_check
          %p332 = pneg %p194
        $region62: #{baseline_network_forward.26} parent=47 // pred_check_branch
          %334 = sbr.rel (%p332) target = $region64
        $region63: #{baseline_network_forward.26} parent=47 // pred_region
          %335 = dma.done [#allocation8], 16
        $region64: #{baseline_network_forward.26} parent=47 // pred_fallthru
          _
        %336 = sfence
        %p337 = scmp.lt.s32.totalorder %s25, 1
        %s338 = scalar_select %p337, %s25, 1
        %p339 = scmp.lt.s32.totalorder %s26, 0
        %s340 = scalar_select %p339, %s26, 0
        %s341 = sadd.s32 %s340, %s338
        %s342 = smul.addr %s341, 8
        %s343 = scalar_lea.vmem %s0, %s342
        %p344 = pneg %p56
        %p345 = pneg %p53
        %p346 = scmp.lt.s32.totalorder %s25, 1
        %s347 = scalar_select %p346, %s25, 1
        %s348 = smul.addr %s347, 4
        %s349 = scalar_lea.vmem %s1, %s348
        %p350 = pneg %p82
        %p351 = pneg %p79
        %p352 = scmp.lt.s32.totalorder %s25, 1
        %s353 = scalar_select %p352, %s25, 1
        %p354 = scmp.lt.s32.totalorder %s26, 0
        %s355 = scalar_select %p354, %s26, 0
        %s356 = smul.addr %s353, 3
        %s357 = sadd.s32 %s355, %s356
        %s358 = smul.addr %s357, 8
        %s359 = scalar_lea.vmem %s2, %s358
        %p360 = pneg %p110
        %p361 = pneg %p107
        %p362 = pneg %p131
        %p363 = pneg %p128
        %p364 = pneg %p152
        %p365 = pneg %p149
        %p366 = pneg %p173
        %p367 = pneg %p170
        %p368 = pneg %p194
        %p369 = pneg %p191
        %p370 = pneg %p222
        %p371 = pneg %p219
        %p372 = scmp.lt.s32.totalorder %s25, 1
        %s373 = scalar_select %p372, %s25, 1
        %p374 = scmp.lt.s32.totalorder %s26, 0
        %s375 = scalar_select %p374, %s26, 0
        %s376 = smul.addr %s373, 2
        %s377 = sadd.s32 %s375, %s376
        %s378 = smul.addr %s377, 8
        %s379 = scalar_lea.vmem %s7, %s378
        %p380 = scmp.lt.s32.totalorder %s25, 1
        %s381 = scalar_select %p380, %s25, 1
        %p382 = scmp.lt.s32.totalorder %s26, 0
        %s383 = scalar_select %p382, %s26, 0
        %s384 = sadd.s32 %s383, %s381
        %s385 = smul.addr %s384, 8
        %s386 = scalar_lea.vmem %s0, %s385
        %p387 = scmp.lt.s32.totalorder %s25, 1
        %s388 = scalar_select %p387, %s25, 1
        %s389 = smul.addr %s388, 4
        %s390 = scalar_lea.vmem %s1, %s389
        %p391 = scmp.lt.s32.totalorder %s25, 1
        %s392 = scalar_select %p391, %s25, 1
        %p393 = scmp.lt.s32.totalorder %s26, 0
        %s394 = scalar_select %p393, %s26, 0
        %s395 = smul.addr %s392, 3
        %s396 = sadd.s32 %s394, %s395
        %s397 = smul.addr %s396, 8
        %s398 = scalar_lea.vmem %s2, %s397
        %p399 = scmp.lt.s32.totalorder %s25, 1
        %s400 = scalar_select %p399, %s25, 1
        %p401 = scmp.lt.s32.totalorder %s26, 0
        %s402 = scalar_select %p401, %s26, 0
        %s403 = smul.addr %s400, 2
        %s404 = sadd.s32 %s402, %s403
        %s405 = smul.addr %s404, 8
        %s406 = scalar_lea.vmem %s7, %s405
        %v407 = vld [vmem:[%s386] sm:$0xff]
        %v408 = vld [vmem:[%s390] sm:$0x1]
        %410 = vset.pattern.permute.xlu0 0
        %411 = vperm.xlu0 %410, %v407
        %v412 = vpop.permute.xlu0 %411
        %v414 = vlaneseq
        %v415 = vshrl.u32 %v414, 7
        %v416 = vsub.s32 0, %v415
        %v417 = vrot.slane %v408, %v416
        %v418 = vadd.f32 %v412, %v417
        %s419 = sld [smem:[#allocation4]]
        %v420 = vstv %s419
        %v421 = vadd.f32 %v418, %v420
        %s422 = sld [smem:[#allocation2]]
        %v423 = vld [vmem:[%s398] sm:$0xff]
        %v424 = vstv %s422
        %v425 = vmul.f32 %v424, %v423
        %v426 = vadd.f32 %v421, %v425
        %s427 = sld [smem:[#allocation2 + $0x80]]
        %s428 = scalar_lea.vmem %s398, 8
        %v429 = vld [vmem:[%s428] sm:$0xff]
        %v430 = vstv %s427
        %v431 = vmul.f32 %v430, %v429
        %v432 = vadd.f32 %v426, %v431
        %s433 = sld [smem:[#allocation2 + $0x100]]
        %s434 = scalar_lea.vmem %s398, 16
        %v435 = vld [vmem:[%s434] sm:$0xff]
        %v436 = vstv %s433
        %v437 = vmul.f32 %v436, %v435
        %v438 = vadd.f32 %v432, %v437
        %v439 = vld [vmem:[%s390 + $0x1] sm:$0x1]
        %440 = vset.pattern.permute.xlu0 1
        %441 = vperm.xlu0 %440, %v407
        %v442 = vpop.permute.xlu0 %441
        %v444 = vlaneseq
        %v445 = vshrl.u32 %v444, 7
        %v446 = vsub.s32 0, %v445
        %v447 = vrot.slane %v439, %v446
        %v448 = vadd.f32 %v442, %v447
        %s449 = sld [smem:[#allocation4 + $0x1]]
        %v450 = vstv %s449
        %v451 = vadd.f32 %v448, %v450
        %s452 = sld [smem:[#allocation2 + $0x1]]
        %v453 = vstv %s452
        %v454 = vmul.f32 %v453, %v423
        %v455 = vadd.f32 %v451, %v454
        %s456 = sld [smem:[#allocation2 + $0x81]]
        %v457 = vstv %s456
        %v458 = vmul.f32 %v457, %v429
        %v459 = vadd.f32 %v455, %v458
        %s460 = sld [smem:[#allocation2 + $0x101]]
        %v461 = vstv %s460
        %v462 = vmul.f32 %v461, %v435
        %v463 = vadd.f32 %v459, %v462
        %v464 = vld [vmem:[%s390 + $0x2] sm:$0x1]
        %465 = vset.pattern.permute.xlu0 2
        %466 = vperm.xlu0 %465, %v407
        %v467 = vpop.permute.xlu0 %466
        %v469 = vlaneseq
        %v470 = vshrl.u32 %v469, 7
        %v471 = vsub.s32 0, %v470
        %v472 = vrot.slane %v464, %v471
        %v473 = vadd.f32 %v467, %v472
        %s474 = sld [smem:[#allocation4 + $0x2]]
        %v475 = vstv %s474
        %v476 = vadd.f32 %v473, %v475
        %s477 = sld [smem:[#allocation2 + $0x2]]
        %v478 = vstv %s477
        %v479 = vmul.f32 %v478, %v423
        %v480 = vadd.f32 %v476, %v479
        %s481 = sld [smem:[#allocation2 + $0x82]]
        %v482 = vstv %s481
        %v483 = vmul.f32 %v482, %v429
        %v484 = vadd.f32 %v480, %v483
        %s485 = sld [smem:[#allocation2 + $0x102]]
        %v486 = vstv %s485
        %v487 = vmul.f32 %v486, %v435
        %v488 = vadd.f32 %v484, %v487
        %vm489 = vcmp.gt.f32.partialorder %v438, 0.0
        %v490 = vmin.f32 %v438, 0.0
        %v491 = vmul.f32 %v490, 1.442695
        %v492 = vpow.pop %v491
        %v493 = vsub.f32 %v492, 1.0
        %v494 = vsel %vm489, %v438, %v493
        %vm495 = vcmp.gt.f32.partialorder %v463, 0.0
        %v496 = vmin.f32 %v463, 0.0
        %v497 = vmul.f32 %v496, 1.442695
        %v498 = vpow.pop %v497
        %v499 = vsub.f32 %v498, 1.0
        %v500 = vsel %vm495, %v463, %v499
        %vm501 = vcmp.gt.f32.partialorder %v488, 0.0
        %v502 = vmin.f32 %v488, 0.0
        %v503 = vmul.f32 %v502, 1.442695
        %v504 = vpow.pop %v503
        %v505 = vsub.f32 %v504, 1.0
        %v506 = vsel %vm501, %v488, %v505
        %s507 = sld [smem:[#allocation7]]
        %s508 = sld [smem:[#allocation6]]
        %v509 = vstv %s508
        %v510 = vmul.f32 %v509, %v494
        %v511 = vstv %s507
        %v512 = vadd.f32 %v511, %v510
        %s513 = sld [smem:[#allocation6 + $0x80]]
        %v514 = vstv %s513
        %v515 = vmul.f32 %v514, %v500
        %v516 = vadd.f32 %v512, %v515
        %s517 = sld [smem:[#allocation6 + $0x100]]
        %v518 = vstv %s517
        %v519 = vmul.f32 %v518, %v506
        %v520 = vadd.f32 %v516, %v519
        %s521 = sld [smem:[#allocation7 + $0x1]]
        %s522 = sld [smem:[#allocation6 + $0x1]]
        %v523 = vstv %s522
        %v524 = vmul.f32 %v523, %v494
        %v525 = vstv %s521
        %v526 = vadd.f32 %v525, %v524
        %s527 = sld [smem:[#allocation6 + $0x81]]
        %v528 = vstv %s527
        %v529 = vmul.f32 %v528, %v500
        %v530 = vadd.f32 %v526, %v529
        %s531 = sld [smem:[#allocation6 + $0x101]]
        %v532 = vstv %s531
        %v533 = vmul.f32 %v532, %v506
        %v534 = vadd.f32 %v530, %v533
        %vm535 = vcmask 64512
        %536 = vst.msk [vmem:[%s406] sm:$0xff] %vm535, %v520
        %s537 = scalar_lea.vmem %s406, 8
        %538 = vst.msk [vmem:[%s537] sm:$0xff] %vm535, %v534
        %p539 = scmp.lt.s32.totalorder %s25, 1
        %s540 = scalar_select %p539, %s25, 1
        %p541 = scmp.lt.s32.totalorder %s26, 0
        %s542 = scalar_select %p541, %s26, 0
        %s543 = smul.addr %s540, 2
        %s544 = sadd.s32 %s542, %s543
        %s545 = smul.addr %s544, 8
        %s546 = scalar_lea.vmem %s7, %s545
        // Predicated region
        $region65: #{baseline_network_forward.26} parent=47 // pred_check
          %p547 = pneg %p219
        $region66: #{baseline_network_forward.26} parent=47 // pred_check_branch
          %549 = sbr.rel (%p547) target = $region68
        $region67: #{baseline_network_forward.26} parent=47 // pred_region
          _
        $region68: #{baseline_network_forward.26} parent=47 // pred_fallthru
          _
      $region48: #{baseline_network_forward.26} parent=5 // pred_fallthru
        _
      %p550 = scmp.le.s32.totalorder 2, %s16
      // Predicated region
      $region69: #{baseline_network_forward.26} parent=5 // pred_check
        %p551 = pneg %p550
      $region70: #{baseline_network_forward.26} parent=5 // pred_check_branch
        %553 = sbr.rel (%p551) target = $region72
      $region71: #{baseline_network_forward.26} parent=5 // pred_region
        %s554 = ssub.s32 %s16, 2
        // Predicated region
        $region73: #{baseline_network_forward.26} parent=71 // pred_check
          %p555 = pneg %p225
        $region74: #{baseline_network_forward.26} parent=71 // pred_check_branch
          %557 = sbr.rel (%p555) target = $region76
        $region75: #{baseline_network_forward.26} parent=71 // pred_region
          %p558 = scmp.lt.s32.totalorder %s27, 1
          %s559 = scalar_select %p558, %s27, 1
          %p560 = scmp.lt.s32.totalorder %s28, 0
          %s561 = scalar_select %p560, %s28, 0
          %s562 = smul.addr %s559, 2
          %s563 = sadd.s32 %s561, %s562
          %s564 = smul.addr %s563, 8
          %s565 = scalar_lea.vmem %s7, %s564
        $region76: #{baseline_network_forward.26} parent=71 // pred_fallthru
          _
      $region72: #{baseline_network_forward.26} parent=5 // pred_fallthru
        _
    $region6: #{baseline_network_forward.26} parent=1 // loop_footer
      %s20 = sadd.s32 1, %s16
    $region7: #{baseline_network_forward.26} parent=1 // loop_footer_branch
      %15 = sbr.rel target = $region3
    $region8: #{baseline_network_forward.26} parent=1 // loop_exit
      _
    %566 = vsyncpa [#allocation3], 1
    %s567 = scalar_lea.sflag [#allocation3], 1
    %568 = vsyncpa %s567, 1
    %569 = vsyncpa [#allocation5], 1
    %570 = vsyncpa [#allocation8], 1

// kernel: baseline_network_forward.27
$region0: #{baseline_network_forward.27}
  #allocation0 [shape = 'u32[]', space=smem, size = 0x4, offset = 0x4, fixed_abs, tag = 'smem constant byte address 0x4 - core index']
  #allocation1 [shape = 'u32[144,128]{1,0:T(1,128)}', space=vmem, size = 0x12000, scoped, tag = 'internal scratch']
  #allocation2 [shape = 'f32[1]{0:T(128)S(6)}', space=smem, size = 0x200, scoped, tag = 'scoped memory for baseline_network_forward.27']
  %s0 = inlined_call_operand.vmem [shape: f32[2,7,8,8], index: 0, kind: input, shape index: {}]
  %s1 = inlined_call_operand.vmem [shape: f32[7,14], index: 1, kind: input, shape index: {}]
  %s2 = inlined_call_operand.vmem [shape: f32[14], index: 2, kind: input, shape index: {}]
  %s3 = inlined_call_operand.vmem [shape: f32[14,14], index: 3, kind: input, shape index: {}]
  %s4 = inlined_call_operand.vmem [shape: f32[14], index: 4, kind: input, shape index: {}]
  %s5 = inlined_call_operand.vmem [shape: f32[14,1], index: 5, kind: input, shape index: {}]
  %s6 = inlined_call_operand.<no memory space> [shape: f32[1], index: 6, kind: input, shape index: {}]
  %s7 = inlined_call_operand.vmem [shape: f32[2,1,8,8], index: 7, kind: output, shape index: {}]
  %s8 = sld [smem:[#allocation0]]
  $region81: #{baseline_network_forward.27} parent=0
    _
  %s10 = ssub.s32 1, %s8
  %s11 = scalar_select 0, %s10, %s8
  %12 = sst [smem:[#allocation2]] %s6
  $region1: #{baseline_network_forward.27} parent=0
    #allocation3 [shape = 'u8[4096]{0}', space=smem, size = 0x1000, scoped, tag = 'input window, operand 1, single buffered']
    #allocation4 [shape = 's32[2]{0}', space=sflag, size = 0x8, scoped, tag = 'scoped memory for baseline_network_forward.27']
    #allocation5 [shape = 'u8[512]{0}', space=smem, size = 0x200, scoped, tag = 'input window, operand 2, single buffered']
    #allocation6 [shape = 's32[1]{0}', space=sflag, size = 0x4, scoped, tag = 'scoped memory for baseline_network_forward.27']
    #allocation7 [shape = 'u8[8192]{0}', space=smem, size = 0x2000, scoped, tag = 'input window, operand 3, single buffered']
    #allocation8 [shape = 'u8[512]{0}', space=smem, size = 0x200, scoped, tag = 'input window, operand 4, single buffered']
    #allocation9 [shape = 's32[1]{0}', space=sflag, size = 0x4, scoped, tag = 'scoped memory for baseline_network_forward.27']
    #allocation10 [shape = 'u8[8192]{0}', space=smem, size = 0x2000, scoped, tag = 'input window, operand 5, single buffered']
    %13 = vsyncpa [#allocation4], 0
    %14 = vsyncpa [#allocation6], 0
    %15 = vsyncpa [#allocation9], 0
    loop: start=0, step=1, limit=4
    $region2: #{baseline_network_forward.27} parent=1 // loop_pre_header
      _
    $region3: #{baseline_network_forward.27} parent=1 // loop_header
      %s17 = sphi 0, %s21
      %p18 = scmp.ge.s32.totalorder %s17, 4
      %s24 = sphi 0, %s36
      %s25 = sphi 0, %s32
      %s26 = sphi 0, %s24
      %s27 = sphi 0, %s25
      %s28 = sphi 0, %s26
      %s29 = sphi 0, %s27
      %s41 = sphi 0, %s43
      %s44 = sphi 0, %s41
      %s45 = sphi 0, %s44
      %s61 = sphi 0, %s45
      %s65 = sphi 0, %s65
      %s67 = sphi 0, %s65
      %s68 = sphi 0, %s67
      %s82 = sphi 0, %s68
      %s86 = sphi 0, %s86
      %s88 = sphi 0, %s86
      %s89 = sphi 0, %s88
      %s103 = sphi 0, %s89
      %s107 = sphi 0, %s107
      %s109 = sphi 0, %s107
      %s110 = sphi 0, %s109
      %s124 = sphi 0, %s110
      %s128 = sphi 0, %s128
      %s130 = sphi 0, %s128
      %s131 = sphi 0, %s130
      %s145 = sphi 0, %s131
      %s149 = sphi 0, %s149
      %s151 = sphi 0, %s149
      %s152 = sphi 0, %s151
      %s166 = sphi 0, %s152
      %s170 = sphi 0, %s170
      %s172 = sphi 0, %s170
      %s173 = sphi 0, %s172
      %s187 = sphi 0, %s173
      %s195 = sphi 0, %s197
      %s198 = sphi 0, %s195
      %s199 = sphi 0, %s198
      %s215 = sphi 0, %s199
    $region4: #{baseline_network_forward.27} parent=1 // loop_header_branch
      %20 = sbr.rel (%p18) target = $region8
    $region5: #{baseline_network_forward.27} parent=1 // loop_body
      %s22 = ssub.s32 %s17, 1
      %s23 = ssub.s32 %s17, 2
      %s30 = sadd.s32 1, %s25
      %p31 = scmp.ge.s32.totalorder %s30, 1
      %s32 = scalar_select %p31, 0, %s30
      %s33 = sadd.s32 1, %s24
      %s34 = scalar_select %p31, %s33, %s24
      %p35 = scmp.ge.s32.totalorder %s34, 2
      %s36 = scalar_select %p35, 0, %s34
      %s37 = ssub.s32 %s24, %s36
      %s38 = ssub.s32 %s25, %s32
      %s39 = sor.u32 %s37, %s38
      %p40 = scmp.eq.s32.totalorder %s39, 0
      %s42 = sadd.s32 %s41, 1
      %s43 = scalar_select %p40, %s41, %s42
      %p46 = pneg %p40
      %p47 = scmp.eq.s32.totalorder %s17, 1
      %p48 = por %p46, %p47
      %p49 = scmp.ne.s32.totalorder %s41, %s44
      %p50 = scmp.eq.s32.totalorder %s17, 0
      %p51 = por %p49, %p50
      %p52 = scmp.ne.s32.totalorder %s41, %s44
      %p53 = scmp.eq.s32.totalorder %s22, 1
      %p54 = por %p52, %p53
      %p55 = scmp.ne.s32.totalorder %s44, %s45
      %p56 = scmp.eq.s32.totalorder %s22, 0
      %p57 = por %p55, %p56
      %p58 = scmp.ne.s32.totalorder %s44, %s45
      %p59 = scmp.eq.s32.totalorder %s23, 1
      %p60 = por %p58, %p59
      %p62 = scmp.ne.s32.totalorder %s45, %s61
      %p63 = scmp.eq.s32.totalorder %s23, 0
      %p64 = por %p62, %p63
      %s66 = sadd.s32 %s65, 1
      %p69 = scmp.eq.s32.totalorder %s17, 1
      %p70 = scmp.ne.s32.totalorder %s65, %s67
      %p71 = scmp.eq.s32.totalorder %s17, 0
      %p72 = por %p70, %p71
      %p73 = scmp.ne.s32.totalorder %s65, %s67
      %p74 = scmp.eq.s32.totalorder %s22, 1
      %p75 = por %p73, %p74
      %p76 = scmp.ne.s32.totalorder %s67, %s68
      %p77 = scmp.eq.s32.totalorder %s22, 0
      %p78 = por %p76, %p77
      %p79 = scmp.ne.s32.totalorder %s67, %s68
      %p80 = scmp.eq.s32.totalorder %s23, 1
      %p81 = por %p79, %p80
      %p83 = scmp.ne.s32.totalorder %s68, %s82
      %p84 = scmp.eq.s32.totalorder %s23, 0
      %p85 = por %p83, %p84
      %s87 = sadd.s32 %s86, 1
      %p90 = scmp.eq.s32.totalorder %s17, 1
      %p91 = scmp.ne.s32.totalorder %s86, %s88
      %p92 = scmp.eq.s32.totalorder %s17, 0
      %p93 = por %p91, %p92
      %p94 = scmp.ne.s32.totalorder %s86, %s88
      %p95 = scmp.eq.s32.totalorder %s22, 1
      %p96 = por %p94, %p95
      %p97 = scmp.ne.s32.totalorder %s88, %s89
      %p98 = scmp.eq.s32.totalorder %s22, 0
      %p99 = por %p97, %p98
      %p100 = scmp.ne.s32.totalorder %s88, %s89
      %p101 = scmp.eq.s32.totalorder %s23, 1
      %p102 = por %p100, %p101
      %p104 = scmp.ne.s32.totalorder %s89, %s103
      %p105 = scmp.eq.s32.totalorder %s23, 0
      %p106 = por %p104, %p105
      %s108 = sadd.s32 %s107, 1
      %p111 = scmp.eq.s32.totalorder %s17, 1
      %p112 = scmp.ne.s32.totalorder %s107, %s109
      %p113 = scmp.eq.s32.totalorder %s17, 0
      %p114 = por %p112, %p113
      %p115 = scmp.ne.s32.totalorder %s107, %s109
      %p116 = scmp.eq.s32.totalorder %s22, 1
      %p117 = por %p115, %p116
      %p118 = scmp.ne.s32.totalorder %s109, %s110
      %p119 = scmp.eq.s32.totalorder %s22, 0
      %p120 = por %p118, %p119
      %p121 = scmp.ne.s32.totalorder %s109, %s110
      %p122 = scmp.eq.s32.totalorder %s23, 1
      %p123 = por %p121, %p122
      %p125 = scmp.ne.s32.totalorder %s110, %s124
      %p126 = scmp.eq.s32.totalorder %s23, 0
      %p127 = por %p125, %p126
      %s129 = sadd.s32 %s128, 1
      %p132 = scmp.eq.s32.totalorder %s17, 1
      %p133 = scmp.ne.s32.totalorder %s128, %s130
      %p134 = scmp.eq.s32.totalorder %s17, 0
      %p135 = por %p133, %p134
      %p136 = scmp.ne.s32.totalorder %s128, %s130
      %p137 = scmp.eq.s32.totalorder %s22, 1
      %p138 = por %p136, %p137
      %p139 = scmp.ne.s32.totalorder %s130, %s131
      %p140 = scmp.eq.s32.totalorder %s22, 0
      %p141 = por %p139, %p140
      %p142 = scmp.ne.s32.totalorder %s130, %s131
      %p143 = scmp.eq.s32.totalorder %s23, 1
      %p144 = por %p142, %p143
      %p146 = scmp.ne.s32.totalorder %s131, %s145
      %p147 = scmp.eq.s32.totalorder %s23, 0
      %p148 = por %p146, %p147
      %s150 = sadd.s32 %s149, 1
      %p153 = scmp.eq.s32.totalorder %s17, 1
      %p154 = scmp.ne.s32.totalorder %s149, %s151
      %p155 = scmp.eq.s32.totalorder %s17, 0
      %p156 = por %p154, %p155
      %p157 = scmp.ne.s32.totalorder %s149, %s151
      %p158 = scmp.eq.s32.totalorder %s22, 1
      %p159 = por %p157, %p158
      %p160 = scmp.ne.s32.totalorder %s151, %s152
      %p161 = scmp.eq.s32.totalorder %s22, 0
      %p162 = por %p160, %p161
      %p163 = scmp.ne.s32.totalorder %s151, %s152
      %p164 = scmp.eq.s32.totalorder %s23, 1
      %p165 = por %p163, %p164
      %p167 = scmp.ne.s32.totalorder %s152, %s166
      %p168 = scmp.eq.s32.totalorder %s23, 0
      %p169 = por %p167, %p168
      %s171 = sadd.s32 %s170, 1
      %p174 = scmp.eq.s32.totalorder %s17, 1
      %p175 = scmp.ne.s32.totalorder %s170, %s172
      %p176 = scmp.eq.s32.totalorder %s17, 0
      %p177 = por %p175, %p176
      %p178 = scmp.ne.s32.totalorder %s170, %s172
      %p179 = scmp.eq.s32.totalorder %s22, 1
      %p180 = por %p178, %p179
      %p181 = scmp.ne.s32.totalorder %s172, %s173
      %p182 = scmp.eq.s32.totalorder %s22, 0
      %p183 = por %p181, %p182
      %p184 = scmp.ne.s32.totalorder %s172, %s173
      %p185 = scmp.eq.s32.totalorder %s23, 1
      %p186 = por %p184, %p185
      %p188 = scmp.ne.s32.totalorder %s173, %s187
      %p189 = scmp.eq.s32.totalorder %s23, 0
      %p190 = por %p188, %p189
      %s191 = ssub.s32 %s24, %s36
      %s192 = ssub.s32 %s25, %s32
      %s193 = sor.u32 %s191, %s192
      %p194 = scmp.eq.s32.totalorder %s193, 0
      %s196 = sadd.s32 %s195, 1
      %s197 = scalar_select %p194, %s195, %s196
      %p200 = pneg %p194
      %p201 = scmp.eq.s32.totalorder %s17, 1
      %p202 = por %p200, %p201
      %p203 = scmp.ne.s32.totalorder %s195, %s198
      %p204 = scmp.eq.s32.totalorder %s17, 0
      %p205 = por %p203, %p204
      %p206 = scmp.ne.s32.totalorder %s195, %s198
      %p207 = scmp.eq.s32.totalorder %s22, 1
      %p208 = por %p206, %p207
      %p209 = scmp.ne.s32.totalorder %s198, %s199
      %p210 = scmp.eq.s32.totalorder %s22, 0
      %p211 = por %p209, %p210
      %p212 = scmp.ne.s32.totalorder %s198, %s199
      %p213 = scmp.eq.s32.totalorder %s23, 1
      %p214 = por %p212, %p213
      %p216 = scmp.ne.s32.totalorder %s199, %s215
      %p217 = scmp.eq.s32.totalorder %s23, 0
      %p218 = por %p216, %p217
      %p219 = scmp.le.s32.totalorder 1, %s17
      %p220 = scmp.lt.s32.totalorder %s17, 3
      %p221 = pnand %p219, %p220
      %p222 = pneg %p221
      // Predicated region
      $region9: #{baseline_network_forward.27} parent=5 // pred_check
        _
      $region10: #{baseline_network_forward.27} parent=5 // pred_check_branch
        %224 = sbr.rel (%p221) target = $region12
      $region11: #{baseline_network_forward.27} parent=5 // pred_region
        %s225 = ssub.s32 %s17, 1
        // Predicated region
        $region13: #{baseline_network_forward.27} parent=11 // pred_check
          %p226 = pneg %p78
        $region14: #{baseline_network_forward.27} parent=11 // pred_check_branch
          %228 = sbr.rel (%p226) target = $region16
        $region15: #{baseline_network_forward.27} parent=11 // pred_region
          %s230 = ssub.s32 128, 128
          %231 = vsyncadd [#allocation4], %s230
          %s233 = sshll.u32 %s1, 4
          %s234 = int_to_ptr.vmem [resolvable:$true] %s233
          %236 = dma.vmem_to_smem %s234, 128, [#allocation3], [#allocation4]
        $region16: #{baseline_network_forward.27} parent=11 // pred_fallthru
          _
        // Predicated region
        $region17: #{baseline_network_forward.27} parent=11 // pred_check
          %p237 = pneg %p99
        $region18: #{baseline_network_forward.27} parent=11 // pred_check_branch
          %239 = sbr.rel (%p237) target = $region20
        $region19: #{baseline_network_forward.27} parent=11 // pred_region
          %s241 = ssub.s32 16, 16
          %242 = vsyncadd [#allocation6], %s241
          %s244 = sshll.u32 %s2, 4
          %s245 = int_to_ptr.vmem [resolvable:$true] %s244
          %247 = dma.vmem_to_smem %s245, 16, [#allocation5], [#allocation6]
        $region20: #{baseline_network_forward.27} parent=11 // pred_fallthru
          _
        // Predicated region
        $region21: #{baseline_network_forward.27} parent=11 // pred_check
          %p248 = pneg %p120
        $region22: #{baseline_network_forward.27} parent=11 // pred_check_branch
          %250 = sbr.rel (%p248) target = $region24
        $region23: #{baseline_network_forward.27} parent=11 // pred_region
          %s252 = ssub.s32 256, 256
          %253 = vsyncadd [#allocation6], %s252
          %s254 = sshll.u32 %s3, 4
          %s255 = int_to_ptr.vmem [resolvable:$true] %s254
          %260 = dma.vmem_to_smem %s255, 256, [#allocation7], [#allocation6], 128, 128, 8
        $region24: #{baseline_network_forward.27} parent=11 // pred_fallthru
          _
        // Predicated region
        $region25: #{baseline_network_forward.27} parent=11 // pred_check
          %p261 = pneg %p141
        $region26: #{baseline_network_forward.27} parent=11 // pred_check_branch
          %263 = sbr.rel (%p261) target = $region28
        $region27: #{baseline_network_forward.27} parent=11 // pred_region
          %s265 = ssub.s32 16, 16
          %266 = vsyncadd [#allocation9], %s265
          %s268 = sshll.u32 %s4, 4
          %s269 = int_to_ptr.vmem [resolvable:$true] %s268
          %271 = dma.vmem_to_smem %s269, 16, [#allocation8], [#allocation9]
        $region28: #{baseline_network_forward.27} parent=11 // pred_fallthru
          _
        // Predicated region
        $region29: #{baseline_network_forward.27} parent=11 // pred_check
          %p272 = pneg %p162
        $region30: #{baseline_network_forward.27} parent=11 // pred_check_branch
          %274 = sbr.rel (%p272) target = $region32
        $region31: #{baseline_network_forward.27} parent=11 // pred_region
          %s276 = ssub.s32 256, 256
          %277 = vsyncadd [#allocation9], %s276
          %s278 = sshll.u32 %s5, 4
          %s279 = int_to_ptr.vmem [resolvable:$true] %s278
          %284 = dma.vmem_to_smem %s279, 256, [#allocation10], [#allocation9], 128, 128, 8
        $region32: #{baseline_network_forward.27} parent=11 // pred_fallthru
          _
        // Predicated region
        $region33: #{baseline_network_forward.27} parent=11 // pred_check
          %p285 = pneg %p183
        $region34: #{baseline_network_forward.27} parent=11 // pred_check_branch
          %287 = sbr.rel (%p285) target = $region36
        $region35: #{baseline_network_forward.27} parent=11 // pred_region
          _
        $region36: #{baseline_network_forward.27} parent=11 // pred_fallthru
          _
      $region12: #{baseline_network_forward.27} parent=5 // pred_fallthru
        _
      %p288 = scmp.lt.s32.totalorder %s17, 2
      // Predicated region
      $region37: #{baseline_network_forward.27} parent=5 // pred_check
        %p289 = pneg %p288
      $region38: #{baseline_network_forward.27} parent=5 // pred_check_branch
        %291 = sbr.rel (%p289) target = $region40
      $region39: #{baseline_network_forward.27} parent=5 // pred_region
        // Predicated region
        $region41: #{baseline_network_forward.27} parent=39 // pred_check
          %p292 = pneg %p51
        $region42: #{baseline_network_forward.27} parent=39 // pred_check_branch
          %294 = sbr.rel (%p292) target = $region44
        $region43: #{baseline_network_forward.27} parent=39 // pred_region
          %p295 = scmp.lt.s32.totalorder %s24, 1
          %s296 = scalar_select %p295, %s24, 1
          %p297 = scmp.lt.s32.totalorder %s25, 0
          %s298 = scalar_select %p297, %s25, 0
          %s299 = smul.addr %s296, 7
          %s300 = sadd.s32 %s298, %s299
          %s301 = smul.addr %s300, 8
          %s302 = scalar_lea.vmem %s0, %s301
        $region44: #{baseline_network_forward.27} parent=39 // pred_fallthru
          _
      $region40: #{baseline_network_forward.27} parent=5 // pred_fallthru
        _
      %p303 = scmp.le.s32.totalorder 1, %s17
      %p304 = scmp.lt.s32.totalorder %s17, 3
      %p305 = pnand %p303, %p304
      %p306 = pneg %p305
      // Predicated region
      $region45: #{baseline_network_forward.27} parent=5 // pred_check
        _
      $region46: #{baseline_network_forward.27} parent=5 // pred_check_branch
        %308 = sbr.rel (%p305) target = $region48
      $region47: #{baseline_network_forward.27} parent=5 // pred_region
        %s309 = ssub.s32 %s17, 1
        // Predicated region
        $region49: #{baseline_network_forward.27} parent=47 // pred_check
          %p310 = pneg %p78
        $region50: #{baseline_network_forward.27} parent=47 // pred_check_branch
          %312 = sbr.rel (%p310) target = $region52
        $region51: #{baseline_network_forward.27} parent=47 // pred_region
          %313 = dma.done [#allocation4], 128
        $region52: #{baseline_network_forward.27} parent=47 // pred_fallthru
          _
        // Predicated region
        $region53: #{baseline_network_forward.27} parent=47 // pred_check
          %p314 = pneg %p99
        $region54: #{baseline_network_forward.27} parent=47 // pred_check_branch
          %316 = sbr.rel (%p314) target = $region56
        $region55: #{baseline_network_forward.27} parent=47 // pred_region
          %317 = dma.done [#allocation6], 16
        $region56: #{baseline_network_forward.27} parent=47 // pred_fallthru
          _
        // Predicated region
        $region57: #{baseline_network_forward.27} parent=47 // pred_check
          %p318 = pneg %p120
        $region58: #{baseline_network_forward.27} parent=47 // pred_check_branch
          %320 = sbr.rel (%p318) target = $region60
        $region59: #{baseline_network_forward.27} parent=47 // pred_region
          %321 = dma.done [#allocation6], 256
        $region60: #{baseline_network_forward.27} parent=47 // pred_fallthru
          _
        // Predicated region
        $region61: #{baseline_network_forward.27} parent=47 // pred_check
          %p322 = pneg %p141
        $region62: #{baseline_network_forward.27} parent=47 // pred_check_branch
          %324 = sbr.rel (%p322) target = $region64
        $region63: #{baseline_network_forward.27} parent=47 // pred_region
          %325 = dma.done [#allocation9], 16
        $region64: #{baseline_network_forward.27} parent=47 // pred_fallthru
          _
        // Predicated region
        $region65: #{baseline_network_forward.27} parent=47 // pred_check
          %p326 = pneg %p162
        $region66: #{baseline_network_forward.27} parent=47 // pred_check_branch
          %328 = sbr.rel (%p326) target = $region68
        $region67: #{baseline_network_forward.27} parent=47 // pred_region
          %329 = dma.done [#allocation9], 256
        $region68: #{baseline_network_forward.27} parent=47 // pred_fallthru
          _
        %330 = sfence
        %p331 = scmp.lt.s32.totalorder %s26, 1
        %s332 = scalar_select %p331, %s26, 1
        %p333 = scmp.lt.s32.totalorder %s27, 0
        %s334 = scalar_select %p333, %s27, 0
        %s335 = smul.addr %s332, 7
        %s336 = sadd.s32 %s334, %s335
        %s337 = smul.addr %s336, 8
        %s338 = scalar_lea.vmem %s0, %s337
        %p339 = pneg %p57
        %p340 = pneg %p54
        %p341 = pneg %p78
        %p342 = pneg %p75
        %p343 = pneg %p99
        %p344 = pneg %p96
        %p345 = pneg %p120
        %p346 = pneg %p117
        %p347 = pneg %p141
        %p348 = pneg %p138
        %p349 = pneg %p162
        %p350 = pneg %p159
        %p351 = pneg %p183
        %p352 = pneg %p180
        %p353 = pneg %p211
        %p354 = pneg %p208
        %p355 = scmp.lt.s32.totalorder %s26, 1
        %s356 = scalar_select %p355, %s26, 1
        %p357 = scmp.lt.s32.totalorder %s27, 0
        %s358 = scalar_select %p357, %s27, 0
        %s359 = sadd.s32 %s358, %s356
        %s360 = smul.addr %s359, 8
        %s361 = scalar_lea.vmem %s7, %s360
        %p362 = scmp.lt.s32.totalorder %s26, 1
        %s363 = scalar_select %p362, %s26, 1
        %p364 = scmp.lt.s32.totalorder %s27, 0
        %s365 = scalar_select %p364, %s27, 0
        %s366 = smul.addr %s363, 7
        %s367 = sadd.s32 %s365, %s366
        %s368 = smul.addr %s367, 8
        %s369 = scalar_lea.vmem %s0, %s368
        %p370 = scmp.lt.s32.totalorder %s26, 1
        %s371 = scalar_select %p370, %s26, 1
        %p372 = scmp.lt.s32.totalorder %s27, 0
        %s373 = scalar_select %p372, %s27, 0
        %s374 = sadd.s32 %s373, %s371
        %s375 = smul.addr %s374, 8
        %s376 = scalar_lea.vmem %s7, %s375
        %s377 = sld [smem:[#allocation5]]
        %s378 = sld [smem:[#allocation3]]
        %v379 = vld [vmem:[%s369] sm:$0xff]
        %v380 = vstv %s378
        %v381 = vmul.f32 %v380, %v379
        %v382 = vstv %s377
        %v383 = vadd.f32 %v382, %v381
        %s384 = sld [smem:[#allocation3 + $0x80]]
        %s385 = scalar_lea.vmem %s369, 8
        %v386 = vld [vmem:[%s385] sm:$0xff]
        %v387 = vstv %s384
        %v388 = vmul.f32 %v387, %v386
        %v389 = vadd.f32 %v383, %v388
        %s390 = sld [smem:[#allocation3 + $0x100]]
        %s391 = scalar_lea.vmem %s369, 16
        %v392 = vld [vmem:[%s391] sm:$0xff]
        %v393 = vstv %s390
        %v394 = vmul.f32 %v393, %v392
        %v395 = vadd.f32 %v389, %v394
        %s396 = sld [smem:[#allocation3 + $0x180]]
        %s397 = scalar_lea.vmem %s369, 24
        %v398 = vld [vmem:[%s397] sm:$0xff]
        %v399 = vstv %s396
        %v400 = vmul.f32 %v399, %v398
        %v401 = vadd.f32 %v395, %v400
        %s402 = sld [smem:[#allocation3 + $0x200]]
        %s403 = scalar_lea.vmem %s369, 32
        %v404 = vld [vmem:[%s403] sm:$0xff]
        %v405 = vstv %s402
        %v406 = vmul.f32 %v405, %v404
        %v407 = vadd.f32 %v401, %v406
        %s408 = sld [smem:[#allocation3 + $0x280]]
        %s409 = scalar_lea.vmem %s369, 40
        %v410 = vld [vmem:[%s409] sm:$0xff]
        %v411 = vstv %s408
        %v412 = vmul.f32 %v411, %v410
        %v413 = vadd.f32 %v407, %v412
        %s414 = sld [smem:[#allocation3 + $0x300]]
        %s415 = scalar_lea.vmem %s369, 48
        %v416 = vld [vmem:[%s415] sm:$0xff]
        %v417 = vstv %s414
        %v418 = vmul.f32 %v417, %v416
        %v419 = vadd.f32 %v413, %v418
        %s420 = sld [smem:[#allocation5 + $0x1]]
        %s421 = sld [smem:[#allocation3 + $0x1]]
        %v422 = vstv %s421
        %v423 = vmul.f32 %v422, %v379
        %v424 = vstv %s420
        %v425 = vadd.f32 %v424, %v423
        %s426 = sld [smem:[#allocation3 + $0x81]]
        %v427 = vstv %s426
        %v428 = vmul.f32 %v427, %v386
        %v429 = vadd.f32 %v425, %v428
        %s430 = sld [smem:[#allocation3 + $0x101]]
        %v431 = vstv %s430
        %v432 = vmul.f32 %v431, %v392
        %v433 = vadd.f32 %v429, %v432
        %s434 = sld [smem:[#allocation3 + $0x181]]
        %v435 = vstv %s434
        %v436 = vmul.f32 %v435, %v398
        %v437 = vadd.f32 %v433, %v436
        %s438 = sld [smem:[#allocation3 + $0x201]]
        %v439 = vstv %s438
        %v440 = vmul.f32 %v439, %v404
        %v441 = vadd.f32 %v437, %v440
        %s442 = sld [smem:[#allocation3 + $0x281]]
        %v443 = vstv %s442
        %v444 = vmul.f32 %v443, %v410
        %v445 = vadd.f32 %v441, %v444
        %s446 = sld [smem:[#allocation3 + $0x301]]
        %v447 = vstv %s446
        %v448 = vmul.f32 %v447, %v416
        %v449 = vadd.f32 %v445, %v448
        %s450 = sld [smem:[#allocation5 + $0x2]]
        %s451 = sld [smem:[#allocation3 + $0x2]]
        %v452 = vstv %s451
        %v453 = vmul.f32 %v452, %v379
        %v454 = vstv %s450
        %v455 = vadd.f32 %v454, %v453
        %s456 = sld [smem:[#allocation3 + $0x82]]
        %v457 = vstv %s456
        %v458 = vmul.f32 %v457, %v386
        %v459 = vadd.f32 %v455, %v458
        %s460 = sld [smem:[#allocation3 + $0x102]]
        %v461 = vstv %s460
        %v462 = vmul.f32 %v461, %v392
        %v463 = vadd.f32 %v459, %v462
        %s464 = sld [smem:[#allocation3 + $0x182]]
        %v465 = vstv %s464
        %v466 = vmul.f32 %v465, %v398
        %v467 = vadd.f32 %v463, %v466
        %s468 = sld [smem:[#allocation3 + $0x202]]
        %v469 = vstv %s468
        %v470 = vmul.f32 %v469, %v404
        %v471 = vadd.f32 %v467, %v470
        %s472 = sld [smem:[#allocation3 + $0x282]]
        %v473 = vstv %s472
        %v474 = vmul.f32 %v473, %v410
        %v475 = vadd.f32 %v471, %v474
        %s476 = sld [smem:[#allocation3 + $0x302]]
        %v477 = vstv %s476
        %v478 = vmul.f32 %v477, %v416
        %v479 = vadd.f32 %v475, %v478
        %s480 = sld [smem:[#allocation5 + $0x3]]
        %s481 = sld [smem:[#allocation3 + $0x3]]
        %v482 = vstv %s481
        %v483 = vmul.f32 %v482, %v379
        %v484 = vstv %s480
        %v485 = vadd.f32 %v484, %v483
        %s486 = sld [smem:[#allocation3 + $0x83]]
        %v487 = vstv %s486
        %v488 = vmul.f32 %v487, %v386
        %v489 = vadd.f32 %v485, %v488
        %s490 = sld [smem:[#allocation3 + $0x103]]
        %v491 = vstv %s490
        %v492 = vmul.f32 %v491, %v392
        %v493 = vadd.f32 %v489, %v492
        %s494 = sld [smem:[#allocation3 + $0x183]]
        %v495 = vstv %s494
        %v496 = vmul.f32 %v495, %v398
        %v497 = vadd.f32 %v493, %v496
        %s498 = sld [smem:[#allocation3 + $0x203]]
        %v499 = vstv %s498
        %v500 = vmul.f32 %v499, %v404
        %v501 = vadd.f32 %v497, %v500
        %s502 = sld [smem:[#allocation3 + $0x283]]
        %v503 = vstv %s502
        %v504 = vmul.f32 %v503, %v410
        %v505 = vadd.f32 %v501, %v504
        %s506 = sld [smem:[#allocation3 + $0x303]]
        %v507 = vstv %s506
        %v508 = vmul.f32 %v507, %v416
        %v509 = vadd.f32 %v505, %v508
        %s510 = sld [smem:[#allocation5 + $0x4]]
        %s511 = sld [smem:[#allocation3 + $0x4]]
        %v512 = vstv %s511
        %v513 = vmul.f32 %v512, %v379
        %v514 = vstv %s510
        %v515 = vadd.f32 %v514, %v513
        %s516 = sld [smem:[#allocation3 + $0x84]]
        %v517 = vstv %s516
        %v518 = vmul.f32 %v517, %v386
        %v519 = vadd.f32 %v515, %v518
        %s520 = sld [smem:[#allocation3 + $0x104]]
        %v521 = vstv %s520
        %v522 = vmul.f32 %v521, %v392
        %v523 = vadd.f32 %v519, %v522
        %s524 = sld [smem:[#allocation3 + $0x184]]
        %v525 = vstv %s524
        %v526 = vmul.f32 %v525, %v398
        %v527 = vadd.f32 %v523, %v526
        %s528 = sld [smem:[#allocation3 + $0x204]]
        %v529 = vstv %s528
        %v530 = vmul.f32 %v529, %v404
        %v531 = vadd.f32 %v527, %v530
        %s532 = sld [smem:[#allocation3 + $0x284]]
        %v533 = vstv %s532
        %v534 = vmul.f32 %v533, %v410
        %v535 = vadd.f32 %v531, %v534
        %s536 = sld [smem:[#allocation3 + $0x304]]
        %v537 = vstv %s536
        %v538 = vmul.f32 %v537, %v416
        %v539 = vadd.f32 %v535, %v538
        %s540 = sld [smem:[#allocation5 + $0x5]]
        %s541 = sld [smem:[#allocation3 + $0x5]]
        %v542 = vstv %s541
        %v543 = vmul.f32 %v542, %v379
        %v544 = vstv %s540
        %v545 = vadd.f32 %v544, %v543
        %s546 = sld [smem:[#allocation3 + $0x85]]
        %v547 = vstv %s546
        %v548 = vmul.f32 %v547, %v386
        %v549 = vadd.f32 %v545, %v548
        %s550 = sld [smem:[#allocation3 + $0x105]]
        %v551 = vstv %s550
        %v552 = vmul.f32 %v551, %v392
        %v553 = vadd.f32 %v549, %v552
        %s554 = sld [smem:[#allocation3 + $0x185]]
        %v555 = vstv %s554
        %v556 = vmul.f32 %v555, %v398
        %v557 = vadd.f32 %v553, %v556
        %s558 = sld [smem:[#allocation3 + $0x205]]
        %v559 = vstv %s558
        %v560 = vmul.f32 %v559, %v404
        %v561 = vadd.f32 %v557, %v560
        %s562 = sld [smem:[#allocation3 + $0x285]]
        %v563 = vstv %s562
        %v564 = vmul.f32 %v563, %v410
        %v565 = vadd.f32 %v561, %v564
        %s566 = sld [smem:[#allocation3 + $0x305]]
        %v567 = vstv %s566
        %v568 = vmul.f32 %v567, %v416
        %v569 = vadd.f32 %v565, %v568
        %s570 = sld [smem:[#allocation5 + $0x6]]
        %s571 = sld [smem:[#allocation3 + $0x6]]
        %v572 = vstv %s571
        %v573 = vmul.f32 %v572, %v379
        %v574 = vstv %s570
        %v575 = vadd.f32 %v574, %v573
        %s576 = sld [smem:[#allocation3 + $0x86]]
        %v577 = vstv %s576
        %v578 = vmul.f32 %v577, %v386
        %v579 = vadd.f32 %v575, %v578
        %s580 = sld [smem:[#allocation3 + $0x106]]
        %v581 = vstv %s580
        %v582 = vmul.f32 %v581, %v392
        %v583 = vadd.f32 %v579, %v582
        %s584 = sld [smem:[#allocation3 + $0x186]]
        %v585 = vstv %s584
        %v586 = vmul.f32 %v585, %v398
        %v587 = vadd.f32 %v583, %v586
        %s588 = sld [smem:[#allocation3 + $0x206]]
        %v589 = vstv %s588
        %v590 = vmul.f32 %v589, %v404
        %v591 = vadd.f32 %v587, %v590
        %s592 = sld [smem:[#allocation3 + $0x286]]
        %v593 = vstv %s592
        %v594 = vmul.f32 %v593, %v410
        %v595 = vadd.f32 %v591, %v594
        %s596 = sld [smem:[#allocation3 + $0x306]]
        %v597 = vstv %s596
        %v598 = vmul.f32 %v597, %v416
        %v599 = vadd.f32 %v595, %v598
        %s600 = sld [smem:[#allocation5 + $0x7]]
        %s601 = sld [smem:[#allocation3 + $0x7]]
        %v602 = vstv %s601
        %v603 = vmul.f32 %v602, %v379
        %v604 = vstv %s600
        %v605 = vadd.f32 %v604, %v603
        %s606 = sld [smem:[#allocation3 + $0x87]]
        %v607 = vstv %s606
        %v608 = vmul.f32 %v607, %v386
        %v609 = vadd.f32 %v605, %v608
        %s610 = sld [smem:[#allocation3 + $0x107]]
        %v611 = vstv %s610
        %v612 = vmul.f32 %v611, %v392
        %v613 = vadd.f32 %v609, %v612
        %s614 = sld [smem:[#allocation3 + $0x187]]
        %v615 = vstv %s614
        %v616 = vmul.f32 %v615, %v398
        %v617 = vadd.f32 %v613, %v616
        %s618 = sld [smem:[#allocation3 + $0x207]]
        %v619 = vstv %s618
        %v620 = vmul.f32 %v619, %v404
        %v621 = vadd.f32 %v617, %v620
        %s622 = sld [smem:[#allocation3 + $0x287]]
        %v623 = vstv %s622
        %v624 = vmul.f32 %v623, %v410
        %v625 = vadd.f32 %v621, %v624
        %s626 = sld [smem:[#allocation3 + $0x307]]
        %v627 = vstv %s626
        %v628 = vmul.f32 %v627, %v416
        %v629 = vadd.f32 %v625, %v628
        %s630 = sld [smem:[#allocation5 + $0x8]]
        %s631 = sld [smem:[#allocation3 + $0x8]]
        %v632 = vstv %s631
        %v633 = vmul.f32 %v632, %v379
        %v634 = vstv %s630
        %v635 = vadd.f32 %v634, %v633
        %s636 = sld [smem:[#allocation3 + $0x88]]
        %v637 = vstv %s636
        %v638 = vmul.f32 %v637, %v386
        %v639 = vadd.f32 %v635, %v638
        %s640 = sld [smem:[#allocation3 + $0x108]]
        %v641 = vstv %s640
        %v642 = vmul.f32 %v641, %v392
        %v643 = vadd.f32 %v639, %v642
        %s644 = sld [smem:[#allocation3 + $0x188]]
        %v645 = vstv %s644
        %v646 = vmul.f32 %v645, %v398
        %v647 = vadd.f32 %v643, %v646
        %s648 = sld [smem:[#allocation3 + $0x208]]
        %v649 = vstv %s648
        %v650 = vmul.f32 %v649, %v404
        %v651 = vadd.f32 %v647, %v650
        %s652 = sld [smem:[#allocation3 + $0x288]]
        %v653 = vstv %s652
        %v654 = vmul.f32 %v653, %v410
        %v655 = vadd.f32 %v651, %v654
        %s656 = sld [smem:[#allocation3 + $0x308]]
        %v657 = vstv %s656
        %v658 = vmul.f32 %v657, %v416
        %v659 = vadd.f32 %v655, %v658
        %s660 = sld [smem:[#allocation5 + $0x9]]
        %s661 = sld [smem:[#allocation3 + $0x9]]
        %v662 = vstv %s661
        %v663 = vmul.f32 %v662, %v379
        %v664 = vstv %s660
        %v665 = vadd.f32 %v664, %v663
        %s666 = sld [smem:[#allocation3 + $0x89]]
        %v667 = vstv %s666
        %v668 = vmul.f32 %v667, %v386
        %v669 = vadd.f32 %v665, %v668
        %s670 = sld [smem:[#allocation3 + $0x109]]
        %v671 = vstv %s670
        %v672 = vmul.f32 %v671, %v392
        %v673 = vadd.f32 %v669, %v672
        %s674 = sld [smem:[#allocation3 + $0x189]]
        %v675 = vstv %s674
        %v676 = vmul.f32 %v675, %v398
        %v677 = vadd.f32 %v673, %v676
        %s678 = sld [smem:[#allocation3 + $0x209]]
        %v679 = vstv %s678
        %v680 = vmul.f32 %v679, %v404
        %v681 = vadd.f32 %v677, %v680
        %s682 = sld [smem:[#allocation3 + $0x289]]
        %v683 = vstv %s682
        %v684 = vmul.f32 %v683, %v410
        %v685 = vadd.f32 %v681, %v684
        %s686 = sld [smem:[#allocation3 + $0x309]]
        %v687 = vstv %s686
        %v688 = vmul.f32 %v687, %v416
        %v689 = vadd.f32 %v685, %v688
        %s690 = sld [smem:[#allocation5 + $0xa]]
        %s691 = sld [smem:[#allocation3 + $0xa]]
        %v692 = vstv %s691
        %v693 = vmul.f32 %v692, %v379
        %v694 = vstv %s690
        %v695 = vadd.f32 %v694, %v693
        %s696 = sld [smem:[#allocation3 + $0x8a]]
        %v697 = vstv %s696
        %v698 = vmul.f32 %v697, %v386
        %v699 = vadd.f32 %v695, %v698
        %s700 = sld [smem:[#allocation3 + $0x10a]]
        %v701 = vstv %s700
        %v702 = vmul.f32 %v701, %v392
        %v703 = vadd.f32 %v699, %v702
        %s704 = sld [smem:[#allocation3 + $0x18a]]
        %v705 = vstv %s704
        %v706 = vmul.f32 %v705, %v398
        %v707 = vadd.f32 %v703, %v706
        %s708 = sld [smem:[#allocation3 + $0x20a]]
        %v709 = vstv %s708
        %v710 = vmul.f32 %v709, %v404
        %v711 = vadd.f32 %v707, %v710
        %s712 = sld [smem:[#allocation3 + $0x28a]]
        %v713 = vstv %s712
        %v714 = vmul.f32 %v713, %v410
        %v715 = vadd.f32 %v711, %v714
        %s716 = sld [smem:[#allocation3 + $0x30a]]
        %v717 = vstv %s716
        %v718 = vmul.f32 %v717, %v416
        %v719 = vadd.f32 %v715, %v718
        %s720 = sld [smem:[#allocation5 + $0xb]]
        %s721 = sld [smem:[#allocation3 + $0xb]]
        %v722 = vstv %s721
        %v723 = vmul.f32 %v722, %v379
        %v724 = vstv %s720
        %v725 = vadd.f32 %v724, %v723
        %s726 = sld [smem:[#allocation3 + $0x8b]]
        %v727 = vstv %s726
        %v728 = vmul.f32 %v727, %v386
        %v729 = vadd.f32 %v725, %v728
        %s730 = sld [smem:[#allocation3 + $0x10b]]
        %v731 = vstv %s730
        %v732 = vmul.f32 %v731, %v392
        %v733 = vadd.f32 %v729, %v732
        %s734 = sld [smem:[#allocation3 + $0x18b]]
        %v735 = vstv %s734
        %v736 = vmul.f32 %v735, %v398
        %v737 = vadd.f32 %v733, %v736
        %s738 = sld [smem:[#allocation3 + $0x20b]]
        %v739 = vstv %s738
        %v740 = vmul.f32 %v739, %v404
        %v741 = vadd.f32 %v737, %v740
        %s742 = sld [smem:[#allocation3 + $0x28b]]
        %v743 = vstv %s742
        %v744 = vmul.f32 %v743, %v410
        %v745 = vadd.f32 %v741, %v744
        %s746 = sld [smem:[#allocation3 + $0x30b]]
        %v747 = vstv %s746
        %v748 = vmul.f32 %v747, %v416
        %v749 = vadd.f32 %v745, %v748
        %s750 = sld [smem:[#allocation5 + $0xc]]
        %s751 = sld [smem:[#allocation3 + $0xc]]
        %v752 = vstv %s751
        %v753 = vmul.f32 %v752, %v379
        %v754 = vstv %s750
        %v755 = vadd.f32 %v754, %v753
        %s756 = sld [smem:[#allocation3 + $0x8c]]
        %v757 = vstv %s756
        %v758 = vmul.f32 %v757, %v386
        %v759 = vadd.f32 %v755, %v758
        %s760 = sld [smem:[#allocation3 + $0x10c]]
        %v761 = vstv %s760
        %v762 = vmul.f32 %v761, %v392
        %v763 = vadd.f32 %v759, %v762
        %s764 = sld [smem:[#allocation3 + $0x18c]]
        %v765 = vstv %s764
        %v766 = vmul.f32 %v765, %v398
        %v767 = vadd.f32 %v763, %v766
        %s768 = sld [smem:[#allocation3 + $0x20c]]
        %v769 = vstv %s768
        %v770 = vmul.f32 %v769, %v404
        %v771 = vadd.f32 %v767, %v770
        %s772 = sld [smem:[#allocation3 + $0x28c]]
        %v773 = vstv %s772
        %v774 = vmul.f32 %v773, %v410
        %v775 = vadd.f32 %v771, %v774
        %s776 = sld [smem:[#allocation3 + $0x30c]]
        %v777 = vstv %s776
        %v778 = vmul.f32 %v777, %v416
        %v779 = vadd.f32 %v775, %v778
        %s780 = sld [smem:[#allocation5 + $0xd]]
        %s781 = sld [smem:[#allocation3 + $0xd]]
        %v782 = vstv %s781
        %v783 = vmul.f32 %v782, %v379
        %v784 = vstv %s780
        %v785 = vadd.f32 %v784, %v783
        %s786 = sld [smem:[#allocation3 + $0x8d]]
        %v787 = vstv %s786
        %v788 = vmul.f32 %v787, %v386
        %v789 = vadd.f32 %v785, %v788
        %s790 = sld [smem:[#allocation3 + $0x10d]]
        %v791 = vstv %s790
        %v792 = vmul.f32 %v791, %v392
        %v793 = vadd.f32 %v789, %v792
        %s794 = sld [smem:[#allocation3 + $0x18d]]
        %v795 = vstv %s794
        %v796 = vmul.f32 %v795, %v398
        %v797 = vadd.f32 %v793, %v796
        %s798 = sld [smem:[#allocation3 + $0x20d]]
        %v799 = vstv %s798
        %v800 = vmul.f32 %v799, %v404
        %v801 = vadd.f32 %v797, %v800
        %s802 = sld [smem:[#allocation3 + $0x28d]]
        %v803 = vstv %s802
        %v804 = vmul.f32 %v803, %v410
        %v805 = vadd.f32 %v801, %v804
        %s806 = sld [smem:[#allocation3 + $0x30d]]
        %v807 = vstv %s806
        %v808 = vmul.f32 %v807, %v416
        %v809 = vadd.f32 %v805, %v808
        %vm810 = vcmp.gt.f32.partialorder %v419, 0.0
        %v811 = vmin.f32 %v419, 0.0
        %v812 = vmul.f32 %v811, 1.442695
        %v813 = vpow.pop %v812
        %v814 = vsub.f32 %v813, 1.0
        %v815 = vsel %vm810, %v419, %v814
        %vm816 = vcmp.gt.f32.partialorder %v449, 0.0
        %v817 = vmin.f32 %v449, 0.0
        %v818 = vmul.f32 %v817, 1.442695
        %v819 = vpow.pop %v818
        %v820 = vsub.f32 %v819, 1.0
        %v821 = vsel %vm816, %v449, %v820
        %vm822 = vcmp.gt.f32.partialorder %v479, 0.0
        %v823 = vmin.f32 %v479, 0.0
        %v824 = vmul.f32 %v823, 1.442695
        %v825 = vpow.pop %v824
        %v826 = vsub.f32 %v825, 1.0
        %v827 = vsel %vm822, %v479, %v826
        %vm828 = vcmp.gt.f32.partialorder %v509, 0.0
        %v829 = vmin.f32 %v509, 0.0
        %v830 = vmul.f32 %v829, 1.442695
        %v831 = vpow.pop %v830
        %v832 = vsub.f32 %v831, 1.0
        %v833 = vsel %vm828, %v509, %v832
        %vm834 = vcmp.gt.f32.partialorder %v539, 0.0
        %v835 = vmin.f32 %v539, 0.0
        %v836 = vmul.f32 %v835, 1.442695
        %v837 = vpow.pop %v836
        %v838 = vsub.f32 %v837, 1.0
        %v839 = vsel %vm834, %v539, %v838
        %vm840 = vcmp.gt.f32.partialorder %v569, 0.0
        %v841 = vmin.f32 %v569, 0.0
        %v842 = vmul.f32 %v841, 1.442695
        %v843 = vpow.pop %v842
        %v844 = vsub.f32 %v843, 1.0
        %v845 = vsel %vm840, %v569, %v844
        %vm846 = vcmp.gt.f32.partialorder %v599, 0.0
        %v847 = vmin.f32 %v599, 0.0
        %v848 = vmul.f32 %v847, 1.442695
        %v849 = vpow.pop %v848
        %v850 = vsub.f32 %v849, 1.0
        %v851 = vsel %vm846, %v599, %v850
        %vm852 = vcmp.gt.f32.partialorder %v629, 0.0
        %v853 = vmin.f32 %v629, 0.0
        %v854 = vmul.f32 %v853, 1.442695
        %v855 = vpow.pop %v854
        %v856 = vsub.f32 %v855, 1.0
        %v857 = vsel %vm852, %v629, %v856
        %vm858 = vcmp.gt.f32.partialorder %v659, 0.0
        %v859 = vmin.f32 %v659, 0.0
        %v860 = vmul.f32 %v859, 1.442695
        %v861 = vpow.pop %v860
        %v862 = vsub.f32 %v861, 1.0
        %v863 = vsel %vm858, %v659, %v862
        %vm864 = vcmp.gt.f32.partialorder %v689, 0.0
        %v865 = vmin.f32 %v689, 0.0
        %v866 = vmul.f32 %v865, 1.442695
        %v867 = vpow.pop %v866
        %v868 = vsub.f32 %v867, 1.0
        %v869 = vsel %vm864, %v689, %v868
        %vm870 = vcmp.gt.f32.partialorder %v719, 0.0
        %v871 = vmin.f32 %v719, 0.0
        %v872 = vmul.f32 %v871, 1.442695
        %v873 = vpow.pop %v872
        %v874 = vsub.f32 %v873, 1.0
        %v875 = vsel %vm870, %v719, %v874
        %vm876 = vcmp.gt.f32.partialorder %v749, 0.0
        %v877 = vmin.f32 %v749, 0.0
        %v878 = vmul.f32 %v877, 1.442695
        %v879 = vpow.pop %v878
        %v880 = vsub.f32 %v879, 1.0
        %v881 = vsel %vm876, %v749, %v880
        %vm882 = vcmp.gt.f32.partialorder %v779, 0.0
        %v883 = vmin.f32 %v779, 0.0
        %v884 = vmul.f32 %v883, 1.442695
        %v885 = vpow.pop %v884
        %v886 = vsub.f32 %v885, 1.0
        %v887 = vsel %vm882, %v779, %v886
        %vm888 = vcmp.gt.f32.partialorder %v809, 0.0
        %v889 = vmin.f32 %v809, 0.0
        %v890 = vmul.f32 %v889, 1.442695
        %v891 = vpow.pop %v890
        %v892 = vsub.f32 %v891, 1.0
        %v893 = vsel %vm888, %v809, %v892
        %s894 = sld [smem:[#allocation8]]
        %s895 = sld [smem:[#allocation7]]
        %v896 = vstv %s895
        %v897 = vmul.f32 %v896, %v815
        %v898 = vstv %s894
        %v899 = vadd.f32 %v898, %v897
        %s900 = sld [smem:[#allocation7 + $0x80]]
        %v901 = vstv %s900
        %v902 = vmul.f32 %v901, %v821
        %v903 = vadd.f32 %v899, %v902
        %s904 = sld [smem:[#allocation7 + $0x100]]
        %v905 = vstv %s904
        %v906 = vmul.f32 %v905, %v827
        %v907 = vadd.f32 %v903, %v906
        %s908 = sld [smem:[#allocation7 + $0x180]]
        %v909 = vstv %s908
        %v910 = vmul.f32 %v909, %v833
        %v911 = vadd.f32 %v907, %v910
        %s912 = sld [smem:[#allocation7 + $0x200]]
        %v913 = vstv %s912
        %v914 = vmul.f32 %v913, %v839
        %v915 = vadd.f32 %v911, %v914
        %s916 = sld [smem:[#allocation7 + $0x280]]
        %v917 = vstv %s916
        %v918 = vmul.f32 %v917, %v845
        %v919 = vadd.f32 %v915, %v918
        %s920 = sld [smem:[#allocation7 + $0x300]]
        %v921 = vstv %s920
        %v922 = vmul.f32 %v921, %v851
        %v923 = vadd.f32 %v919, %v922
        %s924 = sld [smem:[#allocation7 + $0x380]]
        %v925 = vstv %s924
        %v926 = vmul.f32 %v925, %v857
        %v927 = vadd.f32 %v923, %v926
        %s928 = sld [smem:[#allocation7 + $0x400]]
        %v929 = vstv %s928
        %v930 = vmul.f32 %v929, %v863
        %v931 = vadd.f32 %v927, %v930
        %s932 = sld [smem:[#allocation7 + $0x480]]
        %v933 = vstv %s932
        %v934 = vmul.f32 %v933, %v869
        %v935 = vadd.f32 %v931, %v934
        %s936 = sld [smem:[#allocation7 + $0x500]]
        %v937 = vstv %s936
        %v938 = vmul.f32 %v937, %v875
        %v939 = vadd.f32 %v935, %v938
        %s940 = sld [smem:[#allocation7 + $0x580]]
        %v941 = vstv %s940
        %v942 = vmul.f32 %v941, %v881
        %v943 = vadd.f32 %v939, %v942
        %s944 = sld [smem:[#allocation7 + $0x600]]
        %v945 = vstv %s944
        %v946 = vmul.f32 %v945, %v887
        %v947 = vadd.f32 %v943, %v946
        %s948 = sld [smem:[#allocation7 + $0x680]]
        %v949 = vstv %s948
        %v950 = vmul.f32 %v949, %v893
        %v951 = vadd.f32 %v947, %v950
        %s952 = sld [smem:[#allocation8 + $0x1]]
        %s953 = sld [smem:[#allocation7 + $0x1]]
        %v954 = vstv %s953
        %v955 = vmul.f32 %v954, %v815
        %v956 = vstv %s952
        %v957 = vadd.f32 %v956, %v955
        %s958 = sld [smem:[#allocation7 + $0x81]]
        %v959 = vstv %s958
        %v960 = vmul.f32 %v959, %v821
        %v961 = vadd.f32 %v957, %v960
        %s962 = sld [smem:[#allocation7 + $0x101]]
        %v963 = vstv %s962
        %v964 = vmul.f32 %v963, %v827
        %v965 = vadd.f32 %v961, %v964
        %s966 = sld [smem:[#allocation7 + $0x181]]
        %v967 = vstv %s966
        %v968 = vmul.f32 %v967, %v833
        %v969 = vadd.f32 %v965, %v968
        %s970 = sld [smem:[#allocation7 + $0x201]]
        %v971 = vstv %s970
        %v972 = vmul.f32 %v971, %v839
        %v973 = vadd.f32 %v969, %v972
        %s974 = sld [smem:[#allocation7 + $0x281]]
        %v975 = vstv %s974
        %v976 = vmul.f32 %v975, %v845
        %v977 = vadd.f32 %v973, %v976
        %s978 = sld [smem:[#allocation7 + $0x301]]
        %v979 = vstv %s978
        %v980 = vmul.f32 %v979, %v851
        %v981 = vadd.f32 %v977, %v980
        %s982 = sld [smem:[#allocation7 + $0x381]]
        %v983 = vstv %s982
        %v984 = vmul.f32 %v983, %v857
        %v985 = vadd.f32 %v981, %v984
        %s986 = sld [smem:[#allocation7 + $0x401]]
        %v987 = vstv %s986
        %v988 = vmul.f32 %v987, %v863
        %v989 = vadd.f32 %v985, %v988
        %s990 = sld [smem:[#allocation7 + $0x481]]
        %v991 = vstv %s990
        %v992 = vmul.f32 %v991, %v869
        %v993 = vadd.f32 %v989, %v992
        %s994 = sld [smem:[#allocation7 + $0x501]]
        %v995 = vstv %s994
        %v996 = vmul.f32 %v995, %v875
        %v997 = vadd.f32 %v993, %v996
        %s998 = sld [smem:[#allocation7 + $0x581]]
        %v999 = vstv %s998
        %v1000 = vmul.f32 %v999, %v881
        %v1001 = vadd.f32 %v997, %v1000
        %s1002 = sld [smem:[#allocation7 + $0x601]]
        %v1003 = vstv %s1002
        %v1004 = vmul.f32 %v1003, %v887
        %v1005 = vadd.f32 %v1001, %v1004
        %s1006 = sld [smem:[#allocation7 + $0x681]]
        %v1007 = vstv %s1006
        %v1008 = vmul.f32 %v1007, %v893
        %v1009 = vadd.f32 %v1005, %v1008
        %s1010 = sld [smem:[#allocation8 + $0x2]]
        %s1011 = sld [smem:[#allocation7 + $0x2]]
        %v1012 = vstv %s1011
        %v1013 = vmul.f32 %v1012, %v815
        %v1014 = vstv %s1010
        %v1015 = vadd.f32 %v1014, %v1013
        %s1016 = sld [smem:[#allocation7 + $0x82]]
        %v1017 = vstv %s1016
        %v1018 = vmul.f32 %v1017, %v821
        %v1019 = vadd.f32 %v1015, %v1018
        %s1020 = sld [smem:[#allocation7 + $0x102]]
        %v1021 = vstv %s1020
        %v1022 = vmul.f32 %v1021, %v827
        %v1023 = vadd.f32 %v1019, %v1022
        %s1024 = sld [smem:[#allocation7 + $0x182]]
        %v1025 = vstv %s1024
        %v1026 = vmul.f32 %v1025, %v833
        %v1027 = vadd.f32 %v1023, %v1026
        %s1028 = sld [smem:[#allocation7 + $0x202]]
        %v1029 = vstv %s1028
        %v1030 = vmul.f32 %v1029, %v839
        %v1031 = vadd.f32 %v1027, %v1030
        %s1032 = sld [smem:[#allocation7 + $0x282]]
        %v1033 = vstv %s1032
        %v1034 = vmul.f32 %v1033, %v845
        %v1035 = vadd.f32 %v1031, %v1034
        %s1036 = sld [smem:[#allocation7 + $0x302]]
        %v1037 = vstv %s1036
        %v1038 = vmul.f32 %v1037, %v851
        %v1039 = vadd.f32 %v1035, %v1038
        %s1040 = sld [smem:[#allocation7 + $0x382]]
        %v1041 = vstv %s1040
        %v1042 = vmul.f32 %v1041, %v857
        %v1043 = vadd.f32 %v1039, %v1042
        %s1044 = sld [smem:[#allocation7 + $0x402]]
        %v1045 = vstv %s1044
        %v1046 = vmul.f32 %v1045, %v863
        %v1047 = vadd.f32 %v1043, %v1046
        %s1048 = sld [smem:[#allocation7 + $0x482]]
        %v1049 = vstv %s1048
        %v1050 = vmul.f32 %v1049, %v869
        %v1051 = vadd.f32 %v1047, %v1050
        %s1052 = sld [smem:[#allocation7 + $0x502]]
        %v1053 = vstv %s1052
        %v1054 = vmul.f32 %v1053, %v875
        %v1055 = vadd.f32 %v1051, %v1054
        %s1056 = sld [smem:[#allocation7 + $0x582]]
        %v1057 = vstv %s1056
        %v1058 = vmul.f32 %v1057, %v881
        %v1059 = vadd.f32 %v1055, %v1058
        %s1060 = sld [smem:[#allocation7 + $0x602]]
        %v1061 = vstv %s1060
        %v1062 = vmul.f32 %v1061, %v887
        %v1063 = vadd.f32 %v1059, %v1062
        %s1064 = sld [smem:[#allocation7 + $0x682]]
        %v1065 = vstv %s1064
        %v1066 = vmul.f32 %v1065, %v893
        %v1067 = vadd.f32 %v1063, %v1066
        %s1068 = sld [smem:[#allocation8 + $0x3]]
        %s1069 = sld [smem:[#allocation7 + $0x3]]
        %v1070 = vstv %s1069
        %v1071 = vmul.f32 %v1070, %v815
        %v1072 = vstv %s1068
        %v1073 = vadd.f32 %v1072, %v1071
        %s1074 = sld [smem:[#allocation7 + $0x83]]
        %v1075 = vstv %s1074
        %v1076 = vmul.f32 %v1075, %v821
        %v1077 = vadd.f32 %v1073, %v1076
        %s1078 = sld [smem:[#allocation7 + $0x103]]
        %v1079 = vstv %s1078
        %v1080 = vmul.f32 %v1079, %v827
        %v1081 = vadd.f32 %v1077, %v1080
        %s1082 = sld [smem:[#allocation7 + $0x183]]
        %v1083 = vstv %s1082
        %v1084 = vmul.f32 %v1083, %v833
        %v1085 = vadd.f32 %v1081, %v1084
        %s1086 = sld [smem:[#allocation7 + $0x203]]
        %v1087 = vstv %s1086
        %v1088 = vmul.f32 %v1087, %v839
        %v1089 = vadd.f32 %v1085, %v1088
        %s1090 = sld [smem:[#allocation7 + $0x283]]
        %v1091 = vstv %s1090
        %v1092 = vmul.f32 %v1091, %v845
        %v1093 = vadd.f32 %v1089, %v1092
        %s1094 = sld [smem:[#allocation7 + $0x303]]
        %v1095 = vstv %s1094
        %v1096 = vmul.f32 %v1095, %v851
        %v1097 = vadd.f32 %v1093, %v1096
        %s1098 = sld [smem:[#allocation7 + $0x383]]
        %v1099 = vstv %s1098
        %v1100 = vmul.f32 %v1099, %v857
        %v1101 = vadd.f32 %v1097, %v1100
        %s1102 = sld [smem:[#allocation7 + $0x403]]
        %v1103 = vstv %s1102
        %v1104 = vmul.f32 %v1103, %v863
        %v1105 = vadd.f32 %v1101, %v1104
        %s1106 = sld [smem:[#allocation7 + $0x483]]
        %v1107 = vstv %s1106
        %v1108 = vmul.f32 %v1107, %v869
        %v1109 = vadd.f32 %v1105, %v1108
        %s1110 = sld [smem:[#allocation7 + $0x503]]
        %v1111 = vstv %s1110
        %v1112 = vmul.f32 %v1111, %v875
        %v1113 = vadd.f32 %v1109, %v1112
        %s1114 = sld [smem:[#allocation7 + $0x583]]
        %v1115 = vstv %s1114
        %v1116 = vmul.f32 %v1115, %v881
        %v1117 = vadd.f32 %v1113, %v1116
        %s1118 = sld [smem:[#allocation7 + $0x603]]
        %v1119 = vstv %s1118
        %v1120 = vmul.f32 %v1119, %v887
        %v1121 = vadd.f32 %v1117, %v1120
        %s1122 = sld [smem:[#allocation7 + $0x683]]
        %v1123 = vstv %s1122
        %v1124 = vmul.f32 %v1123, %v893
        %v1125 = vadd.f32 %v1121, %v1124
        %s1126 = sld [smem:[#allocation8 + $0x4]]
        %s1127 = sld [smem:[#allocation7 + $0x4]]
        %v1128 = vstv %s1127
        %v1129 = vmul.f32 %v1128, %v815
        %v1130 = vstv %s1126
        %v1131 = vadd.f32 %v1130, %v1129
        %s1132 = sld [smem:[#allocation7 + $0x84]]
        %v1133 = vstv %s1132
        %v1134 = vmul.f32 %v1133, %v821
        %v1135 = vadd.f32 %v1131, %v1134
        %s1136 = sld [smem:[#allocation7 + $0x104]]
        %v1137 = vstv %s1136
        %v1138 = vmul.f32 %v1137, %v827
        %v1139 = vadd.f32 %v1135, %v1138
        %s1140 = sld [smem:[#allocation7 + $0x184]]
        %v1141 = vstv %s1140
        %v1142 = vmul.f32 %v1141, %v833
        %v1143 = vadd.f32 %v1139, %v1142
        %s1144 = sld [smem:[#allocation7 + $0x204]]
        %v1145 = vstv %s1144
        %v1146 = vmul.f32 %v1145, %v839
        %v1147 = vadd.f32 %v1143, %v1146
        %s1148 = sld [smem:[#allocation7 + $0x284]]
        %v1149 = vstv %s1148
        %v1150 = vmul.f32 %v1149, %v845
        %v1151 = vadd.f32 %v1147, %v1150
        %s1152 = sld [smem:[#allocation7 + $0x304]]
        %v1153 = vstv %s1152
        %v1154 = vmul.f32 %v1153, %v851
        %v1155 = vadd.f32 %v1151, %v1154
        %s1156 = sld [smem:[#allocation7 + $0x384]]
        %v1157 = vstv %s1156
        %v1158 = vmul.f32 %v1157, %v857
        %v1159 = vadd.f32 %v1155, %v1158
        %s1160 = sld [smem:[#allocation7 + $0x404]]
        %v1161 = vstv %s1160
        %v1162 = vmul.f32 %v1161, %v863
        %v1163 = vadd.f32 %v1159, %v1162
        %s1164 = sld [smem:[#allocation7 + $0x484]]
        %v1165 = vstv %s1164
        %v1166 = vmul.f32 %v1165, %v869
        %v1167 = vadd.f32 %v1163, %v1166
        %s1168 = sld [smem:[#allocation7 + $0x504]]
        %v1169 = vstv %s1168
        %v1170 = vmul.f32 %v1169, %v875
        %v1171 = vadd.f32 %v1167, %v1170
        %s1172 = sld [smem:[#allocation7 + $0x584]]
        %v1173 = vstv %s1172
        %v1174 = vmul.f32 %v1173, %v881
        %v1175 = vadd.f32 %v1171, %v1174
        %s1176 = sld [smem:[#allocation7 + $0x604]]
        %v1177 = vstv %s1176
        %v1178 = vmul.f32 %v1177, %v887
        %v1179 = vadd.f32 %v1175, %v1178
        %s1180 = sld [smem:[#allocation7 + $0x684]]
        %v1181 = vstv %s1180
        %v1182 = vmul.f32 %v1181, %v893
        %v1183 = vadd.f32 %v1179, %v1182
        %s1184 = sld [smem:[#allocation8 + $0x5]]
        %s1185 = sld [smem:[#allocation7 + $0x5]]
        %v1186 = vstv %s1185
        %v1187 = vmul.f32 %v1186, %v815
        %v1188 = vstv %s1184
        %v1189 = vadd.f32 %v1188, %v1187
        %s1190 = sld [smem:[#allocation7 + $0x85]]
        %v1191 = vstv %s1190
        %v1192 = vmul.f32 %v1191, %v821
        %v1193 = vadd.f32 %v1189, %v1192
        %s1194 = sld [smem:[#allocation7 + $0x105]]
        %v1195 = vstv %s1194
        %v1196 = vmul.f32 %v1195, %v827
        %v1197 = vadd.f32 %v1193, %v1196
        %s1198 = sld [smem:[#allocation7 + $0x185]]
        %v1199 = vstv %s1198
        %v1200 = vmul.f32 %v1199, %v833
        %v1201 = vadd.f32 %v1197, %v1200
        %s1202 = sld [smem:[#allocation7 + $0x205]]
        %v1203 = vstv %s1202
        %v1204 = vmul.f32 %v1203, %v839
        %v1205 = vadd.f32 %v1201, %v1204
        %s1206 = sld [smem:[#allocation7 + $0x285]]
        %v1207 = vstv %s1206
        %v1208 = vmul.f32 %v1207, %v845
        %v1209 = vadd.f32 %v1205, %v1208
        %s1210 = sld [smem:[#allocation7 + $0x305]]
        %v1211 = vstv %s1210
        %v1212 = vmul.f32 %v1211, %v851
        %v1213 = vadd.f32 %v1209, %v1212
        %s1214 = sld [smem:[#allocation7 + $0x385]]
        %v1215 = vstv %s1214
        %v1216 = vmul.f32 %v1215, %v857
        %v1217 = vadd.f32 %v1213, %v1216
        %s1218 = sld [smem:[#allocation7 + $0x405]]
        %v1219 = vstv %s1218
        %v1220 = vmul.f32 %v1219, %v863
        %v1221 = vadd.f32 %v1217, %v1220
        %s1222 = sld [smem:[#allocation7 + $0x485]]
        %v1223 = vstv %s1222
        %v1224 = vmul.f32 %v1223, %v869
        %v1225 = vadd.f32 %v1221, %v1224
        %s1226 = sld [smem:[#allocation7 + $0x505]]
        %v1227 = vstv %s1226
        %v1228 = vmul.f32 %v1227, %v875
        %v1229 = vadd.f32 %v1225, %v1228
        %s1230 = sld [smem:[#allocation7 + $0x585]]
        %v1231 = vstv %s1230
        %v1232 = vmul.f32 %v1231, %v881
        %v1233 = vadd.f32 %v1229, %v1232
        %s1234 = sld [smem:[#allocation7 + $0x605]]
        %v1235 = vstv %s1234
        %v1236 = vmul.f32 %v1235, %v887
        %v1237 = vadd.f32 %v1233, %v1236
        %s1238 = sld [smem:[#allocation7 + $0x685]]
        %v1239 = vstv %s1238
        %v1240 = vmul.f32 %v1239, %v893
        %v1241 = vadd.f32 %v1237, %v1240
        %s1242 = sld [smem:[#allocation8 + $0x6]]
        %s1243 = sld [smem:[#allocation7 + $0x6]]
        %v1244 = vstv %s1243
        %v1245 = vmul.f32 %v1244, %v815
        %v1246 = vstv %s1242
        %v1247 = vadd.f32 %v1246, %v1245
        %s1248 = sld [smem:[#allocation7 + $0x86]]
        %v1249 = vstv %s1248
        %v1250 = vmul.f32 %v1249, %v821
        %v1251 = vadd.f32 %v1247, %v1250
        %s1252 = sld [smem:[#allocation7 + $0x106]]
        %v1253 = vstv %s1252
        %v1254 = vmul.f32 %v1253, %v827
        %v1255 = vadd.f32 %v1251, %v1254
        %s1256 = sld [smem:[#allocation7 + $0x186]]
        %v1257 = vstv %s1256
        %v1258 = vmul.f32 %v1257, %v833
        %v1259 = vadd.f32 %v1255, %v1258
        %s1260 = sld [smem:[#allocation7 + $0x206]]
        %v1261 = vstv %s1260
        %v1262 = vmul.f32 %v1261, %v839
        %v1263 = vadd.f32 %v1259, %v1262
        %s1264 = sld [smem:[#allocation7 + $0x286]]
        %v1265 = vstv %s1264
        %v1266 = vmul.f32 %v1265, %v845
        %v1267 = vadd.f32 %v1263, %v1266
        %s1268 = sld [smem:[#allocation7 + $0x306]]
        %v1269 = vstv %s1268
        %v1270 = vmul.f32 %v1269, %v851
        %v1271 = vadd.f32 %v1267, %v1270
        %s1272 = sld [smem:[#allocation7 + $0x386]]
        %v1273 = vstv %s1272
        %v1274 = vmul.f32 %v1273, %v857
        %v1275 = vadd.f32 %v1271, %v1274
        %s1276 = sld [smem:[#allocation7 + $0x406]]
        %v1277 = vstv %s1276
        %v1278 = vmul.f32 %v1277, %v863
        %v1279 = vadd.f32 %v1275, %v1278
        %s1280 = sld [smem:[#allocation7 + $0x486]]
        %v1281 = vstv %s1280
        %v1282 = vmul.f32 %v1281, %v869
        %v1283 = vadd.f32 %v1279, %v1282
        %s1284 = sld [smem:[#allocation7 + $0x506]]
        %v1285 = vstv %s1284
        %v1286 = vmul.f32 %v1285, %v875
        %v1287 = vadd.f32 %v1283, %v1286
        %s1288 = sld [smem:[#allocation7 + $0x586]]
        %v1289 = vstv %s1288
        %v1290 = vmul.f32 %v1289, %v881
        %v1291 = vadd.f32 %v1287, %v1290
        %s1292 = sld [smem:[#allocation7 + $0x606]]
        %v1293 = vstv %s1292
        %v1294 = vmul.f32 %v1293, %v887
        %v1295 = vadd.f32 %v1291, %v1294
        %s1296 = sld [smem:[#allocation7 + $0x686]]
        %v1297 = vstv %s1296
        %v1298 = vmul.f32 %v1297, %v893
        %v1299 = vadd.f32 %v1295, %v1298
        %s1300 = sld [smem:[#allocation8 + $0x7]]
        %s1301 = sld [smem:[#allocation7 + $0x7]]
        %v1302 = vstv %s1301
        %v1303 = vmul.f32 %v1302, %v815
        %v1304 = vstv %s1300
        %v1305 = vadd.f32 %v1304, %v1303
        %s1306 = sld [smem:[#allocation7 + $0x87]]
        %v1307 = vstv %s1306
        %v1308 = vmul.f32 %v1307, %v821
        %v1309 = vadd.f32 %v1305, %v1308
        %s1310 = sld [smem:[#allocation7 + $0x107]]
        %v1311 = vstv %s1310
        %v1312 = vmul.f32 %v1311, %v827
        %v1313 = vadd.f32 %v1309, %v1312
        %s1314 = sld [smem:[#allocation7 + $0x187]]
        %v1315 = vstv %s1314
        %v1316 = vmul.f32 %v1315, %v833
        %v1317 = vadd.f32 %v1313, %v1316
        %s1318 = sld [smem:[#allocation7 + $0x207]]
        %v1319 = vstv %s1318
        %v1320 = vmul.f32 %v1319, %v839
        %v1321 = vadd.f32 %v1317, %v1320
        %s1322 = sld [smem:[#allocation7 + $0x287]]
        %v1323 = vstv %s1322
        %v1324 = vmul.f32 %v1323, %v845
        %v1325 = vadd.f32 %v1321, %v1324
        %s1326 = sld [smem:[#allocation7 + $0x307]]
        %v1327 = vstv %s1326
        %v1328 = vmul.f32 %v1327, %v851
        %v1329 = vadd.f32 %v1325, %v1328
        %s1330 = sld [smem:[#allocation7 + $0x387]]
        %v1331 = vstv %s1330
        %v1332 = vmul.f32 %v1331, %v857
        %v1333 = vadd.f32 %v1329, %v1332
        %s1334 = sld [smem:[#allocation7 + $0x407]]
        %v1335 = vstv %s1334
        %v1336 = vmul.f32 %v1335, %v863
        %v1337 = vadd.f32 %v1333, %v1336
        %s1338 = sld [smem:[#allocation7 + $0x487]]
        %v1339 = vstv %s1338
        %v1340 = vmul.f32 %v1339, %v869
        %v1341 = vadd.f32 %v1337, %v1340
        %s1342 = sld [smem:[#allocation7 + $0x507]]
        %v1343 = vstv %s1342
        %v1344 = vmul.f32 %v1343, %v875
        %v1345 = vadd.f32 %v1341, %v1344
        %s1346 = sld [smem:[#allocation7 + $0x587]]
        %v1347 = vstv %s1346
        %v1348 = vmul.f32 %v1347, %v881
        %v1349 = vadd.f32 %v1345, %v1348
        %s1350 = sld [smem:[#allocation7 + $0x607]]
        %v1351 = vstv %s1350
        %v1352 = vmul.f32 %v1351, %v887
        %v1353 = vadd.f32 %v1349, %v1352
        %s1354 = sld [smem:[#allocation7 + $0x687]]
        %v1355 = vstv %s1354
        %v1356 = vmul.f32 %v1355, %v893
        %v1357 = vadd.f32 %v1353, %v1356
        %s1358 = sld [smem:[#allocation8 + $0x8]]
        %s1359 = sld [smem:[#allocation7 + $0x8]]
        %v1360 = vstv %s1359
        %v1361 = vmul.f32 %v1360, %v815
        %v1362 = vstv %s1358
        %v1363 = vadd.f32 %v1362, %v1361
        %s1364 = sld [smem:[#allocation7 + $0x88]]
        %v1365 = vstv %s1364
        %v1366 = vmul.f32 %v1365, %v821
        %v1367 = vadd.f32 %v1363, %v1366
        %s1368 = sld [smem:[#allocation7 + $0x108]]
        %v1369 = vstv %s1368
        %v1370 = vmul.f32 %v1369, %v827
        %v1371 = vadd.f32 %v1367, %v1370
        %s1372 = sld [smem:[#allocation7 + $0x188]]
        %v1373 = vstv %s1372
        %v1374 = vmul.f32 %v1373, %v833
        %v1375 = vadd.f32 %v1371, %v1374
        %s1376 = sld [smem:[#allocation7 + $0x208]]
        %v1377 = vstv %s1376
        %v1378 = vmul.f32 %v1377, %v839
        %v1379 = vadd.f32 %v1375, %v1378
        %s1380 = sld [smem:[#allocation7 + $0x288]]
        %v1381 = vstv %s1380
        %v1382 = vmul.f32 %v1381, %v845
        %v1383 = vadd.f32 %v1379, %v1382
        %s1384 = sld [smem:[#allocation7 + $0x308]]
        %v1385 = vstv %s1384
        %v1386 = vmul.f32 %v1385, %v851
        %v1387 = vadd.f32 %v1383, %v1386
        %s1388 = sld [smem:[#allocation7 + $0x388]]
        %v1389 = vstv %s1388
        %v1390 = vmul.f32 %v1389, %v857
        %v1391 = vadd.f32 %v1387, %v1390
        %s1392 = sld [smem:[#allocation7 + $0x408]]
        %v1393 = vstv %s1392
        %v1394 = vmul.f32 %v1393, %v863
        %v1395 = vadd.f32 %v1391, %v1394
        %s1396 = sld [smem:[#allocation7 + $0x488]]
        %v1397 = vstv %s1396
        %v1398 = vmul.f32 %v1397, %v869
        %v1399 = vadd.f32 %v1395, %v1398
        %s1400 = sld [smem:[#allocation7 + $0x508]]
        %v1401 = vstv %s1400
        %v1402 = vmul.f32 %v1401, %v875
        %v1403 = vadd.f32 %v1399, %v1402
        %s1404 = sld [smem:[#allocation7 + $0x588]]
        %v1405 = vstv %s1404
        %v1406 = vmul.f32 %v1405, %v881
        %v1407 = vadd.f32 %v1403, %v1406
        %s1408 = sld [smem:[#allocation7 + $0x608]]
        %v1409 = vstv %s1408
        %v1410 = vmul.f32 %v1409, %v887
        %v1411 = vadd.f32 %v1407, %v1410
        %s1412 = sld [smem:[#allocation7 + $0x688]]
        %v1413 = vstv %s1412
        %v1414 = vmul.f32 %v1413, %v893
        %v1415 = vadd.f32 %v1411, %v1414
        %s1416 = sld [smem:[#allocation8 + $0x9]]
        %s1417 = sld [smem:[#allocation7 + $0x9]]
        %v1418 = vstv %s1417
        %v1419 = vmul.f32 %v1418, %v815
        %v1420 = vstv %s1416
        %v1421 = vadd.f32 %v1420, %v1419
        %s1422 = sld [smem:[#allocation7 + $0x89]]
        %v1423 = vstv %s1422
        %v1424 = vmul.f32 %v1423, %v821
        %v1425 = vadd.f32 %v1421, %v1424
        %s1426 = sld [smem:[#allocation7 + $0x109]]
        %v1427 = vstv %s1426
        %v1428 = vmul.f32 %v1427, %v827
        %v1429 = vadd.f32 %v1425, %v1428
        %s1430 = sld [smem:[#allocation7 + $0x189]]
        %v1431 = vstv %s1430
        %v1432 = vmul.f32 %v1431, %v833
        %v1433 = vadd.f32 %v1429, %v1432
        %s1434 = sld [smem:[#allocation7 + $0x209]]
        %v1435 = vstv %s1434
        %v1436 = vmul.f32 %v1435, %v839
        %v1437 = vadd.f32 %v1433, %v1436
        %s1438 = sld [smem:[#allocation7 + $0x289]]
        %v1439 = vstv %s1438
        %v1440 = vmul.f32 %v1439, %v845
        %v1441 = vadd.f32 %v1437, %v1440
        %s1442 = sld [smem:[#allocation7 + $0x309]]
        %v1443 = vstv %s1442
        %v1444 = vmul.f32 %v1443, %v851
        %v1445 = vadd.f32 %v1441, %v1444
        %s1446 = sld [smem:[#allocation7 + $0x389]]
        %v1447 = vstv %s1446
        %v1448 = vmul.f32 %v1447, %v857
        %v1449 = vadd.f32 %v1445, %v1448
        %s1450 = sld [smem:[#allocation7 + $0x409]]
        %v1451 = vstv %s1450
        %v1452 = vmul.f32 %v1451, %v863
        %v1453 = vadd.f32 %v1449, %v1452
        %s1454 = sld [smem:[#allocation7 + $0x489]]
        %v1455 = vstv %s1454
        %v1456 = vmul.f32 %v1455, %v869
        %v1457 = vadd.f32 %v1453, %v1456
        %s1458 = sld [smem:[#allocation7 + $0x509]]
        %v1459 = vstv %s1458
        %v1460 = vmul.f32 %v1459, %v875
        %v1461 = vadd.f32 %v1457, %v1460
        %s1462 = sld [smem:[#allocation7 + $0x589]]
        %v1463 = vstv %s1462
        %v1464 = vmul.f32 %v1463, %v881
        %v1465 = vadd.f32 %v1461, %v1464
        %s1466 = sld [smem:[#allocation7 + $0x609]]
        %v1467 = vstv %s1466
        %v1468 = vmul.f32 %v1467, %v887
        %v1469 = vadd.f32 %v1465, %v1468
        %s1470 = sld [smem:[#allocation7 + $0x689]]
        %v1471 = vstv %s1470
        %v1472 = vmul.f32 %v1471, %v893
        %v1473 = vadd.f32 %v1469, %v1472
        %s1474 = sld [smem:[#allocation8 + $0xa]]
        %s1475 = sld [smem:[#allocation7 + $0xa]]
        %v1476 = vstv %s1475
        %v1477 = vmul.f32 %v1476, %v815
        %v1478 = vstv %s1474
        %v1479 = vadd.f32 %v1478, %v1477
        %s1480 = sld [smem:[#allocation7 + $0x8a]]
        %v1481 = vstv %s1480
        %v1482 = vmul.f32 %v1481, %v821
        %v1483 = vadd.f32 %v1479, %v1482
        %s1484 = sld [smem:[#allocation7 + $0x10a]]
        %v1485 = vstv %s1484
        %v1486 = vmul.f32 %v1485, %v827
        %v1487 = vadd.f32 %v1483, %v1486
        %s1488 = sld [smem:[#allocation7 + $0x18a]]
        %v1489 = vstv %s1488
        %v1490 = vmul.f32 %v1489, %v833
        %v1491 = vadd.f32 %v1487, %v1490
        %s1492 = sld [smem:[#allocation7 + $0x20a]]
        %v1493 = vstv %s1492
        %v1494 = vmul.f32 %v1493, %v839
        %v1495 = vadd.f32 %v1491, %v1494
        %s1496 = sld [smem:[#allocation7 + $0x28a]]
        %v1497 = vstv %s1496
        %v1498 = vmul.f32 %v1497, %v845
        %v1499 = vadd.f32 %v1495, %v1498
        %s1500 = sld [smem:[#allocation7 + $0x30a]]
        %v1501 = vstv %s1500
        %v1502 = vmul.f32 %v1501, %v851
        %v1503 = vadd.f32 %v1499, %v1502
        %s1504 = sld [smem:[#allocation7 + $0x38a]]
        %v1505 = vstv %s1504
        %v1506 = vmul.f32 %v1505, %v857
        %v1507 = vadd.f32 %v1503, %v1506
        %s1508 = sld [smem:[#allocation7 + $0x40a]]
        %v1509 = vstv %s1508
        %v1510 = vmul.f32 %v1509, %v863
        %v1511 = vadd.f32 %v1507, %v1510
        %s1512 = sld [smem:[#allocation7 + $0x48a]]
        %v1513 = vstv %s1512
        %v1514 = vmul.f32 %v1513, %v869
        %v1515 = vadd.f32 %v1511, %v1514
        %s1516 = sld [smem:[#allocation7 + $0x50a]]
        %v1517 = vstv %s1516
        %v1518 = vmul.f32 %v1517, %v875
        %v1519 = vadd.f32 %v1515, %v1518
        %s1520 = sld [smem:[#allocation7 + $0x58a]]
        %v1521 = vstv %s1520
        %v1522 = vmul.f32 %v1521, %v881
        %v1523 = vadd.f32 %v1519, %v1522
        %s1524 = sld [smem:[#allocation7 + $0x60a]]
        %v1525 = vstv %s1524
        %v1526 = vmul.f32 %v1525, %v887
        %v1527 = vadd.f32 %v1523, %v1526
        %s1528 = sld [smem:[#allocation7 + $0x68a]]
        %v1529 = vstv %s1528
        %v1530 = vmul.f32 %v1529, %v893
        %v1531 = vadd.f32 %v1527, %v1530
        %s1532 = sld [smem:[#allocation8 + $0xb]]
        %s1533 = sld [smem:[#allocation7 + $0xb]]
        %v1534 = vstv %s1533
        %v1535 = vmul.f32 %v1534, %v815
        %v1536 = vstv %s1532
        %v1537 = vadd.f32 %v1536, %v1535
        %s1538 = sld [smem:[#allocation7 + $0x8b]]
        %v1539 = vstv %s1538
        %v1540 = vmul.f32 %v1539, %v821
        %v1541 = vadd.f32 %v1537, %v1540
        %s1542 = sld [smem:[#allocation7 + $0x10b]]
        %v1543 = vstv %s1542
        %v1544 = vmul.f32 %v1543, %v827
        %v1545 = vadd.f32 %v1541, %v1544
        %s1546 = sld [smem:[#allocation7 + $0x18b]]
        %v1547 = vstv %s1546
        %v1548 = vmul.f32 %v1547, %v833
        %v1549 = vadd.f32 %v1545, %v1548
        %s1550 = sld [smem:[#allocation7 + $0x20b]]
        %v1551 = vstv %s1550
        %v1552 = vmul.f32 %v1551, %v839
        %v1553 = vadd.f32 %v1549, %v1552
        %s1554 = sld [smem:[#allocation7 + $0x28b]]
        %v1555 = vstv %s1554
        %v1556 = vmul.f32 %v1555, %v845
        %v1557 = vadd.f32 %v1553, %v1556
        %s1558 = sld [smem:[#allocation7 + $0x30b]]
        %v1559 = vstv %s1558
        %v1560 = vmul.f32 %v1559, %v851
        %v1561 = vadd.f32 %v1557, %v1560
        %s1562 = sld [smem:[#allocation7 + $0x38b]]
        %v1563 = vstv %s1562
        %v1564 = vmul.f32 %v1563, %v857
        %v1565 = vadd.f32 %v1561, %v1564
        %s1566 = sld [smem:[#allocation7 + $0x40b]]
        %v1567 = vstv %s1566
        %v1568 = vmul.f32 %v1567, %v863
        %v1569 = vadd.f32 %v1565, %v1568
        %s1570 = sld [smem:[#allocation7 + $0x48b]]
        %v1571 = vstv %s1570
        %v1572 = vmul.f32 %v1571, %v869
        %v1573 = vadd.f32 %v1569, %v1572
        %s1574 = sld [smem:[#allocation7 + $0x50b]]
        %v1575 = vstv %s1574
        %v1576 = vmul.f32 %v1575, %v875
        %v1577 = vadd.f32 %v1573, %v1576
        %s1578 = sld [smem:[#allocation7 + $0x58b]]
        %v1579 = vstv %s1578
        %v1580 = vmul.f32 %v1579, %v881
        %v1581 = vadd.f32 %v1577, %v1580
        %s1582 = sld [smem:[#allocation7 + $0x60b]]
        %v1583 = vstv %s1582
        %v1584 = vmul.f32 %v1583, %v887
        %v1585 = vadd.f32 %v1581, %v1584
        %s1586 = sld [smem:[#allocation7 + $0x68b]]
        %v1587 = vstv %s1586
        %v1588 = vmul.f32 %v1587, %v893
        %v1589 = vadd.f32 %v1585, %v1588
        %s1590 = sld [smem:[#allocation8 + $0xc]]
        %s1591 = sld [smem:[#allocation7 + $0xc]]
        %v1592 = vstv %s1591
        %v1593 = vmul.f32 %v1592, %v815
        %v1594 = vstv %s1590
        %v1595 = vadd.f32 %v1594, %v1593
        %s1596 = sld [smem:[#allocation7 + $0x8c]]
        %v1597 = vstv %s1596
        %v1598 = vmul.f32 %v1597, %v821
        %v1599 = vadd.f32 %v1595, %v1598
        %s1600 = sld [smem:[#allocation7 + $0x10c]]
        %v1601 = vstv %s1600
        %v1602 = vmul.f32 %v1601, %v827
        %v1603 = vadd.f32 %v1599, %v1602
        %s1604 = sld [smem:[#allocation7 + $0x18c]]
        %v1605 = vstv %s1604
        %v1606 = vmul.f32 %v1605, %v833
        %v1607 = vadd.f32 %v1603, %v1606
        %s1608 = sld [smem:[#allocation7 + $0x20c]]
        %v1609 = vstv %s1608
        %v1610 = vmul.f32 %v1609, %v839
        %v1611 = vadd.f32 %v1607, %v1610
        %s1612 = sld [smem:[#allocation7 + $0x28c]]
        %v1613 = vstv %s1612
        %v1614 = vmul.f32 %v1613, %v845
        %v1615 = vadd.f32 %v1611, %v1614
        %s1616 = sld [smem:[#allocation7 + $0x30c]]
        %v1617 = vstv %s1616
        %v1618 = vmul.f32 %v1617, %v851
        %v1619 = vadd.f32 %v1615, %v1618
        %s1620 = sld [smem:[#allocation7 + $0x38c]]
        %v1621 = vstv %s1620
        %v1622 = vmul.f32 %v1621, %v857
        %v1623 = vadd.f32 %v1619, %v1622
        %s1624 = sld [smem:[#allocation7 + $0x40c]]
        %v1625 = vstv %s1624
        %v1626 = vmul.f32 %v1625, %v863
        %v1627 = vadd.f32 %v1623, %v1626
        %s1628 = sld [smem:[#allocation7 + $0x48c]]
        %v1629 = vstv %s1628
        %v1630 = vmul.f32 %v1629, %v869
        %v1631 = vadd.f32 %v1627, %v1630
        %s1632 = sld [smem:[#allocation7 + $0x50c]]
        %v1633 = vstv %s1632
        %v1634 = vmul.f32 %v1633, %v875
        %v1635 = vadd.f32 %v1631, %v1634
        %s1636 = sld [smem:[#allocation7 + $0x58c]]
        %v1637 = vstv %s1636
        %v1638 = vmul.f32 %v1637, %v881
        %v1639 = vadd.f32 %v1635, %v1638
        %s1640 = sld [smem:[#allocation7 + $0x60c]]
        %v1641 = vstv %s1640
        %v1642 = vmul.f32 %v1641, %v887
        %v1643 = vadd.f32 %v1639, %v1642
        %s1644 = sld [smem:[#allocation7 + $0x68c]]
        %v1645 = vstv %s1644
        %v1646 = vmul.f32 %v1645, %v893
        %v1647 = vadd.f32 %v1643, %v1646
        %s1648 = sld [smem:[#allocation8 + $0xd]]
        %s1649 = sld [smem:[#allocation7 + $0xd]]
        %v1650 = vstv %s1649
        %v1651 = vmul.f32 %v1650, %v815
        %v1652 = vstv %s1648
        %v1653 = vadd.f32 %v1652, %v1651
        %s1654 = sld [smem:[#allocation7 + $0x8d]]
        %v1655 = vstv %s1654
        %v1656 = vmul.f32 %v1655, %v821
        %v1657 = vadd.f32 %v1653, %v1656
        %s1658 = sld [smem:[#allocation7 + $0x10d]]
        %v1659 = vstv %s1658
        %v1660 = vmul.f32 %v1659, %v827
        %v1661 = vadd.f32 %v1657, %v1660
        %s1662 = sld [smem:[#allocation7 + $0x18d]]
        %v1663 = vstv %s1662
        %v1664 = vmul.f32 %v1663, %v833
        %v1665 = vadd.f32 %v1661, %v1664
        %s1666 = sld [smem:[#allocation7 + $0x20d]]
        %v1667 = vstv %s1666
        %v1668 = vmul.f32 %v1667, %v839
        %v1669 = vadd.f32 %v1665, %v1668
        %s1670 = sld [smem:[#allocation7 + $0x28d]]
        %v1671 = vstv %s1670
        %v1672 = vmul.f32 %v1671, %v845
        %v1673 = vadd.f32 %v1669, %v1672
        %s1674 = sld [smem:[#allocation7 + $0x30d]]
        %v1675 = vstv %s1674
        %v1676 = vmul.f32 %v1675, %v851
        %v1677 = vadd.f32 %v1673, %v1676
        %s1678 = sld [smem:[#allocation7 + $0x38d]]
        %v1679 = vstv %s1678
        %v1680 = vmul.f32 %v1679, %v857
        %v1681 = vadd.f32 %v1677, %v1680
        %s1682 = sld [smem:[#allocation7 + $0x40d]]
        %v1683 = vstv %s1682
        %v1684 = vmul.f32 %v1683, %v863
        %v1685 = vadd.f32 %v1681, %v1684
        %s1686 = sld [smem:[#allocation7 + $0x48d]]
        %v1687 = vstv %s1686
        %v1688 = vmul.f32 %v1687, %v869
        %v1689 = vadd.f32 %v1685, %v1688
        %s1690 = sld [smem:[#allocation7 + $0x50d]]
        %v1691 = vstv %s1690
        %v1692 = vmul.f32 %v1691, %v875
        %v1693 = vadd.f32 %v1689, %v1692
        %s1694 = sld [smem:[#allocation7 + $0x58d]]
        %v1695 = vstv %s1694
        %v1696 = vmul.f32 %v1695, %v881
        %v1697 = vadd.f32 %v1693, %v1696
        %s1698 = sld [smem:[#allocation7 + $0x60d]]
        %v1699 = vstv %s1698
        %v1700 = vmul.f32 %v1699, %v887
        %v1701 = vadd.f32 %v1697, %v1700
        %s1702 = sld [smem:[#allocation7 + $0x68d]]
        %v1703 = vstv %s1702
        %v1704 = vmul.f32 %v1703, %v893
        %v1705 = vadd.f32 %v1701, %v1704
        %vm1706 = vcmp.gt.f32.partialorder %v951, 0.0
        %v1707 = vmin.f32 %v951, 0.0
        %v1708 = vmul.f32 %v1707, 1.442695
        %v1709 = vpow.pop %v1708
        %v1710 = vsub.f32 %v1709, 1.0
        %v1711 = vsel %vm1706, %v951, %v1710
        %vm1712 = vcmp.gt.f32.partialorder %v1009, 0.0
        %v1713 = vmin.f32 %v1009, 0.0
        %v1714 = vmul.f32 %v1713, 1.442695
        %v1715 = vpow.pop %v1714
        %v1716 = vsub.f32 %v1715, 1.0
        %v1717 = vsel %vm1712, %v1009, %v1716
        %vm1718 = vcmp.gt.f32.partialorder %v1067, 0.0
        %v1719 = vmin.f32 %v1067, 0.0
        %v1720 = vmul.f32 %v1719, 1.442695
        %v1721 = vpow.pop %v1720
        %v1722 = vsub.f32 %v1721, 1.0
        %v1723 = vsel %vm1718, %v1067, %v1722
        %vm1724 = vcmp.gt.f32.partialorder %v1125, 0.0
        %v1725 = vmin.f32 %v1125, 0.0
        %v1726 = vmul.f32 %v1725, 1.442695
        %v1727 = vpow.pop %v1726
        %v1728 = vsub.f32 %v1727, 1.0
        %v1729 = vsel %vm1724, %v1125, %v1728
        %vm1730 = vcmp.gt.f32.partialorder %v1183, 0.0
        %v1731 = vmin.f32 %v1183, 0.0
        %v1732 = vmul.f32 %v1731, 1.442695
        %v1733 = vpow.pop %v1732
        %v1734 = vsub.f32 %v1733, 1.0
        %v1735 = vsel %vm1730, %v1183, %v1734
        %vm1736 = vcmp.gt.f32.partialorder %v1241, 0.0
        %v1737 = vmin.f32 %v1241, 0.0
        %v1738 = vmul.f32 %v1737, 1.442695
        %v1739 = vpow.pop %v1738
        %v1740 = vsub.f32 %v1739, 1.0
        %v1741 = vsel %vm1736, %v1241, %v1740
        %vm1742 = vcmp.gt.f32.partialorder %v1299, 0.0
        %v1743 = vmin.f32 %v1299, 0.0
        %v1744 = vmul.f32 %v1743, 1.442695
        %v1745 = vpow.pop %v1744
        %v1746 = vsub.f32 %v1745, 1.0
        %v1747 = vsel %vm1742, %v1299, %v1746
        %vm1748 = vcmp.gt.f32.partialorder %v1357, 0.0
        %v1749 = vmin.f32 %v1357, 0.0
        %v1750 = vmul.f32 %v1749, 1.442695
        %v1751 = vpow.pop %v1750
        %v1752 = vsub.f32 %v1751, 1.0
        %v1753 = vsel %vm1748, %v1357, %v1752
        %vm1754 = vcmp.gt.f32.partialorder %v1415, 0.0
        %v1755 = vmin.f32 %v1415, 0.0
        %v1756 = vmul.f32 %v1755, 1.442695
        %v1757 = vpow.pop %v1756
        %v1758 = vsub.f32 %v1757, 1.0
        %v1759 = vsel %vm1754, %v1415, %v1758
        %vm1760 = vcmp.gt.f32.partialorder %v1473, 0.0
        %v1761 = vmin.f32 %v1473, 0.0
        %v1762 = vmul.f32 %v1761, 1.442695
        %v1763 = vpow.pop %v1762
        %v1764 = vsub.f32 %v1763, 1.0
        %v1765 = vsel %vm1760, %v1473, %v1764
        %vm1766 = vcmp.gt.f32.partialorder %v1531, 0.0
        %v1767 = vmin.f32 %v1531, 0.0
        %v1768 = vmul.f32 %v1767, 1.442695
        %v1769 = vpow.pop %v1768
        %v1770 = vsub.f32 %v1769, 1.0
        %v1771 = vsel %vm1766, %v1531, %v1770
        %vm1772 = vcmp.gt.f32.partialorder %v1589, 0.0
        %v1773 = vmin.f32 %v1589, 0.0
        %v1774 = vmul.f32 %v1773, 1.442695
        %v1775 = vpow.pop %v1774
        %v1776 = vsub.f32 %v1775, 1.0
        %v1777 = vsel %vm1772, %v1589, %v1776
        %vm1778 = vcmp.gt.f32.partialorder %v1647, 0.0
        %v1779 = vmin.f32 %v1647, 0.0
        %v1780 = vmul.f32 %v1779, 1.442695
        %v1781 = vpow.pop %v1780
        %v1782 = vsub.f32 %v1781, 1.0
        %v1783 = vsel %vm1778, %v1647, %v1782
        %vm1784 = vcmp.gt.f32.partialorder %v1705, 0.0
        %v1785 = vmin.f32 %v1705, 0.0
        %v1786 = vmul.f32 %v1785, 1.442695
        %v1787 = vpow.pop %v1786
        %v1788 = vsub.f32 %v1787, 1.0
        %v1789 = vsel %vm1784, %v1705, %v1788
        %s1790 = sld [smem:[#allocation2]]
        %s1791 = sld [smem:[#allocation10]]
        %v1792 = vstv %s1791
        %v1793 = vmul.f32 %v1792, %v1711
        %v1794 = vstv %s1790
        %v1795 = vadd.f32 %v1794, %v1793
        %s1796 = sld [smem:[#allocation10 + $0x80]]
        %v1797 = vstv %s1796
        %v1798 = vmul.f32 %v1797, %v1717
        %v1799 = vadd.f32 %v1795, %v1798
        %s1800 = sld [smem:[#allocation10 + $0x100]]
        %v1801 = vstv %s1800
        %v1802 = vmul.f32 %v1801, %v1723
        %v1803 = vadd.f32 %v1799, %v1802
        %s1804 = sld [smem:[#allocation10 + $0x180]]
        %v1805 = vstv %s1804
        %v1806 = vmul.f32 %v1805, %v1729
        %v1807 = vadd.f32 %v1803, %v1806
        %s1808 = sld [smem:[#allocation10 + $0x200]]
        %v1809 = vstv %s1808
        %v1810 = vmul.f32 %v1809, %v1735
        %v1811 = vadd.f32 %v1807, %v1810
        %s1812 = sld [smem:[#allocation10 + $0x280]]
        %v1813 = vstv %s1812
        %v1814 = vmul.f32 %v1813, %v1741
        %v1815 = vadd.f32 %v1811, %v1814
        %s1816 = sld [smem:[#allocation10 + $0x300]]
        %v1817 = vstv %s1816
        %v1818 = vmul.f32 %v1817, %v1747
        %v1819 = vadd.f32 %v1815, %v1818
        %s1820 = sld [smem:[#allocation10 + $0x380]]
        %v1821 = vstv %s1820
        %v1822 = vmul.f32 %v1821, %v1753
        %v1823 = vadd.f32 %v1819, %v1822
        %s1824 = sld [smem:[#allocation10 + $0x400]]
        %v1825 = vstv %s1824
        %v1826 = vmul.f32 %v1825, %v1759
        %v1827 = vadd.f32 %v1823, %v1826
        %s1828 = sld [smem:[#allocation10 + $0x480]]
        %v1829 = vstv %s1828
        %v1830 = vmul.f32 %v1829, %v1765
        %v1831 = vadd.f32 %v1827, %v1830
        %s1832 = sld [smem:[#allocation10 + $0x500]]
        %v1833 = vstv %s1832
        %v1834 = vmul.f32 %v1833, %v1771
        %v1835 = vadd.f32 %v1831, %v1834
        %s1836 = sld [smem:[#allocation10 + $0x580]]
        %v1837 = vstv %s1836
        %v1838 = vmul.f32 %v1837, %v1777
        %v1839 = vadd.f32 %v1835, %v1838
        %s1840 = sld [smem:[#allocation10 + $0x600]]
        %v1841 = vstv %s1840
        %v1842 = vmul.f32 %v1841, %v1783
        %v1843 = vadd.f32 %v1839, %v1842
        %s1844 = sld [smem:[#allocation10 + $0x680]]
        %v1845 = vstv %s1844
        %v1846 = vmul.f32 %v1845, %v1789
        %v1847 = vadd.f32 %v1843, %v1846
        %vm1848 = vcmask 64512
        %1849 = vst.msk [vmem:[%s376] sm:$0xff] %vm1848, %v1847
        %p1850 = scmp.lt.s32.totalorder %s26, 1
        %s1851 = scalar_select %p1850, %s26, 1
        %p1852 = scmp.lt.s32.totalorder %s27, 0
        %s1853 = scalar_select %p1852, %s27, 0
        %s1854 = sadd.s32 %s1853, %s1851
        %s1855 = smul.addr %s1854, 8
        %s1856 = scalar_lea.vmem %s7, %s1855
        // Predicated region
        $region69: #{baseline_network_forward.27} parent=47 // pred_check
          %p1857 = pneg %p208
        $region70: #{baseline_network_forward.27} parent=47 // pred_check_branch
          %1859 = sbr.rel (%p1857) target = $region72
        $region71: #{baseline_network_forward.27} parent=47 // pred_region
          _
        $region72: #{baseline_network_forward.27} parent=47 // pred_fallthru
          _
      $region48: #{baseline_network_forward.27} parent=5 // pred_fallthru
        _
      %p1860 = scmp.le.s32.totalorder 2, %s17
      // Predicated region
      $region73: #{baseline_network_forward.27} parent=5 // pred_check
        %p1861 = pneg %p1860
      $region74: #{baseline_network_forward.27} parent=5 // pred_check_branch
        %1863 = sbr.rel (%p1861) target = $region76
      $region75: #{baseline_network_forward.27} parent=5 // pred_region
        %s1864 = ssub.s32 %s17, 2
        // Predicated region
        $region77: #{baseline_network_forward.27} parent=75 // pred_check
          %p1865 = pneg %p214
        $region78: #{baseline_network_forward.27} parent=75 // pred_check_branch
          %1867 = sbr.rel (%p1865) target = $region80
        $region79: #{baseline_network_forward.27} parent=75 // pred_region
          %p1868 = scmp.lt.s32.totalorder %s28, 1
          %s1869 = scalar_select %p1868, %s28, 1
          %p1870 = scmp.lt.s32.totalorder %s29, 0
          %s1871 = scalar_select %p1870, %s29, 0
          %s1872 = sadd.s32 %s1871, %s1869
          %s1873 = smul.addr %s1872, 8
          %s1874 = scalar_lea.vmem %s7, %s1873
        $region80: #{baseline_network_forward.27} parent=75 // pred_fallthru
          _
      $region76: #{baseline_network_forward.27} parent=5 // pred_fallthru
        _
    $region6: #{baseline_network_forward.27} parent=1 // loop_footer
      %s21 = sadd.s32 1, %s17
    $region7: #{baseline_network_forward.27} parent=1 // loop_footer_branch
      %16 = sbr.rel target = $region3
    $region8: #{baseline_network_forward.27} parent=1 // loop_exit
      _
    %1875 = vsyncpa [#allocation4], 1
    %s1876 = scalar_lea.sflag [#allocation4], 1
    %1877 = vsyncpa %s1876, 1
    %1878 = vsyncpa [#allocation6], 1
    %1879 = vsyncpa [#allocation9], 1

</llo_original>
